<compile_context>
chip_gen: v7x
topology: tpu7x:2x2x1
jax: 0.10.0
libtpu: 0.0.40
codegen_flags: <defaults>
</compile_context>

<pallas_src>
import functools
import numpy as np
import jax
import jax.numpy as jnp
from jax.experimental import pallas as pl
from jax.experimental.pallas import tpu as pltpu

# ----------------------- synthetic config -----------------------
B = 2
IMG_C, IMG_HW = 3, 32
VAE_F, LATENT_C = 4, 8          # VAE downsample factor / latent channels (stand-in for 8x / 16ch)
PATCH = 2                       # transformer patch size
D = 64                          # transformer hidden dim (stand-in for 1536)
HEADS, HEAD_DIM = 4, 16
FF_MULT = 4
CTX_DIM, CTX_LEN = 128, 1       # stand-in for the (B, 1, 4096) zero encoder_hidden_states
POOLED_DIM = 64                 # stand-in for the (B, 2048) zero pooled_projections
TIME_SIN_DIM = 32               # stand-in for the 256-dim sinusoid
NUM_LAYERS = 2                  # last layer is context_pre_only (as in SD3)
TOTAL_TIME_STEPS = 50
TIMESTEP = 10
EPS = 1e-6
LAT_HW = IMG_HW // VAE_F
S = (LAT_HW // PATCH) ** 2      # transformer tokens per image (16)


def _vmem():
    return pl.BlockSpec(memory_space=pltpu.MemorySpace.VMEM)


# ----------------------- small VAE patchify-conv kernel -----------------------
def _linear_kernel(x_ref, w_ref, b_ref, o_ref):
    # bf16 MXU matmul, f32 accumulation + f32 bias.
    o_ref[...] = jnp.dot(x_ref[...], w_ref[...], preferred_element_type=jnp.float32) + b_ref[...]


def pl_linear(x_bf16, wb):
    w, b = wb                                   # w: (K, N) bf16, b: (1, N) f32
    M, _ = x_bf16.shape
    N = w.shape[1]
    return pl.pallas_call(
        _linear_kernel,
        out_shape=jax.ShapeDtypeStruct((M, N), jnp.float32),
        in_specs=[_vmem()] * 3,
        out_specs=_vmem(),
    )(x_bf16, w, b)


# ----------------------- fully-fused SD3 transformer kernel -----------------------
def _sd3_transformer_kernel(patch_ref, pew_ref, peb_ref, pos_ref, enc_ref, temb_ref, *refs,
                            pre_only_flags):
    f32, bf16 = jnp.float32, jnp.bfloat16
    out_ref = refs[-1]
    w = refs[:-1]

    # Patch embedding + positional embedding fused in (hidden never leaves VMEM afterwards).
    hidden = (jnp.dot(patch_ref[...], pew_ref[...], preferred_element_type=f32)
              + peb_ref[...] + pos_ref[...])                      # (B*S, D) f32
    encoder = enc_ref[...]                                        # (B*Lc, D) f32
    # temb is batch-uniform (pooled_projections == 0, scalar timestep) -> (1, D) broadcast.
    silu_t = jax.nn.silu(temb_ref[...]).astype(bf16)              # single cast, reused everywhere

    def ln(x):
        # LayerNorm(elementwise_affine=False, eps=1e-6)
        mean = jnp.mean(x, axis=-1, keepdims=True)
        var = jnp.mean(jnp.square(x - mean), axis=-1, keepdims=True)
        return (x - mean) * jax.lax.rsqrt(var + EPS)

    def linear(x_bf16, w_ref, b_ref):
        return jnp.dot(x_bf16, w_ref[...], preferred_element_type=f32) + b_ref[...]

    inv_sqrt_d = 1.0 / float(np.sqrt(HEAD_DIM))                   # SDPA default scale
    idx = 0

    def take():
        nonlocal idx
        pair = (w[idx], w[idx + 1])
        idx += 2
        return pair

    captures = []                                                 # attn/mlp/block per layer

    for pre_only in pre_only_flags:
        n1_w, n1_b = take()
        n1c_w, n1c_b = take()
        qkvh_w, qkvh_b = take()
        qkvc_w, qkvc_b = take()
        out_w, out_b = take()
        if not pre_only:
            addout_w, addout_b = take()
        ff1_w, ff1_b = take()
        ff2_w, ff2_b = take()
        if not pre_only:
            ffc1_w, ffc1_b = take()
            ffc2_w, ffc2_b = take()

        # AdaLayerNormZero / AdaLayerNormContinuous modulation projections.
        emb = linear(silu_t, n1_w, n1_b)                          # (1, 6D)
        cemb = linear(silu_t, n1c_w, n1c_b)                       # (1, 6D) or (1, 2D)

        def chunk(e, i):
            return e[:, i * D:(i + 1) * D]

        shift_msa, scale_msa, gate_msa = chunk(emb, 0), chunk(emb, 1), chunk(emb, 2)
        shift_mlp, scale_mlp, gate_mlp = chunk(emb, 3), chunk(emb, 4), chunk(emb, 5)
        if pre_only:
            c_scale, c_shift = chunk(cemb, 0), chunk(cemb, 1)     # Continuous: (scale, shift)
        else:
            c_shift_msa, c_scale_msa, c_gate_msa = chunk(cemb, 0), chunk(cemb, 1), chunk(cemb, 2)
            c_shift_mlp, c_scale_mlp, c_gate_mlp = chunk(cemb, 3), chunk(cemb, 4), chunk(cemb, 5)
            c_scale, c_shift = c_scale_msa, c_shift_msa

        norm_hidden = (ln(hidden) * (1.0 + scale_msa) + shift_msa).astype(bf16)
        norm_encoder = (ln(encoder) * (1.0 + c_scale) + c_shift).astype(bf16)

        # Fused lane-dense QKV projections (D -> 3D), bf16 operands / f32 accumulation.
        qkv_h = linear(norm_hidden, qkvh_w, qkvh_b).reshape(B, S, 3 * D)
        qkv_c = linear(norm_encoder, qkvc_w, qkvc_b).reshape(B, CTX_LEN, 3 * D)

        # Joint attention: ONE pass over the concatenated query set (sample + context).
        k_all = jnp.concatenate([qkv_h[:, :, D:2 * D], qkv_c[:, :, D:2 * D]], axis=1).astype(bf16)
        v_all = jnp.concatenate([qkv_h[:, :, 2 * D:], qkv_c[:, :, 2 * D:]], axis=1).astype(bf16)
        if pre_only:
            q_all = qkv_h[:, :, 0:D]                              # context attn output is discarded
        else:
            q_all = jnp.concatenate([qkv_h[:, :, 0:D], qkv_c[:, :, 0:D]], axis=1)
        q_all = (q_all * inv_sqrt_d).astype(bf16)                 # cast once; fold SDPA scale into q

        head_outs = []
        for h in range(HEADS):
            sl = slice(h * HEAD_DIM, (h + 1) * HEAD_DIM)
            s = jnp.einsum('bqd,bkd->bqk', q_all[:, :, sl], k_all[:, :, sl],
                           preferred_element_type=f32)            # (B, rows, S_tot)
            m = jnp.max(s, axis=-1, keepdims=True)
            p = jnp.exp(s - m)
            p = p * pl.reciprocal(jnp.sum(p, axis=-1, keepdims=True), approx=True)
            head_outs.append(jnp.einsum('bqk,bkd->bqd', p.astype(bf16), v_all[:, :, sl],
                                        preferred_element_type=f32))
        attn_all = jnp.concatenate(head_outs, axis=-1)            # (B, rows, D) f32

        # to_out projection with fused gate + residual epilogue.
        attn_h = attn_all[:, :S, :].reshape(B * S, D).astype(bf16)
        attn_output = gate_msa * linear(attn_h, out_w, out_b)     # captured as self.attn_output
        hidden = hidden + attn_output

        # norm2 + MLP modulation + gelu-approximate FeedForward + gate + residual.
        norm_hidden2 = (ln(hidden) * (1.0 + scale_mlp) + shift_mlp).astype(bf16)
        h1 = jax.nn.gelu(linear(norm_hidden2, ff1_w, ff1_b), approximate=True).astype(bf16)
        ff_output = gate_mlp * linear(h1, ff2_w, ff2_b)           # captured as self.mlp_output
        hidden = hidden + ff_output                               # captured as self.block_output

        captures += [attn_output, ff_output, hidden]

        if not pre_only:
            attn_c = attn_all[:, S:, :].reshape(B * CTX_LEN, D).astype(bf16)
            encoder = encoder + c_gate_msa * linear(attn_c, addout_w, addout_b)
            norm_encoder2 = (ln(encoder) * (1.0 + c_scale_mlp) + c_shift_mlp).astype(bf16)
            hc = jax.nn.gelu(linear(norm_encoder2, ffc1_w, ffc1_b), approximate=True).astype(bf16)
            encoder = encoder + c_gate_mlp * linear(hc, ffc2_w, ffc2_b)

    # Single packed, lane-dense store: (B*S, 6*D = 3*128) bf16 -> unmasked vst, halved HBM bytes.
    out_ref[...] = jnp.concatenate(captures, axis=-1).astype(out_ref.dtype)


def pl_sd3_transformer(params, patches_bf16, enc0, temb):
    pre_only_flags = tuple(i == NUM_LAYERS - 1 for i in range(NUM_LAYERS))

    w_args = []
    for i, blk in enumerate(params['blocks']):
        pre_only = pre_only_flags[i]
        pairs = [blk['norm1'], blk['norm1_context'], blk['qkv'], blk['qkv_ctx'], blk['to_out']]
        if not pre_only:
            pairs.append(blk['to_add_out'])
        pairs += [blk['ff1'], blk['ff2']]
        if not pre_only:
            pairs += [blk['ff_c1'], blk['ff_c2']]
        for wb in pairs:
            w_args.extend(wb)

    pe_w, pe_b = params['patch_embed']
    pos_tiled = jnp.tile(params['pos_embed'], (B, 1))             # (B*S, D) f32
    args = (patches_bf16, pe_w, pe_b, pos_tiled, enc0, temb, *w_args)

    # Rough cost hint so XLA schedules the surrounding glue sensibly.
    s_tot = S + CTX_LEN
    d_ff = FF_MULT * D
    flops_blk = (2 * B * s_tot * D * 3 * D
                 + 4 * B * HEADS * s_tot * s_tot * HEAD_DIM
                 + 2 * B * s_tot * D * D
                 + 4 * B * s_tot * D * d_ff)
    flops = NUM_LAYERS * flops_blk + 2 * B * S * PATCH * PATCH * LATENT_C * D
    trans = NUM_LAYERS * B * (HEADS * s_tot * s_tot + s_tot * d_ff + 2 * D)
    bytes_acc = (sum(int(np.prod(a.shape)) * a.dtype.itemsize for a in args)
                 + B * S * 3 * NUM_LAYERS * D * 2)

    return pl.pallas_call(
        functools.partial(_sd3_transformer_kernel, pre_only_flags=pre_only_flags),
        out_shape=jax.ShapeDtypeStruct((B * S, 3 * NUM_LAYERS * D), jnp.bfloat16),
        in_specs=[_vmem()] * len(args),
        out_specs=_vmem(),
        cost_estimate=pl.CostEstimate(flops=int(flops), transcendentals=int(trans),
                                      bytes_accessed=int(bytes_acc)),
    )(*args)


# ----------------------- params -----------------------
def _dense(key, fin, fout):
    kw, kb = jax.random.split(key)
    w = (0.02 * jax.random.normal(kw, (fin, fout), jnp.float32)).astype(jnp.bfloat16)  # bf16 MXU operand
    b = (0.02 * jax.random.normal(kb, (fout,), jnp.float32)).reshape(1, fout)          # f32 bias
    return w, b


def init_params(key):
    keys = iter(jax.random.split(key, 64))
    p = {}
    # TODO(synk): real SD3 VAE is a deep conv/resnet encoder; replaced by one patchify conv.
    p['vae'] = _dense(next(keys), VAE_F * VAE_F * IMG_C, 2 * LATENT_C)   # mean + logvar
    p['patch_embed'] = _dense(next(keys), PATCH * PATCH * LATENT_C, D)
    p['pos_embed'] = 0.02 * jax.random.normal(next(keys), (S, D), jnp.float32)
    p['time_mlp1'] = _dense(next(keys), TIME_SIN_DIM, D)
    p['time_mlp2'] = _dense(next(keys), D, D)
    p['text_mlp1'] = _dense(next(keys), POOLED_DIM, D)
    p['text_mlp2'] = _dense(next(keys), D, D)
    p['context_embedder'] = _dense(next(keys), CTX_DIM, D)
    blocks = []
    for i in range(NUM_LAYERS):
        pre_only = (i == NUM_LAYERS - 1)
        blk = {
            'norm1': _dense(next(keys), D, 6 * D),                                # AdaLayerNormZero
            'norm1_context': _dense(next(keys), D, (2 if pre_only else 6) * D),   # Continuous / Zero
            'qkv': _dense(next(keys), D, 3 * D),        # fused to_q | to_k | to_v
            'qkv_ctx': _dense(next(keys), D, 3 * D),    # fused add_q | add_k | add_v
            'to_out': _dense(next(keys), D, D),
            'ff1': _dense(next(keys), D, FF_MULT * D),
            'ff2': _dense(next(keys), FF_MULT * D, D),
        }
        if not pre_only:
            blk['to_add_out'] = _dense(next(keys), D, D)
            blk['ff_c1'] = _dense(next(keys), D, FF_MULT * D)
            blk['ff_c2'] = _dense(next(keys), FF_MULT * D, D)
        blocks.append(blk)
    p['blocks'] = blocks
    return p


# ----------------------- glue -----------------------
def patchify(x, p):
    # x: (B, H, W, C) NHWC -> (B, (H//p)*(W//p), p*p*C)
    Bb, H, W, C = x.shape
    x = x.reshape(Bb, H // p, p, W // p, p, C)
    x = x.transpose(0, 1, 3, 2, 4, 5)
    return x.reshape(Bb, (H // p) * (W // p), p * p * C)


def expand_hw(x):
    hw = int(np.sqrt(x.shape[1]))
    return x.reshape(x.shape[0], hw, hw, x.shape[2])


def sinusoidal_embedding(t, dim):
    # diffusers Timesteps(flip_sin_to_cos=True, downscale_freq_shift=0) -> [cos, sin]
    half = dim // 2
    freqs = jnp.exp(-jnp.log(10000.0) * jnp.arange(half, dtype=jnp.float32) / half)
    args = t[:, None] * freqs[None, :]
    return jnp.concatenate([jnp.cos(args), jnp.sin(args)], axis=-1)


def time_text_embed(params, t_proj):
    # Tiny (1, D)-sized glue; the pooled-text branch's zero-input matmul is folded to its biases.
    f32 = jnp.float32
    w1, b1 = params['time_mlp1']
    w2, b2 = params['time_mlp2']
    temb = jax.nn.silu(t_proj @ w1.astype(f32) + b1) @ w2.astype(f32) + b2
    w3, b3 = params['text_mlp1']
    w4, b4 = params['text_mlp2']
    pemb = jax.nn.silu(b3) @ w4.astype(f32) + b4       # pooled_projections == 0 -> bias only
    del w3
    return temb + pemb                                 # (1, D), identical for every batch element


def stable_diffusion3_forward(params, image, key, timestep=TIMESTEP):
    """image: (B, C, H, W) NCHW float32 — matches the PyTorch module input convention."""
    Bb = image.shape[0]
    k_noise, k_vae = jax.random.split(key)

    # --- DDPMScheduler.add_noise(image, noise, [timestep]) with linear beta schedule ---
    betas = jnp.linspace(1e-4, 0.02, TOTAL_TIME_STEPS, dtype=jnp.float32)
    alphas_cumprod = jnp.cumprod(1.0 - betas)
    a = alphas_cumprod[timestep]
    noise = jax.random.normal(k_noise, image.shape, jnp.float32)
    noisy = jnp.sqrt(a) * image + jnp.sqrt(1.0 - a) * noise

    # --- VAE encode (synthetic patchify conv, bf16 operands) + latent_dist.sample() ---
    x = jnp.transpose(noisy, (0, 2, 3, 1))                        # NCHW -> NHWC
    vae_in = patchify(x, VAE_F).reshape(Bb * LAT_HW * LAT_HW,
                                        VAE_F * VAE_F * IMG_C).astype(jnp.bfloat16)
    moments = pl_linear(vae_in, params['vae']).reshape(Bb, LAT_HW * LAT_HW, 2 * LATENT_C)
    mean, logvar = jnp.split(moments, 2, axis=-1)
    logvar = jnp.clip(logvar, -30.0, 20.0)
    eps_n = jax.random.normal(k_vae, mean.shape, jnp.float32)
    latent = (mean + jnp.exp(0.5 * logvar) * eps_n).reshape(Bb, LAT_HW, LAT_HW, LATENT_C)

    # --- SD3 transformer inputs (patch-embed projection itself is fused into the kernel) ---
    patches = patchify(latent, PATCH).reshape(Bb * S, PATCH * PATCH * LATENT_C).astype(jnp.bfloat16)
    t_val = jnp.array([TOTAL_TIME_STEPS - 1 - timestep], dtype=jnp.float32)  # scheduler.timesteps[t]
    temb = time_text_embed(params, sinusoidal_embedding(t_val, TIME_SIN_DIM))
    ctx_b = params['context_embedder'][1]                         # encoder_hidden_states == 0
    enc0 = jnp.broadcast_to(ctx_b, (Bb * CTX_LEN, D)).astype(jnp.float32)

    # --- single fused transformer kernel (both joint blocks) ---
    packed = pl_sd3_transformer(params, patches, enc0, temb)      # (B*S, 6*D) bf16, lane-dense

    # --- unpack captures (return_flat_dict=True semantics) ---
    out_dict = {}
    for i in range(NUM_LAYERS):
        for j, name in enumerate(('attn', 'mlp', 'block')):
            feat = packed[:, (3 * i + j) * D:(3 * i + j + 1) * D].reshape(Bb, S, D)
            out_dict[f'{name}_{i}'] = [expand_hw(feat)]
    return out_dict


if __name__ == "__main__":
    key = jax.random.PRNGKey(0)
    k_img, k_params, k_fwd = jax.random.split(key, 3)
    image = jax.random.normal(k_img, (B, IMG_C, IMG_HW, IMG_HW), jnp.float32)
    params = init_params(k_params)

    forward = jax.jit(stable_diffusion3_forward, static_argnames=('timestep',))
    out = forward(params, image, k_fwd)
    out = jax.tree_util.tree_map(jax.block_until_ready, out)

    # same sanity check as the PyTorch module: features must be (B, H, W, C) with H == W
    shape = out['attn_0'][0].shape
    assert len(shape) == 4 and shape[1] == shape[2], shape
    assert set(out.keys()) == {f'{k}_{i}' for k in ('attn', 'mlp', 'block') for i in range(NUM_LAYERS)}
    print("KERNEL_OK")
</pallas_src>

<mosaic_0001>
module attributes {stable_mosaic.version = 11 : i64} {
  func.func @_linear_kernel(%arg0: memref<128x48xbf16, #tpu.memory_space<vmem>>, %arg1: memref<48x16xbf16, #tpu.memory_space<vmem>>, %arg2: memref<1x16xf32, #tpu.memory_space<vmem>>, %arg3: memref<128x16xf32, #tpu.memory_space<vmem>>) attributes {dimension_semantics = [], scalar_prefetch = 0 : i64, scratch_operands = 0 : i64, tpu.core_type = #tpu.core_type<tc>} {
    %c0 = arith.constant 0 : index
    %c0_0 = arith.constant 0 : index
    %0 = vector.load %arg0[%c0, %c0_0] : memref<128x48xbf16, #tpu.memory_space<vmem>>, vector<128x48xbf16>
    %c0_1 = arith.constant 0 : index
    %c0_2 = arith.constant 0 : index
    %1 = vector.load %arg1[%c0_1, %c0_2] : memref<48x16xbf16, #tpu.memory_space<vmem>>, vector<48x16xbf16>
    %cst = arith.constant dense<0.000000e+00> : vector<128x16xf32>
    %2 = tpu.matmul %0, %1, %cst {dimension_numbers = #tpu.dot_dimension_numbers<[1], [0], [0], [1], [0, 0, 1, 1], [], []>} : vector<128x48xbf16>, vector<48x16xbf16>, vector<128x16xf32> -> vector<128x16xf32>
    %c0_3 = arith.constant 0 : index
    %c0_4 = arith.constant 0 : index
    %3 = vector.load %arg2[%c0_3, %c0_4] : memref<1x16xf32, #tpu.memory_space<vmem>>, vector<1x16xf32>
    %4 = vector.broadcast %3 : vector<1x16xf32> to vector<128x16xf32>
    %5 = arith.addf %2, %4 : vector<128x16xf32>
    %c0_5 = arith.constant 0 : index
    %c0_6 = arith.constant 0 : index
    %6 = vector.load %arg3[%c0_5, %c0_6] : memref<128x16xf32, #tpu.memory_space<vmem>>, vector<128x16xf32>
    tpu.vector_store %arg3[%c0_5, %c0_6], %5 {strides = array<i32>} : memref<128x16xf32, #tpu.memory_space<vmem>>, vector<128x16xf32>,
    return
  }
}

module attributes {stable_mosaic.version = 11 : i64} {
  func.func @_sd3_transformer_kernel(%arg0: memref<32x32xbf16, #tpu.memory_space<vmem>>, %arg1: memref<32x64xbf16, #tpu.memory_space<vmem>>, %arg2: memref<1x64xf32, #tpu.memory_space<vmem>>, %arg3: memref<32x64xf32, #tpu.memory_space<vmem>>, %arg4: memref<2x64xf32, #tpu.memory_space<vmem>>, %arg5: memref<1x64xf32, #tpu.memory_space<vmem>>, %arg6: memref<64x384xbf16, #tpu.memory_space<vmem>>, %arg7: memref<1x384xf32, #tpu.memory_space<vmem>>, %arg8: memref<64x384xbf16, #tpu.memory_space<vmem>>, %arg9: memref<1x384xf32, #tpu.memory_space<vmem>>, %arg10: memref<64x192xbf16, #tpu.memory_space<vmem>>, %arg11: memref<1x192xf32, #tpu.memory_space<vmem>>, %arg12: memref<64x192xbf16, #tpu.memory_space<vmem>>, %arg13: memref<1x192xf32, #tpu.memory_space<vmem>>, %arg14: memref<64x64xbf16, #tpu.memory_space<vmem>>, %arg15: memref<1x64xf32, #tpu.memory_space<vmem>>, %arg16: memref<64x64xbf16, #tpu.memory_space<vmem>>, %arg17: memref<1x64xf32, #tpu.memory_space<vmem>>, %arg18: memref<64x256xbf16, #tpu.memory_space<vmem>>, %arg19: memref<1x256xf32, #tpu.memory_space<vmem>>, %arg20: memref<256x64xbf16, #tpu.memory_space<vmem>>, %arg21: memref<1x64xf32, #tpu.memory_space<vmem>>, %arg22: memref<64x256xbf16, #tpu.memory_space<vmem>>, %arg23: memref<1x256xf32, #tpu.memory_space<vmem>>, %arg24: memref<256x64xbf16, #tpu.memory_space<vmem>>, %arg25: memref<1x64xf32, #tpu.memory_space<vmem>>, %arg26: memref<64x384xbf16, #tpu.memory_space<vmem>>, %arg27: memref<1x384xf32, #tpu.memory_space<vmem>>, %arg28: memref<64x128xbf16, #tpu.memory_space<vmem>>, %arg29: memref<1x128xf32, #tpu.memory_space<vmem>>, %arg30: memref<64x192xbf16, #tpu.memory_space<vmem>>, %arg31: memref<1x192xf32, #tpu.memory_space<vmem>>, %arg32: memref<64x192xbf16, #tpu.memory_space<vmem>>, %arg33: memref<1x192xf32, #tpu.memory_space<vmem>>, %arg34: memref<64x64xbf16, #tpu.memory_space<vmem>>, %arg35: memref<1x64xf32, #tpu.memory_space<vmem>>, %arg36: memref<64x256xbf16, #tpu.memory_space<vmem>>, %arg37: memref<1x256xf32, #tpu.memory_space<vmem>>, %arg38: memref<256x64xbf16, #tpu.memory_space<vmem>>, %arg39: memref<1x64xf32, #tpu.memory_space<vmem>>, %arg40: memref<32x384xbf16, #tpu.memory_space<vmem>>) attributes {dimension_semantics = [], scalar_prefetch = 0 : i64, scratch_operands = 0 : i64, tpu.core_type = #tpu.core_type<tc>} {
    %c0 = arith.constant 0 : index
    %c0_0 = arith.constant 0 : index
    %0 = vector.load %arg0[%c0, %c0_0] : memref<32x32xbf16, #tpu.memory_space<vmem>>, vector<32x32xbf16>
    %c0_1 = arith.constant 0 : index
    %c0_2 = arith.constant 0 : index
    %1 = vector.load %arg1[%c0_1, %c0_2] : memref<32x64xbf16, #tpu.memory_space<vmem>>, vector<32x64xbf16>
    %cst = arith.constant dense<0.000000e+00> : vector<32x64xf32>
    %2 = tpu.matmul %0, %1, %cst {dimension_numbers = #tpu.dot_dimension_numbers<[1], [0], [0], [1], [0, 0, 1, 1], [], []>} : vector<32x32xbf16>, vector<32x64xbf16>, vector<32x64xf32> -> vector<32x64xf32>
    %c0_3 = arith.constant 0 : index
    %c0_4 = arith.constant 0 : index
    %3 = vector.load %arg2[%c0_3, %c0_4] : memref<1x64xf32, #tpu.memory_space<vmem>>, vector<1x64xf32>
    %4 = vector.broadcast %3 : vector<1x64xf32> to vector<32x64xf32>
    %5 = arith.addf %2, %4 : vector<32x64xf32>
    %c0_5 = arith.constant 0 : index
    %c0_6 = arith.constant 0 : index
    %6 = vector.load %arg3[%c0_5, %c0_6] : memref<32x64xf32, #tpu.memory_space<vmem>>, vector<32x64xf32>
    %7 = arith.addf %5, %6 : vector<32x64xf32>
    %c0_7 = arith.constant 0 : index
    %c0_8 = arith.constant 0 : index
    %8 = vector.load %arg4[%c0_7, %c0_8] : memref<2x64xf32, #tpu.memory_space<vmem>>, vector<2x64xf32>
    %c0_9 = arith.constant 0 : index
    %c0_10 = arith.constant 0 : index
    %9 = vector.load %arg5[%c0_9, %c0_10] : memref<1x64xf32, #tpu.memory_space<vmem>>, vector<1x64xf32>
    %10 = arith.negf %9 : vector<1x64xf32>
    %11 = math.exp %10 : vector<1x64xf32>
    %cst_11 = arith.constant 1.000000e+00 : f32
    %12 = vector.broadcast %cst_11 : f32 to vector<1x64xf32>
    %13 = arith.addf %12, %11 : vector<1x64xf32>
    %14 = arith.divf %12, %13 : vector<1x64xf32>
    %15 = arith.mulf %9, %14 : vector<1x64xf32>
    %16 = arith.truncf %15 : vector<1x64xf32> to vector<1x64xbf16>
    %c0_12 = arith.constant 0 : index
    %c0_13 = arith.constant 0 : index
    %17 = vector.load %arg6[%c0_12, %c0_13] : memref<64x384xbf16, #tpu.memory_space<vmem>>, vector<64x384xbf16>
    %cst_14 = arith.constant dense<0.000000e+00> : vector<1x384xf32>
    %18 = tpu.matmul %16, %17, %cst_14 {dimension_numbers = #tpu.dot_dimension_numbers<[1], [0], [0], [1], [0, 0, 1, 1], [], []>} : vector<1x64xbf16>, vector<64x384xbf16>, vector<1x384xf32> -> vector<1x384xf32>
    %c0_15 = arith.constant 0 : index
    %c0_16 = arith.constant 0 : index
    %19 = vector.load %arg7[%c0_15, %c0_16] : memref<1x384xf32, #tpu.memory_space<vmem>>, vector<1x384xf32>
    %20 = arith.addf %18, %19 : vector<1x384xf32>
    %c0_17 = arith.constant 0 : index
    %c0_18 = arith.constant 0 : index
    %21 = vector.load %arg8[%c0_17, %c0_18] : memref<64x384xbf16, #tpu.memory_space<vmem>>, vector<64x384xbf16>
    %cst_19 = arith.constant dense<0.000000e+00> : vector<1x384xf32>
    %22 = tpu.matmul %16, %21, %cst_19 {dimension_numbers = #tpu.dot_dimension_numbers<[1], [0], [0], [1], [0, 0, 1, 1], [], []>} : vector<1x64xbf16>, vector<64x384xbf16>, vector<1x384xf32> -> vector<1x384xf32>
    %c0_20 = arith.constant 0 : index
    %c0_21 = arith.constant 0 : index
    %23 = vector.load %arg9[%c0_20, %c0_21] : memref<1x384xf32, #tpu.memory_space<vmem>>, vector<1x384xf32>
    %24 = arith.addf %22, %23 : vector<1x384xf32>
    %25 = vector.extract_strided_slice %20 {offsets = [0, 0], sizes = [1, 64], strides = [1, 1]} : vector<1x384xf32> to vector<1x64xf32>
    %26 = vector.extract_strided_slice %20 {offsets = [0, 64], sizes = [1, 64], strides = [1, 1]} : vector<1x384xf32> to vector<1x64xf32>
    %27 = vector.extract_strided_slice %20 {offsets = [0, 128], sizes = [1, 64], strides = [1, 1]} : vector<1x384xf32> to vector<1x64xf32>
    %28 = vector.extract_strided_slice %20 {offsets = [0, 192], sizes = [1, 64], strides = [1, 1]} : vector<1x384xf32> to vector<1x64xf32>
    %29 = vector.extract_strided_slice %20 {offsets = [0, 256], sizes = [1, 64], strides = [1, 1]} : vector<1x384xf32> to vector<1x64xf32>
    %30 = vector.extract_strided_slice %20 {offsets = [0, 320], sizes = [1, 64], strides = [1, 1]} : vector<1x384xf32> to vector<1x64xf32>
    %31 = vector.extract_strided_slice %24 {offsets = [0, 0], sizes = [1, 64], strides = [1, 1]} : vector<1x384xf32> to vector<1x64xf32>
    %32 = vector.extract_strided_slice %24 {offsets = [0, 64], sizes = [1, 64], strides = [1, 1]} : vector<1x384xf32> to vector<1x64xf32>
    %33 = vector.extract_strided_slice %24 {offsets = [0, 128], sizes = [1, 64], strides = [1, 1]} : vector<1x384xf32> to vector<1x64xf32>
    %34 = vector.extract_strided_slice %24 {offsets = [0, 192], sizes = [1, 64], strides = [1, 1]} : vector<1x384xf32> to vector<1x64xf32>
    %35 = vector.extract_strided_slice %24 {offsets = [0, 256], sizes = [1, 64], strides = [1, 1]} : vector<1x384xf32> to vector<1x64xf32>
    %36 = vector.extract_strided_slice %24 {offsets = [0, 320], sizes = [1, 64], strides = [1, 1]} : vector<1x384xf32> to vector<1x64xf32>
    %cst_22 = arith.constant dense<0.000000e+00> : vector<32xf32>
    %37 = vector.multi_reduction <add>, %7, %cst_22 [1] : vector<32x64xf32> to vector<32xf32>
    %38 = vector.shape_cast %37 : vector<32xf32> to vector<32x1xf32>
    %cst_23 = arith.constant 6.400000e+01 : f32
    %39 = vector.broadcast %cst_23 : f32 to vector<32x1xf32>
    %40 = arith.divf %38, %39 : vector<32x1xf32>
    %41 = vector.broadcast %40 : vector<32x1xf32> to vector<32x64xf32>
    %42 = arith.subf %7, %41 : vector<32x64xf32>
    %43 = arith.mulf %42, %42 : vector<32x64xf32>
    %cst_24 = arith.constant dense<0.000000e+00> : vector<32xf32>
    %44 = vector.multi_reduction <add>, %43, %cst_24 [1] : vector<32x64xf32> to vector<32xf32>
    %45 = vector.shape_cast %44 : vector<32xf32> to vector<32x1xf32>
    %cst_25 = arith.constant 6.400000e+01 : f32
    %46 = vector.broadcast %cst_25 : f32 to vector<32x1xf32>
    %47 = arith.divf %45, %46 : vector<32x1xf32>
    %48 = vector.broadcast %40 : vector<32x1xf32> to vector<32x64xf32>
    %49 = arith.subf %7, %48 : vector<32x64xf32>
    %cst_26 = arith.constant 9.99999997E-7 : f32
    %50 = vector.broadcast %cst_26 : f32 to vector<32x1xf32>
    %51 = arith.addf %47, %50 : vector<32x1xf32>
    %52 = math.rsqrt %51 : vector<32x1xf32>
    %53 = vector.broadcast %52 : vector<32x1xf32> to vector<32x64xf32>
    %54 = arith.mulf %49, %53 : vector<32x64xf32>
    %cst_27 = arith.constant 1.000000e+00 : f32
    %55 = vector.broadcast %cst_27 : f32 to vector<1x64xf32>
    %56 = arith.addf %55, %26 : vector<1x64xf32>
    %57 = vector.broadcast %56 : vector<1x64xf32> to vector<32x64xf32>
    %58 = arith.mulf %54, %57 : vector<32x64xf32>
    %59 = vector.broadcast %25 : vector<1x64xf32> to vector<32x64xf32>
    %60 = arith.addf %58, %59 : vector<32x64xf32>
    %61 = arith.truncf %60 : vector<32x64xf32> to vector<32x64xbf16>
    %cst_28 = arith.constant dense<0.000000e+00> : vector<2xf32>
    %62 = vector.multi_reduction <add>, %8, %cst_28 [1] : vector<2x64xf32> to vector<2xf32>
    %63 = vector.shape_cast %62 : vector<2xf32> to vector<2x1xf32>
    %cst_29 = arith.constant 6.400000e+01 : f32
    %64 = vector.broadcast %cst_29 : f32 to vector<2x1xf32>
    %65 = arith.divf %63, %64 : vector<2x1xf32>
    %66 = vector.broadcast %65 : vector<2x1xf32> to vector<2x64xf32>
    %67 = arith.subf %8, %66 : vector<2x64xf32>
    %68 = arith.mulf %67, %67 : vector<2x64xf32>
    %cst_30 = arith.constant dense<0.000000e+00> : vector<2xf32>
    %69 = vector.multi_reduction <add>, %68, %cst_30 [1] : vector<2x64xf32> to vector<2xf32>
    %70 = vector.shape_cast %69 : vector<2xf32> to vector<2x1xf32>
    %cst_31 = arith.constant 6.400000e+01 : f32
    %71 = vector.broadcast %cst_31 : f32 to vector<2x1xf32>
    %72 = arith.divf %70, %71 : vector<2x1xf32>
    %73 = vector.broadcast %65 : vector<2x1xf32> to vector<2x64xf32>
    %74 = arith.subf %8, %73 : vector<2x64xf32>
    %cst_32 = arith.constant 9.99999997E-7 : f32
    %75 = vector.broadcast %cst_32 : f32 to vector<2x1xf32>
    %76 = arith.addf %72, %75 : vector<2x1xf32>
    %77 = math.rsqrt %76 : vector<2x1xf32>
    %78 = vector.broadcast %77 : vector<2x1xf32> to vector<2x64xf32>
    %79 = arith.mulf %74, %78 : vector<2x64xf32>
    %cst_33 = arith.constant 1.000000e+00 : f32
    %80 = vector.broadcast %cst_33 : f32 to vector<1x64xf32>
    %81 = arith.addf %80, %32 : vector<1x64xf32>
    %82 = vector.broadcast %81 : vector<1x64xf32> to vector<2x64xf32>
    %83 = arith.mulf %79, %82 : vector<2x64xf32>
    %84 = vector.broadcast %31 : vector<1x64xf32> to vector<2x64xf32>
    %85 = arith.addf %83, %84 : vector<2x64xf32>
    %86 = arith.truncf %85 : vector<2x64xf32> to vector<2x64xbf16>
    %c0_34 = arith.constant 0 : index
    %c0_35 = arith.constant 0 : index
    %87 = vector.load %arg10[%c0_34, %c0_35] : memref<64x192xbf16, #tpu.memory_space<vmem>>, vector<64x192xbf16>
    %cst_36 = arith.constant dense<0.000000e+00> : vector<32x192xf32>
    %88 = tpu.matmul %61, %87, %cst_36 {dimension_numbers = #tpu.dot_dimension_numbers<[1], [0], [0], [1], [0, 0, 1, 1], [], []>} : vector<32x64xbf16>, vector<64x192xbf16>, vector<32x192xf32> -> vector<32x192xf32>
    %c0_37 = arith.constant 0 : index
    %c0_38 = arith.constant 0 : index
    %89 = vector.load %arg11[%c0_37, %c0_38] : memref<1x192xf32, #tpu.memory_space<vmem>>, vector<1x192xf32>
    %90 = vector.broadcast %89 : vector<1x192xf32> to vector<32x192xf32>
    %91 = arith.addf %88, %90 : vector<32x192xf32>
    %92 = vector.shape_cast %91 : vector<32x192xf32> to vector<2x16x192xf32>
    %c0_39 = arith.constant 0 : index
    %c0_40 = arith.constant 0 : index
    %93 = vector.load %arg12[%c0_39, %c0_40] : memref<64x192xbf16, #tpu.memory_space<vmem>>, vector<64x192xbf16>
    %cst_41 = arith.constant dense<0.000000e+00> : vector<2x192xf32>
    %94 = tpu.matmul %86, %93, %cst_41 {dimension_numbers = #tpu.dot_dimension_numbers<[1], [0], [0], [1], [0, 0, 1, 1], [], []>} : vector<2x64xbf16>, vector<64x192xbf16>, vector<2x192xf32> -> vector<2x192xf32>
    %c0_42 = arith.constant 0 : index
    %c0_43 = arith.constant 0 : index
    %95 = vector.load %arg13[%c0_42, %c0_43] : memref<1x192xf32, #tpu.memory_space<vmem>>, vector<1x192xf32>
    %96 = vector.broadcast %95 : vector<1x192xf32> to vector<2x192xf32>
    %97 = arith.addf %94, %96 : vector<2x192xf32>
    %98 = vector.shape_cast %97 : vector<2x192xf32> to vector<2x1x192xf32>
    %99 = vector.extract_strided_slice %92 {offsets = [0, 0, 64], sizes = [2, 16, 64], strides = [1, 1, 1]} : vector<2x16x192xf32> to vector<2x16x64xf32>
    %100 = vector.extract_strided_slice %98 {offsets = [0, 0, 64], sizes = [2, 1, 64], strides = [1, 1, 1]} : vector<2x1x192xf32> to vector<2x1x64xf32>
    %101 = tpu.concatenate %99, %100 in 1 : vector<2x16x64xf32>, vector<2x1x64xf32> -> vector<2x17x64xf32>
    %102 = arith.truncf %101 : vector<2x17x64xf32> to vector<2x17x64xbf16>
    %103 = vector.extract_strided_slice %92 {offsets = [0, 0, 128], sizes = [2, 16, 64], strides = [1, 1, 1]} : vector<2x16x192xf32> to vector<2x16x64xf32>
    %104 = vector.extract_strided_slice %98 {offsets = [0, 0, 128], sizes = [2, 1, 64], strides = [1, 1, 1]} : vector<2x1x192xf32> to vector<2x1x64xf32>
    %105 = tpu.concatenate %103, %104 in 1 : vector<2x16x64xf32>, vector<2x1x64xf32> -> vector<2x17x64xf32>
    %106 = arith.truncf %105 : vector<2x17x64xf32> to vector<2x17x64xbf16>
    %107 = vector.extract_strided_slice %92 {offsets = [0, 0, 0], sizes = [2, 16, 64], strides = [1, 1, 1]} : vector<2x16x192xf32> to vector<2x16x64xf32>
    %108 = vector.extract_strided_slice %98 {offsets = [0, 0, 0], sizes = [2, 1, 64], strides = [1, 1, 1]} : vector<2x1x192xf32> to vector<2x1x64xf32>
    %109 = tpu.concatenate %107, %108 in 1 : vector<2x16x64xf32>, vector<2x1x64xf32> -> vector<2x17x64xf32>
    %cst_44 = arith.constant 2.500000e-01 : f32
    %110 = vector.broadcast %cst_44 : f32 to vector<2x17x64xf32>
    %111 = arith.mulf %109, %110 : vector<2x17x64xf32>
    %112 = arith.truncf %111 : vector<2x17x64xf32> to vector<2x17x64xbf16>
    %113 = vector.extract_strided_slice %112 {offsets = [0, 0, 0], sizes = [2, 17, 16], strides = [1, 1, 1]} : vector<2x17x64xbf16> to vector<2x17x16xbf16>
    %114 = vector.extract_strided_slice %102 {offsets = [0, 0, 0], sizes = [2, 17, 16], strides = [1, 1, 1]} : vector<2x17x64xbf16> to vector<2x17x16xbf16>
    "tpu.trace_start"() <{level = 10 : i32, message = "bqd,bkd->bqk"}> : () -> ()
    %cst_45 = arith.constant dense<0.000000e+00> : vector<2x17x17xf32>
    %115 = tpu.matmul %113, %114, %cst_45 {dimension_numbers = #tpu.dot_dimension_numbers<[2], [2], [1], [1], [0, 0, 0, 1, 1, 1], [0], [0]>} : vector<2x17x16xbf16>, vector<2x17x16xbf16>, vector<2x17x17xf32> -> vector<2x17x17xf32>
    "tpu.trace_stop"() : () -> ()
    %cst_46 = arith.constant dense<0xFF800000> : vector<2x17xf32>
    %116 = vector.multi_reduction <maximumf>, %115, %cst_46 [2] : vector<2x17x17xf32> to vector<2x17xf32>
    %117 = vector.shape_cast %116 : vector<2x17xf32> to vector<2x17x1xf32>
    %118 = vector.broadcast %117 : vector<2x17x1xf32> to vector<2x17x17xf32>
    %119 = arith.subf %115, %118 : vector<2x17x17xf32>
    %120 = math.exp %119 : vector<2x17x17xf32>
    %cst_47 = arith.constant dense<0.000000e+00> : vector<2x17xf32>
    %121 = vector.multi_reduction <add>, %120, %cst_47 [2] : vector<2x17x17xf32> to vector<2x17xf32>
    %122 = vector.shape_cast %121 : vector<2x17xf32> to vector<2x17x1xf32>
    %123 = tpu.reciprocal %122 {approx = true} : vector<2x17x1xf32> -> vector<2x17x1xf32>
    %124 = vector.broadcast %123 : vector<2x17x1xf32> to vector<2x17x17xf32>
    %125 = arith.mulf %120, %124 : vector<2x17x17xf32>
    %126 = arith.truncf %125 : vector<2x17x17xf32> to vector<2x17x17xbf16>
    %127 = vector.extract_strided_slice %106 {offsets = [0, 0, 0], sizes = [2, 17, 16], strides = [1, 1, 1]} : vector<2x17x64xbf16> to vector<2x17x16xbf16>
    "tpu.trace_start"() <{level = 10 : i32, message = "bqk,bkd->bqd"}> : () -> ()
    %cst_48 = arith.constant dense<0.000000e+00> : vector<2x17x16xf32>
    %128 = tpu.matmul %126, %127, %cst_48 {dimension_numbers = #tpu.dot_dimension_numbers<[2], [1], [1], [2], [0, 0, 0, 1, 1, 2], [0], [0]>} : vector<2x17x17xbf16>, vector<2x17x16xbf16>, vector<2x17x16xf32> -> vector<2x17x16xf32>
    "tpu.trace_stop"() : () -> ()
    %129 = vector.extract_strided_slice %112 {offsets = [0, 0, 16], sizes = [2, 17, 16], strides = [1, 1, 1]} : vector<2x17x64xbf16> to vector<2x17x16xbf16>
    %130 = vector.extract_strided_slice %102 {offsets = [0, 0, 16], sizes = [2, 17, 16], strides = [1, 1, 1]} : vector<2x17x64xbf16> to vector<2x17x16xbf16>
    "tpu.trace_start"() <{level = 10 : i32, message = "bqd,bkd->bqk"}> : () -> ()
    %cst_49 = arith.constant dense<0.000000e+00> : vector<2x17x17xf32>
    %131 = tpu.matmul %129, %130, %cst_49 {dimension_numbers = #tpu.dot_dimension_numbers<[2], [2], [1], [1], [0, 0, 0, 1, 1, 1], [0], [0]>} : vector<2x17x16xbf16>, vector<2x17x16xbf16>, vector<2x17x17xf32> -> vector<2x17x17xf32>
    "tpu.trace_stop"() : () -> ()
    %cst_50 = arith.constant dense<0xFF800000> : vector<2x17xf32>
    %132 = vector.multi_reduction <maximumf>, %131, %cst_50 [2] : vector<2x17x17xf32> to vector<2x17xf32>
    %133 = vector.shape_cast %132 : vector<2x17xf32> to vector<2x17x1xf32>
    %134 = vector.broadcast %133 : vector<2x17x1xf32> to vector<2x17x17xf32>
    %135 = arith.subf %131, %134 : vector<2x17x17xf32>
    %136 = math.exp %135 : vector<2x17x17xf32>
    %cst_51 = arith.constant dense<0.000000e+00> : vector<2x17xf32>
    %137 = vector.multi_reduction <add>, %136, %cst_51 [2] : vector<2x17x17xf32> to vector<2x17xf32>
    %138 = vector.shape_cast %137 : vector<2x17xf32> to vector<2x17x1xf32>
    %139 = tpu.reciprocal %138 {approx = true} : vector<2x17x1xf32> -> vector<2x17x1xf32>
    %140 = vector.broadcast %139 : vector<2x17x1xf32> to vector<2x17x17xf32>
    %141 = arith.mulf %136, %140 : vector<2x17x17xf32>
    %142 = arith.truncf %141 : vector<2x17x17xf32> to vector<2x17x17xbf16>
    %143 = vector.extract_strided_slice %106 {offsets = [0, 0, 16], sizes = [2, 17, 16], strides = [1, 1, 1]} : vector<2x17x64xbf16> to vector<2x17x16xbf16>
    "tpu.trace_start"() <{level = 10 : i32, message = "bqk,bkd->bqd"}> : () -> ()
    %cst_52 = arith.constant dense<0.000000e+00> : vector<2x17x16xf32>
    %144 = tpu.matmul %142, %143, %cst_52 {dimension_numbers = #tpu.dot_dimension_numbers<[2], [1], [1], [2], [0, 0, 0, 1, 1, 2], [0], [0]>} : vector<2x17x17xbf16>, vector<2x17x16xbf16>, vector<2x17x16xf32> -> vector<2x17x16xf32>
    "tpu.trace_stop"() : () -> ()
    %145 = vector.extract_strided_slice %112 {offsets = [0, 0, 32], sizes = [2, 17, 16], strides = [1, 1, 1]} : vector<2x17x64xbf16> to vector<2x17x16xbf16>
    %146 = vector.extract_strided_slice %102 {offsets = [0, 0, 32], sizes = [2, 17, 16], strides = [1, 1, 1]} : vector<2x17x64xbf16> to vector<2x17x16xbf16>
    "tpu.trace_start"() <{level = 10 : i32, message = "bqd,bkd->bqk"}> : () -> ()
    %cst_53 = arith.constant dense<0.000000e+00> : vector<2x17x17xf32>
    %147 = tpu.matmul %145, %146, %cst_53 {dimension_numbers = #tpu.dot_dimension_numbers<[2], [2], [1], [1], [0, 0, 0, 1, 1, 1], [0], [0]>} : vector<2x17x16xbf16>, vector<2x17x16xbf16>, vector<2x17x17xf32> -> vector<2x17x17xf32>
    "tpu.trace_stop"() : () -> ()
    %cst_54 = arith.constant dense<0xFF800000> : vector<2x17xf32>
    %148 = vector.multi_reduction <maximumf>, %147, %cst_54 [2] : vector<2x17x17xf32> to vector<2x17xf32>
    %149 = vector.shape_cast %148 : vector<2x17xf32> to vector<2x17x1xf32>
    %150 = vector.broadcast %149 : vector<2x17x1xf32> to vector<2x17x17xf32>
    %151 = arith.subf %147, %150 : vector<2x17x17xf32>
    %152 = math.exp %151 : vector<2x17x17xf32>
    %cst_55 = arith.constant dense<0.000000e+00> : vector<2x17xf32>
    %153 = vector.multi_reduction <add>, %152, %cst_55 [2] : vector<2x17x17xf32> to vector<2x17xf32>
    %154 = vector.shape_cast %153 : vector<2x17xf32> to vector<2x17x1xf32>
    %155 = tpu.reciprocal %154 {approx = true} : vector<2x17x1xf32> -> vector<2x17x1xf32>
    %156 = vector.broadcast %155 : vector<2x17x1xf32> to vector<2x17x17xf32>
    %157 = arith.mulf %152, %156 : vector<2x17x17xf32>
    %158 = arith.truncf %157 : vector<2x17x17xf32> to vector<2x17x17xbf16>
    %159 = vector.extract_strided_slice %106 {offsets = [0, 0, 32], sizes = [2, 17, 16], strides = [1, 1, 1]} : vector<2x17x64xbf16> to vector<2x17x16xbf16>
    "tpu.trace_start"() <{level = 10 : i32, message = "bqk,bkd->bqd"}> : () -> ()
    %cst_56 = arith.constant dense<0.000000e+00> : vector<2x17x16xf32>
    %160 = tpu.matmul %158, %159, %cst_56 {dimension_numbers = #tpu.dot_dimension_numbers<[2], [1], [1], [2], [0, 0, 0, 1, 1, 2], [0], [0]>} : vector<2x17x17xbf16>, vector<2x17x16xbf16>, vector<2x17x16xf32> -> vector<2x17x16xf32>
    "tpu.trace_stop"() : () -> ()
    %161 = vector.extract_strided_slice %112 {offsets = [0, 0, 48], sizes = [2, 17, 16], strides = [1, 1, 1]} : vector<2x17x64xbf16> to vector<2x17x16xbf16>
    %162 = vector.extract_strided_slice %102 {offsets = [0, 0, 48], sizes = [2, 17, 16], strides = [1, 1, 1]} : vector<2x17x64xbf16> to vector<2x17x16xbf16>
    "tpu.trace_start"() <{level = 10 : i32, message = "bqd,bkd->bqk"}> : () -> ()
    %cst_57 = arith.constant dense<0.000000e+00> : vector<2x17x17xf32>
    %163 = tpu.matmul %161, %162, %cst_57 {dimension_numbers = #tpu.dot_dimension_numbers<[2], [2], [1], [1], [0, 0, 0, 1, 1, 1], [0], [0]>} : vector<2x17x16xbf16>, vector<2x17x16xbf16>, vector<2x17x17xf32> -> vector<2x17x17xf32>
    "tpu.trace_stop"() : () -> ()
    %cst_58 = arith.constant dense<0xFF800000> : vector<2x17xf32>
    %164 = vector.multi_reduction <maximumf>, %163, %cst_58 [2] : vector<2x17x17xf32> to vector<2x17xf32>
    %165 = vector.shape_cast %164 : vector<2x17xf32> to vector<2x17x1xf32>
    %166 = vector.broadcast %165 : vector<2x17x1xf32> to vector<2x17x17xf32>
    %167 = arith.subf %163, %166 : vector<2x17x17xf32>
    %168 = math.exp %167 : vector<2x17x17xf32>
    %cst_59 = arith.constant dense<0.000000e+00> : vector<2x17xf32>
    %169 = vector.multi_reduction <add>, %168, %cst_59 [2] : vector<2x17x17xf32> to vector<2x17xf32>
    %170 = vector.shape_cast %169 : vector<2x17xf32> to vector<2x17x1xf32>
    %171 = tpu.reciprocal %170 {approx = true} : vector<2x17x1xf32> -> vector<2x17x1xf32>
    %172 = vector.broadcast %171 : vector<2x17x1xf32> to vector<2x17x17xf32>
    %173 = arith.mulf %168, %172 : vector<2x17x17xf32>
    %174 = arith.truncf %173 : vector<2x17x17xf32> to vector<2x17x17xbf16>
    %175 = vector.extract_strided_slice %106 {offsets = [0, 0, 48], sizes = [2, 17, 16], strides = [1, 1, 1]} : vector<2x17x64xbf16> to vector<2x17x16xbf16>
    "tpu.trace_start"() <{level = 10 : i32, message = "bqk,bkd->bqd"}> : () -> ()
    %cst_60 = arith.constant dense<0.000000e+00> : vector<2x17x16xf32>
    %176 = tpu.matmul %174, %175, %cst_60 {dimension_numbers = #tpu.dot_dimension_numbers<[2], [1], [1], [2], [0, 0, 0, 1, 1, 2], [0], [0]>} : vector<2x17x17xbf16>, vector<2x17x16xbf16>, vector<2x17x16xf32> -> vector<2x17x16xf32>
    "tpu.trace_stop"() : () -> ()
    %177 = tpu.concatenate %128, %144, %160, %176 in 2 : vector<2x17x16xf32>, vector<2x17x16xf32>, vector<2x17x16xf32>, vector<2x17x16xf32> -> vector<2x17x64xf32>
    %178 = vector.extract_strided_slice %177 {offsets = [0, 0, 0], sizes = [2, 16, 64], strides = [1, 1, 1]} : vector<2x17x64xf32> to vector<2x16x64xf32>
    %179 = vector.shape_cast %178 : vector<2x16x64xf32> to vector<32x64xf32>
    %180 = arith.truncf %179 : vector<32x64xf32> to vector<32x64xbf16>
    %c0_61 = arith.constant 0 : index
    %c0_62 = arith.constant 0 : index
    %181 = vector.load %arg14[%c0_61, %c0_62] : memref<64x64xbf16, #tpu.memory_space<vmem>>, vector<64x64xbf16>
    %cst_63 = arith.constant dense<0.000000e+00> : vector<32x64xf32>
    %182 = tpu.matmul %180, %181, %cst_63 {dimension_numbers = #tpu.dot_dimension_numbers<[1], [0], [0], [1], [0, 0, 1, 1], [], []>} : vector<32x64xbf16>, vector<64x64xbf16>, vector<32x64xf32> -> vector<32x64xf32>
    %c0_64 = arith.constant 0 : index
    %c0_65 = arith.constant 0 : index
    %183 = vector.load %arg15[%c0_64, %c0_65] : memref<1x64xf32, #tpu.memory_space<vmem>>, vector<1x64xf32>
    %184 = vector.broadcast %183 : vector<1x64xf32> to vector<32x64xf32>
    %185 = arith.addf %182, %184 : vector<32x64xf32>
    %186 = vector.broadcast %27 : vector<1x64xf32> to vector<32x64xf32>
    %187 = arith.mulf %186, %185 : vector<32x64xf32>
    %188 = arith.addf %7, %187 : vector<32x64xf32>
    %cst_66 = arith.constant dense<0.000000e+00> : vector<32xf32>
    %189 = vector.multi_reduction <add>, %188, %cst_66 [1] : vector<32x64xf32> to vector<32xf32>
    %190 = vector.shape_cast %189 : vector<32xf32> to vector<32x1xf32>
    %cst_67 = arith.constant 6.400000e+01 : f32
    %191 = vector.broadcast %cst_67 : f32 to vector<32x1xf32>
    %192 = arith.divf %190, %191 : vector<32x1xf32>
    %193 = vector.broadcast %192 : vector<32x1xf32> to vector<32x64xf32>
    %194 = arith.subf %188, %193 : vector<32x64xf32>
    %195 = arith.mulf %194, %194 : vector<32x64xf32>
    %cst_68 = arith.constant dense<0.000000e+00> : vector<32xf32>
    %196 = vector.multi_reduction <add>, %195, %cst_68 [1] : vector<32x64xf32> to vector<32xf32>
    %197 = vector.shape_cast %196 : vector<32xf32> to vector<32x1xf32>
    %cst_69 = arith.constant 6.400000e+01 : f32
    %198 = vector.broadcast %cst_69 : f32 to vector<32x1xf32>
    %199 = arith.divf %197, %198 : vector<32x1xf32>
    %200 = vector.broadcast %192 : vector<32x1xf32> to vector<32x64xf32>
    %201 = arith.subf %188, %200 : vector<32x64xf32>
    %cst_70 = arith.constant 9.99999997E-7 : f32
    %202 = vector.broadcast %cst_70 : f32 to vector<32x1xf32>
    %203 = arith.addf %199, %202 : vector<32x1xf32>
    %204 = math.rsqrt %203 : vector<32x1xf32>
    %205 = vector.broadcast %204 : vector<32x1xf32> to vector<32x64xf32>
    %206 = arith.mulf %201, %205 : vector<32x64xf32>
    %cst_71 = arith.constant 1.000000e+00 : f32
    %207 = vector.broadcast %cst_71 : f32 to vector<1x64xf32>
    %208 = arith.addf %207, %29 : vector<1x64xf32>
    %209 = vector.broadcast %208 : vector<1x64xf32> to vector<32x64xf32>
    %210 = arith.mulf %206, %209 : vector<32x64xf32>
    %211 = vector.broadcast %28 : vector<1x64xf32> to vector<32x64xf32>
    %212 = arith.addf %210, %211 : vector<32x64xf32>
    %213 = arith.truncf %212 : vector<32x64xf32> to vector<32x64xbf16>
    %c0_72 = arith.constant 0 : index
    %c0_73 = arith.constant 0 : index
    %214 = vector.load %arg18[%c0_72, %c0_73] : memref<64x256xbf16, #tpu.memory_space<vmem>>, vector<64x256xbf16>
    %cst_74 = arith.constant dense<0.000000e+00> : vector<32x256xf32>
    %215 = tpu.matmul %213, %214, %cst_74 {dimension_numbers = #tpu.dot_dimension_numbers<[1], [0], [0], [1], [0, 0, 1, 1], [], []>} : vector<32x64xbf16>, vector<64x256xbf16>, vector<32x256xf32> -> vector<32x256xf32>
    %c0_75 = arith.constant 0 : index
    %c0_76 = arith.constant 0 : index
    %216 = vector.load %arg19[%c0_75, %c0_76] : memref<1x256xf32, #tpu.memory_space<vmem>>, vector<1x256xf32>
    %217 = vector.broadcast %216 : vector<1x256xf32> to vector<32x256xf32>
    %218 = arith.addf %215, %217 : vector<32x256xf32>
    %219 = arith.mulf %218, %218 : vector<32x256xf32>
    %220 = arith.mulf %218, %219 : vector<32x256xf32>
    %cst_77 = arith.constant 4.471500e-02 : f32
    %221 = vector.broadcast %cst_77 : f32 to vector<32x256xf32>
    %222 = arith.mulf %221, %220 : vector<32x256xf32>
    %223 = arith.addf %218, %222 : vector<32x256xf32>
    %cst_78 = arith.constant 0.797884583 : f32
    %224 = vector.broadcast %cst_78 : f32 to vector<32x256xf32>
    %225 = arith.mulf %224, %223 : vector<32x256xf32>
    %226 = math.tanh %225 : vector<32x256xf32>
    %cst_79 = arith.constant 1.000000e+00 : f32
    %227 = vector.broadcast %cst_79 : f32 to vector<32x256xf32>
    %228 = arith.addf %227, %226 : vector<32x256xf32>
    %cst_80 = arith.constant 5.000000e-01 : f32
    %229 = vector.broadcast %cst_80 : f32 to vector<32x256xf32>
    %230 = arith.mulf %229, %228 : vector<32x256xf32>
    %231 = arith.mulf %218, %230 : vector<32x256xf32>
    %232 = arith.truncf %231 : vector<32x256xf32> to vector<32x256xbf16>
    %c0_81 = arith.constant 0 : index
    %c0_82 = arith.constant 0 : index
    %233 = vector.load %arg20[%c0_81, %c0_82] : memref<256x64xbf16, #tpu.memory_space<vmem>>, vector<256x64xbf16>
    %cst_83 = arith.constant dense<0.000000e+00> : vector<32x64xf32>
    %234 = tpu.matmul %232, %233, %cst_83 {dimension_numbers = #tpu.dot_dimension_numbers<[1], [0], [0], [1], [0, 0, 1, 1], [], []>} : vector<32x256xbf16>, vector<256x64xbf16>, vector<32x64xf32> -> vector<32x64xf32>
    %c0_84 = arith.constant 0 : index
    %c0_85 = arith.constant 0 : index
    %235 = vector.load %arg21[%c0_84, %c0_85] : memref<1x64xf32, #tpu.memory_space<vmem>>, vector<1x64xf32>
    %236 = vector.broadcast %235 : vector<1x64xf32> to vector<32x64xf32>
    %237 = arith.addf %234, %236 : vector<32x64xf32>
    %238 = vector.broadcast %30 : vector<1x64xf32> to vector<32x64xf32>
    %239 = arith.mulf %238, %237 : vector<32x64xf32>
    %240 = arith.addf %188, %239 : vector<32x64xf32>
    %241 = vector.extract_strided_slice %177 {offsets = [0, 16, 0], sizes = [2, 1, 64], strides = [1, 1, 1]} : vector<2x17x64xf32> to vector<2x1x64xf32>
    %242 = vector.shape_cast %241 : vector<2x1x64xf32> to vector<2x64xf32>
    %243 = arith.truncf %242 : vector<2x64xf32> to vector<2x64xbf16>
    %c0_86 = arith.constant 0 : index
    %c0_87 = arith.constant 0 : index
    %244 = vector.load %arg16[%c0_86, %c0_87] : memref<64x64xbf16, #tpu.memory_space<vmem>>, vector<64x64xbf16>
    %cst_88 = arith.constant dense<0.000000e+00> : vector<2x64xf32>
    %245 = tpu.matmul %243, %244, %cst_88 {dimension_numbers = #tpu.dot_dimension_numbers<[1], [0], [0], [1], [0, 0, 1, 1], [], []>} : vector<2x64xbf16>, vector<64x64xbf16>, vector<2x64xf32> -> vector<2x64xf32>
    %c0_89 = arith.constant 0 : index
    %c0_90 = arith.constant 0 : index
    %246 = vector.load %arg17[%c0_89, %c0_90] : memref<1x64xf32, #tpu.memory_space<vmem>>, vector<1x64xf32>
    %247 = vector.broadcast %246 : vector<1x64xf32> to vector<2x64xf32>
    %248 = arith.addf %245, %247 : vector<2x64xf32>
    %249 = vector.broadcast %33 : vector<1x64xf32> to vector<2x64xf32>
    %250 = arith.mulf %249, %248 : vector<2x64xf32>
    %251 = arith.addf %8, %250 : vector<2x64xf32>
    %cst_91 = arith.constant dense<0.000000e+00> : vector<2xf32>
    %252 = vector.multi_reduction <add>, %251, %cst_91 [1] : vector<2x64xf32> to vector<2xf32>
    %253 = vector.shape_cast %252 : vector<2xf32> to vector<2x1xf32>
    %cst_92 = arith.constant 6.400000e+01 : f32
    %254 = vector.broadcast %cst_92 : f32 to vector<2x1xf32>
    %255 = arith.divf %253, %254 : vector<2x1xf32>
    %256 = vector.broadcast %255 : vector<2x1xf32> to vector<2x64xf32>
    %257 = arith.subf %251, %256 : vector<2x64xf32>
    %258 = arith.mulf %257, %257 : vector<2x64xf32>
    %cst_93 = arith.constant dense<0.000000e+00> : vector<2xf32>
    %259 = vector.multi_reduction <add>, %258, %cst_93 [1] : vector<2x64xf32> to vector<2xf32>
    %260 = vector.shape_cast %259 : vector<2xf32> to vector<2x1xf32>
    %cst_94 = arith.constant 6.400000e+01 : f32
    %261 = vector.broadcast %cst_94 : f32 to vector<2x1xf32>
    %262 = arith.divf %260, %261 : vector<2x1xf32>
    %263 = vector.broadcast %255 : vector<2x1xf32> to vector<2x64xf32>
    %264 = arith.subf %251, %263 : vector<2x64xf32>
    %cst_95 = arith.constant 9.99999997E-7 : f32
    %265 = vector.broadcast %cst_95 : f32 to vector<2x1xf32>
    %266 = arith.addf %262, %265 : vector<2x1xf32>
    %267 = math.rsqrt %266 : vector<2x1xf32>
    %268 = vector.broadcast %267 : vector<2x1xf32> to vector<2x64xf32>
    %269 = arith.mulf %264, %268 : vector<2x64xf32>
    %cst_96 = arith.constant 1.000000e+00 : f32
    %270 = vector.broadcast %cst_96 : f32 to vector<1x64xf32>
    %271 = arith.addf %270, %35 : vector<1x64xf32>
    %272 = vector.broadcast %271 : vector<1x64xf32> to vector<2x64xf32>
    %273 = arith.mulf %269, %272 : vector<2x64xf32>
    %274 = vector.broadcast %34 : vector<1x64xf32> to vector<2x64xf32>
    %275 = arith.addf %273, %274 : vector<2x64xf32>
    %276 = arith.truncf %275 : vector<2x64xf32> to vector<2x64xbf16>
    %c0_97 = arith.constant 0 : index
    %c0_98 = arith.constant 0 : index
    %277 = vector.load %arg22[%c0_97, %c0_98] : memref<64x256xbf16, #tpu.memory_space<vmem>>, vector<64x256xbf16>
    %cst_99 = arith.constant dense<0.000000e+00> : vector<2x256xf32>
    %278 = tpu.matmul %276, %277, %cst_99 {dimension_numbers = #tpu.dot_dimension_numbers<[1], [0], [0], [1], [0, 0, 1, 1], [], []>} : vector<2x64xbf16>, vector<64x256xbf16>, vector<2x256xf32> -> vector<2x256xf32>
    %c0_100 = arith.constant 0 : index
    %c0_101 = arith.constant 0 : index
    %279 = vector.load %arg23[%c0_100, %c0_101] : memref<1x256xf32, #tpu.memory_space<vmem>>, vector<1x256xf32>
    %280 = vector.broadcast %279 : vector<1x256xf32> to vector<2x256xf32>
    %281 = arith.addf %278, %280 : vector<2x256xf32>
    %282 = arith.mulf %281, %281 : vector<2x256xf32>
    %283 = arith.mulf %281, %282 : vector<2x256xf32>
    %cst_102 = arith.constant 4.471500e-02 : f32
    %284 = vector.broadcast %cst_102 : f32 to vector<2x256xf32>
    %285 = arith.mulf %284, %283 : vector<2x256xf32>
    %286 = arith.addf %281, %285 : vector<2x256xf32>
    %cst_103 = arith.constant 0.797884583 : f32
    %287 = vector.broadcast %cst_103 : f32 to vector<2x256xf32>
    %288 = arith.mulf %287, %286 : vector<2x256xf32>
    %289 = math.tanh %288 : vector<2x256xf32>
    %cst_104 = arith.constant 1.000000e+00 : f32
    %290 = vector.broadcast %cst_104 : f32 to vector<2x256xf32>
    %291 = arith.addf %290, %289 : vector<2x256xf32>
    %cst_105 = arith.constant 5.000000e-01 : f32
    %292 = vector.broadcast %cst_105 : f32 to vector<2x256xf32>
    %293 = arith.mulf %292, %291 : vector<2x256xf32>
    %294 = arith.mulf %281, %293 : vector<2x256xf32>
    %295 = arith.truncf %294 : vector<2x256xf32> to vector<2x256xbf16>
    %c0_106 = arith.constant 0 : index
    %c0_107 = arith.constant 0 : index
    %296 = vector.load %arg24[%c0_106, %c0_107] : memref<256x64xbf16, #tpu.memory_space<vmem>>, vector<256x64xbf16>
    %cst_108 = arith.constant dense<0.000000e+00> : vector<2x64xf32>
    %297 = tpu.matmul %295, %296, %cst_108 {dimension_numbers = #tpu.dot_dimension_numbers<[1], [0], [0], [1], [0, 0, 1, 1], [], []>} : vector<2x256xbf16>, vector<256x64xbf16>, vector<2x64xf32> -> vector<2x64xf32>
    %c0_109 = arith.constant 0 : index
    %c0_110 = arith.constant 0 : index
    %298 = vector.load %arg25[%c0_109, %c0_110] : memref<1x64xf32, #tpu.memory_space<vmem>>, vector<1x64xf32>
    %299 = vector.broadcast %298 : vector<1x64xf32> to vector<2x64xf32>
    %300 = arith.addf %297, %299 : vector<2x64xf32>
    %301 = vector.broadcast %36 : vector<1x64xf32> to vector<2x64xf32>
    %302 = arith.mulf %301, %300 : vector<2x64xf32>
    %303 = arith.addf %251, %302 : vector<2x64xf32>
    %c0_111 = arith.constant 0 : index
    %c0_112 = arith.constant 0 : index
    %304 = vector.load %arg26[%c0_111, %c0_112] : memref<64x384xbf16, #tpu.memory_space<vmem>>, vector<64x384xbf16>
    %cst_113 = arith.constant dense<0.000000e+00> : vector<1x384xf32>
    %305 = tpu.matmul %16, %304, %cst_113 {dimension_numbers = #tpu.dot_dimension_numbers<[1], [0], [0], [1], [0, 0, 1, 1], [], []>} : vector<1x64xbf16>, vector<64x384xbf16>, vector<1x384xf32> -> vector<1x384xf32>
    %c0_114 = arith.constant 0 : index
    %c0_115 = arith.constant 0 : index
    %306 = vector.load %arg27[%c0_114, %c0_115] : memref<1x384xf32, #tpu.memory_space<vmem>>, vector<1x384xf32>
    %307 = arith.addf %305, %306 : vector<1x384xf32>
    %c0_116 = arith.constant 0 : index
    %c0_117 = arith.constant 0 : index
    %308 = vector.load %arg28[%c0_116, %c0_117] : memref<64x128xbf16, #tpu.memory_space<vmem>>, vector<64x128xbf16>
    %cst_118 = arith.constant dense<0.000000e+00> : vector<1x128xf32>
    %309 = tpu.matmul %16, %308, %cst_118 {dimension_numbers = #tpu.dot_dimension_numbers<[1], [0], [0], [1], [0, 0, 1, 1], [], []>} : vector<1x64xbf16>, vector<64x128xbf16>, vector<1x128xf32> -> vector<1x128xf32>
    %c0_119 = arith.constant 0 : index
    %c0_120 = arith.constant 0 : index
    %310 = vector.load %arg29[%c0_119, %c0_120] : memref<1x128xf32, #tpu.memory_space<vmem>>, vector<1x128xf32>
    %311 = arith.addf %309, %310 : vector<1x128xf32>
    %312 = vector.extract_strided_slice %307 {offsets = [0, 0], sizes = [1, 64], strides = [1, 1]} : vector<1x384xf32> to vector<1x64xf32>
    %313 = vector.extract_strided_slice %307 {offsets = [0, 64], sizes = [1, 64], strides = [1, 1]} : vector<1x384xf32> to vector<1x64xf32>
    %314 = vector.extract_strided_slice %307 {offsets = [0, 128], sizes = [1, 64], strides = [1, 1]} : vector<1x384xf32> to vector<1x64xf32>
    %315 = vector.extract_strided_slice %307 {offsets = [0, 192], sizes = [1, 64], strides = [1, 1]} : vector<1x384xf32> to vector<1x64xf32>
    %316 = vector.extract_strided_slice %307 {offsets = [0, 256], sizes = [1, 64], strides = [1, 1]} : vector<1x384xf32> to vector<1x64xf32>
    %317 = vector.extract_strided_slice %307 {offsets = [0, 320], sizes = [1, 64], strides = [1, 1]} : vector<1x384xf32> to vector<1x64xf32>
    %318 = vector.extract_strided_slice %311 {offsets = [0, 0], sizes = [1, 64], strides = [1, 1]} : vector<1x128xf32> to vector<1x64xf32>
    %319 = vector.extract_strided_slice %311 {offsets = [0, 64], sizes = [1, 64], strides = [1, 1]} : vector<1x128xf32> to vector<1x64xf32>
    %cst_121 = arith.constant dense<0.000000e+00> : vector<32xf32>
    %320 = vector.multi_reduction <add>, %240, %cst_121 [1] : vector<32x64xf32> to vector<32xf32>
    %321 = vector.shape_cast %320 : vector<32xf32> to vector<32x1xf32>
    %cst_122 = arith.constant 6.400000e+01 : f32
    %322 = vector.broadcast %cst_122 : f32 to vector<32x1xf32>
    %323 = arith.divf %321, %322 : vector<32x1xf32>
    %324 = vector.broadcast %323 : vector<32x1xf32> to vector<32x64xf32>
    %325 = arith.subf %240, %324 : vector<32x64xf32>
    %326 = arith.mulf %325, %325 : vector<32x64xf32>
    %cst_123 = arith.constant dense<0.000000e+00> : vector<32xf32>
    %327 = vector.multi_reduction <add>, %326, %cst_123 [1] : vector<32x64xf32> to vector<32xf32>
    %328 = vector.shape_cast %327 : vector<32xf32> to vector<32x1xf32>
    %cst_124 = arith.constant 6.400000e+01 : f32
    %329 = vector.broadcast %cst_124 : f32 to vector<32x1xf32>
    %330 = arith.divf %328, %329 : vector<32x1xf32>
    %331 = vector.broadcast %323 : vector<32x1xf32> to vector<32x64xf32>
    %332 = arith.subf %240, %331 : vector<32x64xf32>
    %cst_125 = arith.constant 9.99999997E-7 : f32
    %333 = vector.broadcast %cst_125 : f32 to vector<32x1xf32>
    %334 = arith.addf %330, %333 : vector<32x1xf32>
    %335 = math.rsqrt %334 : vector<32x1xf32>
    %336 = vector.broadcast %335 : vector<32x1xf32> to vector<32x64xf32>
    %337 = arith.mulf %332, %336 : vector<32x64xf32>
    %cst_126 = arith.constant 1.000000e+00 : f32
    %338 = vector.broadcast %cst_126 : f32 to vector<1x64xf32>
    %339 = arith.addf %338, %313 : vector<1x64xf32>
    %340 = vector.broadcast %339 : vector<1x64xf32> to vector<32x64xf32>
    %341 = arith.mulf %337, %340 : vector<32x64xf32>
    %342 = vector.broadcast %312 : vector<1x64xf32> to vector<32x64xf32>
    %343 = arith.addf %341, %342 : vector<32x64xf32>
    %344 = arith.truncf %343 : vector<32x64xf32> to vector<32x64xbf16>
    %cst_127 = arith.constant dense<0.000000e+00> : vector<2xf32>
    %345 = vector.multi_reduction <add>, %303, %cst_127 [1] : vector<2x64xf32> to vector<2xf32>
    %346 = vector.shape_cast %345 : vector<2xf32> to vector<2x1xf32>
    %cst_128 = arith.constant 6.400000e+01 : f32
    %347 = vector.broadcast %cst_128 : f32 to vector<2x1xf32>
    %348 = arith.divf %346, %347 : vector<2x1xf32>
    %349 = vector.broadcast %348 : vector<2x1xf32> to vector<2x64xf32>
    %350 = arith.subf %303, %349 : vector<2x64xf32>
    %351 = arith.mulf %350, %350 : vector<2x64xf32>
    %cst_129 = arith.constant dense<0.000000e+00> : vector<2xf32>
    %352 = vector.multi_reduction <add>, %351, %cst_129 [1] : vector<2x64xf32> to vector<2xf32>
    %353 = vector.shape_cast %352 : vector<2xf32> to vector<2x1xf32>
    %cst_130 = arith.constant 6.400000e+01 : f32
    %354 = vector.broadcast %cst_130 : f32 to vector<2x1xf32>
    %355 = arith.divf %353, %354 : vector<2x1xf32>
    %356 = vector.broadcast %348 : vector<2x1xf32> to vector<2x64xf32>
    %357 = arith.subf %303, %356 : vector<2x64xf32>
    %cst_131 = arith.constant 9.99999997E-7 : f32
    %358 = vector.broadcast %cst_131 : f32 to vector<2x1xf32>
    %359 = arith.addf %355, %358 : vector<2x1xf32>
    %360 = math.rsqrt %359 : vector<2x1xf32>
    %361 = vector.broadcast %360 : vector<2x1xf32> to vector<2x64xf32>
    %362 = arith.mulf %357, %361 : vector<2x64xf32>
    %cst_132 = arith.constant 1.000000e+00 : f32
    %363 = vector.broadcast %cst_132 : f32 to vector<1x64xf32>
    %364 = arith.addf %363, %318 : vector<1x64xf32>
    %365 = vector.broadcast %364 : vector<1x64xf32> to vector<2x64xf32>
    %366 = arith.mulf %362, %365 : vector<2x64xf32>
    %367 = vector.broadcast %319 : vector<1x64xf32> to vector<2x64xf32>
    %368 = arith.addf %366, %367 : vector<2x64xf32>
    %369 = arith.truncf %368 : vector<2x64xf32> to vector<2x64xbf16>
    %c0_133 = arith.constant 0 : index
    %c0_134 = arith.constant 0 : index
    %370 = vector.load %arg30[%c0_133, %c0_134] : memref<64x192xbf16, #tpu.memory_space<vmem>>, vector<64x192xbf16>
    %cst_135 = arith.constant dense<0.000000e+00> : vector<32x192xf32>
    %371 = tpu.matmul %344, %370, %cst_135 {dimension_numbers = #tpu.dot_dimension_numbers<[1], [0], [0], [1], [0, 0, 1, 1], [], []>} : vector<32x64xbf16>, vector<64x192xbf16>, vector<32x192xf32> -> vector<32x192xf32>
    %c0_136 = arith.constant 0 : index
    %c0_137 = arith.constant 0 : index
    %372 = vector.load %arg31[%c0_136, %c0_137] : memref<1x192xf32, #tpu.memory_space<vmem>>, vector<1x192xf32>
    %373 = vector.broadcast %372 : vector<1x192xf32> to vector<32x192xf32>
    %374 = arith.addf %371, %373 : vector<32x192xf32>
    %375 = vector.shape_cast %374 : vector<32x192xf32> to vector<2x16x192xf32>
    %c0_138 = arith.constant 0 : index
    %c0_139 = arith.constant 0 : index
    %376 = vector.load %arg32[%c0_138, %c0_139] : memref<64x192xbf16, #tpu.memory_space<vmem>>, vector<64x192xbf16>
    %cst_140 = arith.constant dense<0.000000e+00> : vector<2x192xf32>
    %377 = tpu.matmul %369, %376, %cst_140 {dimension_numbers = #tpu.dot_dimension_numbers<[1], [0], [0], [1], [0, 0, 1, 1], [], []>} : vector<2x64xbf16>, vector<64x192xbf16>, vector<2x192xf32> -> vector<2x192xf32>
    %c0_141 = arith.constant 0 : index
    %c0_142 = arith.constant 0 : index
    %378 = vector.load %arg33[%c0_141, %c0_142] : memref<1x192xf32, #tpu.memory_space<vmem>>, vector<1x192xf32>
    %379 = vector.broadcast %378 : vector<1x192xf32> to vector<2x192xf32>
    %380 = arith.addf %377, %379 : vector<2x192xf32>
    %381 = vector.shape_cast %380 : vector<2x192xf32> to vector<2x1x192xf32>
    %382 = vector.extract_strided_slice %375 {offsets = [0, 0, 64], sizes = [2, 16, 64], strides = [1, 1, 1]} : vector<2x16x192xf32> to vector<2x16x64xf32>
    %383 = vector.extract_strided_slice %381 {offsets = [0, 0, 64], sizes = [2, 1, 64], strides = [1, 1, 1]} : vector<2x1x192xf32> to vector<2x1x64xf32>
    %384 = tpu.concatenate %382, %383 in 1 : vector<2x16x64xf32>, vector<2x1x64xf32> -> vector<2x17x64xf32>
    %385 = arith.truncf %384 : vector<2x17x64xf32> to vector<2x17x64xbf16>
    %386 = vector.extract_strided_slice %375 {offsets = [0, 0, 128], sizes = [2, 16, 64], strides = [1, 1, 1]} : vector<2x16x192xf32> to vector<2x16x64xf32>
    %387 = vector.extract_strided_slice %381 {offsets = [0, 0, 128], sizes = [2, 1, 64], strides = [1, 1, 1]} : vector<2x1x192xf32> to vector<2x1x64xf32>
    %388 = tpu.concatenate %386, %387 in 1 : vector<2x16x64xf32>, vector<2x1x64xf32> -> vector<2x17x64xf32>
    %389 = arith.truncf %388 : vector<2x17x64xf32> to vector<2x17x64xbf16>
    %390 = vector.extract_strided_slice %375 {offsets = [0, 0, 0], sizes = [2, 16, 64], strides = [1, 1, 1]} : vector<2x16x192xf32> to vector<2x16x64xf32>
    %cst_143 = arith.constant 2.500000e-01 : f32
    %391 = vector.broadcast %cst_143 : f32 to vector<2x16x64xf32>
    %392 = arith.mulf %390, %391 : vector<2x16x64xf32>
    %393 = arith.truncf %392 : vector<2x16x64xf32> to vector<2x16x64xbf16>
    %394 = vector.extract_strided_slice %393 {offsets = [0, 0, 0], sizes = [2, 16, 16], strides = [1, 1, 1]} : vector<2x16x64xbf16> to vector<2x16x16xbf16>
    %395 = vector.extract_strided_slice %385 {offsets = [0, 0, 0], sizes = [2, 17, 16], strides = [1, 1, 1]} : vector<2x17x64xbf16> to vector<2x17x16xbf16>
    "tpu.trace_start"() <{level = 10 : i32, message = "bqd,bkd->bqk"}> : () -> ()
    %cst_144 = arith.constant dense<0.000000e+00> : vector<2x16x17xf32>
    %396 = tpu.matmul %394, %395, %cst_144 {dimension_numbers = #tpu.dot_dimension_numbers<[2], [2], [1], [1], [0, 0, 0, 1, 1, 1], [0], [0]>} : vector<2x16x16xbf16>, vector<2x17x16xbf16>, vector<2x16x17xf32> -> vector<2x16x17xf32>
    "tpu.trace_stop"() : () -> ()
    %cst_145 = arith.constant dense<0xFF800000> : vector<2x16xf32>
    %397 = vector.multi_reduction <maximumf>, %396, %cst_145 [2] : vector<2x16x17xf32> to vector<2x16xf32>
    %398 = vector.shape_cast %397 : vector<2x16xf32> to vector<2x16x1xf32>
    %399 = vector.broadcast %398 : vector<2x16x1xf32> to vector<2x16x17xf32>
    %400 = arith.subf %396, %399 : vector<2x16x17xf32>
    %401 = math.exp %400 : vector<2x16x17xf32>
    %cst_146 = arith.constant dense<0.000000e+00> : vector<2x16xf32>
    %402 = vector.multi_reduction <add>, %401, %cst_146 [2] : vector<2x16x17xf32> to vector<2x16xf32>
    %403 = vector.shape_cast %402 : vector<2x16xf32> to vector<2x16x1xf32>
    %404 = tpu.reciprocal %403 {approx = true} : vector<2x16x1xf32> -> vector<2x16x1xf32>
    %405 = vector.broadcast %404 : vector<2x16x1xf32> to vector<2x16x17xf32>
    %406 = arith.mulf %401, %405 : vector<2x16x17xf32>
    %407 = arith.truncf %406 : vector<2x16x17xf32> to vector<2x16x17xbf16>
    %408 = vector.extract_strided_slice %389 {offsets = [0, 0, 0], sizes = [2, 17, 16], strides = [1, 1, 1]} : vector<2x17x64xbf16> to vector<2x17x16xbf16>
    "tpu.trace_start"() <{level = 10 : i32, message = "bqk,bkd->bqd"}> : () -> ()
    %cst_147 = arith.constant dense<0.000000e+00> : vector<2x16x16xf32>
    %409 = tpu.matmul %407, %408, %cst_147 {dimension_numbers = #tpu.dot_dimension_numbers<[2], [1], [1], [2], [0, 0, 0, 1, 1, 2], [0], [0]>} : vector<2x16x17xbf16>, vector<2x17x16xbf16>, vector<2x16x16xf32> -> vector<2x16x16xf32>
    "tpu.trace_stop"() : () -> ()
    %410 = vector.extract_strided_slice %393 {offsets = [0, 0, 16], sizes = [2, 16, 16], strides = [1, 1, 1]} : vector<2x16x64xbf16> to vector<2x16x16xbf16>
    %411 = vector.extract_strided_slice %385 {offsets = [0, 0, 16], sizes = [2, 17, 16], strides = [1, 1, 1]} : vector<2x17x64xbf16> to vector<2x17x16xbf16>
    "tpu.trace_start"() <{level = 10 : i32, message = "bqd,bkd->bqk"}> : () -> ()
    %cst_148 = arith.constant dense<0.000000e+00> : vector<2x16x17xf32>
    %412 = tpu.matmul %410, %411, %cst_148 {dimension_numbers = #tpu.dot_dimension_numbers<[2], [2], [1], [1], [0, 0, 0, 1, 1, 1], [0], [0]>} : vector<2x16x16xbf16>, vector<2x17x16xbf16>, vector<2x16x17xf32> -> vector<2x16x17xf32>
    "tpu.trace_stop"() : () -> ()
    %cst_149 = arith.constant dense<0xFF800000> : vector<2x16xf32>
    %413 = vector.multi_reduction <maximumf>, %412, %cst_149 [2] : vector<2x16x17xf32> to vector<2x16xf32>
    %414 = vector.shape_cast %413 : vector<2x16xf32> to vector<2x16x1xf32>
    %415 = vector.broadcast %414 : vector<2x16x1xf32> to vector<2x16x17xf32>
    %416 = arith.subf %412, %415 : vector<2x16x17xf32>
    %417 = math.exp %416 : vector<2x16x17xf32>
    %cst_150 = arith.constant dense<0.000000e+00> : vector<2x16xf32>
    %418 = vector.multi_reduction <add>, %417, %cst_150 [2] : vector<2x16x17xf32> to vector<2x16xf32>
    %419 = vector.shape_cast %418 : vector<2x16xf32> to vector<2x16x1xf32>
    %420 = tpu.reciprocal %419 {approx = true} : vector<2x16x1xf32> -> vector<2x16x1xf32>
    %421 = vector.broadcast %420 : vector<2x16x1xf32> to vector<2x16x17xf32>
    %422 = arith.mulf %417, %421 : vector<2x16x17xf32>
    %423 = arith.truncf %422 : vector<2x16x17xf32> to vector<2x16x17xbf16>
    %424 = vector.extract_strided_slice %389 {offsets = [0, 0, 16], sizes = [2, 17, 16], strides = [1, 1, 1]} : vector<2x17x64xbf16> to vector<2x17x16xbf16>
    "tpu.trace_start"() <{level = 10 : i32, message = "bqk,bkd->bqd"}> : () -> ()
    %cst_151 = arith.constant dense<0.000000e+00> : vector<2x16x16xf32>
    %425 = tpu.matmul %423, %424, %cst_151 {dimension_numbers = #tpu.dot_dimension_numbers<[2], [1], [1], [2], [0, 0, 0, 1, 1, 2], [0], [0]>} : vector<2x16x17xbf16>, vector<2x17x16xbf16>, vector<2x16x16xf32> -> vector<2x16x16xf32>
    "tpu.trace_stop"() : () -> ()
    %426 = vector.extract_strided_slice %393 {offsets = [0, 0, 32], sizes = [2, 16, 16], strides = [1, 1, 1]} : vector<2x16x64xbf16> to vector<2x16x16xbf16>
    %427 = vector.extract_strided_slice %385 {offsets = [0, 0, 32], sizes = [2, 17, 16], strides = [1, 1, 1]} : vector<2x17x64xbf16> to vector<2x17x16xbf16>
    "tpu.trace_start"() <{level = 10 : i32, message = "bqd,bkd->bqk"}> : () -> ()
    %cst_152 = arith.constant dense<0.000000e+00> : vector<2x16x17xf32>
    %428 = tpu.matmul %426, %427, %cst_152 {dimension_numbers = #tpu.dot_dimension_numbers<[2], [2], [1], [1], [0, 0, 0, 1, 1, 1], [0], [0]>} : vector<2x16x16xbf16>, vector<2x17x16xbf16>, vector<2x16x17xf32> -> vector<2x16x17xf32>
    "tpu.trace_stop"() : () -> ()
    %cst_153 = arith.constant dense<0xFF800000> : vector<2x16xf32>
    %429 = vector.multi_reduction <maximumf>, %428, %cst_153 [2] : vector<2x16x17xf32> to vector<2x16xf32>
    %430 = vector.shape_cast %429 : vector<2x16xf32> to vector<2x16x1xf32>
    %431 = vector.broadcast %430 : vector<2x16x1xf32> to vector<2x16x17xf32>
    %432 = arith.subf %428, %431 : vector<2x16x17xf32>
    %433 = math.exp %432 : vector<2x16x17xf32>
    %cst_154 = arith.constant dense<0.000000e+00> : vector<2x16xf32>
    %434 = vector.multi_reduction <add>, %433, %cst_154 [2] : vector<2x16x17xf32> to vector<2x16xf32>
    %435 = vector.shape_cast %434 : vector<2x16xf32> to vector<2x16x1xf32>
    %436 = tpu.reciprocal %435 {approx = true} : vector<2x16x1xf32> -> vector<2x16x1xf32>
    %437 = vector.broadcast %436 : vector<2x16x1xf32> to vector<2x16x17xf32>
    %438 = arith.mulf %433, %437 : vector<2x16x17xf32>
    %439 = arith.truncf %438 : vector<2x16x17xf32> to vector<2x16x17xbf16>
    %440 = vector.extract_strided_slice %389 {offsets = [0, 0, 32], sizes = [2, 17, 16], strides = [1, 1, 1]} : vector<2x17x64xbf16> to vector<2x17x16xbf16>
    "tpu.trace_start"() <{level = 10 : i32, message = "bqk,bkd->bqd"}> : () -> ()
    %cst_155 = arith.constant dense<0.000000e+00> : vector<2x16x16xf32>
    %441 = tpu.matmul %439, %440, %cst_155 {dimension_numbers = #tpu.dot_dimension_numbers<[2], [1], [1], [2], [0, 0, 0, 1, 1, 2], [0], [0]>} : vector<2x16x17xbf16>, vector<2x17x16xbf16>, vector<2x16x16xf32> -> vector<2x16x16xf32>
    "tpu.trace_stop"() : () -> ()
    %442 = vector.extract_strided_slice %393 {offsets = [0, 0, 48], sizes = [2, 16, 16], strides = [1, 1, 1]} : vector<2x16x64xbf16> to vector<2x16x16xbf16>
    %443 = vector.extract_strided_slice %385 {offsets = [0, 0, 48], sizes = [2, 17, 16], strides = [1, 1, 1]} : vector<2x17x64xbf16> to vector<2x17x16xbf16>
    "tpu.trace_start"() <{level = 10 : i32, message = "bqd,bkd->bqk"}> : () -> ()
    %cst_156 = arith.constant dense<0.000000e+00> : vector<2x16x17xf32>
    %444 = tpu.matmul %442, %443, %cst_156 {dimension_numbers = #tpu.dot_dimension_numbers<[2], [2], [1], [1], [0, 0, 0, 1, 1, 1], [0], [0]>} : vector<2x16x16xbf16>, vector<2x17x16xbf16>, vector<2x16x17xf32> -> vector<2x16x17xf32>
    "tpu.trace_stop"() : () -> ()
    %cst_157 = arith.constant dense<0xFF800000> : vector<2x16xf32>
    %445 = vector.multi_reduction <maximumf>, %444, %cst_157 [2] : vector<2x16x17xf32> to vector<2x16xf32>
    %446 = vector.shape_cast %445 : vector<2x16xf32> to vector<2x16x1xf32>
    %447 = vector.broadcast %446 : vector<2x16x1xf32> to vector<2x16x17xf32>
    %448 = arith.subf %444, %447 : vector<2x16x17xf32>
    %449 = math.exp %448 : vector<2x16x17xf32>
    %cst_158 = arith.constant dense<0.000000e+00> : vector<2x16xf32>
    %450 = vector.multi_reduction <add>, %449, %cst_158 [2] : vector<2x16x17xf32> to vector<2x16xf32>
    %451 = vector.shape_cast %450 : vector<2x16xf32> to vector<2x16x1xf32>
    %452 = tpu.reciprocal %451 {approx = true} : vector<2x16x1xf32> -> vector<2x16x1xf32>
    %453 = vector.broadcast %452 : vector<2x16x1xf32> to vector<2x16x17xf32>
    %454 = arith.mulf %449, %453 : vector<2x16x17xf32>
    %455 = arith.truncf %454 : vector<2x16x17xf32> to vector<2x16x17xbf16>
    %456 = vector.extract_strided_slice %389 {offsets = [0, 0, 48], sizes = [2, 17, 16], strides = [1, 1, 1]} : vector<2x17x64xbf16> to vector<2x17x16xbf16>
    "tpu.trace_start"() <{level = 10 : i32, message = "bqk,bkd->bqd"}> : () -> ()
    %cst_159 = arith.constant dense<0.000000e+00> : vector<2x16x16xf32>
    %457 = tpu.matmul %455, %456, %cst_159 {dimension_numbers = #tpu.dot_dimension_numbers<[2], [1], [1], [2], [0, 0, 0, 1, 1, 2], [0], [0]>} : vector<2x16x17xbf16>, vector<2x17x16xbf16>, vector<2x16x16xf32> -> vector<2x16x16xf32>
    "tpu.trace_stop"() : () -> ()
    %458 = tpu.concatenate %409, %425, %441, %457 in 2 : vector<2x16x16xf32>, vector<2x16x16xf32>, vector<2x16x16xf32>, vector<2x16x16xf32> -> vector<2x16x64xf32>
    %459 = vector.shape_cast %458 : vector<2x16x64xf32> to vector<32x64xf32>
    %460 = arith.truncf %459 : vector<32x64xf32> to vector<32x64xbf16>
    %c0_160 = arith.constant 0 : index
    %c0_161 = arith.constant 0 : index
    %461 = vector.load %arg34[%c0_160, %c0_161] : memref<64x64xbf16, #tpu.memory_space<vmem>>, vector<64x64xbf16>
    %cst_162 = arith.constant dense<0.000000e+00> : vector<32x64xf32>
    %462 = tpu.matmul %460, %461, %cst_162 {dimension_numbers = #tpu.dot_dimension_numbers<[1], [0], [0], [1], [0, 0, 1, 1], [], []>} : vector<32x64xbf16>, vector<64x64xbf16>, vector<32x64xf32> -> vector<32x64xf32>
    %c0_163 = arith.constant 0 : index
    %c0_164 = arith.constant 0 : index
    %463 = vector.load %arg35[%c0_163, %c0_164] : memref<1x64xf32, #tpu.memory_space<vmem>>, vector<1x64xf32>
    %464 = vector.broadcast %463 : vector<1x64xf32> to vector<32x64xf32>
    %465 = arith.addf %462, %464 : vector<32x64xf32>
    %466 = vector.broadcast %314 : vector<1x64xf32> to vector<32x64xf32>
    %467 = arith.mulf %466, %465 : vector<32x64xf32>
    %468 = arith.addf %240, %467 : vector<32x64xf32>
    %cst_165 = arith.constant dense<0.000000e+00> : vector<32xf32>
    %469 = vector.multi_reduction <add>, %468, %cst_165 [1] : vector<32x64xf32> to vector<32xf32>
    %470 = vector.shape_cast %469 : vector<32xf32> to vector<32x1xf32>
    %cst_166 = arith.constant 6.400000e+01 : f32
    %471 = vector.broadcast %cst_166 : f32 to vector<32x1xf32>
    %472 = arith.divf %470, %471 : vector<32x1xf32>
    %473 = vector.broadcast %472 : vector<32x1xf32> to vector<32x64xf32>
    %474 = arith.subf %468, %473 : vector<32x64xf32>
    %475 = arith.mulf %474, %474 : vector<32x64xf32>
    %cst_167 = arith.constant dense<0.000000e+00> : vector<32xf32>
    %476 = vector.multi_reduction <add>, %475, %cst_167 [1] : vector<32x64xf32> to vector<32xf32>
    %477 = vector.shape_cast %476 : vector<32xf32> to vector<32x1xf32>
    %cst_168 = arith.constant 6.400000e+01 : f32
    %478 = vector.broadcast %cst_168 : f32 to vector<32x1xf32>
    %479 = arith.divf %477, %478 : vector<32x1xf32>
    %480 = vector.broadcast %472 : vector<32x1xf32> to vector<32x64xf32>
    %481 = arith.subf %468, %480 : vector<32x64xf32>
    %cst_169 = arith.constant 9.99999997E-7 : f32
    %482 = vector.broadcast %cst_169 : f32 to vector<32x1xf32>
    %483 = arith.addf %479, %482 : vector<32x1xf32>
    %484 = math.rsqrt %483 : vector<32x1xf32>
    %485 = vector.broadcast %484 : vector<32x1xf32> to vector<32x64xf32>
    %486 = arith.mulf %481, %485 : vector<32x64xf32>
    %cst_170 = arith.constant 1.000000e+00 : f32
    %487 = vector.broadcast %cst_170 : f32 to vector<1x64xf32>
    %488 = arith.addf %487, %316 : vector<1x64xf32>
    %489 = vector.broadcast %488 : vector<1x64xf32> to vector<32x64xf32>
    %490 = arith.mulf %486, %489 : vector<32x64xf32>
    %491 = vector.broadcast %315 : vector<1x64xf32> to vector<32x64xf32>
    %492 = arith.addf %490, %491 : vector<32x64xf32>
    %493 = arith.truncf %492 : vector<32x64xf32> to vector<32x64xbf16>
    %c0_171 = arith.constant 0 : index
    %c0_172 = arith.constant 0 : index
    %494 = vector.load %arg36[%c0_171, %c0_172] : memref<64x256xbf16, #tpu.memory_space<vmem>>, vector<64x256xbf16>
    %cst_173 = arith.constant dense<0.000000e+00> : vector<32x256xf32>
    %495 = tpu.matmul %493, %494, %cst_173 {dimension_numbers = #tpu.dot_dimension_numbers<[1], [0], [0], [1], [0, 0, 1, 1], [], []>} : vector<32x64xbf16>, vector<64x256xbf16>, vector<32x256xf32> -> vector<32x256xf32>
    %c0_174 = arith.constant 0 : index
    %c0_175 = arith.constant 0 : index
    %496 = vector.load %arg37[%c0_174, %c0_175] : memref<1x256xf32, #tpu.memory_space<vmem>>, vector<1x256xf32>
    %497 = vector.broadcast %496 : vector<1x256xf32> to vector<32x256xf32>
    %498 = arith.addf %495, %497 : vector<32x256xf32>
    %499 = arith.mulf %498, %498 : vector<32x256xf32>
    %500 = arith.mulf %498, %499 : vector<32x256xf32>
    %cst_176 = arith.constant 4.471500e-02 : f32
    %501 = vector.broadcast %cst_176 : f32 to vector<32x256xf32>
    %502 = arith.mulf %501, %500 : vector<32x256xf32>
    %503 = arith.addf %498, %502 : vector<32x256xf32>
    %cst_177 = arith.constant 0.797884583 : f32
    %504 = vector.broadcast %cst_177 : f32 to vector<32x256xf32>
    %505 = arith.mulf %504, %503 : vector<32x256xf32>
    %506 = math.tanh %505 : vector<32x256xf32>
    %cst_178 = arith.constant 1.000000e+00 : f32
    %507 = vector.broadcast %cst_178 : f32 to vector<32x256xf32>
    %508 = arith.addf %507, %506 : vector<32x256xf32>
    %cst_179 = arith.constant 5.000000e-01 : f32
    %509 = vector.broadcast %cst_179 : f32 to vector<32x256xf32>
    %510 = arith.mulf %509, %508 : vector<32x256xf32>
    %511 = arith.mulf %498, %510 : vector<32x256xf32>
    %512 = arith.truncf %511 : vector<32x256xf32> to vector<32x256xbf16>
    %c0_180 = arith.constant 0 : index
    %c0_181 = arith.constant 0 : index
    %513 = vector.load %arg38[%c0_180, %c0_181] : memref<256x64xbf16, #tpu.memory_space<vmem>>, vector<256x64xbf16>
    %cst_182 = arith.constant dense<0.000000e+00> : vector<32x64xf32>
    %514 = tpu.matmul %512, %513, %cst_182 {dimension_numbers = #tpu.dot_dimension_numbers<[1], [0], [0], [1], [0, 0, 1, 1], [], []>} : vector<32x256xbf16>, vector<256x64xbf16>, vector<32x64xf32> -> vector<32x64xf32>
    %c0_183 = arith.constant 0 : index
    %c0_184 = arith.constant 0 : index
    %515 = vector.load %arg39[%c0_183, %c0_184] : memref<1x64xf32, #tpu.memory_space<vmem>>, vector<1x64xf32>
    %516 = vector.broadcast %515 : vector<1x64xf32> to vector<32x64xf32>
    %517 = arith.addf %514, %516 : vector<32x64xf32>
    %518 = vector.broadcast %317 : vector<1x64xf32> to vector<32x64xf32>
    %519 = arith.mulf %518, %517 : vector<32x64xf32>
    %520 = arith.addf %468, %519 : vector<32x64xf32>
    %521 = tpu.concatenate %187, %239, %240, %467, %519, %520 in 1 : vector<32x64xf32>, vector<32x64xf32>, vector<32x64xf32>, vector<32x64xf32>, vector<32x64xf32>, vector<32x64xf32> -> vector<32x384xf32>
    %522 = arith.truncf %521 : vector<32x384xf32> to vector<32x384xbf16>
    %c0_185 = arith.constant 0 : index
    %c0_186 = arith.constant 0 : index
    %523 = vector.load %arg40[%c0_185, %c0_186] : memref<32x384xbf16, #tpu.memory_space<vmem>>, vector<32x384xbf16>
    tpu.vector_store %arg40[%c0_185, %c0_186], %522 {strides = array<i32>} : memref<32x384xbf16, #tpu.memory_space<vmem>>, vector<32x384xbf16>,
    return
  }
}

</mosaic_0001>

<llo_original>
// kernel: stable_diffusion3_forward.4
$region0: #{stable_diffusion3_forward.4}
  #allocation0 [shape = 'u32[]', space=smem, size = 0x4, offset = 0x4, fixed_abs, tag = 'smem constant byte address 0x4 - core index']
  #allocation1 [shape = 'u32[144,128]{1,0:T(1,128)}', space=vmem, size = 0x12000, scoped, tag = 'internal scratch']
  %s0 = inlined_call_operand.vmem [shape: bf16[128,48], index: 0, kind: input, shape index: {}]
  %s1 = inlined_call_operand.vmem [shape: bf16[48,16], index: 1, kind: input, shape index: {}]
  %s2 = inlined_call_operand.vmem [shape: f32[1,16], index: 2, kind: input, shape index: {}]
  %s3 = inlined_call_operand.vmem [shape: f32[128,16], index: 3, kind: output, shape index: {}]
  %s4 = sld [smem:[#allocation0]]
  $region22: #{stable_diffusion3_forward.4} parent=0
    _
  %s6 = ssub.s32 1, %s4
  %s7 = scalar_select 0, %s6, %s4
  // Predicated region
  $region2: #{stable_diffusion3_forward.4} parent=0 // pred_check
    _
  $region3: #{stable_diffusion3_forward.4} parent=0 // pred_check_branch
    %9 = sbr.rel (0) target = $region5
  $region4: #{stable_diffusion3_forward.4} parent=0 // pred_region
    _
  $region5: #{stable_diffusion3_forward.4} parent=0 // pred_fallthru
    _
  // Predicated region
  $region6: #{stable_diffusion3_forward.4} parent=0 // pred_check
    _
  $region7: #{stable_diffusion3_forward.4} parent=0 // pred_check_branch
    %11 = sbr.rel (0) target = $region9
  $region8: #{stable_diffusion3_forward.4} parent=0 // pred_region
    _
  $region9: #{stable_diffusion3_forward.4} parent=0 // pred_fallthru
    _
  // Predicated region
  $region10: #{stable_diffusion3_forward.4} parent=0 // pred_check
    _
  $region11: #{stable_diffusion3_forward.4} parent=0 // pred_check_branch
    %13 = sbr.rel (0) target = $region13
  $region12: #{stable_diffusion3_forward.4} parent=0 // pred_region
    _
  $region13: #{stable_diffusion3_forward.4} parent=0 // pred_fallthru
    _
  %v15 = vld [vmem:[%s0] sm:$0xf]
  %v16 = vld [vmem:[%s0 + $0x4] sm:$0xf]
  %v17 = vld [vmem:[%s0 + $0x8] sm:$0xf]
  %v18 = vld [vmem:[%s0 + $0xc] sm:$0xf]
  %v19 = vld [vmem:[%s0 + $0x10] sm:$0xf]
  %v20 = vld [vmem:[%s0 + $0x14] sm:$0xf]
  %v21 = vld [vmem:[%s0 + $0x18] sm:$0xf]
  %v22 = vld [vmem:[%s0 + $0x1c] sm:$0xf]
  %v23 = vld [vmem:[%s0 + $0x20] sm:$0xf]
  %v24 = vld [vmem:[%s0 + $0x24] sm:$0xf]
  %v25 = vld [vmem:[%s0 + $0x28] sm:$0xf]
  %v26 = vld [vmem:[%s0 + $0x2c] sm:$0xf]
  %v27 = vld [vmem:[%s0 + $0x30] sm:$0xf]
  %v28 = vld [vmem:[%s0 + $0x34] sm:$0xf]
  %v29 = vld [vmem:[%s0 + $0x38] sm:$0xf]
  %v30 = vld [vmem:[%s0 + $0x3c] sm:$0xf]
  %v31 = vld [vmem:[%s1] sm:$0xf]
  %v32 = vld [vmem:[%s1 + $0x4] sm:$0xf]
  %v33 = vld [vmem:[%s1 + $0x8] sm:$0xf]
  %v34 = vld [vmem:[%s1 + $0xc] sm:$0xf]
  %v35 = vld [vmem:[%s1 + $0x10] sm:$0xf]
  %v36 = vld [vmem:[%s1 + $0x14] sm:$0xf]
  %v37 = vld [vmem:[%s2] sm:$0x1]
  %v39 = vlaneseq
  %v40 = vshrl.u32 %v39, 7
  %v41 = vsub.s32 0, %v40
  %v42 = vrot.slane %v37, %v41
  %v60 = vunpack.c.l.b16 %v15
  %v61 = vunpack.c.l.b16 %v16
  %v62 = vunpack.c.l.b16 %v17
  %v63 = vunpack.c.l.b16 %v18
  %v64 = vunpack.c.l.b16 %v19
  %v65 = vunpack.c.l.b16 %v20
  %v66 = vunpack.c.l.b16 %v21
  %v67 = vunpack.c.l.b16 %v22
  %v68 = vunpack.c.l.b16 %v23
  %v69 = vunpack.c.l.b16 %v24
  %v70 = vunpack.c.l.b16 %v25
  %v71 = vunpack.c.l.b16 %v26
  %v72 = vunpack.c.l.b16 %v27
  %v73 = vunpack.c.l.b16 %v28
  %v74 = vunpack.c.l.b16 %v29
  %v75 = vunpack.c.l.b16 %v30
  %v76 = vpack.c.b16 %v61, %v60
  %v77 = vpack.c.b16 %v63, %v62
  %v78 = vpack.c.b16 %v65, %v64
  %v79 = vpack.c.b16 %v67, %v66
  %v80 = vpack.c.b16 %v69, %v68
  %v81 = vpack.c.b16 %v71, %v70
  %v82 = vpack.c.b16 %v73, %v72
  %v83 = vpack.c.b16 %v75, %v74
  %v90 = vunpack.c.l.b16 %v31
  %v91 = vunpack.c.l.b16 %v32
  %v92 = vunpack.c.l.b16 %v33
  %v93 = vunpack.c.l.b16 %v34
  %v94 = vunpack.c.l.b16 %v35
  %v95 = vunpack.c.l.b16 %v36
  %v96 = vpack.c.b16 %v91, %v90
  %v97 = vpack.c.b16 %v93, %v92
  %v98 = vpack.c.b16 %v95, %v94
  %vm102 = vcmask 392192
  %v104 = vsel %vm102, %v76, 0
  %v107 = vsel %vm102, %v77, 0
  %v110 = vsel %vm102, %v78, 0
  %v113 = vsel %vm102, %v79, 0
  %v116 = vsel %vm102, %v80, 0
  %v119 = vsel %vm102, %v81, 0
  %v122 = vsel %vm102, %v82, 0
  %v125 = vsel %vm102, %v83, 0
  %127 = vmatprep.subr.bf16.mxu0 0
  %128 = vmatpush1.bf16.msra.mxu0 %v96
  %129 = vmatprep.subr.bf16.mxu0 0
  %130 = vmatpush1.bf16.msra.mxu0 %v97
  %131 = vmatprep.subr.bf16.mxu0 0
  %132 = vmatpush1.bf16.msra.mxu0 %v98
  %133 = vmatprep.subr.bf16.mxu0 0
  %134 = vmatpush1.bf16.msra.mxu0 0
  %135 = vmatprep.subr.bf16.mxu0 0
  %136 = vmatpush1.bf16.msra.mxu0 0
  %137 = vmatprep.subr.bf16.mxu0 0
  %138 = vmatpush1.bf16.msra.mxu0 0
  %139 = vmatprep.subr.bf16.mxu0 0
  %140 = vmatpush1.bf16.msra.mxu0 0
  %141 = vmatprep.subr.bf16.mxu0 0
  %142 = vmatpush1.bf16.msra.mxu0 0
  %143 = vmatprep.subr.bf16.mxu0 0
  %144 = vmatpush1.bf16.msra.mxu0 0
  %145 = vmatprep.subr.bf16.mxu0 0
  %146 = vmatpush1.bf16.msra.mxu0 0
  %147 = vmatprep.subr.bf16.mxu0 0
  %148 = vmatpush1.bf16.msra.mxu0 0
  %149 = vmatprep.subr.bf16.mxu0 0
  %150 = vmatpush1.bf16.msra.mxu0 0
  %151 = vmatprep.subr.bf16.mxu0 0
  %152 = vmatpush1.bf16.msra.mxu0 0
  %153 = vmatprep.subr.bf16.mxu0 0
  %154 = vmatpush1.bf16.msra.mxu0 0
  %155 = vmatprep.subr.bf16.mxu0 0
  %156 = vmatpush1.bf16.msra.mxu0 0
  %157 = vmatprep.subr.bf16.mxu0 0
  %158 = vmatpush1.bf16.msra.mxu0 0
  %159 = vmatprep.mubr.bf16.mxu0 0
  %160 = vmatmul.mubr.bf16.gmra.mrb[0].mxu0 %v104
  %v161 = vpop.f32.mrb[0].mxu0
  %v162 = vadd.f32 %v42, %v161
  %v163 = vpop.f32.mrb[0].mxu0
  %v164 = vpop.f32.mrb[0].mxu0
  %v165 = vadd.f32 %v42, %v164
  %v166 = vpop.f32.mrb[0].mxu0
  %167 = vmatprep.mubr.bf16.mxu0 0
  %168 = vmatmul.mubr.bf16.gmra.mrb[0].mxu0 %v107
  %v169 = vpop.f32.mrb[0].mxu0
  %v170 = vadd.f32 %v42, %v169
  %v171 = vpop.f32.mrb[0].mxu0
  %v172 = vpop.f32.mrb[0].mxu0
  %v173 = vadd.f32 %v42, %v172
  %v174 = vpop.f32.mrb[0].mxu0
  %175 = vmatprep.mubr.bf16.mxu0 0
  %176 = vmatmul.mubr.bf16.gmra.mrb[0].mxu0 %v110
  %v177 = vpop.f32.mrb[0].mxu0
  %v178 = vadd.f32 %v42, %v177
  %v179 = vpop.f32.mrb[0].mxu0
  %v180 = vpop.f32.mrb[0].mxu0
  %v181 = vadd.f32 %v42, %v180
  %v182 = vpop.f32.mrb[0].mxu0
  %183 = vmatprep.mubr.bf16.mxu0 0
  %184 = vmatmul.mubr.bf16.gmra.mrb[0].mxu0 %v113
  %v185 = vpop.f32.mrb[0].mxu0
  %v186 = vadd.f32 %v42, %v185
  %v187 = vpop.f32.mrb[0].mxu0
  %v188 = vpop.f32.mrb[0].mxu0
  %v189 = vadd.f32 %v42, %v188
  %v190 = vpop.f32.mrb[0].mxu0
  %191 = vmatprep.mubr.bf16.mxu0 0
  %192 = vmatmul.mubr.bf16.gmra.mrb[0].mxu0 %v116
  %v193 = vpop.f32.mrb[0].mxu0
  %v194 = vadd.f32 %v42, %v193
  %v195 = vpop.f32.mrb[0].mxu0
  %v196 = vpop.f32.mrb[0].mxu0
  %v197 = vadd.f32 %v42, %v196
  %v198 = vpop.f32.mrb[0].mxu0
  %199 = vmatprep.mubr.bf16.mxu0 0
  %200 = vmatmul.mubr.bf16.gmra.mrb[0].mxu0 %v119
  %v201 = vpop.f32.mrb[0].mxu0
  %v202 = vadd.f32 %v42, %v201
  %v203 = vpop.f32.mrb[0].mxu0
  %v204 = vpop.f32.mrb[0].mxu0
  %v205 = vadd.f32 %v42, %v204
  %v206 = vpop.f32.mrb[0].mxu0
  %207 = vmatprep.mubr.bf16.mxu0 0
  %208 = vmatmul.mubr.bf16.gmra.mrb[0].mxu0 %v122
  %v209 = vpop.f32.mrb[0].mxu0
  %v210 = vadd.f32 %v42, %v209
  %v211 = vpop.f32.mrb[0].mxu0
  %v212 = vpop.f32.mrb[0].mxu0
  %v213 = vadd.f32 %v42, %v212
  %v214 = vpop.f32.mrb[0].mxu0
  %215 = vmatprep.mubr.bf16.mxu0 0
  %216 = vmatmul.mubr.bf16.gmra.mrb[0].mxu0 %v125
  %v217 = vpop.f32.mrb[0].mxu0
  %v218 = vadd.f32 %v42, %v217
  %v219 = vpop.f32.mrb[0].mxu0
  %v220 = vpop.f32.mrb[0].mxu0
  %v221 = vadd.f32 %v42, %v220
  %v222 = vpop.f32.mrb[0].mxu0
  %223 = vdwg.mxu0
  %vm224 = vcmask 130048
  %225 = vst.msk [vmem:[%s3] sm:$0xff] %vm224, %v162
  %226 = vst.msk [vmem:[%s3 + $0x8] sm:$0xff] %vm224, %v165
  %227 = vst.msk [vmem:[%s3 + $0x10] sm:$0xff] %vm224, %v170
  %228 = vst.msk [vmem:[%s3 + $0x18] sm:$0xff] %vm224, %v173
  %229 = vst.msk [vmem:[%s3 + $0x20] sm:$0xff] %vm224, %v178
  %230 = vst.msk [vmem:[%s3 + $0x28] sm:$0xff] %vm224, %v181
  %231 = vst.msk [vmem:[%s3 + $0x30] sm:$0xff] %vm224, %v186
  %232 = vst.msk [vmem:[%s3 + $0x38] sm:$0xff] %vm224, %v189
  %233 = vst.msk [vmem:[%s3 + $0x40] sm:$0xff] %vm224, %v194
  %234 = vst.msk [vmem:[%s3 + $0x48] sm:$0xff] %vm224, %v197
  %235 = vst.msk [vmem:[%s3 + $0x50] sm:$0xff] %vm224, %v202
  %236 = vst.msk [vmem:[%s3 + $0x58] sm:$0xff] %vm224, %v205
  %237 = vst.msk [vmem:[%s3 + $0x60] sm:$0xff] %vm224, %v210
  %238 = vst.msk [vmem:[%s3 + $0x68] sm:$0xff] %vm224, %v213
  %239 = vst.msk [vmem:[%s3 + $0x70] sm:$0xff] %vm224, %v218
  %240 = vst.msk [vmem:[%s3 + $0x78] sm:$0xff] %vm224, %v221
  // Predicated region
  $region14: #{stable_diffusion3_forward.4} parent=0 // pred_check
    _
  $region15: #{stable_diffusion3_forward.4} parent=0 // pred_check_branch
    %242 = sbr.rel (0) target = $region17
  $region16: #{stable_diffusion3_forward.4} parent=0 // pred_region
    _
  $region17: #{stable_diffusion3_forward.4} parent=0 // pred_fallthru
    _
  // Predicated region
  $region18: #{stable_diffusion3_forward.4} parent=0 // pred_check
    _
  $region19: #{stable_diffusion3_forward.4} parent=0 // pred_check_branch
    %244 = sbr.rel (0) target = $region21
  $region20: #{stable_diffusion3_forward.4} parent=0 // pred_region
    _
  $region21: #{stable_diffusion3_forward.4} parent=0 // pred_fallthru
    _

// kernel: stable_diffusion3_forward.5
$region0: #{stable_diffusion3_forward.5}
  #allocation0 [shape = 'u32[]', space=smem, size = 0x4, offset = 0x4, fixed_abs, tag = 'smem constant byte address 0x4 - core index']
  #allocation1 [shape = 'u32[144,128]{1,0:T(1,128)}', space=vmem, size = 0x12000, scoped, tag = 'internal scratch']
  %s0 = inlined_call_operand.smem [shape: u32[41], index: -1, kind: input, shape index: {}]
  %s1 = sld [smem:[%s0]]
  %s2 = scalar_lea.smem %s0, 1
  %s3 = sld [smem:[%s2]]
  %s4 = scalar_lea.smem %s0, 2
  %s5 = sld [smem:[%s4]]
  %s6 = scalar_lea.smem %s0, 3
  %s7 = sld [smem:[%s6]]
  %s8 = scalar_lea.smem %s0, 4
  %s9 = sld [smem:[%s8]]
  %s10 = scalar_lea.smem %s0, 5
  %s11 = sld [smem:[%s10]]
  %s12 = scalar_lea.smem %s0, 6
  %s13 = sld [smem:[%s12]]
  %s14 = scalar_lea.smem %s0, 7
  %s15 = sld [smem:[%s14]]
  %s16 = scalar_lea.smem %s0, 8
  %s17 = sld [smem:[%s16]]
  %s18 = scalar_lea.smem %s0, 9
  %s19 = sld [smem:[%s18]]
  %s20 = scalar_lea.smem %s0, 10
  %s21 = sld [smem:[%s20]]
  %s22 = scalar_lea.smem %s0, 11
  %s23 = sld [smem:[%s22]]
  %s24 = scalar_lea.smem %s0, 12
  %s25 = sld [smem:[%s24]]
  %s26 = scalar_lea.smem %s0, 13
  %s27 = sld [smem:[%s26]]
  %s28 = scalar_lea.smem %s0, 14
  %s29 = sld [smem:[%s28]]
  %s30 = scalar_lea.smem %s0, 15
  %s31 = sld [smem:[%s30]]
  %s32 = scalar_lea.smem %s0, 16
  %s33 = sld [smem:[%s32]]
  %s34 = scalar_lea.smem %s0, 17
  %s35 = sld [smem:[%s34]]
  %s36 = scalar_lea.smem %s0, 18
  %s37 = sld [smem:[%s36]]
  %s38 = scalar_lea.smem %s0, 19
  %s39 = sld [smem:[%s38]]
  %s40 = scalar_lea.smem %s0, 20
  %s41 = sld [smem:[%s40]]
  %s42 = scalar_lea.smem %s0, 21
  %s43 = sld [smem:[%s42]]
  %s44 = scalar_lea.smem %s0, 22
  %s45 = sld [smem:[%s44]]
  %s46 = scalar_lea.smem %s0, 23
  %s47 = sld [smem:[%s46]]
  %s48 = scalar_lea.smem %s0, 24
  %s49 = sld [smem:[%s48]]
  %s50 = scalar_lea.smem %s0, 25
  %s51 = sld [smem:[%s50]]
  %s52 = scalar_lea.smem %s0, 26
  %s53 = sld [smem:[%s52]]
  %s54 = scalar_lea.smem %s0, 27
  %s55 = sld [smem:[%s54]]
  %s56 = scalar_lea.smem %s0, 28
  %s57 = sld [smem:[%s56]]
  %s58 = scalar_lea.smem %s0, 29
  %s59 = sld [smem:[%s58]]
  %s60 = scalar_lea.smem %s0, 30
  %s61 = sld [smem:[%s60]]
  %s62 = scalar_lea.smem %s0, 31
  %s63 = sld [smem:[%s62]]
  %s64 = scalar_lea.smem %s0, 32
  %s65 = sld [smem:[%s64]]
  %s66 = scalar_lea.smem %s0, 33
  %s67 = sld [smem:[%s66]]
  %s68 = scalar_lea.smem %s0, 34
  %s69 = sld [smem:[%s68]]
  %s70 = scalar_lea.smem %s0, 35
  %s71 = sld [smem:[%s70]]
  %s72 = scalar_lea.smem %s0, 36
  %s73 = sld [smem:[%s72]]
  %s74 = scalar_lea.smem %s0, 37
  %s75 = sld [smem:[%s74]]
  %s76 = scalar_lea.smem %s0, 38
  %s77 = sld [smem:[%s76]]
  %s78 = scalar_lea.smem %s0, 39
  %s79 = sld [smem:[%s78]]
  %s80 = scalar_lea.smem %s0, 40
  %s81 = sld [smem:[%s80]]
  %s82 = sld [smem:[#allocation0]]
  $region178: #{stable_diffusion3_forward.5} parent=0
    _
  %s84 = ssub.s32 1, %s82
  %s85 = scalar_select 0, %s84, %s82
  $region1: #{stable_diffusion3_forward.5} parent=0
    #allocation2 [shape = 'u8[512]{0}', space=vmem, size = 0x400, scoped, tag = 'input window, operand 35, single buffered']
    #allocation3 [shape = 's32[1]{0}', space=sflag, size = 0x4, scoped, tag = 'scoped memory for stable_diffusion3_forward.5']
    #allocation4 [shape = 'u8[512]{0}', space=vmem, size = 0x400, scoped, tag = 'input window, operand 39, single buffered']
    #allocation5 [shape = 's32[1]{0}', space=sflag, size = 0x4, scoped, tag = 'scoped memory for stable_diffusion3_forward.5']
    %86 = vsyncpa [#allocation3], 0
    %87 = vsyncpa [#allocation5], 0
    // Predicated region
    $region2: #{stable_diffusion3_forward.5} parent=1 // pred_check
      _
    $region3: #{stable_diffusion3_forward.5} parent=1 // pred_check_branch
      %89 = sbr.rel (0) target = $region5
    $region4: #{stable_diffusion3_forward.5} parent=1 // pred_region
      _
    $region5: #{stable_diffusion3_forward.5} parent=1 // pred_fallthru
      _
    // Predicated region
    $region6: #{stable_diffusion3_forward.5} parent=1 // pred_check
      _
    $region7: #{stable_diffusion3_forward.5} parent=1 // pred_check_branch
      %91 = sbr.rel (0) target = $region9
    $region8: #{stable_diffusion3_forward.5} parent=1 // pred_region
      _
    $region9: #{stable_diffusion3_forward.5} parent=1 // pred_fallthru
      _
    // Predicated region
    $region10: #{stable_diffusion3_forward.5} parent=1 // pred_check
      _
    $region11: #{stable_diffusion3_forward.5} parent=1 // pred_check_branch
      %93 = sbr.rel (0) target = $region13
    $region12: #{stable_diffusion3_forward.5} parent=1 // pred_region
      _
    $region13: #{stable_diffusion3_forward.5} parent=1 // pred_fallthru
      _
    // Predicated region
    $region14: #{stable_diffusion3_forward.5} parent=1 // pred_check
      _
    $region15: #{stable_diffusion3_forward.5} parent=1 // pred_check_branch
      %95 = sbr.rel (0) target = $region17
    $region16: #{stable_diffusion3_forward.5} parent=1 // pred_region
      _
    $region17: #{stable_diffusion3_forward.5} parent=1 // pred_fallthru
      _
    // Predicated region
    $region18: #{stable_diffusion3_forward.5} parent=1 // pred_check
      _
    $region19: #{stable_diffusion3_forward.5} parent=1 // pred_check_branch
      %97 = sbr.rel (0) target = $region21
    $region20: #{stable_diffusion3_forward.5} parent=1 // pred_region
      _
    $region21: #{stable_diffusion3_forward.5} parent=1 // pred_fallthru
      _
    // Predicated region
    $region22: #{stable_diffusion3_forward.5} parent=1 // pred_check
      _
    $region23: #{stable_diffusion3_forward.5} parent=1 // pred_check_branch
      %99 = sbr.rel (0) target = $region25
    $region24: #{stable_diffusion3_forward.5} parent=1 // pred_region
      _
    $region25: #{stable_diffusion3_forward.5} parent=1 // pred_fallthru
      _
    // Predicated region
    $region26: #{stable_diffusion3_forward.5} parent=1 // pred_check
      _
    $region27: #{stable_diffusion3_forward.5} parent=1 // pred_check_branch
      %101 = sbr.rel (0) target = $region29
    $region28: #{stable_diffusion3_forward.5} parent=1 // pred_region
      _
    $region29: #{stable_diffusion3_forward.5} parent=1 // pred_fallthru
      _
    // Predicated region
    $region30: #{stable_diffusion3_forward.5} parent=1 // pred_check
      _
    $region31: #{stable_diffusion3_forward.5} parent=1 // pred_check_branch
      %103 = sbr.rel (0) target = $region33
    $region32: #{stable_diffusion3_forward.5} parent=1 // pred_region
      _
    $region33: #{stable_diffusion3_forward.5} parent=1 // pred_fallthru
      _
    // Predicated region
    $region34: #{stable_diffusion3_forward.5} parent=1 // pred_check
      _
    $region35: #{stable_diffusion3_forward.5} parent=1 // pred_check_branch
      %105 = sbr.rel (0) target = $region37
    $region36: #{stable_diffusion3_forward.5} parent=1 // pred_region
      _
    $region37: #{stable_diffusion3_forward.5} parent=1 // pred_fallthru
      _
    // Predicated region
    $region38: #{stable_diffusion3_forward.5} parent=1 // pred_check
      _
    $region39: #{stable_diffusion3_forward.5} parent=1 // pred_check_branch
      %107 = sbr.rel (0) target = $region41
    $region40: #{stable_diffusion3_forward.5} parent=1 // pred_region
      _
    $region41: #{stable_diffusion3_forward.5} parent=1 // pred_fallthru
      _
    // Predicated region
    $region42: #{stable_diffusion3_forward.5} parent=1 // pred_check
      _
    $region43: #{stable_diffusion3_forward.5} parent=1 // pred_check_branch
      %109 = sbr.rel (0) target = $region45
    $region44: #{stable_diffusion3_forward.5} parent=1 // pred_region
      _
    $region45: #{stable_diffusion3_forward.5} parent=1 // pred_fallthru
      _
    // Predicated region
    $region46: #{stable_diffusion3_forward.5} parent=1 // pred_check
      _
    $region47: #{stable_diffusion3_forward.5} parent=1 // pred_check_branch
      %111 = sbr.rel (0) target = $region49
    $region48: #{stable_diffusion3_forward.5} parent=1 // pred_region
      _
    $region49: #{stable_diffusion3_forward.5} parent=1 // pred_fallthru
      _
    // Predicated region
    $region50: #{stable_diffusion3_forward.5} parent=1 // pred_check
      _
    $region51: #{stable_diffusion3_forward.5} parent=1 // pred_check_branch
      %113 = sbr.rel (0) target = $region53
    $region52: #{stable_diffusion3_forward.5} parent=1 // pred_region
      _
    $region53: #{stable_diffusion3_forward.5} parent=1 // pred_fallthru
      _
    // Predicated region
    $region54: #{stable_diffusion3_forward.5} parent=1 // pred_check
      _
    $region55: #{stable_diffusion3_forward.5} parent=1 // pred_check_branch
      %115 = sbr.rel (0) target = $region57
    $region56: #{stable_diffusion3_forward.5} parent=1 // pred_region
      _
    $region57: #{stable_diffusion3_forward.5} parent=1 // pred_fallthru
      _
    // Predicated region
    $region58: #{stable_diffusion3_forward.5} parent=1 // pred_check
      _
    $region59: #{stable_diffusion3_forward.5} parent=1 // pred_check_branch
      %117 = sbr.rel (0) target = $region61
    $region60: #{stable_diffusion3_forward.5} parent=1 // pred_region
      _
    $region61: #{stable_diffusion3_forward.5} parent=1 // pred_fallthru
      _
    // Predicated region
    $region62: #{stable_diffusion3_forward.5} parent=1 // pred_check
      _
    $region63: #{stable_diffusion3_forward.5} parent=1 // pred_check_branch
      %119 = sbr.rel (0) target = $region65
    $region64: #{stable_diffusion3_forward.5} parent=1 // pred_region
      _
    $region65: #{stable_diffusion3_forward.5} parent=1 // pred_fallthru
      _
    // Predicated region
    $region66: #{stable_diffusion3_forward.5} parent=1 // pred_check
      _
    $region67: #{stable_diffusion3_forward.5} parent=1 // pred_check_branch
      %121 = sbr.rel (0) target = $region69
    $region68: #{stable_diffusion3_forward.5} parent=1 // pred_region
      _
    $region69: #{stable_diffusion3_forward.5} parent=1 // pred_fallthru
      _
    // Predicated region
    $region70: #{stable_diffusion3_forward.5} parent=1 // pred_check
      _
    $region71: #{stable_diffusion3_forward.5} parent=1 // pred_check_branch
      %123 = sbr.rel (0) target = $region73
    $region72: #{stable_diffusion3_forward.5} parent=1 // pred_region
      _
    $region73: #{stable_diffusion3_forward.5} parent=1 // pred_fallthru
      _
    // Predicated region
    $region74: #{stable_diffusion3_forward.5} parent=1 // pred_check
      _
    $region75: #{stable_diffusion3_forward.5} parent=1 // pred_check_branch
      %125 = sbr.rel (0) target = $region77
    $region76: #{stable_diffusion3_forward.5} parent=1 // pred_region
      _
    $region77: #{stable_diffusion3_forward.5} parent=1 // pred_fallthru
      _
    // Predicated region
    $region78: #{stable_diffusion3_forward.5} parent=1 // pred_check
      _
    $region79: #{stable_diffusion3_forward.5} parent=1 // pred_check_branch
      %127 = sbr.rel (0) target = $region81
    $region80: #{stable_diffusion3_forward.5} parent=1 // pred_region
      _
    $region81: #{stable_diffusion3_forward.5} parent=1 // pred_fallthru
      _
    // Predicated region
    $region82: #{stable_diffusion3_forward.5} parent=1 // pred_check
      _
    $region83: #{stable_diffusion3_forward.5} parent=1 // pred_check_branch
      %129 = sbr.rel (0) target = $region85
    $region84: #{stable_diffusion3_forward.5} parent=1 // pred_region
      _
    $region85: #{stable_diffusion3_forward.5} parent=1 // pred_fallthru
      _
    // Predicated region
    $region86: #{stable_diffusion3_forward.5} parent=1 // pred_check
      _
    $region87: #{stable_diffusion3_forward.5} parent=1 // pred_check_branch
      %131 = sbr.rel (0) target = $region89
    $region88: #{stable_diffusion3_forward.5} parent=1 // pred_region
      _
    $region89: #{stable_diffusion3_forward.5} parent=1 // pred_fallthru
      _
    // Predicated region
    $region90: #{stable_diffusion3_forward.5} parent=1 // pred_check
      _
    $region91: #{stable_diffusion3_forward.5} parent=1 // pred_check_branch
      %133 = sbr.rel (0) target = $region93
    $region92: #{stable_diffusion3_forward.5} parent=1 // pred_region
      _
    $region93: #{stable_diffusion3_forward.5} parent=1 // pred_fallthru
      _
    // Predicated region
    $region94: #{stable_diffusion3_forward.5} parent=1 // pred_check
      _
    $region95: #{stable_diffusion3_forward.5} parent=1 // pred_check_branch
      %135 = sbr.rel (0) target = $region97
    $region96: #{stable_diffusion3_forward.5} parent=1 // pred_region
      _
    $region97: #{stable_diffusion3_forward.5} parent=1 // pred_fallthru
      _
    // Predicated region
    $region98: #{stable_diffusion3_forward.5} parent=1 // pred_check
      _
    $region99: #{stable_diffusion3_forward.5} parent=1 // pred_check_branch
      %137 = sbr.rel (0) target = $region101
    $region100: #{stable_diffusion3_forward.5} parent=1 // pred_region
      _
    $region101: #{stable_diffusion3_forward.5} parent=1 // pred_fallthru
      _
    // Predicated region
    $region102: #{stable_diffusion3_forward.5} parent=1 // pred_check
      _
    $region103: #{stable_diffusion3_forward.5} parent=1 // pred_check_branch
      %139 = sbr.rel (0) target = $region105
    $region104: #{stable_diffusion3_forward.5} parent=1 // pred_region
      _
    $region105: #{stable_diffusion3_forward.5} parent=1 // pred_fallthru
      _
    // Predicated region
    $region106: #{stable_diffusion3_forward.5} parent=1 // pred_check
      _
    $region107: #{stable_diffusion3_forward.5} parent=1 // pred_check_branch
      %141 = sbr.rel (0) target = $region109
    $region108: #{stable_diffusion3_forward.5} parent=1 // pred_region
      _
    $region109: #{stable_diffusion3_forward.5} parent=1 // pred_fallthru
      _
    // Predicated region
    $region110: #{stable_diffusion3_forward.5} parent=1 // pred_check
      _
    $region111: #{stable_diffusion3_forward.5} parent=1 // pred_check_branch
      %143 = sbr.rel (0) target = $region113
    $region112: #{stable_diffusion3_forward.5} parent=1 // pred_region
      _
    $region113: #{stable_diffusion3_forward.5} parent=1 // pred_fallthru
      _
    // Predicated region
    $region114: #{stable_diffusion3_forward.5} parent=1 // pred_check
      _
    $region115: #{stable_diffusion3_forward.5} parent=1 // pred_check_branch
      %145 = sbr.rel (0) target = $region117
    $region116: #{stable_diffusion3_forward.5} parent=1 // pred_region
      _
    $region117: #{stable_diffusion3_forward.5} parent=1 // pred_fallthru
      _
    // Predicated region
    $region118: #{stable_diffusion3_forward.5} parent=1 // pred_check
      _
    $region119: #{stable_diffusion3_forward.5} parent=1 // pred_check_branch
      %147 = sbr.rel (0) target = $region121
    $region120: #{stable_diffusion3_forward.5} parent=1 // pred_region
      _
    $region121: #{stable_diffusion3_forward.5} parent=1 // pred_fallthru
      _
    // Predicated region
    $region122: #{stable_diffusion3_forward.5} parent=1 // pred_check
      _
    $region123: #{stable_diffusion3_forward.5} parent=1 // pred_check_branch
      %149 = sbr.rel (0) target = $region125
    $region124: #{stable_diffusion3_forward.5} parent=1 // pred_region
      _
    $region125: #{stable_diffusion3_forward.5} parent=1 // pred_fallthru
      _
    // Predicated region
    $region126: #{stable_diffusion3_forward.5} parent=1 // pred_check
      _
    $region127: #{stable_diffusion3_forward.5} parent=1 // pred_check_branch
      %151 = sbr.rel (0) target = $region129
    $region128: #{stable_diffusion3_forward.5} parent=1 // pred_region
      _
    $region129: #{stable_diffusion3_forward.5} parent=1 // pred_fallthru
      _
    // Predicated region
    $region130: #{stable_diffusion3_forward.5} parent=1 // pred_check
      _
    $region131: #{stable_diffusion3_forward.5} parent=1 // pred_check_branch
      %153 = sbr.rel (0) target = $region133
    $region132: #{stable_diffusion3_forward.5} parent=1 // pred_region
      _
    $region133: #{stable_diffusion3_forward.5} parent=1 // pred_fallthru
      _
    // Predicated region
    $region134: #{stable_diffusion3_forward.5} parent=1 // pred_check
      _
    $region135: #{stable_diffusion3_forward.5} parent=1 // pred_check_branch
      %155 = sbr.rel (0) target = $region137
    $region136: #{stable_diffusion3_forward.5} parent=1 // pred_region
      _
    $region137: #{stable_diffusion3_forward.5} parent=1 // pred_fallthru
      _
    // Predicated region
    $region138: #{stable_diffusion3_forward.5} parent=1 // pred_check
      _
    $region139: #{stable_diffusion3_forward.5} parent=1 // pred_check_branch
      %157 = sbr.rel (0) target = $region141
    $region140: #{stable_diffusion3_forward.5} parent=1 // pred_region
      _
    $region141: #{stable_diffusion3_forward.5} parent=1 // pred_fallthru
      _
    // Predicated region
    $region142: #{stable_diffusion3_forward.5} parent=1 // pred_check
      _
    $region143: #{stable_diffusion3_forward.5} parent=1 // pred_check_branch
      %159 = sbr.rel (0) target = $region145
    $region144: #{stable_diffusion3_forward.5} parent=1 // pred_region
      %s161 = ssub.s32 16, 16
      %162 = vsyncadd [#allocation3], %s161
      %s164 = sshll.u32 [#allocation2], 4
      %s165 = int_to_ptr.vmem [resolvable:$true] %s164
      %167 = dma.hbm_to_vmem [thread:$0]  %s71, 16, %s165, [#allocation3]
    $region145: #{stable_diffusion3_forward.5} parent=1 // pred_fallthru
      _
    // Predicated region
    $region146: #{stable_diffusion3_forward.5} parent=1 // pred_check
      _
    $region147: #{stable_diffusion3_forward.5} parent=1 // pred_check_branch
      %169 = sbr.rel (0) target = $region149
    $region148: #{stable_diffusion3_forward.5} parent=1 // pred_region
      _
    $region149: #{stable_diffusion3_forward.5} parent=1 // pred_fallthru
      _
    // Predicated region
    $region150: #{stable_diffusion3_forward.5} parent=1 // pred_check
      _
    $region151: #{stable_diffusion3_forward.5} parent=1 // pred_check_branch
      %171 = sbr.rel (0) target = $region153
    $region152: #{stable_diffusion3_forward.5} parent=1 // pred_region
      _
    $region153: #{stable_diffusion3_forward.5} parent=1 // pred_fallthru
      _
    // Predicated region
    $region154: #{stable_diffusion3_forward.5} parent=1 // pred_check
      _
    $region155: #{stable_diffusion3_forward.5} parent=1 // pred_check_branch
      %173 = sbr.rel (0) target = $region157
    $region156: #{stable_diffusion3_forward.5} parent=1 // pred_region
      _
    $region157: #{stable_diffusion3_forward.5} parent=1 // pred_fallthru
      _
    // Predicated region
    $region158: #{stable_diffusion3_forward.5} parent=1 // pred_check
      _
    $region159: #{stable_diffusion3_forward.5} parent=1 // pred_check_branch
      %175 = sbr.rel (0) target = $region161
    $region160: #{stable_diffusion3_forward.5} parent=1 // pred_region
      %s177 = ssub.s32 16, 16
      %178 = vsyncadd [#allocation5], %s177
      %s180 = sshll.u32 [#allocation4], 4
      %s181 = int_to_ptr.vmem [resolvable:$true] %s180
      %183 = dma.hbm_to_vmem [thread:$0]  %s79, 16, %s181, [#allocation5]
    $region161: #{stable_diffusion3_forward.5} parent=1 // pred_fallthru
      _
    // Predicated region
    $region162: #{stable_diffusion3_forward.5} parent=1 // pred_check
      _
    $region163: #{stable_diffusion3_forward.5} parent=1 // pred_check_branch
      %185 = sbr.rel (0) target = $region165
    $region164: #{stable_diffusion3_forward.5} parent=1 // pred_region
      %186 = dma.done [#allocation3], 16
    $region165: #{stable_diffusion3_forward.5} parent=1 // pred_fallthru
      _
    // Predicated region
    $region166: #{stable_diffusion3_forward.5} parent=1 // pred_check
      _
    $region167: #{stable_diffusion3_forward.5} parent=1 // pred_check_branch
      %188 = sbr.rel (0) target = $region169
    $region168: #{stable_diffusion3_forward.5} parent=1 // pred_region
      %189 = dma.done [#allocation5], 16
    $region169: #{stable_diffusion3_forward.5} parent=1 // pred_fallthru
      _
    %v191 = vld [vmem:[%s1] sm:$0xf]
    %v192 = vld [vmem:[%s1 + $0x4] sm:$0xf]
    %v193 = vld [vmem:[%s1 + $0x8] sm:$0xf]
    %v194 = vld [vmem:[%s1 + $0xc] sm:$0xf]
    %v195 = vld [vmem:[%s3] sm:$0xf]
    %v196 = vld [vmem:[%s3 + $0x4] sm:$0xf]
    %v197 = vld [vmem:[%s3 + $0x8] sm:$0xf]
    %v198 = vld [vmem:[%s3 + $0xc] sm:$0xf]
    %v199 = vld [vmem:[%s5] sm:$0x1]
    %v201 = vlaneseq
    %v202 = vshrl.u32 %v201, 7
    %v203 = vsub.s32 0, %v202
    %v204 = vrot.slane %v199, %v203
    %v210 = vunpack.c.l.b16 %v191
    %v211 = vunpack.c.l.b16 %v192
    %v212 = vunpack.c.l.b16 %v193
    %v213 = vunpack.c.l.b16 %v194
    %v214 = vpack.c.b16 %v211, %v210
    %v215 = vpack.c.b16 %v213, %v212
    %v220 = vunpack.c.l.b16 %v195
    %v221 = vunpack.c.l.b16 %v196
    %v222 = vunpack.c.l.b16 %v197
    %v223 = vunpack.c.l.b16 %v198
    %v224 = vpack.c.b16 %v221, %v220
    %v225 = vpack.c.b16 %v223, %v222
    %vm228 = vcmask 261120
    %v230 = vsel %vm228, %v214, 0
    %v233 = vsel %vm228, %v215, 0
    %235 = vmatprep.subr.bf16.mxu0 0
    %236 = vmatpush1.bf16.msra.mxu0 %v224
    %237 = vmatprep.subr.bf16.mxu0 0
    %238 = vmatpush1.bf16.msra.mxu0 %v225
    %239 = vmatprep.subr.bf16.mxu0 0
    %240 = vmatpush1.bf16.msra.mxu0 0
    %241 = vmatprep.subr.bf16.mxu0 0
    %242 = vmatpush1.bf16.msra.mxu0 0
    %243 = vmatprep.subr.bf16.mxu0 0
    %244 = vmatpush1.bf16.msra.mxu0 0
    %245 = vmatprep.subr.bf16.mxu0 0
    %246 = vmatpush1.bf16.msra.mxu0 0
    %247 = vmatprep.subr.bf16.mxu0 0
    %248 = vmatpush1.bf16.msra.mxu0 0
    %249 = vmatprep.subr.bf16.mxu0 0
    %250 = vmatpush1.bf16.msra.mxu0 0
    %251 = vmatprep.subr.bf16.mxu0 0
    %252 = vmatpush1.bf16.msra.mxu0 0
    %253 = vmatprep.subr.bf16.mxu0 0
    %254 = vmatpush1.bf16.msra.mxu0 0
    %255 = vmatprep.subr.bf16.mxu0 0
    %256 = vmatpush1.bf16.msra.mxu0 0
    %257 = vmatprep.subr.bf16.mxu0 0
    %258 = vmatpush1.bf16.msra.mxu0 0
    %259 = vmatprep.subr.bf16.mxu0 0
    %260 = vmatpush1.bf16.msra.mxu0 0
    %261 = vmatprep.subr.bf16.mxu0 0
    %262 = vmatpush1.bf16.msra.mxu0 0
    %263 = vmatprep.subr.bf16.mxu0 0
    %264 = vmatpush1.bf16.msra.mxu0 0
    %265 = vmatprep.subr.bf16.mxu0 0
    %266 = vmatpush1.bf16.msra.mxu0 0
    %267 = vmatprep.mubr.bf16.mxu0 0
    %268 = vmatmul.mubr.bf16.gmra.mrb[0].mxu0 %v230
    %v269 = vpop.f32.mrb[0].mxu0
    %v270 = vadd.f32 %v204, %v269
    %v271 = vpop.f32.mrb[0].mxu0
    %v272 = vpop.f32.mrb[0].mxu0
    %v273 = vadd.f32 %v204, %v272
    %v274 = vpop.f32.mrb[0].mxu0
    %275 = vmatprep.mubr.bf16.mxu0 0
    %276 = vmatmul.mubr.bf16.gmra.mrb[0].mxu0 %v233
    %v277 = vpop.f32.mrb[0].mxu0
    %v278 = vadd.f32 %v204, %v277
    %v279 = vpop.f32.mrb[0].mxu0
    %v280 = vpop.f32.mrb[0].mxu0
    %v281 = vadd.f32 %v204, %v280
    %v282 = vpop.f32.mrb[0].mxu0
    %283 = vdwg.mxu0
    %v284 = vld [vmem:[%s7] sm:$0xff]
    %v285 = vld [vmem:[%s7 + $0x8] sm:$0xff]
    %v286 = vld [vmem:[%s7 + $0x10] sm:$0xff]
    %v287 = vld [vmem:[%s7 + $0x18] sm:$0xff]
    %v288 = vadd.f32 %v270, %v284
    %v289 = vadd.f32 %v273, %v285
    %v290 = vadd.f32 %v278, %v286
    %v291 = vadd.f32 %v281, %v287
    %v292 = vld [vmem:[%s9] sm:$0x3]
    %v293 = vld [vmem:[%s11] sm:$0x1]
    %v294 = vxor.u32 %v293, 2147483648
    %v295 = vmul.f32 %v294, 1.442695
    %v296 = vpow.pop %v295
    %v297 = vadd.f32 %v296, 1.0
    %v298 = vrcp.pop %v297
    %v299 = vmul.f32 1.0, %v298
    %v300 = vmul.f32 %v293, %v299
    %v301 = vpack.c.bf16 %v300, %v300
    %v302 = vld [vmem:[%s13] sm:$0xff]
    %v303 = vld [vmem:[%s13 + $0x8] sm:$0xf]
    %v304 = vld [vmem:[%s13 + $0xc] sm:$0xff]
    %v305 = vld [vmem:[%s13 + $0x14] sm:$0xf]
    %v306 = vld [vmem:[%s13 + $0x18] sm:$0xff]
    %v307 = vld [vmem:[%s13 + $0x20] sm:$0xf]
    %v308 = vld [vmem:[%s13 + $0x24] sm:$0xff]
    %v309 = vld [vmem:[%s13 + $0x2c] sm:$0xf]
    %v310 = vld [vmem:[%s13 + $0x30] sm:$0xff]
    %v311 = vld [vmem:[%s13 + $0x38] sm:$0xf]
    %v312 = vld [vmem:[%s13 + $0x3c] sm:$0xff]
    %v313 = vld [vmem:[%s13 + $0x44] sm:$0xf]
    %v314 = vld [vmem:[%s13 + $0x48] sm:$0xff]
    %v315 = vld [vmem:[%s13 + $0x50] sm:$0xf]
    %v316 = vld [vmem:[%s13 + $0x54] sm:$0xff]
    %v317 = vld [vmem:[%s13 + $0x5c] sm:$0xf]
    %v318 = vld [vmem:[%s15] sm:$0x7]
    %v335 = vunpack.c.l.b16 %v302
    %v336 = vunpack.c.h.b16 %v302
    %v337 = vunpack.c.l.b16 %v303
    %v338 = vunpack.c.l.b16 %v304
    %v339 = vunpack.c.h.b16 %v304
    %v340 = vunpack.c.l.b16 %v305
    %v341 = vunpack.c.l.b16 %v306
    %v342 = vunpack.c.h.b16 %v306
    %v343 = vunpack.c.l.b16 %v307
    %v344 = vunpack.c.l.b16 %v308
    %v345 = vunpack.c.h.b16 %v308
    %v346 = vunpack.c.l.b16 %v309
    %v347 = vunpack.c.l.b16 %v310
    %v348 = vunpack.c.h.b16 %v310
    %v349 = vunpack.c.l.b16 %v311
    %v350 = vunpack.c.l.b16 %v312
    %v351 = vunpack.c.h.b16 %v312
    %v352 = vunpack.c.l.b16 %v313
    %v353 = vunpack.c.l.b16 %v314
    %v354 = vunpack.c.h.b16 %v314
    %v355 = vunpack.c.l.b16 %v315
    %v356 = vunpack.c.l.b16 %v316
    %v357 = vunpack.c.h.b16 %v316
    %v358 = vunpack.c.l.b16 %v317
    %v359 = vpack.c.b16 %v338, %v335
    %v360 = vpack.c.b16 %v339, %v336
    %v361 = vpack.c.b16 %v340, %v337
    %v362 = vpack.c.b16 %v344, %v341
    %v363 = vpack.c.b16 %v345, %v342
    %v364 = vpack.c.b16 %v346, %v343
    %v365 = vpack.c.b16 %v350, %v347
    %v366 = vpack.c.b16 %v351, %v348
    %v367 = vpack.c.b16 %v352, %v349
    %v368 = vpack.c.b16 %v356, %v353
    %v369 = vpack.c.b16 %v357, %v354
    %v370 = vpack.c.b16 %v358, %v355
    %v384 = vlaneseq
    %v385 = vshrl.u32 %v384, 7
    %v386 = vsub.s32 0, %v385
    %v387 = vrot.slane %v318, %v386
    %v388 = vlaneseq
    %v389 = vshrl.u32 %v388, 7
    %v390 = vsub.s32 1, %v389
    %v391 = vrot.slane %v318, %v390
    %v392 = vlaneseq
    %v393 = vshrl.u32 %v392, 7
    %v394 = vsub.s32 2, %v393
    %v395 = vrot.slane %v318, %v394
    %vm399 = vcmask 523264
    %v401 = vsel %vm399, %v301, 0
    %403 = vmatprep.subr.bf16.mxu0 %v360
    %404 = vmatpush1.bf16.msra.mxu0 %v359
    %405 = vmatprep.subr.bf16.mxu0 %v363
    %406 = vmatpush1.bf16.msra.mxu0 %v362
    %407 = vmatprep.subr.bf16.mxu0 %v366
    %408 = vmatpush1.bf16.msra.mxu0 %v365
    %409 = vmatprep.subr.bf16.mxu0 %v369
    %410 = vmatpush1.bf16.msra.mxu0 %v368
    %411 = vmatprep.subr.bf16.mxu0 0
    %412 = vmatpush1.bf16.msra.mxu0 0
    %413 = vmatprep.subr.bf16.mxu0 0
    %414 = vmatpush1.bf16.msra.mxu0 0
    %415 = vmatprep.subr.bf16.mxu0 0
    %416 = vmatpush1.bf16.msra.mxu0 0
    %417 = vmatprep.subr.bf16.mxu0 0
    %418 = vmatpush1.bf16.msra.mxu0 0
    %419 = vmatprep.subr.bf16.mxu0 0
    %420 = vmatpush1.bf16.msra.mxu0 0
    %421 = vmatprep.subr.bf16.mxu0 0
    %422 = vmatpush1.bf16.msra.mxu0 0
    %423 = vmatprep.subr.bf16.mxu0 0
    %424 = vmatpush1.bf16.msra.mxu0 0
    %425 = vmatprep.subr.bf16.mxu0 0
    %426 = vmatpush1.bf16.msra.mxu0 0
    %427 = vmatprep.subr.bf16.mxu0 0
    %428 = vmatpush1.bf16.msra.mxu0 0
    %429 = vmatprep.subr.bf16.mxu0 0
    %430 = vmatpush1.bf16.msra.mxu0 0
    %431 = vmatprep.subr.bf16.mxu0 0
    %432 = vmatpush1.bf16.msra.mxu0 0
    %433 = vmatprep.subr.bf16.mxu0 0
    %434 = vmatpush1.bf16.msra.mxu0 0
    %435 = vmatprep.mubr.bf16.mxu0 0
    %436 = vmatmul.mubr.bf16.gmra.mrb[0].mxu0 %v401
    %v437 = vpop.f32.mrb[0].mxu0
    %v438 = vadd.f32 %v387, %v437
    %v439 = vpop.f32.mrb[0].mxu0
    %v440 = vadd.f32 %v391, %v439
    %v441 = vpop.f32.mrb[0].mxu0
    %v442 = vpop.f32.mrb[0].mxu0
    %443 = vdwg.mxu0
    %444 = vmatprep.subr.bf16.mxu0 0
    %445 = vmatpush1.bf16.msra.mxu0 %v361
    %446 = vmatprep.subr.bf16.mxu0 0
    %447 = vmatpush1.bf16.msra.mxu0 %v364
    %448 = vmatprep.subr.bf16.mxu0 0
    %449 = vmatpush1.bf16.msra.mxu0 %v367
    %450 = vmatprep.subr.bf16.mxu0 0
    %451 = vmatpush1.bf16.msra.mxu0 %v370
    %452 = vmatprep.subr.bf16.mxu0 0
    %453 = vmatpush1.bf16.msra.mxu0 0
    %454 = vmatprep.subr.bf16.mxu0 0
    %455 = vmatpush1.bf16.msra.mxu0 0
    %456 = vmatprep.subr.bf16.mxu0 0
    %457 = vmatpush1.bf16.msra.mxu0 0
    %458 = vmatprep.subr.bf16.mxu0 0
    %459 = vmatpush1.bf16.msra.mxu0 0
    %460 = vmatprep.subr.bf16.mxu0 0
    %461 = vmatpush1.bf16.msra.mxu0 0
    %462 = vmatprep.subr.bf16.mxu0 0
    %463 = vmatpush1.bf16.msra.mxu0 0
    %464 = vmatprep.subr.bf16.mxu0 0
    %465 = vmatpush1.bf16.msra.mxu0 0
    %466 = vmatprep.subr.bf16.mxu0 0
    %467 = vmatpush1.bf16.msra.mxu0 0
    %468 = vmatprep.subr.bf16.mxu0 0
    %469 = vmatpush1.bf16.msra.mxu0 0
    %470 = vmatprep.subr.bf16.mxu0 0
    %471 = vmatpush1.bf16.msra.mxu0 0
    %472 = vmatprep.subr.bf16.mxu0 0
    %473 = vmatpush1.bf16.msra.mxu0 0
    %474 = vmatprep.subr.bf16.mxu0 0
    %475 = vmatpush1.bf16.msra.mxu0 0
    %476 = vmatprep.mubr.bf16.mxu0 0
    %477 = vmatmul.mubr.bf16.gmra.mrb[0].mxu0 %v401
    %v478 = vpop.f32.mrb[0].mxu0
    %v479 = vadd.f32 %v395, %v478
    %v480 = vpop.f32.mrb[0].mxu0
    %v481 = vpop.f32.mrb[0].mxu0
    %v482 = vpop.f32.mrb[0].mxu0
    %483 = vdwg.mxu0
    %v484 = vld [vmem:[%s17] sm:$0xff]
    %v485 = vld [vmem:[%s17 + $0x8] sm:$0xf]
    %v486 = vld [vmem:[%s17 + $0xc] sm:$0xff]
    %v487 = vld [vmem:[%s17 + $0x14] sm:$0xf]
    %v488 = vld [vmem:[%s17 + $0x18] sm:$0xff]
    %v489 = vld [vmem:[%s17 + $0x20] sm:$0xf]
    %v490 = vld [vmem:[%s17 + $0x24] sm:$0xff]
    %v491 = vld [vmem:[%s17 + $0x2c] sm:$0xf]
    %v492 = vld [vmem:[%s17 + $0x30] sm:$0xff]
    %v493 = vld [vmem:[%s17 + $0x38] sm:$0xf]
    %v494 = vld [vmem:[%s17 + $0x3c] sm:$0xff]
    %v495 = vld [vmem:[%s17 + $0x44] sm:$0xf]
    %v496 = vld [vmem:[%s17 + $0x48] sm:$0xff]
    %v497 = vld [vmem:[%s17 + $0x50] sm:$0xf]
    %v498 = vld [vmem:[%s17 + $0x54] sm:$0xff]
    %v499 = vld [vmem:[%s17 + $0x5c] sm:$0xf]
    %v500 = vld [vmem:[%s19] sm:$0x7]
    %v517 = vunpack.c.l.b16 %v484
    %v518 = vunpack.c.h.b16 %v484
    %v519 = vunpack.c.l.b16 %v485
    %v520 = vunpack.c.l.b16 %v486
    %v521 = vunpack.c.h.b16 %v486
    %v522 = vunpack.c.l.b16 %v487
    %v523 = vunpack.c.l.b16 %v488
    %v524 = vunpack.c.h.b16 %v488
    %v525 = vunpack.c.l.b16 %v489
    %v526 = vunpack.c.l.b16 %v490
    %v527 = vunpack.c.h.b16 %v490
    %v528 = vunpack.c.l.b16 %v491
    %v529 = vunpack.c.l.b16 %v492
    %v530 = vunpack.c.h.b16 %v492
    %v531 = vunpack.c.l.b16 %v493
    %v532 = vunpack.c.l.b16 %v494
    %v533 = vunpack.c.h.b16 %v494
    %v534 = vunpack.c.l.b16 %v495
    %v535 = vunpack.c.l.b16 %v496
    %v536 = vunpack.c.h.b16 %v496
    %v537 = vunpack.c.l.b16 %v497
    %v538 = vunpack.c.l.b16 %v498
    %v539 = vunpack.c.h.b16 %v498
    %v540 = vunpack.c.l.b16 %v499
    %v541 = vpack.c.b16 %v520, %v517
    %v542 = vpack.c.b16 %v521, %v518
    %v543 = vpack.c.b16 %v522, %v519
    %v544 = vpack.c.b16 %v526, %v523
    %v545 = vpack.c.b16 %v527, %v524
    %v546 = vpack.c.b16 %v528, %v525
    %v547 = vpack.c.b16 %v532, %v529
    %v548 = vpack.c.b16 %v533, %v530
    %v549 = vpack.c.b16 %v534, %v531
    %v550 = vpack.c.b16 %v538, %v535
    %v551 = vpack.c.b16 %v539, %v536
    %v552 = vpack.c.b16 %v540, %v537
    %v566 = vlaneseq
    %v567 = vshrl.u32 %v566, 7
    %v568 = vsub.s32 0, %v567
    %v569 = vrot.slane %v500, %v568
    %v570 = vlaneseq
    %v571 = vshrl.u32 %v570, 7
    %v572 = vsub.s32 1, %v571
    %v573 = vrot.slane %v500, %v572
    %v574 = vlaneseq
    %v575 = vshrl.u32 %v574, 7
    %v576 = vsub.s32 2, %v575
    %v577 = vrot.slane %v500, %v576
    %581 = vmatprep.subr.bf16.mxu0 %v542
    %582 = vmatpush1.bf16.msra.mxu0 %v541
    %583 = vmatprep.subr.bf16.mxu0 %v545
    %584 = vmatpush1.bf16.msra.mxu0 %v544
    %585 = vmatprep.subr.bf16.mxu0 %v548
    %586 = vmatpush1.bf16.msra.mxu0 %v547
    %587 = vmatprep.subr.bf16.mxu0 %v551
    %588 = vmatpush1.bf16.msra.mxu0 %v550
    %589 = vmatprep.subr.bf16.mxu0 0
    %590 = vmatpush1.bf16.msra.mxu0 0
    %591 = vmatprep.subr.bf16.mxu0 0
    %592 = vmatpush1.bf16.msra.mxu0 0
    %593 = vmatprep.subr.bf16.mxu0 0
    %594 = vmatpush1.bf16.msra.mxu0 0
    %595 = vmatprep.subr.bf16.mxu0 0
    %596 = vmatpush1.bf16.msra.mxu0 0
    %597 = vmatprep.subr.bf16.mxu0 0
    %598 = vmatpush1.bf16.msra.mxu0 0
    %599 = vmatprep.subr.bf16.mxu0 0
    %600 = vmatpush1.bf16.msra.mxu0 0
    %601 = vmatprep.subr.bf16.mxu0 0
    %602 = vmatpush1.bf16.msra.mxu0 0
    %603 = vmatprep.subr.bf16.mxu0 0
    %604 = vmatpush1.bf16.msra.mxu0 0
    %605 = vmatprep.subr.bf16.mxu0 0
    %606 = vmatpush1.bf16.msra.mxu0 0
    %607 = vmatprep.subr.bf16.mxu0 0
    %608 = vmatpush1.bf16.msra.mxu0 0
    %609 = vmatprep.subr.bf16.mxu0 0
    %610 = vmatpush1.bf16.msra.mxu0 0
    %611 = vmatprep.subr.bf16.mxu0 0
    %612 = vmatpush1.bf16.msra.mxu0 0
    %613 = vmatprep.mubr.bf16.mxu0 0
    %614 = vmatmul.mubr.bf16.gmra.mrb[0].mxu0 %v401
    %v615 = vpop.f32.mrb[0].mxu0
    %v616 = vadd.f32 %v569, %v615
    %v617 = vpop.f32.mrb[0].mxu0
    %v618 = vadd.f32 %v573, %v617
    %v619 = vpop.f32.mrb[0].mxu0
    %v620 = vpop.f32.mrb[0].mxu0
    %621 = vdwg.mxu0
    %622 = vmatprep.subr.bf16.mxu0 0
    %623 = vmatpush1.bf16.msra.mxu0 %v543
    %624 = vmatprep.subr.bf16.mxu0 0
    %625 = vmatpush1.bf16.msra.mxu0 %v546
    %626 = vmatprep.subr.bf16.mxu0 0
    %627 = vmatpush1.bf16.msra.mxu0 %v549
    %628 = vmatprep.subr.bf16.mxu0 0
    %629 = vmatpush1.bf16.msra.mxu0 %v552
    %630 = vmatprep.subr.bf16.mxu0 0
    %631 = vmatpush1.bf16.msra.mxu0 0
    %632 = vmatprep.subr.bf16.mxu0 0
    %633 = vmatpush1.bf16.msra.mxu0 0
    %634 = vmatprep.subr.bf16.mxu0 0
    %635 = vmatpush1.bf16.msra.mxu0 0
    %636 = vmatprep.subr.bf16.mxu0 0
    %637 = vmatpush1.bf16.msra.mxu0 0
    %638 = vmatprep.subr.bf16.mxu0 0
    %639 = vmatpush1.bf16.msra.mxu0 0
    %640 = vmatprep.subr.bf16.mxu0 0
    %641 = vmatpush1.bf16.msra.mxu0 0
    %642 = vmatprep.subr.bf16.mxu0 0
    %643 = vmatpush1.bf16.msra.mxu0 0
    %644 = vmatprep.subr.bf16.mxu0 0
    %645 = vmatpush1.bf16.msra.mxu0 0
    %646 = vmatprep.subr.bf16.mxu0 0
    %647 = vmatpush1.bf16.msra.mxu0 0
    %648 = vmatprep.subr.bf16.mxu0 0
    %649 = vmatpush1.bf16.msra.mxu0 0
    %650 = vmatprep.subr.bf16.mxu0 0
    %651 = vmatpush1.bf16.msra.mxu0 0
    %652 = vmatprep.subr.bf16.mxu0 0
    %653 = vmatpush1.bf16.msra.mxu0 0
    %654 = vmatprep.mubr.bf16.mxu0 0
    %655 = vmatmul.mubr.bf16.gmra.mrb[0].mxu0 %v401
    %v656 = vpop.f32.mrb[0].mxu0
    %v657 = vadd.f32 %v577, %v656
    %v658 = vpop.f32.mrb[0].mxu0
    %v659 = vpop.f32.mrb[0].mxu0
    %v660 = vpop.f32.mrb[0].mxu0
    %661 = vdwg.mxu0
    %v662 = vsel %vm399, %v288, 0.0
    %663 = vadd.xlane.f32.xlu0 %v662
    %v664 = vpop.xlane.xlu0 %663
    %v665 = vsel %vm399, %v289, 0.0
    %666 = vadd.xlane.f32.xlu0 %v665
    %v667 = vpop.xlane.xlu0 %666
    %v668 = vsel %vm399, %v290, 0.0
    %669 = vadd.xlane.f32.xlu0 %v668
    %v670 = vpop.xlane.xlu0 %669
    %v671 = vsel %vm399, %v291, 0.0
    %672 = vadd.xlane.f32.xlu0 %v671
    %v673 = vpop.xlane.xlu0 %672
    %v674 = vrcp.pop 64.0
    %v675 = vmul.f32 %v664, %v674
    %v676 = vmul.f32 %v667, %v674
    %v677 = vmul.f32 %v670, %v674
    %v678 = vmul.f32 %v673, %v674
    %v679 = vsub.f32 %v288, %v675
    %v680 = vsub.f32 %v289, %v676
    %v681 = vsub.f32 %v290, %v677
    %v682 = vsub.f32 %v291, %v678
    %v683 = vmul.f32 %v679, %v679
    %v684 = vmul.f32 %v680, %v680
    %v685 = vmul.f32 %v681, %v681
    %v686 = vmul.f32 %v682, %v682
    %v687 = vsel %vm399, %v683, 0.0
    %688 = vadd.xlane.f32.xlu0 %v687
    %v689 = vpop.xlane.xlu0 %688
    %v690 = vsel %vm399, %v684, 0.0
    %691 = vadd.xlane.f32.xlu0 %v690
    %v692 = vpop.xlane.xlu0 %691
    %v693 = vsel %vm399, %v685, 0.0
    %694 = vadd.xlane.f32.xlu0 %v693
    %v695 = vpop.xlane.xlu0 %694
    %v696 = vsel %vm399, %v686, 0.0
    %697 = vadd.xlane.f32.xlu0 %v696
    %v698 = vpop.xlane.xlu0 %697
    %v699 = vmul.f32 %v689, %v674
    %v700 = vmul.f32 %v692, %v674
    %v701 = vmul.f32 %v695, %v674
    %v702 = vmul.f32 %v698, %v674
    %v703 = vadd.f32 %v699, 1e-06
    %v704 = vadd.f32 %v700, 1e-06
    %v705 = vadd.f32 %v701, 1e-06
    %v706 = vadd.f32 %v702, 1e-06
    %v707 = vrsqrt.pop %v703
    %v708 = vrsqrt.pop %v704
    %v709 = vrsqrt.pop %v705
    %v710 = vrsqrt.pop %v706
    %v711 = vmul.f32 %v679, %v707
    %v712 = vmul.f32 %v680, %v708
    %v713 = vmul.f32 %v681, %v709
    %v714 = vmul.f32 %v682, %v710
    %v715 = vadd.f32 %v438, 1.0
    %v716 = vlaneseq
    %v717 = vshrl.u32 %v716, 7
    %v718 = vsub.s32 0, %v717
    %v719 = vrot.slane %v715, %v718
    %721 = vrot.lane.b32.xlu0 %v719, 64
    %v722 = vpop.permute.xlu0 %721
    %v724 = vmul.f32 %v711, %v722
    %v725 = vmul.f32 %v712, %v722
    %v726 = vmul.f32 %v713, %v722
    %v727 = vmul.f32 %v714, %v722
    %v728 = vlaneseq
    %v729 = vshrl.u32 %v728, 7
    %v730 = vsub.s32 0, %v729
    %v731 = vrot.slane %v438, %v730
    %v732 = vadd.f32 %v724, %v731
    %v733 = vadd.f32 %v725, %v731
    %v734 = vadd.f32 %v726, %v731
    %v735 = vadd.f32 %v727, %v731
    %v736 = vpack.c.bf16 %v733, %v732
    %v737 = vpack.c.bf16 %v735, %v734
    %vm738 = vcmask 517120
    %v739 = vsel %vm738, %v292, 0.0
    %740 = vadd.xlane.f32.xlu0 %v739
    %v741 = vpop.xlane.xlu0 %740
    %v742 = vmul.f32 %v741, %v674
    %v743 = vsub.f32 %v292, %v742
    %v744 = vmul.f32 %v743, %v743
    %v745 = vsel %vm738, %v744, 0.0
    %746 = vadd.xlane.f32.xlu0 %v745
    %v747 = vpop.xlane.xlu0 %746
    %v748 = vmul.f32 %v747, %v674
    %v749 = vadd.f32 %v748, 1e-06
    %v750 = vrsqrt.pop %v749
    %v751 = vmul.f32 %v743, %v750
    %v752 = vadd.f32 %v616, 1.0
    %v753 = vlaneseq
    %v754 = vshrl.u32 %v753, 7
    %v755 = vsub.s32 0, %v754
    %v756 = vrot.slane %v752, %v755
    %758 = vrot.lane.b32.xlu0 %v756, 64
    %v759 = vpop.permute.xlu0 %758
    %v761 = vmul.f32 %v751, %v759
    %v762 = vlaneseq
    %v763 = vshrl.u32 %v762, 7
    %v764 = vsub.s32 0, %v763
    %v765 = vrot.slane %v616, %v764
    %v766 = vadd.f32 %v761, %v765
    %v767 = vpack.c.bf16 %v766, %v766
    %v768 = vld [vmem:[%s21] sm:$0xff]
    %v769 = vld [vmem:[%s21 + $0x8] sm:$0xff]
    %v770 = vld [vmem:[%s21 + $0x10] sm:$0xff]
    %v771 = vld [vmem:[%s21 + $0x18] sm:$0xff]
    %v772 = vld [vmem:[%s21 + $0x20] sm:$0xff]
    %v773 = vld [vmem:[%s21 + $0x28] sm:$0xff]
    %v774 = vld [vmem:[%s21 + $0x30] sm:$0xff]
    %v775 = vld [vmem:[%s21 + $0x38] sm:$0xff]
    %v776 = vld [vmem:[%s23] sm:$0x3]
    %v778 = vlaneseq
    %v779 = vshrl.u32 %v778, 7
    %v780 = vsub.s32 0, %v779
    %v781 = vrot.slane %v776, %v780
    %v782 = vlaneseq
    %v783 = vshrl.u32 %v782, 7
    %v784 = vsub.s32 1, %v783
    %v785 = vrot.slane %v776, %v784
    %v796 = vunpack.c.l.b16 %v768
    %v797 = vunpack.c.h.b16 %v768
    %v798 = vunpack.c.l.b16 %v769
    %v799 = vunpack.c.h.b16 %v769
    %v800 = vunpack.c.l.b16 %v770
    %v801 = vunpack.c.h.b16 %v770
    %v802 = vunpack.c.l.b16 %v771
    %v803 = vunpack.c.h.b16 %v771
    %v804 = vunpack.c.l.b16 %v772
    %v805 = vunpack.c.h.b16 %v772
    %v806 = vunpack.c.l.b16 %v773
    %v807 = vunpack.c.h.b16 %v773
    %v808 = vunpack.c.l.b16 %v774
    %v809 = vunpack.c.h.b16 %v774
    %v810 = vunpack.c.l.b16 %v775
    %v811 = vunpack.c.h.b16 %v775
    %v812 = vpack.c.b16 %v798, %v796
    %v813 = vpack.c.b16 %v799, %v797
    %v814 = vpack.c.b16 %v802, %v800
    %v815 = vpack.c.b16 %v803, %v801
    %v816 = vpack.c.b16 %v806, %v804
    %v817 = vpack.c.b16 %v807, %v805
    %v818 = vpack.c.b16 %v810, %v808
    %v819 = vpack.c.b16 %v811, %v809
    %v829 = vsel %vm399, %v736, 0
    %v832 = vsel %vm399, %v737, 0
    %834 = vmatprep.subr.bf16.mxu0 %v813
    %835 = vmatpush1.bf16.msra.mxu0 %v812
    %836 = vmatprep.subr.bf16.mxu0 %v815
    %837 = vmatpush1.bf16.msra.mxu0 %v814
    %838 = vmatprep.subr.bf16.mxu0 %v817
    %839 = vmatpush1.bf16.msra.mxu0 %v816
    %840 = vmatprep.subr.bf16.mxu0 %v819
    %841 = vmatpush1.bf16.msra.mxu0 %v818
    %842 = vmatprep.subr.bf16.mxu0 0
    %843 = vmatpush1.bf16.msra.mxu0 0
    %844 = vmatprep.subr.bf16.mxu0 0
    %845 = vmatpush1.bf16.msra.mxu0 0
    %846 = vmatprep.subr.bf16.mxu0 0
    %847 = vmatpush1.bf16.msra.mxu0 0
    %848 = vmatprep.subr.bf16.mxu0 0
    %849 = vmatpush1.bf16.msra.mxu0 0
    %850 = vmatprep.subr.bf16.mxu0 0
    %851 = vmatpush1.bf16.msra.mxu0 0
    %852 = vmatprep.subr.bf16.mxu0 0
    %853 = vmatpush1.bf16.msra.mxu0 0
    %854 = vmatprep.subr.bf16.mxu0 0
    %855 = vmatpush1.bf16.msra.mxu0 0
    %856 = vmatprep.subr.bf16.mxu0 0
    %857 = vmatpush1.bf16.msra.mxu0 0
    %858 = vmatprep.subr.bf16.mxu0 0
    %859 = vmatpush1.bf16.msra.mxu0 0
    %860 = vmatprep.subr.bf16.mxu0 0
    %861 = vmatpush1.bf16.msra.mxu0 0
    %862 = vmatprep.subr.bf16.mxu0 0
    %863 = vmatpush1.bf16.msra.mxu0 0
    %864 = vmatprep.subr.bf16.mxu0 0
    %865 = vmatpush1.bf16.msra.mxu0 0
    %866 = vmatprep.mubr.bf16.mxu0 0
    %867 = vmatmul.mubr.bf16.gmra.mrb[0].mxu0 %v829
    %v868 = vpop.f32.mrb[0].mxu0
    %v869 = vadd.f32 %v781, %v868
    %v870 = vpop.f32.mrb[0].mxu0
    %v871 = vadd.f32 %v785, %v870
    %v872 = vpop.f32.mrb[0].mxu0
    %v873 = vadd.f32 %v781, %v872
    %v874 = vpop.f32.mrb[0].mxu0
    %v875 = vadd.f32 %v785, %v874
    %876 = vmatprep.mubr.bf16.mxu0 0
    %877 = vmatmul.mubr.bf16.gmra.mrb[0].mxu0 %v832
    %v878 = vpop.f32.mrb[0].mxu0
    %v879 = vadd.f32 %v781, %v878
    %v880 = vpop.f32.mrb[0].mxu0
    %v881 = vadd.f32 %v785, %v880
    %v882 = vpop.f32.mrb[0].mxu0
    %v883 = vadd.f32 %v781, %v882
    %v884 = vpop.f32.mrb[0].mxu0
    %v885 = vadd.f32 %v785, %v884
    %886 = vdwg.mxu0
    %v887 = vld [vmem:[%s25] sm:$0xff]
    %v888 = vld [vmem:[%s25 + $0x8] sm:$0xff]
    %v889 = vld [vmem:[%s25 + $0x10] sm:$0xff]
    %v890 = vld [vmem:[%s25 + $0x18] sm:$0xff]
    %v891 = vld [vmem:[%s25 + $0x20] sm:$0xff]
    %v892 = vld [vmem:[%s25 + $0x28] sm:$0xff]
    %v893 = vld [vmem:[%s25 + $0x30] sm:$0xff]
    %v894 = vld [vmem:[%s25 + $0x38] sm:$0xff]
    %v895 = vld [vmem:[%s27] sm:$0x3]
    %v897 = vlaneseq
    %v898 = vshrl.u32 %v897, 7
    %v899 = vsub.s32 0, %v898
    %v900 = vrot.slane %v895, %v899
    %v901 = vlaneseq
    %v902 = vshrl.u32 %v901, 7
    %v903 = vsub.s32 1, %v902
    %v904 = vrot.slane %v895, %v903
    %v915 = vunpack.c.l.b16 %v887
    %v916 = vunpack.c.h.b16 %v887
    %v917 = vunpack.c.l.b16 %v888
    %v918 = vunpack.c.h.b16 %v888
    %v919 = vunpack.c.l.b16 %v889
    %v920 = vunpack.c.h.b16 %v889
    %v921 = vunpack.c.l.b16 %v890
    %v922 = vunpack.c.h.b16 %v890
    %v923 = vunpack.c.l.b16 %v891
    %v924 = vunpack.c.h.b16 %v891
    %v925 = vunpack.c.l.b16 %v892
    %v926 = vunpack.c.h.b16 %v892
    %v927 = vunpack.c.l.b16 %v893
    %v928 = vunpack.c.h.b16 %v893
    %v929 = vunpack.c.l.b16 %v894
    %v930 = vunpack.c.h.b16 %v894
    %v931 = vpack.c.b16 %v917, %v915
    %v932 = vpack.c.b16 %v918, %v916
    %v933 = vpack.c.b16 %v921, %v919
    %v934 = vpack.c.b16 %v922, %v920
    %v935 = vpack.c.b16 %v925, %v923
    %v936 = vpack.c.b16 %v926, %v924
    %v937 = vpack.c.b16 %v929, %v927
    %v938 = vpack.c.b16 %v930, %v928
    %v948 = vsel %vm399, %v767, 0
    %950 = vmatprep.subr.bf16.mxu0 %v932
    %951 = vmatpush1.bf16.msra.mxu0 %v931
    %952 = vmatprep.subr.bf16.mxu0 %v934
    %953 = vmatpush1.bf16.msra.mxu0 %v933
    %954 = vmatprep.subr.bf16.mxu0 %v936
    %955 = vmatpush1.bf16.msra.mxu0 %v935
    %956 = vmatprep.subr.bf16.mxu0 %v938
    %957 = vmatpush1.bf16.msra.mxu0 %v937
    %958 = vmatprep.subr.bf16.mxu0 0
    %959 = vmatpush1.bf16.msra.mxu0 0
    %960 = vmatprep.subr.bf16.mxu0 0
    %961 = vmatpush1.bf16.msra.mxu0 0
    %962 = vmatprep.subr.bf16.mxu0 0
    %963 = vmatpush1.bf16.msra.mxu0 0
    %964 = vmatprep.subr.bf16.mxu0 0
    %965 = vmatpush1.bf16.msra.mxu0 0
    %966 = vmatprep.subr.bf16.mxu0 0
    %967 = vmatpush1.bf16.msra.mxu0 0
    %968 = vmatprep.subr.bf16.mxu0 0
    %969 = vmatpush1.bf16.msra.mxu0 0
    %970 = vmatprep.subr.bf16.mxu0 0
    %971 = vmatpush1.bf16.msra.mxu0 0
    %972 = vmatprep.subr.bf16.mxu0 0
    %973 = vmatpush1.bf16.msra.mxu0 0
    %974 = vmatprep.subr.bf16.mxu0 0
    %975 = vmatpush1.bf16.msra.mxu0 0
    %976 = vmatprep.subr.bf16.mxu0 0
    %977 = vmatpush1.bf16.msra.mxu0 0
    %978 = vmatprep.subr.bf16.mxu0 0
    %979 = vmatpush1.bf16.msra.mxu0 0
    %980 = vmatprep.subr.bf16.mxu0 0
    %981 = vmatpush1.bf16.msra.mxu0 0
    %982 = vmatprep.mubr.bf16.mxu0 0
    %983 = vmatmul.mubr.bf16.gmra.mrb[0].mxu0 %v948
    %v984 = vpop.f32.mrb[0].mxu0
    %v985 = vadd.f32 %v900, %v984
    %v986 = vpop.f32.mrb[0].mxu0
    %v987 = vadd.f32 %v904, %v986
    %v988 = vpop.f32.mrb[0].mxu0
    %v989 = vpop.f32.mrb[0].mxu0
    %990 = vdwg.mxu0
    %v993 = vcombine.low %v985, %v987
    %v995 = vunpack.c.l.s4 1966171168
    %v996 = vunpack.c.0.s8 %v995
    %v997 = vlaneseq
    %v998 = vshrl.u32 %v997, 7
    %v999 = vsub.s32 %v996, %v998
    %v1000 = vrot.slane %v993, %v999
    %v1001 = vcombine.high %v1000, %v1000
    %v1003 = vunpack.c.l.s4 1966171168
    %v1004 = vunpack.c.0.s8 %v1003
    %v1005 = vlaneseq
    %v1006 = vshrl.u32 %v1005, 7
    %v1007 = vsub.s32 %v1004, %v1006
    %v1008 = vrot.slane %v1000, %v1007
    %v1010 = vunpack.c.l.s4 1966171168
    %v1011 = vunpack.c.0.s8 %v1010
    %v1012 = vlaneseq
    %v1013 = vshrl.u32 %v1012, 7
    %v1014 = vsub.s32 %v1011, %v1013
    %v1015 = vrot.slane %v1001, %v1014
    %v1018 = vpack.c.bf16 %v873, %v869
    %v1019 = vpack.c.bf16 %v1008, %v1008
    %v1020 = vpack.c.bf16 %v883, %v879
    %v1021 = vpack.c.bf16 %v1015, %v1015
    %v1022 = vlaneseq
    %v1023 = vshrl.u32 %v1022, 7
    %v1024 = vsub.s32 1, %v1023
    %v1025 = vrot.slane %v1008, %v1024
    %v1026 = vlaneseq
    %v1027 = vshrl.u32 %v1026, 7
    %v1028 = vsub.s32 1, %v1027
    %v1029 = vrot.slane %v1015, %v1028
    %v1032 = vpack.c.bf16 %v875, %v871
    %v1033 = vpack.c.bf16 %v1025, %v1025
    %v1034 = vpack.c.bf16 %v885, %v881
    %v1035 = vpack.c.bf16 %v1029, %v1029
    %v1036 = vmul.f32 %v869, 0.25
    %v1037 = vmul.f32 %v873, 0.25
    %v1038 = vmul.f32 %v1008, 0.25
    %v1039 = vmul.f32 %v879, 0.25
    %v1040 = vmul.f32 %v883, 0.25
    %v1041 = vmul.f32 %v1015, 0.25
    %v1042 = vpack.c.bf16 %v1037, %v1036
    %v1043 = vpack.c.bf16 %v1038, %v1038
    %v1044 = vpack.c.bf16 %v1040, %v1039
    %v1045 = vpack.c.bf16 %v1041, %v1041
    %1048 = vrot.lane.b32.xlu0 %v1018, 64
    %v1049 = vpop.permute.xlu0 %1048
    %1050 = vrot.lane.b32.xlu0 %v1019, 64
    %v1051 = vpop.permute.xlu0 %1050
    %vm1052 = vcmask 130048
    %v1054 = vsel %vm1052, %v1042, 0
    %v1057 = vsel %vm1052, %v1043, 0
    %v1060 = vsel %vm1052, %v1049, 0
    %v1063 = vsel %vm1052, %v1051, 0
    %1065 = vmatprep.subr.bf16.mxu0 0
    %1066 = vmatpush1.bf16.xpose.msra.mxu0 %v1060
    %1067 = vmatprep.subr.bf16.mxu0 0
    %1068 = vmatpush1.bf16.xpose.msra.mxu0 %v1063
    %1069 = vmatprep.subr.bf16.mxu0 0
    %1070 = vmatpush1.bf16.xpose.msra.mxu0 0
    %1071 = vmatprep.subr.bf16.mxu0 0
    %1072 = vmatpush1.bf16.xpose.msra.mxu0 0
    %1073 = vmatprep.subr.bf16.mxu0 0
    %1074 = vmatpush1.bf16.xpose.msra.mxu0 0
    %1075 = vmatprep.subr.bf16.mxu0 0
    %1076 = vmatpush1.bf16.xpose.msra.mxu0 0
    %1077 = vmatprep.subr.bf16.mxu0 0
    %1078 = vmatpush1.bf16.xpose.msra.mxu0 0
    %1079 = vmatprep.subr.bf16.mxu0 0
    %1080 = vmatpush1.bf16.xpose.msra.mxu0 0
    %1081 = vmatprep.subr.bf16.mxu0 0
    %1082 = vmatpush1.bf16.xpose.msra.mxu0 0
    %1083 = vmatprep.subr.bf16.mxu0 0
    %1084 = vmatpush1.bf16.xpose.msra.mxu0 0
    %1085 = vmatprep.subr.bf16.mxu0 0
    %1086 = vmatpush1.bf16.xpose.msra.mxu0 0
    %1087 = vmatprep.subr.bf16.mxu0 0
    %1088 = vmatpush1.bf16.xpose.msra.mxu0 0
    %1089 = vmatprep.subr.bf16.mxu0 0
    %1090 = vmatpush1.bf16.xpose.msra.mxu0 0
    %1091 = vmatprep.subr.bf16.mxu0 0
    %1092 = vmatpush1.bf16.xpose.msra.mxu0 0
    %1093 = vmatprep.subr.bf16.mxu0 0
    %1094 = vmatpush1.bf16.xpose.msra.mxu0 0
    %1095 = vmatprep.subr.bf16.mxu0 0
    %1096 = vmatpush1.bf16.xpose.msra.mxu0 0
    %1097 = vmatprep.mubr.bf16.mxu0 0
    %1098 = vmatmul.mubr.bf16.gmra.mrb[0].mxu0 %v1054
    %v1099 = vpop.f32.mrb[0].mxu0
    %v1100 = vadd.f32 0.0, %v1099
    %v1101 = vpop.f32.mrb[0].mxu0
    %v1102 = vpop.f32.mrb[0].mxu0
    %v1103 = vadd.f32 0.0, %v1102
    %v1104 = vpop.f32.mrb[0].mxu0
    %1105 = vmatprep.mubr.bf16.mxu0 0
    %1106 = vmatmul.mubr.bf16.gmra.mrb[0].mxu0 %v1057
    %v1107 = vpop.f32.mrb[0].mxu0
    %v1108 = vadd.f32 0.0, %v1107
    %v1109 = vpop.f32.mrb[0].mxu0
    %v1110 = vpop.f32.mrb[0].mxu0
    %v1111 = vpop.f32.mrb[0].mxu0
    %1112 = vdwg.mxu0
    %1115 = vrot.lane.b32.xlu0 %v1020, 64
    %v1116 = vpop.permute.xlu0 %1115
    %1117 = vrot.lane.b32.xlu0 %v1021, 64
    %v1118 = vpop.permute.xlu0 %1117
    %v1120 = vsel %vm1052, %v1044, 0
    %v1123 = vsel %vm1052, %v1045, 0
    %v1126 = vsel %vm1052, %v1116, 0
    %v1129 = vsel %vm1052, %v1118, 0
    %1131 = vmatprep.subr.bf16.mxu0 0
    %1132 = vmatpush1.bf16.xpose.msra.mxu0 %v1126
    %1133 = vmatprep.subr.bf16.mxu0 0
    %1134 = vmatpush1.bf16.xpose.msra.mxu0 %v1129
    %1135 = vmatprep.subr.bf16.mxu0 0
    %1136 = vmatpush1.bf16.xpose.msra.mxu0 0
    %1137 = vmatprep.subr.bf16.mxu0 0
    %1138 = vmatpush1.bf16.xpose.msra.mxu0 0
    %1139 = vmatprep.subr.bf16.mxu0 0
    %1140 = vmatpush1.bf16.xpose.msra.mxu0 0
    %1141 = vmatprep.subr.bf16.mxu0 0
    %1142 = vmatpush1.bf16.xpose.msra.mxu0 0
    %1143 = vmatprep.subr.bf16.mxu0 0
    %1144 = vmatpush1.bf16.xpose.msra.mxu0 0
    %1145 = vmatprep.subr.bf16.mxu0 0
    %1146 = vmatpush1.bf16.xpose.msra.mxu0 0
    %1147 = vmatprep.subr.bf16.mxu0 0
    %1148 = vmatpush1.bf16.xpose.msra.mxu0 0
    %1149 = vmatprep.subr.bf16.mxu0 0
    %1150 = vmatpush1.bf16.xpose.msra.mxu0 0
    %1151 = vmatprep.subr.bf16.mxu0 0
    %1152 = vmatpush1.bf16.xpose.msra.mxu0 0
    %1153 = vmatprep.subr.bf16.mxu0 0
    %1154 = vmatpush1.bf16.xpose.msra.mxu0 0
    %1155 = vmatprep.subr.bf16.mxu0 0
    %1156 = vmatpush1.bf16.xpose.msra.mxu0 0
    %1157 = vmatprep.subr.bf16.mxu0 0
    %1158 = vmatpush1.bf16.xpose.msra.mxu0 0
    %1159 = vmatprep.subr.bf16.mxu0 0
    %1160 = vmatpush1.bf16.xpose.msra.mxu0 0
    %1161 = vmatprep.subr.bf16.mxu0 0
    %1162 = vmatpush1.bf16.xpose.msra.mxu0 0
    %1163 = vmatprep.mubr.bf16.mxu0 0
    %1164 = vmatmul.mubr.bf16.gmra.mrb[0].mxu0 %v1120
    %v1165 = vpop.f32.mrb[0].mxu0
    %v1166 = vadd.f32 0.0, %v1165
    %v1167 = vpop.f32.mrb[0].mxu0
    %v1168 = vpop.f32.mrb[0].mxu0
    %v1169 = vadd.f32 0.0, %v1168
    %v1170 = vpop.f32.mrb[0].mxu0
    %1171 = vmatprep.mubr.bf16.mxu0 0
    %1172 = vmatmul.mubr.bf16.gmra.mrb[0].mxu0 %v1123
    %v1173 = vpop.f32.mrb[0].mxu0
    %v1174 = vadd.f32 0.0, %v1173
    %v1175 = vpop.f32.mrb[0].mxu0
    %v1176 = vpop.f32.mrb[0].mxu0
    %v1177 = vpop.f32.mrb[0].mxu0
    %1178 = vdwg.mxu0
    %vm1179 = vcmask 138240
    %v1180 = vsel %vm1179, %v1100, -inf
    %1181 = vmax.xlane.f32.xlu0 %v1180
    %v1182 = vpop.xlane.xlu0 %1181
    %v1183 = vsel %vm1179, %v1103, -inf
    %1184 = vmax.xlane.f32.xlu0 %v1183
    %v1185 = vpop.xlane.xlu0 %1184
    %vm1186 = vcmask 131072
    %v1187 = vsel %vm1186, %v1108, -inf
    %1188 = vmax.xlane.f32.xlu0 %v1187
    %v1189 = vpop.xlane.xlu0 %1188
    %v1190 = vsel %vm1179, %v1166, -inf
    %1191 = vmax.xlane.f32.xlu0 %v1190
    %v1192 = vpop.xlane.xlu0 %1191
    %v1193 = vsel %vm1179, %v1169, -inf
    %1194 = vmax.xlane.f32.xlu0 %v1193
    %v1195 = vpop.xlane.xlu0 %1194
    %v1196 = vsel %vm1186, %v1174, -inf
    %1197 = vmax.xlane.f32.xlu0 %v1196
    %v1198 = vpop.xlane.xlu0 %1197
    %v1199 = vsub.f32 %v1100, %v1182
    %v1200 = vsub.f32 %v1103, %v1185
    %v1201 = vsub.f32 %v1108, %v1189
    %v1202 = vsub.f32 %v1166, %v1192
    %v1203 = vsub.f32 %v1169, %v1195
    %v1204 = vsub.f32 %v1174, %v1198
    %v1205 = vmul.f32 %v1199, 1.442695
    %v1206 = vpow.pop %v1205
    %v1207 = vmul.f32 %v1200, 1.442695
    %v1208 = vpow.pop %v1207
    %v1209 = vmul.f32 %v1201, 1.442695
    %v1210 = vpow.pop %v1209
    %v1211 = vmul.f32 %v1202, 1.442695
    %v1212 = vpow.pop %v1211
    %v1213 = vmul.f32 %v1203, 1.442695
    %v1214 = vpow.pop %v1213
    %v1215 = vmul.f32 %v1204, 1.442695
    %v1216 = vpow.pop %v1215
    %v1217 = vsel %vm1179, %v1206, 0.0
    %1218 = vadd.xlane.f32.xlu0 %v1217
    %v1219 = vpop.xlane.xlu0 %1218
    %v1220 = vsel %vm1179, %v1208, 0.0
    %1221 = vadd.xlane.f32.xlu0 %v1220
    %v1222 = vpop.xlane.xlu0 %1221
    %v1223 = vsel %vm1186, %v1210, 0.0
    %1224 = vadd.xlane.f32.xlu0 %v1223
    %v1225 = vpop.xlane.xlu0 %1224
    %v1226 = vsel %vm1179, %v1212, 0.0
    %1227 = vadd.xlane.f32.xlu0 %v1226
    %v1228 = vpop.xlane.xlu0 %1227
    %v1229 = vsel %vm1179, %v1214, 0.0
    %1230 = vadd.xlane.f32.xlu0 %v1229
    %v1231 = vpop.xlane.xlu0 %1230
    %v1232 = vsel %vm1186, %v1216, 0.0
    %1233 = vadd.xlane.f32.xlu0 %v1232
    %v1234 = vpop.xlane.xlu0 %1233
    %v1235 = vrcp.pop %v1219
    %v1236 = vrcp.pop %v1222
    %v1237 = vrcp.pop %v1225
    %v1238 = vrcp.pop %v1228
    %v1239 = vrcp.pop %v1231
    %v1240 = vrcp.pop %v1234
    %v1241 = vmul.f32 %v1206, %v1235
    %v1242 = vmul.f32 %v1208, %v1236
    %v1243 = vmul.f32 %v1210, %v1237
    %v1244 = vmul.f32 %v1212, %v1238
    %v1245 = vmul.f32 %v1214, %v1239
    %v1246 = vmul.f32 %v1216, %v1240
    %v1247 = vpack.c.bf16 %v1242, %v1241
    %v1248 = vpack.c.bf16 %v1243, %v1243
    %v1249 = vpack.c.bf16 %v1245, %v1244
    %v1250 = vpack.c.bf16 %v1246, %v1246
    %v1252 = vsel %vm1179, %v1247, 0
    %v1255 = vsel %vm1179, %v1248, 0
    %vm1257 = vcmask 1040384
    %v1258 = vsel 0, 4294967295, 65535
    %v1259 = vsel %vm1257, %v1258, 0
    %v1261 = vand.u32 %v1033, %v1259
    %1263 = vmatprep.subr.bf16.mxu0 0
    %1264 = vmatpush1.bf16.msra.mxu0 %v1032
    %1265 = vmatprep.subr.bf16.mxu0 0
    %1266 = vmatpush1.bf16.msra.mxu0 %v1261
    %1267 = vmatprep.subr.bf16.mxu0 0
    %1268 = vmatpush1.bf16.msra.mxu0 0
    %1269 = vmatprep.subr.bf16.mxu0 0
    %1270 = vmatpush1.bf16.msra.mxu0 0
    %1271 = vmatprep.subr.bf16.mxu0 0
    %1272 = vmatpush1.bf16.msra.mxu0 0
    %1273 = vmatprep.subr.bf16.mxu0 0
    %1274 = vmatpush1.bf16.msra.mxu0 0
    %1275 = vmatprep.subr.bf16.mxu0 0
    %1276 = vmatpush1.bf16.msra.mxu0 0
    %1277 = vmatprep.subr.bf16.mxu0 0
    %1278 = vmatpush1.bf16.msra.mxu0 0
    %1279 = vmatprep.subr.bf16.mxu0 0
    %1280 = vmatpush1.bf16.msra.mxu0 0
    %1281 = vmatprep.subr.bf16.mxu0 0
    %1282 = vmatpush1.bf16.msra.mxu0 0
    %1283 = vmatprep.subr.bf16.mxu0 0
    %1284 = vmatpush1.bf16.msra.mxu0 0
    %1285 = vmatprep.subr.bf16.mxu0 0
    %1286 = vmatpush1.bf16.msra.mxu0 0
    %1287 = vmatprep.subr.bf16.mxu0 0
    %1288 = vmatpush1.bf16.msra.mxu0 0
    %1289 = vmatprep.subr.bf16.mxu0 0
    %1290 = vmatpush1.bf16.msra.mxu0 0
    %1291 = vmatprep.subr.bf16.mxu0 0
    %1292 = vmatpush1.bf16.msra.mxu0 0
    %1293 = vmatprep.subr.bf16.mxu0 0
    %1294 = vmatpush1.bf16.msra.mxu0 0
    %1295 = vmatprep.mubr.bf16.mxu0 0
    %1296 = vmatmul.mubr.bf16.gmra.mrb[0].mxu0 %v1252
    %v1297 = vpop.f32.mrb[0].mxu0
    %v1298 = vadd.f32 0.0, %v1297
    %v1299 = vpop.f32.mrb[0].mxu0
    %v1300 = vpop.f32.mrb[0].mxu0
    %v1301 = vadd.f32 0.0, %v1300
    %v1302 = vpop.f32.mrb[0].mxu0
    %1303 = vmatprep.mubr.bf16.mxu0 0
    %1304 = vmatmul.mubr.bf16.gmra.mrb[0].mxu0 %v1255
    %v1305 = vpop.f32.mrb[0].mxu0
    %v1306 = vadd.f32 0.0, %v1305
    %v1307 = vpop.f32.mrb[0].mxu0
    %v1308 = vpop.f32.mrb[0].mxu0
    %v1309 = vpop.f32.mrb[0].mxu0
    %1310 = vdwg.mxu0
    %v1312 = vsel %vm1179, %v1249, 0
    %v1315 = vsel %vm1179, %v1250, 0
    %v1318 = vand.u32 %v1035, %v1259
    %1320 = vmatprep.subr.bf16.mxu0 0
    %1321 = vmatpush1.bf16.msra.mxu0 %v1034
    %1322 = vmatprep.subr.bf16.mxu0 0
    %1323 = vmatpush1.bf16.msra.mxu0 %v1318
    %1324 = vmatprep.subr.bf16.mxu0 0
    %1325 = vmatpush1.bf16.msra.mxu0 0
    %1326 = vmatprep.subr.bf16.mxu0 0
    %1327 = vmatpush1.bf16.msra.mxu0 0
    %1328 = vmatprep.subr.bf16.mxu0 0
    %1329 = vmatpush1.bf16.msra.mxu0 0
    %1330 = vmatprep.subr.bf16.mxu0 0
    %1331 = vmatpush1.bf16.msra.mxu0 0
    %1332 = vmatprep.subr.bf16.mxu0 0
    %1333 = vmatpush1.bf16.msra.mxu0 0
    %1334 = vmatprep.subr.bf16.mxu0 0
    %1335 = vmatpush1.bf16.msra.mxu0 0
    %1336 = vmatprep.subr.bf16.mxu0 0
    %1337 = vmatpush1.bf16.msra.mxu0 0
    %1338 = vmatprep.subr.bf16.mxu0 0
    %1339 = vmatpush1.bf16.msra.mxu0 0
    %1340 = vmatprep.subr.bf16.mxu0 0
    %1341 = vmatpush1.bf16.msra.mxu0 0
    %1342 = vmatprep.subr.bf16.mxu0 0
    %1343 = vmatpush1.bf16.msra.mxu0 0
    %1344 = vmatprep.subr.bf16.mxu0 0
    %1345 = vmatpush1.bf16.msra.mxu0 0
    %1346 = vmatprep.subr.bf16.mxu0 0
    %1347 = vmatpush1.bf16.msra.mxu0 0
    %1348 = vmatprep.subr.bf16.mxu0 0
    %1349 = vmatpush1.bf16.msra.mxu0 0
    %1350 = vmatprep.subr.bf16.mxu0 0
    %1351 = vmatpush1.bf16.msra.mxu0 0
    %1352 = vmatprep.mubr.bf16.mxu0 0
    %1353 = vmatmul.mubr.bf16.gmra.mrb[0].mxu0 %v1312
    %v1354 = vpop.f32.mrb[0].mxu0
    %v1355 = vadd.f32 0.0, %v1354
    %v1356 = vpop.f32.mrb[0].mxu0
    %v1357 = vpop.f32.mrb[0].mxu0
    %v1358 = vadd.f32 0.0, %v1357
    %v1359 = vpop.f32.mrb[0].mxu0
    %1360 = vmatprep.mubr.bf16.mxu0 0
    %1361 = vmatmul.mubr.bf16.gmra.mrb[0].mxu0 %v1315
    %v1362 = vpop.f32.mrb[0].mxu0
    %v1363 = vadd.f32 0.0, %v1362
    %v1364 = vpop.f32.mrb[0].mxu0
    %v1365 = vpop.f32.mrb[0].mxu0
    %v1366 = vpop.f32.mrb[0].mxu0
    %1367 = vdwg.mxu0
    %1370 = vrot.lane.b32.xlu0 %v1042, 112
    %v1371 = vpop.permute.xlu0 %1370
    %1372 = vrot.lane.b32.xlu0 %v1043, 112
    %v1373 = vpop.permute.xlu0 %1372
    %1374 = vrot.lane.b32.xlu0 %v1018, 48
    %v1375 = vpop.permute.xlu0 %1374
    %1376 = vrot.lane.b32.xlu0 %v1019, 48
    %v1377 = vpop.permute.xlu0 %1376
    %v1379 = vsel %vm1052, %v1371, 0
    %v1382 = vsel %vm1052, %v1373, 0
    %v1385 = vsel %vm1052, %v1375, 0
    %v1388 = vsel %vm1052, %v1377, 0
    %1390 = vmatprep.subr.bf16.mxu0 0
    %1391 = vmatpush1.bf16.xpose.msra.mxu0 %v1385
    %1392 = vmatprep.subr.bf16.mxu0 0
    %1393 = vmatpush1.bf16.xpose.msra.mxu0 %v1388
    %1394 = vmatprep.subr.bf16.mxu0 0
    %1395 = vmatpush1.bf16.xpose.msra.mxu0 0
    %1396 = vmatprep.subr.bf16.mxu0 0
    %1397 = vmatpush1.bf16.xpose.msra.mxu0 0
    %1398 = vmatprep.subr.bf16.mxu0 0
    %1399 = vmatpush1.bf16.xpose.msra.mxu0 0
    %1400 = vmatprep.subr.bf16.mxu0 0
    %1401 = vmatpush1.bf16.xpose.msra.mxu0 0
    %1402 = vmatprep.subr.bf16.mxu0 0
    %1403 = vmatpush1.bf16.xpose.msra.mxu0 0
    %1404 = vmatprep.subr.bf16.mxu0 0
    %1405 = vmatpush1.bf16.xpose.msra.mxu0 0
    %1406 = vmatprep.subr.bf16.mxu0 0
    %1407 = vmatpush1.bf16.xpose.msra.mxu0 0
    %1408 = vmatprep.subr.bf16.mxu0 0
    %1409 = vmatpush1.bf16.xpose.msra.mxu0 0
    %1410 = vmatprep.subr.bf16.mxu0 0
    %1411 = vmatpush1.bf16.xpose.msra.mxu0 0
    %1412 = vmatprep.subr.bf16.mxu0 0
    %1413 = vmatpush1.bf16.xpose.msra.mxu0 0
    %1414 = vmatprep.subr.bf16.mxu0 0
    %1415 = vmatpush1.bf16.xpose.msra.mxu0 0
    %1416 = vmatprep.subr.bf16.mxu0 0
    %1417 = vmatpush1.bf16.xpose.msra.mxu0 0
    %1418 = vmatprep.subr.bf16.mxu0 0
    %1419 = vmatpush1.bf16.xpose.msra.mxu0 0
    %1420 = vmatprep.subr.bf16.mxu0 0
    %1421 = vmatpush1.bf16.xpose.msra.mxu0 0
    %1422 = vmatprep.mubr.bf16.mxu0 0
    %1423 = vmatmul.mubr.bf16.gmra.mrb[0].mxu0 %v1379
    %v1424 = vpop.f32.mrb[0].mxu0
    %v1425 = vadd.f32 0.0, %v1424
    %v1426 = vpop.f32.mrb[0].mxu0
    %v1427 = vpop.f32.mrb[0].mxu0
    %v1428 = vadd.f32 0.0, %v1427
    %v1429 = vpop.f32.mrb[0].mxu0
    %1430 = vmatprep.mubr.bf16.mxu0 0
    %1431 = vmatmul.mubr.bf16.gmra.mrb[0].mxu0 %v1382
    %v1432 = vpop.f32.mrb[0].mxu0
    %v1433 = vadd.f32 0.0, %v1432
    %v1434 = vpop.f32.mrb[0].mxu0
    %v1435 = vpop.f32.mrb[0].mxu0
    %v1436 = vpop.f32.mrb[0].mxu0
    %1437 = vdwg.mxu0
    %1440 = vrot.lane.b32.xlu0 %v1044, 112
    %v1441 = vpop.permute.xlu0 %1440
    %1442 = vrot.lane.b32.xlu0 %v1045, 112
    %v1443 = vpop.permute.xlu0 %1442
    %1444 = vrot.lane.b32.xlu0 %v1020, 48
    %v1445 = vpop.permute.xlu0 %1444
    %1446 = vrot.lane.b32.xlu0 %v1021, 48
    %v1447 = vpop.permute.xlu0 %1446
    %v1449 = vsel %vm1052, %v1441, 0
    %v1452 = vsel %vm1052, %v1443, 0
    %v1455 = vsel %vm1052, %v1445, 0
    %v1458 = vsel %vm1052, %v1447, 0
    %1460 = vmatprep.subr.bf16.mxu0 0
    %1461 = vmatpush1.bf16.xpose.msra.mxu0 %v1455
    %1462 = vmatprep.subr.bf16.mxu0 0
    %1463 = vmatpush1.bf16.xpose.msra.mxu0 %v1458
    %1464 = vmatprep.subr.bf16.mxu0 0
    %1465 = vmatpush1.bf16.xpose.msra.mxu0 0
    %1466 = vmatprep.subr.bf16.mxu0 0
    %1467 = vmatpush1.bf16.xpose.msra.mxu0 0
    %1468 = vmatprep.subr.bf16.mxu0 0
    %1469 = vmatpush1.bf16.xpose.msra.mxu0 0
    %1470 = vmatprep.subr.bf16.mxu0 0
    %1471 = vmatpush1.bf16.xpose.msra.mxu0 0
    %1472 = vmatprep.subr.bf16.mxu0 0
    %1473 = vmatpush1.bf16.xpose.msra.mxu0 0
    %1474 = vmatprep.subr.bf16.mxu0 0
    %1475 = vmatpush1.bf16.xpose.msra.mxu0 0
    %1476 = vmatprep.subr.bf16.mxu0 0
    %1477 = vmatpush1.bf16.xpose.msra.mxu0 0
    %1478 = vmatprep.subr.bf16.mxu0 0
    %1479 = vmatpush1.bf16.xpose.msra.mxu0 0
    %1480 = vmatprep.subr.bf16.mxu0 0
    %1481 = vmatpush1.bf16.xpose.msra.mxu0 0
    %1482 = vmatprep.subr.bf16.mxu0 0
    %1483 = vmatpush1.bf16.xpose.msra.mxu0 0
    %1484 = vmatprep.subr.bf16.mxu0 0
    %1485 = vmatpush1.bf16.xpose.msra.mxu0 0
    %1486 = vmatprep.subr.bf16.mxu0 0
    %1487 = vmatpush1.bf16.xpose.msra.mxu0 0
    %1488 = vmatprep.subr.bf16.mxu0 0
    %1489 = vmatpush1.bf16.xpose.msra.mxu0 0
    %1490 = vmatprep.subr.bf16.mxu0 0
    %1491 = vmatpush1.bf16.xpose.msra.mxu0 0
    %1492 = vmatprep.mubr.bf16.mxu0 0
    %1493 = vmatmul.mubr.bf16.gmra.mrb[0].mxu0 %v1449
    %v1494 = vpop.f32.mrb[0].mxu0
    %v1495 = vadd.f32 0.0, %v1494
    %v1496 = vpop.f32.mrb[0].mxu0
    %v1497 = vpop.f32.mrb[0].mxu0
    %v1498 = vadd.f32 0.0, %v1497
    %v1499 = vpop.f32.mrb[0].mxu0
    %1500 = vmatprep.mubr.bf16.mxu0 0
    %1501 = vmatmul.mubr.bf16.gmra.mrb[0].mxu0 %v1452
    %v1502 = vpop.f32.mrb[0].mxu0
    %v1503 = vadd.f32 0.0, %v1502
    %v1504 = vpop.f32.mrb[0].mxu0
    %v1505 = vpop.f32.mrb[0].mxu0
    %v1506 = vpop.f32.mrb[0].mxu0
    %1507 = vdwg.mxu0
    %v1508 = vsel %vm1179, %v1425, -inf
    %1509 = vmax.xlane.f32.xlu0 %v1508
    %v1510 = vpop.xlane.xlu0 %1509
    %v1511 = vsel %vm1179, %v1428, -inf
    %1512 = vmax.xlane.f32.xlu0 %v1511
    %v1513 = vpop.xlane.xlu0 %1512
    %v1514 = vsel %vm1186, %v1433, -inf
    %1515 = vmax.xlane.f32.xlu0 %v1514
    %v1516 = vpop.xlane.xlu0 %1515
    %v1517 = vsel %vm1179, %v1495, -inf
    %1518 = vmax.xlane.f32.xlu0 %v1517
    %v1519 = vpop.xlane.xlu0 %1518
    %v1520 = vsel %vm1179, %v1498, -inf
    %1521 = vmax.xlane.f32.xlu0 %v1520
    %v1522 = vpop.xlane.xlu0 %1521
    %v1523 = vsel %vm1186, %v1503, -inf
    %1524 = vmax.xlane.f32.xlu0 %v1523
    %v1525 = vpop.xlane.xlu0 %1524
    %v1526 = vsub.f32 %v1425, %v1510
    %v1527 = vsub.f32 %v1428, %v1513
    %v1528 = vsub.f32 %v1433, %v1516
    %v1529 = vsub.f32 %v1495, %v1519
    %v1530 = vsub.f32 %v1498, %v1522
    %v1531 = vsub.f32 %v1503, %v1525
    %v1532 = vmul.f32 %v1526, 1.442695
    %v1533 = vpow.pop %v1532
    %v1534 = vmul.f32 %v1527, 1.442695
    %v1535 = vpow.pop %v1534
    %v1536 = vmul.f32 %v1528, 1.442695
    %v1537 = vpow.pop %v1536
    %v1538 = vmul.f32 %v1529, 1.442695
    %v1539 = vpow.pop %v1538
    %v1540 = vmul.f32 %v1530, 1.442695
    %v1541 = vpow.pop %v1540
    %v1542 = vmul.f32 %v1531, 1.442695
    %v1543 = vpow.pop %v1542
    %v1544 = vsel %vm1179, %v1533, 0.0
    %1545 = vadd.xlane.f32.xlu0 %v1544
    %v1546 = vpop.xlane.xlu0 %1545
    %v1547 = vsel %vm1179, %v1535, 0.0
    %1548 = vadd.xlane.f32.xlu0 %v1547
    %v1549 = vpop.xlane.xlu0 %1548
    %v1550 = vsel %vm1186, %v1537, 0.0
    %1551 = vadd.xlane.f32.xlu0 %v1550
    %v1552 = vpop.xlane.xlu0 %1551
    %v1553 = vsel %vm1179, %v1539, 0.0
    %1554 = vadd.xlane.f32.xlu0 %v1553
    %v1555 = vpop.xlane.xlu0 %1554
    %v1556 = vsel %vm1179, %v1541, 0.0
    %1557 = vadd.xlane.f32.xlu0 %v1556
    %v1558 = vpop.xlane.xlu0 %1557
    %v1559 = vsel %vm1186, %v1543, 0.0
    %1560 = vadd.xlane.f32.xlu0 %v1559
    %v1561 = vpop.xlane.xlu0 %1560
    %v1562 = vrcp.pop %v1546
    %v1563 = vrcp.pop %v1549
    %v1564 = vrcp.pop %v1552
    %v1565 = vrcp.pop %v1555
    %v1566 = vrcp.pop %v1558
    %v1567 = vrcp.pop %v1561
    %v1568 = vmul.f32 %v1533, %v1562
    %v1569 = vmul.f32 %v1535, %v1563
    %v1570 = vmul.f32 %v1537, %v1564
    %v1571 = vmul.f32 %v1539, %v1565
    %v1572 = vmul.f32 %v1541, %v1566
    %v1573 = vmul.f32 %v1543, %v1567
    %v1574 = vpack.c.bf16 %v1569, %v1568
    %v1575 = vpack.c.bf16 %v1570, %v1570
    %v1576 = vpack.c.bf16 %v1572, %v1571
    %v1577 = vpack.c.bf16 %v1573, %v1573
    %1580 = vrot.lane.b32.xlu0 %v1032, 112
    %v1581 = vpop.permute.xlu0 %1580
    %1582 = vrot.lane.b32.xlu0 %v1033, 112
    %v1583 = vpop.permute.xlu0 %1582
    %v1586 = vsel %vm1179, %v1574, 0
    %v1589 = vsel %vm1179, %v1575, 0
    %v1592 = vand.u32 %v1583, %v1259
    %1594 = vmatprep.subr.bf16.mxu0 0
    %1595 = vmatpush1.bf16.msra.mxu0 %v1581
    %1596 = vmatprep.subr.bf16.mxu0 0
    %1597 = vmatpush1.bf16.msra.mxu0 %v1592
    %1598 = vmatprep.subr.bf16.mxu0 0
    %1599 = vmatpush1.bf16.msra.mxu0 0
    %1600 = vmatprep.subr.bf16.mxu0 0
    %1601 = vmatpush1.bf16.msra.mxu0 0
    %1602 = vmatprep.subr.bf16.mxu0 0
    %1603 = vmatpush1.bf16.msra.mxu0 0
    %1604 = vmatprep.subr.bf16.mxu0 0
    %1605 = vmatpush1.bf16.msra.mxu0 0
    %1606 = vmatprep.subr.bf16.mxu0 0
    %1607 = vmatpush1.bf16.msra.mxu0 0
    %1608 = vmatprep.subr.bf16.mxu0 0
    %1609 = vmatpush1.bf16.msra.mxu0 0
    %1610 = vmatprep.subr.bf16.mxu0 0
    %1611 = vmatpush1.bf16.msra.mxu0 0
    %1612 = vmatprep.subr.bf16.mxu0 0
    %1613 = vmatpush1.bf16.msra.mxu0 0
    %1614 = vmatprep.subr.bf16.mxu0 0
    %1615 = vmatpush1.bf16.msra.mxu0 0
    %1616 = vmatprep.subr.bf16.mxu0 0
    %1617 = vmatpush1.bf16.msra.mxu0 0
    %1618 = vmatprep.subr.bf16.mxu0 0
    %1619 = vmatpush1.bf16.msra.mxu0 0
    %1620 = vmatprep.subr.bf16.mxu0 0
    %1621 = vmatpush1.bf16.msra.mxu0 0
    %1622 = vmatprep.subr.bf16.mxu0 0
    %1623 = vmatpush1.bf16.msra.mxu0 0
    %1624 = vmatprep.subr.bf16.mxu0 0
    %1625 = vmatpush1.bf16.msra.mxu0 0
    %1626 = vmatprep.mubr.bf16.mxu0 0
    %1627 = vmatmul.mubr.bf16.gmra.mrb[0].mxu0 %v1586
    %v1628 = vpop.f32.mrb[0].mxu0
    %v1629 = vadd.f32 0.0, %v1628
    %v1630 = vpop.f32.mrb[0].mxu0
    %v1631 = vpop.f32.mrb[0].mxu0
    %v1632 = vadd.f32 0.0, %v1631
    %v1633 = vpop.f32.mrb[0].mxu0
    %1634 = vmatprep.mubr.bf16.mxu0 0
    %1635 = vmatmul.mubr.bf16.gmra.mrb[0].mxu0 %v1589
    %v1636 = vpop.f32.mrb[0].mxu0
    %v1637 = vadd.f32 0.0, %v1636
    %v1638 = vpop.f32.mrb[0].mxu0
    %v1639 = vpop.f32.mrb[0].mxu0
    %v1640 = vpop.f32.mrb[0].mxu0
    %1641 = vdwg.mxu0
    %1644 = vrot.lane.b32.xlu0 %v1034, 112
    %v1645 = vpop.permute.xlu0 %1644
    %1646 = vrot.lane.b32.xlu0 %v1035, 112
    %v1647 = vpop.permute.xlu0 %1646
    %v1650 = vsel %vm1179, %v1576, 0
    %v1653 = vsel %vm1179, %v1577, 0
    %v1656 = vand.u32 %v1647, %v1259
    %1658 = vmatprep.subr.bf16.mxu0 0
    %1659 = vmatpush1.bf16.msra.mxu0 %v1645
    %1660 = vmatprep.subr.bf16.mxu0 0
    %1661 = vmatpush1.bf16.msra.mxu0 %v1656
    %1662 = vmatprep.subr.bf16.mxu0 0
    %1663 = vmatpush1.bf16.msra.mxu0 0
    %1664 = vmatprep.subr.bf16.mxu0 0
    %1665 = vmatpush1.bf16.msra.mxu0 0
    %1666 = vmatprep.subr.bf16.mxu0 0
    %1667 = vmatpush1.bf16.msra.mxu0 0
    %1668 = vmatprep.subr.bf16.mxu0 0
    %1669 = vmatpush1.bf16.msra.mxu0 0
    %1670 = vmatprep.subr.bf16.mxu0 0
    %1671 = vmatpush1.bf16.msra.mxu0 0
    %1672 = vmatprep.subr.bf16.mxu0 0
    %1673 = vmatpush1.bf16.msra.mxu0 0
    %1674 = vmatprep.subr.bf16.mxu0 0
    %1675 = vmatpush1.bf16.msra.mxu0 0
    %1676 = vmatprep.subr.bf16.mxu0 0
    %1677 = vmatpush1.bf16.msra.mxu0 0
    %1678 = vmatprep.subr.bf16.mxu0 0
    %1679 = vmatpush1.bf16.msra.mxu0 0
    %1680 = vmatprep.subr.bf16.mxu0 0
    %1681 = vmatpush1.bf16.msra.mxu0 0
    %1682 = vmatprep.subr.bf16.mxu0 0
    %1683 = vmatpush1.bf16.msra.mxu0 0
    %1684 = vmatprep.subr.bf16.mxu0 0
    %1685 = vmatpush1.bf16.msra.mxu0 0
    %1686 = vmatprep.subr.bf16.mxu0 0
    %1687 = vmatpush1.bf16.msra.mxu0 0
    %1688 = vmatprep.subr.bf16.mxu0 0
    %1689 = vmatpush1.bf16.msra.mxu0 0
    %1690 = vmatprep.mubr.bf16.mxu0 0
    %1691 = vmatmul.mubr.bf16.gmra.mrb[0].mxu0 %v1650
    %v1692 = vpop.f32.mrb[0].mxu0
    %v1693 = vadd.f32 0.0, %v1692
    %v1694 = vpop.f32.mrb[0].mxu0
    %v1695 = vpop.f32.mrb[0].mxu0
    %v1696 = vadd.f32 0.0, %v1695
    %v1697 = vpop.f32.mrb[0].mxu0
    %1698 = vmatprep.mubr.bf16.mxu0 0
    %1699 = vmatmul.mubr.bf16.gmra.mrb[0].mxu0 %v1653
    %v1700 = vpop.f32.mrb[0].mxu0
    %v1701 = vadd.f32 0.0, %v1700
    %v1702 = vpop.f32.mrb[0].mxu0
    %v1703 = vpop.f32.mrb[0].mxu0
    %v1704 = vpop.f32.mrb[0].mxu0
    %1705 = vdwg.mxu0
    %1706 = vrot.lane.b32.xlu0 %v1042, 96
    %v1707 = vpop.permute.xlu0 %1706
    %1708 = vrot.lane.b32.xlu0 %v1043, 96
    %v1709 = vpop.permute.xlu0 %1708
    %1710 = vrot.lane.b32.xlu0 %v1018, 32
    %v1711 = vpop.permute.xlu0 %1710
    %1712 = vrot.lane.b32.xlu0 %v1019, 32
    %v1713 = vpop.permute.xlu0 %1712
    %v1715 = vsel %vm1052, %v1707, 0
    %v1718 = vsel %vm1052, %v1709, 0
    %v1721 = vsel %vm1052, %v1711, 0
    %v1724 = vsel %vm1052, %v1713, 0
    %1726 = vmatprep.subr.bf16.mxu0 0
    %1727 = vmatpush1.bf16.xpose.msra.mxu0 %v1721
    %1728 = vmatprep.subr.bf16.mxu0 0
    %1729 = vmatpush1.bf16.xpose.msra.mxu0 %v1724
    %1730 = vmatprep.subr.bf16.mxu0 0
    %1731 = vmatpush1.bf16.xpose.msra.mxu0 0
    %1732 = vmatprep.subr.bf16.mxu0 0
    %1733 = vmatpush1.bf16.xpose.msra.mxu0 0
    %1734 = vmatprep.subr.bf16.mxu0 0
    %1735 = vmatpush1.bf16.xpose.msra.mxu0 0
    %1736 = vmatprep.subr.bf16.mxu0 0
    %1737 = vmatpush1.bf16.xpose.msra.mxu0 0
    %1738 = vmatprep.subr.bf16.mxu0 0
    %1739 = vmatpush1.bf16.xpose.msra.mxu0 0
    %1740 = vmatprep.subr.bf16.mxu0 0
    %1741 = vmatpush1.bf16.xpose.msra.mxu0 0
    %1742 = vmatprep.subr.bf16.mxu0 0
    %1743 = vmatpush1.bf16.xpose.msra.mxu0 0
    %1744 = vmatprep.subr.bf16.mxu0 0
    %1745 = vmatpush1.bf16.xpose.msra.mxu0 0
    %1746 = vmatprep.subr.bf16.mxu0 0
    %1747 = vmatpush1.bf16.xpose.msra.mxu0 0
    %1748 = vmatprep.subr.bf16.mxu0 0
    %1749 = vmatpush1.bf16.xpose.msra.mxu0 0
    %1750 = vmatprep.subr.bf16.mxu0 0
    %1751 = vmatpush1.bf16.xpose.msra.mxu0 0
    %1752 = vmatprep.subr.bf16.mxu0 0
    %1753 = vmatpush1.bf16.xpose.msra.mxu0 0
    %1754 = vmatprep.subr.bf16.mxu0 0
    %1755 = vmatpush1.bf16.xpose.msra.mxu0 0
    %1756 = vmatprep.subr.bf16.mxu0 0
    %1757 = vmatpush1.bf16.xpose.msra.mxu0 0
    %1758 = vmatprep.mubr.bf16.mxu0 0
    %1759 = vmatmul.mubr.bf16.gmra.mrb[0].mxu0 %v1715
    %v1760 = vpop.f32.mrb[0].mxu0
    %v1761 = vadd.f32 0.0, %v1760
    %v1762 = vpop.f32.mrb[0].mxu0
    %v1763 = vpop.f32.mrb[0].mxu0
    %v1764 = vadd.f32 0.0, %v1763
    %v1765 = vpop.f32.mrb[0].mxu0
    %1766 = vmatprep.mubr.bf16.mxu0 0
    %1767 = vmatmul.mubr.bf16.gmra.mrb[0].mxu0 %v1718
    %v1768 = vpop.f32.mrb[0].mxu0
    %v1769 = vadd.f32 0.0, %v1768
    %v1770 = vpop.f32.mrb[0].mxu0
    %v1771 = vpop.f32.mrb[0].mxu0
    %v1772 = vpop.f32.mrb[0].mxu0
    %1773 = vdwg.mxu0
    %1774 = vrot.lane.b32.xlu0 %v1044, 96
    %v1775 = vpop.permute.xlu0 %1774
    %1776 = vrot.lane.b32.xlu0 %v1045, 96
    %v1777 = vpop.permute.xlu0 %1776
    %1778 = vrot.lane.b32.xlu0 %v1020, 32
    %v1779 = vpop.permute.xlu0 %1778
    %1780 = vrot.lane.b32.xlu0 %v1021, 32
    %v1781 = vpop.permute.xlu0 %1780
    %v1783 = vsel %vm1052, %v1775, 0
    %v1786 = vsel %vm1052, %v1777, 0
    %v1789 = vsel %vm1052, %v1779, 0
    %v1792 = vsel %vm1052, %v1781, 0
    %1794 = vmatprep.subr.bf16.mxu0 0
    %1795 = vmatpush1.bf16.xpose.msra.mxu0 %v1789
    %1796 = vmatprep.subr.bf16.mxu0 0
    %1797 = vmatpush1.bf16.xpose.msra.mxu0 %v1792
    %1798 = vmatprep.subr.bf16.mxu0 0
    %1799 = vmatpush1.bf16.xpose.msra.mxu0 0
    %1800 = vmatprep.subr.bf16.mxu0 0
    %1801 = vmatpush1.bf16.xpose.msra.mxu0 0
    %1802 = vmatprep.subr.bf16.mxu0 0
    %1803 = vmatpush1.bf16.xpose.msra.mxu0 0
    %1804 = vmatprep.subr.bf16.mxu0 0
    %1805 = vmatpush1.bf16.xpose.msra.mxu0 0
    %1806 = vmatprep.subr.bf16.mxu0 0
    %1807 = vmatpush1.bf16.xpose.msra.mxu0 0
    %1808 = vmatprep.subr.bf16.mxu0 0
    %1809 = vmatpush1.bf16.xpose.msra.mxu0 0
    %1810 = vmatprep.subr.bf16.mxu0 0
    %1811 = vmatpush1.bf16.xpose.msra.mxu0 0
    %1812 = vmatprep.subr.bf16.mxu0 0
    %1813 = vmatpush1.bf16.xpose.msra.mxu0 0
    %1814 = vmatprep.subr.bf16.mxu0 0
    %1815 = vmatpush1.bf16.xpose.msra.mxu0 0
    %1816 = vmatprep.subr.bf16.mxu0 0
    %1817 = vmatpush1.bf16.xpose.msra.mxu0 0
    %1818 = vmatprep.subr.bf16.mxu0 0
    %1819 = vmatpush1.bf16.xpose.msra.mxu0 0
    %1820 = vmatprep.subr.bf16.mxu0 0
    %1821 = vmatpush1.bf16.xpose.msra.mxu0 0
    %1822 = vmatprep.subr.bf16.mxu0 0
    %1823 = vmatpush1.bf16.xpose.msra.mxu0 0
    %1824 = vmatprep.subr.bf16.mxu0 0
    %1825 = vmatpush1.bf16.xpose.msra.mxu0 0
    %1826 = vmatprep.mubr.bf16.mxu0 0
    %1827 = vmatmul.mubr.bf16.gmra.mrb[0].mxu0 %v1783
    %v1828 = vpop.f32.mrb[0].mxu0
    %v1829 = vadd.f32 0.0, %v1828
    %v1830 = vpop.f32.mrb[0].mxu0
    %v1831 = vpop.f32.mrb[0].mxu0
    %v1832 = vadd.f32 0.0, %v1831
    %v1833 = vpop.f32.mrb[0].mxu0
    %1834 = vmatprep.mubr.bf16.mxu0 0
    %1835 = vmatmul.mubr.bf16.gmra.mrb[0].mxu0 %v1786
    %v1836 = vpop.f32.mrb[0].mxu0
    %v1837 = vadd.f32 0.0, %v1836
    %v1838 = vpop.f32.mrb[0].mxu0
    %v1839 = vpop.f32.mrb[0].mxu0
    %v1840 = vpop.f32.mrb[0].mxu0
    %1841 = vdwg.mxu0
    %v1842 = vsel %vm1179, %v1761, -inf
    %1843 = vmax.xlane.f32.xlu0 %v1842
    %v1844 = vpop.xlane.xlu0 %1843
    %v1845 = vsel %vm1179, %v1764, -inf
    %1846 = vmax.xlane.f32.xlu0 %v1845
    %v1847 = vpop.xlane.xlu0 %1846
    %v1848 = vsel %vm1186, %v1769, -inf
    %1849 = vmax.xlane.f32.xlu0 %v1848
    %v1850 = vpop.xlane.xlu0 %1849
    %v1851 = vsel %vm1179, %v1829, -inf
    %1852 = vmax.xlane.f32.xlu0 %v1851
    %v1853 = vpop.xlane.xlu0 %1852
    %v1854 = vsel %vm1179, %v1832, -inf
    %1855 = vmax.xlane.f32.xlu0 %v1854
    %v1856 = vpop.xlane.xlu0 %1855
    %v1857 = vsel %vm1186, %v1837, -inf
    %1858 = vmax.xlane.f32.xlu0 %v1857
    %v1859 = vpop.xlane.xlu0 %1858
    %v1860 = vsub.f32 %v1761, %v1844
    %v1861 = vsub.f32 %v1764, %v1847
    %v1862 = vsub.f32 %v1769, %v1850
    %v1863 = vsub.f32 %v1829, %v1853
    %v1864 = vsub.f32 %v1832, %v1856
    %v1865 = vsub.f32 %v1837, %v1859
    %v1866 = vmul.f32 %v1860, 1.442695
    %v1867 = vpow.pop %v1866
    %v1868 = vmul.f32 %v1861, 1.442695
    %v1869 = vpow.pop %v1868
    %v1870 = vmul.f32 %v1862, 1.442695
    %v1871 = vpow.pop %v1870
    %v1872 = vmul.f32 %v1863, 1.442695
    %v1873 = vpow.pop %v1872
    %v1874 = vmul.f32 %v1864, 1.442695
    %v1875 = vpow.pop %v1874
    %v1876 = vmul.f32 %v1865, 1.442695
    %v1877 = vpow.pop %v1876
    %v1878 = vsel %vm1179, %v1867, 0.0
    %1879 = vadd.xlane.f32.xlu0 %v1878
    %v1880 = vpop.xlane.xlu0 %1879
    %v1881 = vsel %vm1179, %v1869, 0.0
    %1882 = vadd.xlane.f32.xlu0 %v1881
    %v1883 = vpop.xlane.xlu0 %1882
    %v1884 = vsel %vm1186, %v1871, 0.0
    %1885 = vadd.xlane.f32.xlu0 %v1884
    %v1886 = vpop.xlane.xlu0 %1885
    %v1887 = vsel %vm1179, %v1873, 0.0
    %1888 = vadd.xlane.f32.xlu0 %v1887
    %v1889 = vpop.xlane.xlu0 %1888
    %v1890 = vsel %vm1179, %v1875, 0.0
    %1891 = vadd.xlane.f32.xlu0 %v1890
    %v1892 = vpop.xlane.xlu0 %1891
    %v1893 = vsel %vm1186, %v1877, 0.0
    %1894 = vadd.xlane.f32.xlu0 %v1893
    %v1895 = vpop.xlane.xlu0 %1894
    %v1896 = vrcp.pop %v1880
    %v1897 = vrcp.pop %v1883
    %v1898 = vrcp.pop %v1886
    %v1899 = vrcp.pop %v1889
    %v1900 = vrcp.pop %v1892
    %v1901 = vrcp.pop %v1895
    %v1902 = vmul.f32 %v1867, %v1896
    %v1903 = vmul.f32 %v1869, %v1897
    %v1904 = vmul.f32 %v1871, %v1898
    %v1905 = vmul.f32 %v1873, %v1899
    %v1906 = vmul.f32 %v1875, %v1900
    %v1907 = vmul.f32 %v1877, %v1901
    %v1908 = vpack.c.bf16 %v1903, %v1902
    %v1909 = vpack.c.bf16 %v1904, %v1904
    %v1910 = vpack.c.bf16 %v1906, %v1905
    %v1911 = vpack.c.bf16 %v1907, %v1907
    %1912 = vrot.lane.b32.xlu0 %v1032, 96
    %v1913 = vpop.permute.xlu0 %1912
    %1914 = vrot.lane.b32.xlu0 %v1033, 96
    %v1915 = vpop.permute.xlu0 %1914
    %v1918 = vsel %vm1179, %v1908, 0
    %v1921 = vsel %vm1179, %v1909, 0
    %v1924 = vand.u32 %v1915, %v1259
    %1926 = vmatprep.subr.bf16.mxu0 0
    %1927 = vmatpush1.bf16.msra.mxu0 %v1913
    %1928 = vmatprep.subr.bf16.mxu0 0
    %1929 = vmatpush1.bf16.msra.mxu0 %v1924
    %1930 = vmatprep.subr.bf16.mxu0 0
    %1931 = vmatpush1.bf16.msra.mxu0 0
    %1932 = vmatprep.subr.bf16.mxu0 0
    %1933 = vmatpush1.bf16.msra.mxu0 0
    %1934 = vmatprep.subr.bf16.mxu0 0
    %1935 = vmatpush1.bf16.msra.mxu0 0
    %1936 = vmatprep.subr.bf16.mxu0 0
    %1937 = vmatpush1.bf16.msra.mxu0 0
    %1938 = vmatprep.subr.bf16.mxu0 0
    %1939 = vmatpush1.bf16.msra.mxu0 0
    %1940 = vmatprep.subr.bf16.mxu0 0
    %1941 = vmatpush1.bf16.msra.mxu0 0
    %1942 = vmatprep.subr.bf16.mxu0 0
    %1943 = vmatpush1.bf16.msra.mxu0 0
    %1944 = vmatprep.subr.bf16.mxu0 0
    %1945 = vmatpush1.bf16.msra.mxu0 0
    %1946 = vmatprep.subr.bf16.mxu0 0
    %1947 = vmatpush1.bf16.msra.mxu0 0
    %1948 = vmatprep.subr.bf16.mxu0 0
    %1949 = vmatpush1.bf16.msra.mxu0 0
    %1950 = vmatprep.subr.bf16.mxu0 0
    %1951 = vmatpush1.bf16.msra.mxu0 0
    %1952 = vmatprep.subr.bf16.mxu0 0
    %1953 = vmatpush1.bf16.msra.mxu0 0
    %1954 = vmatprep.subr.bf16.mxu0 0
    %1955 = vmatpush1.bf16.msra.mxu0 0
    %1956 = vmatprep.subr.bf16.mxu0 0
    %1957 = vmatpush1.bf16.msra.mxu0 0
    %1958 = vmatprep.mubr.bf16.mxu0 0
    %1959 = vmatmul.mubr.bf16.gmra.mrb[0].mxu0 %v1918
    %v1960 = vpop.f32.mrb[0].mxu0
    %v1961 = vadd.f32 0.0, %v1960
    %v1962 = vpop.f32.mrb[0].mxu0
    %v1963 = vpop.f32.mrb[0].mxu0
    %v1964 = vadd.f32 0.0, %v1963
    %v1965 = vpop.f32.mrb[0].mxu0
    %1966 = vmatprep.mubr.bf16.mxu0 0
    %1967 = vmatmul.mubr.bf16.gmra.mrb[0].mxu0 %v1921
    %v1968 = vpop.f32.mrb[0].mxu0
    %v1969 = vadd.f32 0.0, %v1968
    %v1970 = vpop.f32.mrb[0].mxu0
    %v1971 = vpop.f32.mrb[0].mxu0
    %v1972 = vpop.f32.mrb[0].mxu0
    %1973 = vdwg.mxu0
    %1974 = vrot.lane.b32.xlu0 %v1034, 96
    %v1975 = vpop.permute.xlu0 %1974
    %1976 = vrot.lane.b32.xlu0 %v1035, 96
    %v1977 = vpop.permute.xlu0 %1976
    %v1980 = vsel %vm1179, %v1910, 0
    %v1983 = vsel %vm1179, %v1911, 0
    %v1986 = vand.u32 %v1977, %v1259
    %1988 = vmatprep.subr.bf16.mxu0 0
    %1989 = vmatpush1.bf16.msra.mxu0 %v1975
    %1990 = vmatprep.subr.bf16.mxu0 0
    %1991 = vmatpush1.bf16.msra.mxu0 %v1986
    %1992 = vmatprep.subr.bf16.mxu0 0
    %1993 = vmatpush1.bf16.msra.mxu0 0
    %1994 = vmatprep.subr.bf16.mxu0 0
    %1995 = vmatpush1.bf16.msra.mxu0 0
    %1996 = vmatprep.subr.bf16.mxu0 0
    %1997 = vmatpush1.bf16.msra.mxu0 0
    %1998 = vmatprep.subr.bf16.mxu0 0
    %1999 = vmatpush1.bf16.msra.mxu0 0
    %2000 = vmatprep.subr.bf16.mxu0 0
    %2001 = vmatpush1.bf16.msra.mxu0 0
    %2002 = vmatprep.subr.bf16.mxu0 0
    %2003 = vmatpush1.bf16.msra.mxu0 0
    %2004 = vmatprep.subr.bf16.mxu0 0
    %2005 = vmatpush1.bf16.msra.mxu0 0
    %2006 = vmatprep.subr.bf16.mxu0 0
    %2007 = vmatpush1.bf16.msra.mxu0 0
    %2008 = vmatprep.subr.bf16.mxu0 0
    %2009 = vmatpush1.bf16.msra.mxu0 0
    %2010 = vmatprep.subr.bf16.mxu0 0
    %2011 = vmatpush1.bf16.msra.mxu0 0
    %2012 = vmatprep.subr.bf16.mxu0 0
    %2013 = vmatpush1.bf16.msra.mxu0 0
    %2014 = vmatprep.subr.bf16.mxu0 0
    %2015 = vmatpush1.bf16.msra.mxu0 0
    %2016 = vmatprep.subr.bf16.mxu0 0
    %2017 = vmatpush1.bf16.msra.mxu0 0
    %2018 = vmatprep.subr.bf16.mxu0 0
    %2019 = vmatpush1.bf16.msra.mxu0 0
    %2020 = vmatprep.mubr.bf16.mxu0 0
    %2021 = vmatmul.mubr.bf16.gmra.mrb[0].mxu0 %v1980
    %v2022 = vpop.f32.mrb[0].mxu0
    %v2023 = vadd.f32 0.0, %v2022
    %v2024 = vpop.f32.mrb[0].mxu0
    %v2025 = vpop.f32.mrb[0].mxu0
    %v2026 = vadd.f32 0.0, %v2025
    %v2027 = vpop.f32.mrb[0].mxu0
    %2028 = vmatprep.mubr.bf16.mxu0 0
    %2029 = vmatmul.mubr.bf16.gmra.mrb[0].mxu0 %v1983
    %v2030 = vpop.f32.mrb[0].mxu0
    %v2031 = vadd.f32 0.0, %v2030
    %v2032 = vpop.f32.mrb[0].mxu0
    %v2033 = vpop.f32.mrb[0].mxu0
    %v2034 = vpop.f32.mrb[0].mxu0
    %2035 = vdwg.mxu0
    %2036 = vrot.lane.b32.xlu0 %v1042, 80
    %v2037 = vpop.permute.xlu0 %2036
    %2038 = vrot.lane.b32.xlu0 %v1043, 80
    %v2039 = vpop.permute.xlu0 %2038
    %2040 = vrot.lane.b32.xlu0 %v1018, 16
    %v2041 = vpop.permute.xlu0 %2040
    %2042 = vrot.lane.b32.xlu0 %v1019, 16
    %v2043 = vpop.permute.xlu0 %2042
    %v2045 = vsel %vm1052, %v2037, 0
    %v2048 = vsel %vm1052, %v2039, 0
    %v2051 = vsel %vm1052, %v2041, 0
    %v2054 = vsel %vm1052, %v2043, 0
    %2056 = vmatprep.subr.bf16.mxu0 0
    %2057 = vmatpush1.bf16.xpose.msra.mxu0 %v2051
    %2058 = vmatprep.subr.bf16.mxu0 0
    %2059 = vmatpush1.bf16.xpose.msra.mxu0 %v2054
    %2060 = vmatprep.subr.bf16.mxu0 0
    %2061 = vmatpush1.bf16.xpose.msra.mxu0 0
    %2062 = vmatprep.subr.bf16.mxu0 0
    %2063 = vmatpush1.bf16.xpose.msra.mxu0 0
    %2064 = vmatprep.subr.bf16.mxu0 0
    %2065 = vmatpush1.bf16.xpose.msra.mxu0 0
    %2066 = vmatprep.subr.bf16.mxu0 0
    %2067 = vmatpush1.bf16.xpose.msra.mxu0 0
    %2068 = vmatprep.subr.bf16.mxu0 0
    %2069 = vmatpush1.bf16.xpose.msra.mxu0 0
    %2070 = vmatprep.subr.bf16.mxu0 0
    %2071 = vmatpush1.bf16.xpose.msra.mxu0 0
    %2072 = vmatprep.subr.bf16.mxu0 0
    %2073 = vmatpush1.bf16.xpose.msra.mxu0 0
    %2074 = vmatprep.subr.bf16.mxu0 0
    %2075 = vmatpush1.bf16.xpose.msra.mxu0 0
    %2076 = vmatprep.subr.bf16.mxu0 0
    %2077 = vmatpush1.bf16.xpose.msra.mxu0 0
    %2078 = vmatprep.subr.bf16.mxu0 0
    %2079 = vmatpush1.bf16.xpose.msra.mxu0 0
    %2080 = vmatprep.subr.bf16.mxu0 0
    %2081 = vmatpush1.bf16.xpose.msra.mxu0 0
    %2082 = vmatprep.subr.bf16.mxu0 0
    %2083 = vmatpush1.bf16.xpose.msra.mxu0 0
    %2084 = vmatprep.subr.bf16.mxu0 0
    %2085 = vmatpush1.bf16.xpose.msra.mxu0 0
    %2086 = vmatprep.subr.bf16.mxu0 0
    %2087 = vmatpush1.bf16.xpose.msra.mxu0 0
    %2088 = vmatprep.mubr.bf16.mxu0 0
    %2089 = vmatmul.mubr.bf16.gmra.mrb[0].mxu0 %v2045
    %v2090 = vpop.f32.mrb[0].mxu0
    %v2091 = vadd.f32 0.0, %v2090
    %v2092 = vpop.f32.mrb[0].mxu0
    %v2093 = vpop.f32.mrb[0].mxu0
    %v2094 = vadd.f32 0.0, %v2093
    %v2095 = vpop.f32.mrb[0].mxu0
    %2096 = vmatprep.mubr.bf16.mxu0 0
    %2097 = vmatmul.mubr.bf16.gmra.mrb[0].mxu0 %v2048
    %v2098 = vpop.f32.mrb[0].mxu0
    %v2099 = vadd.f32 0.0, %v2098
    %v2100 = vpop.f32.mrb[0].mxu0
    %v2101 = vpop.f32.mrb[0].mxu0
    %v2102 = vpop.f32.mrb[0].mxu0
    %2103 = vdwg.mxu0
    %2104 = vrot.lane.b32.xlu0 %v1044, 80
    %v2105 = vpop.permute.xlu0 %2104
    %2106 = vrot.lane.b32.xlu0 %v1045, 80
    %v2107 = vpop.permute.xlu0 %2106
    %2108 = vrot.lane.b32.xlu0 %v1020, 16
    %v2109 = vpop.permute.xlu0 %2108
    %2110 = vrot.lane.b32.xlu0 %v1021, 16
    %v2111 = vpop.permute.xlu0 %2110
    %v2113 = vsel %vm1052, %v2105, 0
    %v2116 = vsel %vm1052, %v2107, 0
    %v2119 = vsel %vm1052, %v2109, 0
    %v2122 = vsel %vm1052, %v2111, 0
    %2124 = vmatprep.subr.bf16.mxu0 0
    %2125 = vmatpush1.bf16.xpose.msra.mxu0 %v2119
    %2126 = vmatprep.subr.bf16.mxu0 0
    %2127 = vmatpush1.bf16.xpose.msra.mxu0 %v2122
    %2128 = vmatprep.subr.bf16.mxu0 0
    %2129 = vmatpush1.bf16.xpose.msra.mxu0 0
    %2130 = vmatprep.subr.bf16.mxu0 0
    %2131 = vmatpush1.bf16.xpose.msra.mxu0 0
    %2132 = vmatprep.subr.bf16.mxu0 0
    %2133 = vmatpush1.bf16.xpose.msra.mxu0 0
    %2134 = vmatprep.subr.bf16.mxu0 0
    %2135 = vmatpush1.bf16.xpose.msra.mxu0 0
    %2136 = vmatprep.subr.bf16.mxu0 0
    %2137 = vmatpush1.bf16.xpose.msra.mxu0 0
    %2138 = vmatprep.subr.bf16.mxu0 0
    %2139 = vmatpush1.bf16.xpose.msra.mxu0 0
    %2140 = vmatprep.subr.bf16.mxu0 0
    %2141 = vmatpush1.bf16.xpose.msra.mxu0 0
    %2142 = vmatprep.subr.bf16.mxu0 0
    %2143 = vmatpush1.bf16.xpose.msra.mxu0 0
    %2144 = vmatprep.subr.bf16.mxu0 0
    %2145 = vmatpush1.bf16.xpose.msra.mxu0 0
    %2146 = vmatprep.subr.bf16.mxu0 0
    %2147 = vmatpush1.bf16.xpose.msra.mxu0 0
    %2148 = vmatprep.subr.bf16.mxu0 0
    %2149 = vmatpush1.bf16.xpose.msra.mxu0 0
    %2150 = vmatprep.subr.bf16.mxu0 0
    %2151 = vmatpush1.bf16.xpose.msra.mxu0 0
    %2152 = vmatprep.subr.bf16.mxu0 0
    %2153 = vmatpush1.bf16.xpose.msra.mxu0 0
    %2154 = vmatprep.subr.bf16.mxu0 0
    %2155 = vmatpush1.bf16.xpose.msra.mxu0 0
    %2156 = vmatprep.mubr.bf16.mxu0 0
    %2157 = vmatmul.mubr.bf16.gmra.mrb[0].mxu0 %v2113
    %v2158 = vpop.f32.mrb[0].mxu0
    %v2159 = vadd.f32 0.0, %v2158
    %v2160 = vpop.f32.mrb[0].mxu0
    %v2161 = vpop.f32.mrb[0].mxu0
    %v2162 = vadd.f32 0.0, %v2161
    %v2163 = vpop.f32.mrb[0].mxu0
    %2164 = vmatprep.mubr.bf16.mxu0 0
    %2165 = vmatmul.mubr.bf16.gmra.mrb[0].mxu0 %v2116
    %v2166 = vpop.f32.mrb[0].mxu0
    %v2167 = vadd.f32 0.0, %v2166
    %v2168 = vpop.f32.mrb[0].mxu0
    %v2169 = vpop.f32.mrb[0].mxu0
    %v2170 = vpop.f32.mrb[0].mxu0
    %2171 = vdwg.mxu0
    %v2172 = vsel %vm1179, %v2091, -inf
    %2173 = vmax.xlane.f32.xlu0 %v2172
    %v2174 = vpop.xlane.xlu0 %2173
    %v2175 = vsel %vm1179, %v2094, -inf
    %2176 = vmax.xlane.f32.xlu0 %v2175
    %v2177 = vpop.xlane.xlu0 %2176
    %v2178 = vsel %vm1186, %v2099, -inf
    %2179 = vmax.xlane.f32.xlu0 %v2178
    %v2180 = vpop.xlane.xlu0 %2179
    %v2181 = vsel %vm1179, %v2159, -inf
    %2182 = vmax.xlane.f32.xlu0 %v2181
    %v2183 = vpop.xlane.xlu0 %2182
    %v2184 = vsel %vm1179, %v2162, -inf
    %2185 = vmax.xlane.f32.xlu0 %v2184
    %v2186 = vpop.xlane.xlu0 %2185
    %v2187 = vsel %vm1186, %v2167, -inf
    %2188 = vmax.xlane.f32.xlu0 %v2187
    %v2189 = vpop.xlane.xlu0 %2188
    %v2190 = vsub.f32 %v2091, %v2174
    %v2191 = vsub.f32 %v2094, %v2177
    %v2192 = vsub.f32 %v2099, %v2180
    %v2193 = vsub.f32 %v2159, %v2183
    %v2194 = vsub.f32 %v2162, %v2186
    %v2195 = vsub.f32 %v2167, %v2189
    %v2196 = vmul.f32 %v2190, 1.442695
    %v2197 = vpow.pop %v2196
    %v2198 = vmul.f32 %v2191, 1.442695
    %v2199 = vpow.pop %v2198
    %v2200 = vmul.f32 %v2192, 1.442695
    %v2201 = vpow.pop %v2200
    %v2202 = vmul.f32 %v2193, 1.442695
    %v2203 = vpow.pop %v2202
    %v2204 = vmul.f32 %v2194, 1.442695
    %v2205 = vpow.pop %v2204
    %v2206 = vmul.f32 %v2195, 1.442695
    %v2207 = vpow.pop %v2206
    %v2208 = vsel %vm1179, %v2197, 0.0
    %2209 = vadd.xlane.f32.xlu0 %v2208
    %v2210 = vpop.xlane.xlu0 %2209
    %v2211 = vsel %vm1179, %v2199, 0.0
    %2212 = vadd.xlane.f32.xlu0 %v2211
    %v2213 = vpop.xlane.xlu0 %2212
    %v2214 = vsel %vm1186, %v2201, 0.0
    %2215 = vadd.xlane.f32.xlu0 %v2214
    %v2216 = vpop.xlane.xlu0 %2215
    %v2217 = vsel %vm1179, %v2203, 0.0
    %2218 = vadd.xlane.f32.xlu0 %v2217
    %v2219 = vpop.xlane.xlu0 %2218
    %v2220 = vsel %vm1179, %v2205, 0.0
    %2221 = vadd.xlane.f32.xlu0 %v2220
    %v2222 = vpop.xlane.xlu0 %2221
    %v2223 = vsel %vm1186, %v2207, 0.0
    %2224 = vadd.xlane.f32.xlu0 %v2223
    %v2225 = vpop.xlane.xlu0 %2224
    %v2226 = vrcp.pop %v2210
    %v2227 = vrcp.pop %v2213
    %v2228 = vrcp.pop %v2216
    %v2229 = vrcp.pop %v2219
    %v2230 = vrcp.pop %v2222
    %v2231 = vrcp.pop %v2225
    %v2232 = vmul.f32 %v2197, %v2226
    %v2233 = vmul.f32 %v2199, %v2227
    %v2234 = vmul.f32 %v2201, %v2228
    %v2235 = vmul.f32 %v2203, %v2229
    %v2236 = vmul.f32 %v2205, %v2230
    %v2237 = vmul.f32 %v2207, %v2231
    %v2238 = vpack.c.bf16 %v2233, %v2232
    %v2239 = vpack.c.bf16 %v2234, %v2234
    %v2240 = vpack.c.bf16 %v2236, %v2235
    %v2241 = vpack.c.bf16 %v2237, %v2237
    %2242 = vrot.lane.b32.xlu0 %v1032, 80
    %v2243 = vpop.permute.xlu0 %2242
    %2244 = vrot.lane.b32.xlu0 %v1033, 80
    %v2245 = vpop.permute.xlu0 %2244
    %v2248 = vsel %vm1179, %v2238, 0
    %v2251 = vsel %vm1179, %v2239, 0
    %v2254 = vand.u32 %v2245, %v1259
    %2256 = vmatprep.subr.bf16.mxu0 0
    %2257 = vmatpush1.bf16.msra.mxu0 %v2243
    %2258 = vmatprep.subr.bf16.mxu0 0
    %2259 = vmatpush1.bf16.msra.mxu0 %v2254
    %2260 = vmatprep.subr.bf16.mxu0 0
    %2261 = vmatpush1.bf16.msra.mxu0 0
    %2262 = vmatprep.subr.bf16.mxu0 0
    %2263 = vmatpush1.bf16.msra.mxu0 0
    %2264 = vmatprep.subr.bf16.mxu0 0
    %2265 = vmatpush1.bf16.msra.mxu0 0
    %2266 = vmatprep.subr.bf16.mxu0 0
    %2267 = vmatpush1.bf16.msra.mxu0 0
    %2268 = vmatprep.subr.bf16.mxu0 0
    %2269 = vmatpush1.bf16.msra.mxu0 0
    %2270 = vmatprep.subr.bf16.mxu0 0
    %2271 = vmatpush1.bf16.msra.mxu0 0
    %2272 = vmatprep.subr.bf16.mxu0 0
    %2273 = vmatpush1.bf16.msra.mxu0 0
    %2274 = vmatprep.subr.bf16.mxu0 0
    %2275 = vmatpush1.bf16.msra.mxu0 0
    %2276 = vmatprep.subr.bf16.mxu0 0
    %2277 = vmatpush1.bf16.msra.mxu0 0
    %2278 = vmatprep.subr.bf16.mxu0 0
    %2279 = vmatpush1.bf16.msra.mxu0 0
    %2280 = vmatprep.subr.bf16.mxu0 0
    %2281 = vmatpush1.bf16.msra.mxu0 0
    %2282 = vmatprep.subr.bf16.mxu0 0
    %2283 = vmatpush1.bf16.msra.mxu0 0
    %2284 = vmatprep.subr.bf16.mxu0 0
    %2285 = vmatpush1.bf16.msra.mxu0 0
    %2286 = vmatprep.subr.bf16.mxu0 0
    %2287 = vmatpush1.bf16.msra.mxu0 0
    %2288 = vmatprep.mubr.bf16.mxu0 0
    %2289 = vmatmul.mubr.bf16.gmra.mrb[0].mxu0 %v2248
    %v2290 = vpop.f32.mrb[0].mxu0
    %v2291 = vadd.f32 0.0, %v2290
    %v2292 = vpop.f32.mrb[0].mxu0
    %v2293 = vpop.f32.mrb[0].mxu0
    %v2294 = vadd.f32 0.0, %v2293
    %v2295 = vpop.f32.mrb[0].mxu0
    %2296 = vmatprep.mubr.bf16.mxu0 0
    %2297 = vmatmul.mubr.bf16.gmra.mrb[0].mxu0 %v2251
    %v2298 = vpop.f32.mrb[0].mxu0
    %v2299 = vadd.f32 0.0, %v2298
    %v2300 = vpop.f32.mrb[0].mxu0
    %v2301 = vpop.f32.mrb[0].mxu0
    %v2302 = vpop.f32.mrb[0].mxu0
    %2303 = vdwg.mxu0
    %2304 = vrot.lane.b32.xlu0 %v1034, 80
    %v2305 = vpop.permute.xlu0 %2304
    %2306 = vrot.lane.b32.xlu0 %v1035, 80
    %v2307 = vpop.permute.xlu0 %2306
    %v2310 = vsel %vm1179, %v2240, 0
    %v2313 = vsel %vm1179, %v2241, 0
    %v2316 = vand.u32 %v2307, %v1259
    %2318 = vmatprep.subr.bf16.mxu0 0
    %2319 = vmatpush1.bf16.msra.mxu0 %v2305
    %2320 = vmatprep.subr.bf16.mxu0 0
    %2321 = vmatpush1.bf16.msra.mxu0 %v2316
    %2322 = vmatprep.subr.bf16.mxu0 0
    %2323 = vmatpush1.bf16.msra.mxu0 0
    %2324 = vmatprep.subr.bf16.mxu0 0
    %2325 = vmatpush1.bf16.msra.mxu0 0
    %2326 = vmatprep.subr.bf16.mxu0 0
    %2327 = vmatpush1.bf16.msra.mxu0 0
    %2328 = vmatprep.subr.bf16.mxu0 0
    %2329 = vmatpush1.bf16.msra.mxu0 0
    %2330 = vmatprep.subr.bf16.mxu0 0
    %2331 = vmatpush1.bf16.msra.mxu0 0
    %2332 = vmatprep.subr.bf16.mxu0 0
    %2333 = vmatpush1.bf16.msra.mxu0 0
    %2334 = vmatprep.subr.bf16.mxu0 0
    %2335 = vmatpush1.bf16.msra.mxu0 0
    %2336 = vmatprep.subr.bf16.mxu0 0
    %2337 = vmatpush1.bf16.msra.mxu0 0
    %2338 = vmatprep.subr.bf16.mxu0 0
    %2339 = vmatpush1.bf16.msra.mxu0 0
    %2340 = vmatprep.subr.bf16.mxu0 0
    %2341 = vmatpush1.bf16.msra.mxu0 0
    %2342 = vmatprep.subr.bf16.mxu0 0
    %2343 = vmatpush1.bf16.msra.mxu0 0
    %2344 = vmatprep.subr.bf16.mxu0 0
    %2345 = vmatpush1.bf16.msra.mxu0 0
    %2346 = vmatprep.subr.bf16.mxu0 0
    %2347 = vmatpush1.bf16.msra.mxu0 0
    %2348 = vmatprep.subr.bf16.mxu0 0
    %2349 = vmatpush1.bf16.msra.mxu0 0
    %2350 = vmatprep.mubr.bf16.mxu0 0
    %2351 = vmatmul.mubr.bf16.gmra.mrb[0].mxu0 %v2310
    %v2352 = vpop.f32.mrb[0].mxu0
    %v2353 = vadd.f32 0.0, %v2352
    %v2354 = vpop.f32.mrb[0].mxu0
    %v2355 = vpop.f32.mrb[0].mxu0
    %v2356 = vadd.f32 0.0, %v2355
    %v2357 = vpop.f32.mrb[0].mxu0
    %2358 = vmatprep.mubr.bf16.mxu0 0
    %2359 = vmatmul.mubr.bf16.gmra.mrb[0].mxu0 %v2313
    %v2360 = vpop.f32.mrb[0].mxu0
    %v2361 = vadd.f32 0.0, %v2360
    %v2362 = vpop.f32.mrb[0].mxu0
    %v2363 = vpop.f32.mrb[0].mxu0
    %v2364 = vpop.f32.mrb[0].mxu0
    %2365 = vdwg.mxu0
    %2372 = vrot.lane.b32.xlu0 %v1629, 16
    %v2373 = vpop.permute.xlu0 %2372
    %2374 = vrot.lane.b32.xlu0 %v1632, 16
    %v2375 = vpop.permute.xlu0 %2374
    %2376 = vrot.lane.b32.xlu0 %v1637, 16
    %v2377 = vpop.permute.xlu0 %2376
    %2378 = vrot.lane.b32.xlu0 %v1693, 16
    %v2379 = vpop.permute.xlu0 %2378
    %2380 = vrot.lane.b32.xlu0 %v1696, 16
    %v2381 = vpop.permute.xlu0 %2380
    %2382 = vrot.lane.b32.xlu0 %v1701, 16
    %v2383 = vpop.permute.xlu0 %2382
    %2396 = vrot.lane.b32.xlu0 %v1961, 32
    %v2397 = vpop.permute.xlu0 %2396
    %2398 = vrot.lane.b32.xlu0 %v1964, 32
    %v2399 = vpop.permute.xlu0 %2398
    %2400 = vrot.lane.b32.xlu0 %v1969, 32
    %v2401 = vpop.permute.xlu0 %2400
    %2402 = vrot.lane.b32.xlu0 %v2023, 32
    %v2403 = vpop.permute.xlu0 %2402
    %2404 = vrot.lane.b32.xlu0 %v2026, 32
    %v2405 = vpop.permute.xlu0 %2404
    %2406 = vrot.lane.b32.xlu0 %v2031, 32
    %v2407 = vpop.permute.xlu0 %2406
    %2420 = vrot.lane.b32.xlu0 %v2291, 48
    %v2421 = vpop.permute.xlu0 %2420
    %2422 = vrot.lane.b32.xlu0 %v2294, 48
    %v2423 = vpop.permute.xlu0 %2422
    %2424 = vrot.lane.b32.xlu0 %v2299, 48
    %v2425 = vpop.permute.xlu0 %2424
    %2426 = vrot.lane.b32.xlu0 %v2353, 48
    %v2427 = vpop.permute.xlu0 %2426
    %2428 = vrot.lane.b32.xlu0 %v2356, 48
    %v2429 = vpop.permute.xlu0 %2428
    %2430 = vrot.lane.b32.xlu0 %v2361, 48
    %v2431 = vpop.permute.xlu0 %2430
    %v2438 = vsel %vm1052, %v1298, %v2373
    %v2439 = vsel %vm1052, %v1301, %v2375
    %v2440 = vsel %vm1052, %v1306, %v2377
    %v2441 = vsel %vm1052, %v1355, %v2379
    %v2442 = vsel %vm1052, %v1358, %v2381
    %v2443 = vsel %vm1052, %v1363, %v2383
    %v2444 = vsel %vm228, %v2438, %v2397
    %v2445 = vsel %vm228, %v2439, %v2399
    %v2446 = vsel %vm228, %v2440, %v2401
    %v2447 = vsel %vm228, %v2441, %v2403
    %v2448 = vsel %vm228, %v2442, %v2405
    %v2449 = vsel %vm228, %v2443, %v2407
    %vm2450 = vcmask 392192
    %v2451 = vsel %vm2450, %v2444, %v2421
    %v2452 = vsel %vm2450, %v2445, %v2423
    %v2453 = vsel %vm2450, %v2446, %v2425
    %v2454 = vsel %vm2450, %v2447, %v2427
    %v2455 = vsel %vm2450, %v2448, %v2429
    %v2456 = vsel %vm2450, %v2449, %v2431
    %v2457 = vpack.c.bf16 %v2452, %v2451
    %v2458 = vpack.c.bf16 %v2455, %v2454
    %v2459 = vld [vmem:[%s29] sm:$0xf]
    %v2460 = vld [vmem:[%s29 + $0x4] sm:$0xf]
    %v2461 = vld [vmem:[%s29 + $0x8] sm:$0xf]
    %v2462 = vld [vmem:[%s29 + $0xc] sm:$0xf]
    %v2463 = vld [vmem:[%s29 + $0x10] sm:$0xf]
    %v2464 = vld [vmem:[%s29 + $0x14] sm:$0xf]
    %v2465 = vld [vmem:[%s29 + $0x18] sm:$0xf]
    %v2466 = vld [vmem:[%s29 + $0x1c] sm:$0xf]
    %v2467 = vld [vmem:[%s31] sm:$0x1]
    %v2469 = vlaneseq
    %v2470 = vshrl.u32 %v2469, 7
    %v2471 = vsub.s32 0, %v2470
    %v2472 = vrot.slane %v2467, %v2471
    %v2482 = vunpack.c.l.b16 %v2459
    %v2483 = vunpack.c.l.b16 %v2460
    %v2484 = vunpack.c.l.b16 %v2461
    %v2485 = vunpack.c.l.b16 %v2462
    %v2486 = vunpack.c.l.b16 %v2463
    %v2487 = vunpack.c.l.b16 %v2464
    %v2488 = vunpack.c.l.b16 %v2465
    %v2489 = vunpack.c.l.b16 %v2466
    %v2490 = vpack.c.b16 %v2483, %v2482
    %v2491 = vpack.c.b16 %v2485, %v2484
    %v2492 = vpack.c.b16 %v2487, %v2486
    %v2493 = vpack.c.b16 %v2489, %v2488
    %v2499 = vsel %vm399, %v2457, 0
    %v2502 = vsel %vm399, %v2458, 0
    %2504 = vmatprep.subr.bf16.mxu0 0
    %2505 = vmatpush1.bf16.msra.mxu0 %v2490
    %2506 = vmatprep.subr.bf16.mxu0 0
    %2507 = vmatpush1.bf16.msra.mxu0 %v2491
    %2508 = vmatprep.subr.bf16.mxu0 0
    %2509 = vmatpush1.bf16.msra.mxu0 %v2492
    %2510 = vmatprep.subr.bf16.mxu0 0
    %2511 = vmatpush1.bf16.msra.mxu0 %v2493
    %2512 = vmatprep.subr.bf16.mxu0 0
    %2513 = vmatpush1.bf16.msra.mxu0 0
    %2514 = vmatprep.subr.bf16.mxu0 0
    %2515 = vmatpush1.bf16.msra.mxu0 0
    %2516 = vmatprep.subr.bf16.mxu0 0
    %2517 = vmatpush1.bf16.msra.mxu0 0
    %2518 = vmatprep.subr.bf16.mxu0 0
    %2519 = vmatpush1.bf16.msra.mxu0 0
    %2520 = vmatprep.subr.bf16.mxu0 0
    %2521 = vmatpush1.bf16.msra.mxu0 0
    %2522 = vmatprep.subr.bf16.mxu0 0
    %2523 = vmatpush1.bf16.msra.mxu0 0
    %2524 = vmatprep.subr.bf16.mxu0 0
    %2525 = vmatpush1.bf16.msra.mxu0 0
    %2526 = vmatprep.subr.bf16.mxu0 0
    %2527 = vmatpush1.bf16.msra.mxu0 0
    %2528 = vmatprep.subr.bf16.mxu0 0
    %2529 = vmatpush1.bf16.msra.mxu0 0
    %2530 = vmatprep.subr.bf16.mxu0 0
    %2531 = vmatpush1.bf16.msra.mxu0 0
    %2532 = vmatprep.subr.bf16.mxu0 0
    %2533 = vmatpush1.bf16.msra.mxu0 0
    %2534 = vmatprep.subr.bf16.mxu0 0
    %2535 = vmatpush1.bf16.msra.mxu0 0
    %2536 = vmatprep.mubr.bf16.mxu0 0
    %2537 = vmatmul.mubr.bf16.gmra.mrb[0].mxu0 %v2499
    %v2538 = vpop.f32.mrb[0].mxu0
    %v2539 = vadd.f32 %v2472, %v2538
    %v2540 = vpop.f32.mrb[0].mxu0
    %v2541 = vpop.f32.mrb[0].mxu0
    %v2542 = vadd.f32 %v2472, %v2541
    %v2543 = vpop.f32.mrb[0].mxu0
    %2544 = vmatprep.mubr.bf16.mxu0 0
    %2545 = vmatmul.mubr.bf16.gmra.mrb[0].mxu0 %v2502
    %v2546 = vpop.f32.mrb[0].mxu0
    %v2547 = vadd.f32 %v2472, %v2546
    %v2548 = vpop.f32.mrb[0].mxu0
    %v2549 = vpop.f32.mrb[0].mxu0
    %v2550 = vadd.f32 %v2472, %v2549
    %v2551 = vpop.f32.mrb[0].mxu0
    %2552 = vdwg.mxu0
    %v2553 = vlaneseq
    %v2554 = vshrl.u32 %v2553, 7
    %v2555 = vsub.s32 0, %v2554
    %v2556 = vrot.slane %v440, %v2555
    %v2557 = vmul.f32 %v2556, %v2539
    %v2558 = vmul.f32 %v2556, %v2542
    %v2559 = vmul.f32 %v2556, %v2547
    %v2560 = vmul.f32 %v2556, %v2550
    %v2561 = vadd.f32 %v288, %v2557
    %v2562 = vadd.f32 %v289, %v2558
    %v2563 = vadd.f32 %v290, %v2559
    %v2564 = vadd.f32 %v291, %v2560
    %v2565 = vsel %vm399, %v2561, 0.0
    %2566 = vadd.xlane.f32.xlu0 %v2565
    %v2567 = vpop.xlane.xlu0 %2566
    %v2568 = vsel %vm399, %v2562, 0.0
    %2569 = vadd.xlane.f32.xlu0 %v2568
    %v2570 = vpop.xlane.xlu0 %2569
    %v2571 = vsel %vm399, %v2563, 0.0
    %2572 = vadd.xlane.f32.xlu0 %v2571
    %v2573 = vpop.xlane.xlu0 %2572
    %v2574 = vsel %vm399, %v2564, 0.0
    %2575 = vadd.xlane.f32.xlu0 %v2574
    %v2576 = vpop.xlane.xlu0 %2575
    %v2577 = vmul.f32 %v2567, %v674
    %v2578 = vmul.f32 %v2570, %v674
    %v2579 = vmul.f32 %v2573, %v674
    %v2580 = vmul.f32 %v2576, %v674
    %v2581 = vsub.f32 %v2561, %v2577
    %v2582 = vsub.f32 %v2562, %v2578
    %v2583 = vsub.f32 %v2563, %v2579
    %v2584 = vsub.f32 %v2564, %v2580
    %v2585 = vmul.f32 %v2581, %v2581
    %v2586 = vmul.f32 %v2582, %v2582
    %v2587 = vmul.f32 %v2583, %v2583
    %v2588 = vmul.f32 %v2584, %v2584
    %v2589 = vsel %vm399, %v2585, 0.0
    %2590 = vadd.xlane.f32.xlu0 %v2589
    %v2591 = vpop.xlane.xlu0 %2590
    %v2592 = vsel %vm399, %v2586, 0.0
    %2593 = vadd.xlane.f32.xlu0 %v2592
    %v2594 = vpop.xlane.xlu0 %2593
    %v2595 = vsel %vm399, %v2587, 0.0
    %2596 = vadd.xlane.f32.xlu0 %v2595
    %v2597 = vpop.xlane.xlu0 %2596
    %v2598 = vsel %vm399, %v2588, 0.0
    %2599 = vadd.xlane.f32.xlu0 %v2598
    %v2600 = vpop.xlane.xlu0 %2599
    %v2601 = vmul.f32 %v2591, %v674
    %v2602 = vmul.f32 %v2594, %v674
    %v2603 = vmul.f32 %v2597, %v674
    %v2604 = vmul.f32 %v2600, %v674
    %v2605 = vadd.f32 %v2601, 1e-06
    %v2606 = vadd.f32 %v2602, 1e-06
    %v2607 = vadd.f32 %v2603, 1e-06
    %v2608 = vadd.f32 %v2604, 1e-06
    %v2609 = vrsqrt.pop %v2605
    %v2610 = vrsqrt.pop %v2606
    %v2611 = vrsqrt.pop %v2607
    %v2612 = vrsqrt.pop %v2608
    %v2613 = vmul.f32 %v2581, %v2609
    %v2614 = vmul.f32 %v2582, %v2610
    %v2615 = vmul.f32 %v2583, %v2611
    %v2616 = vmul.f32 %v2584, %v2612
    %v2617 = vadd.f32 %v479, 1.0
    %v2618 = vlaneseq
    %v2619 = vshrl.u32 %v2618, 7
    %v2620 = vsub.s32 0, %v2619
    %v2621 = vrot.slane %v2617, %v2620
    %v2622 = vmul.f32 %v2613, %v2621
    %v2623 = vmul.f32 %v2614, %v2621
    %v2624 = vmul.f32 %v2615, %v2621
    %v2625 = vmul.f32 %v2616, %v2621
    %2627 = vrot.lane.b32.xlu0 %v2556, 64
    %v2628 = vpop.permute.xlu0 %2627
    %v2630 = vadd.f32 %v2622, %v2628
    %v2631 = vadd.f32 %v2623, %v2628
    %v2632 = vadd.f32 %v2624, %v2628
    %v2633 = vadd.f32 %v2625, %v2628
    %v2634 = vpack.c.bf16 %v2631, %v2630
    %v2635 = vpack.c.bf16 %v2633, %v2632
    %v2636 = vld [vmem:[%s37] sm:$0xff]
    %v2637 = vld [vmem:[%s37 + $0x8] sm:$0xff]
    %v2638 = vld [vmem:[%s37 + $0x10] sm:$0xff]
    %v2639 = vld [vmem:[%s37 + $0x18] sm:$0xff]
    %v2640 = vld [vmem:[%s37 + $0x20] sm:$0xff]
    %v2641 = vld [vmem:[%s37 + $0x28] sm:$0xff]
    %v2642 = vld [vmem:[%s37 + $0x30] sm:$0xff]
    %v2643 = vld [vmem:[%s37 + $0x38] sm:$0xff]
    %v2644 = vld [vmem:[%s39] sm:$0x3]
    %v2646 = vlaneseq
    %v2647 = vshrl.u32 %v2646, 7
    %v2648 = vsub.s32 0, %v2647
    %v2649 = vrot.slane %v2644, %v2648
    %v2650 = vlaneseq
    %v2651 = vshrl.u32 %v2650, 7
    %v2652 = vsub.s32 1, %v2651
    %v2653 = vrot.slane %v2644, %v2652
    %v2664 = vunpack.c.l.b16 %v2636
    %v2665 = vunpack.c.h.b16 %v2636
    %v2666 = vunpack.c.l.b16 %v2637
    %v2667 = vunpack.c.h.b16 %v2637
    %v2668 = vunpack.c.l.b16 %v2638
    %v2669 = vunpack.c.h.b16 %v2638
    %v2670 = vunpack.c.l.b16 %v2639
    %v2671 = vunpack.c.h.b16 %v2639
    %v2672 = vunpack.c.l.b16 %v2640
    %v2673 = vunpack.c.h.b16 %v2640
    %v2674 = vunpack.c.l.b16 %v2641
    %v2675 = vunpack.c.h.b16 %v2641
    %v2676 = vunpack.c.l.b16 %v2642
    %v2677 = vunpack.c.h.b16 %v2642
    %v2678 = vunpack.c.l.b16 %v2643
    %v2679 = vunpack.c.h.b16 %v2643
    %v2680 = vpack.c.b16 %v2666, %v2664
    %v2681 = vpack.c.b16 %v2667, %v2665
    %v2682 = vpack.c.b16 %v2670, %v2668
    %v2683 = vpack.c.b16 %v2671, %v2669
    %v2684 = vpack.c.b16 %v2674, %v2672
    %v2685 = vpack.c.b16 %v2675, %v2673
    %v2686 = vpack.c.b16 %v2678, %v2676
    %v2687 = vpack.c.b16 %v2679, %v2677
    %v2697 = vsel %vm399, %v2634, 0
    %v2700 = vsel %vm399, %v2635, 0
    %2702 = vmatprep.subr.bf16.mxu0 %v2681
    %2703 = vmatpush1.bf16.msra.mxu0 %v2680
    %2704 = vmatprep.subr.bf16.mxu0 %v2683
    %2705 = vmatpush1.bf16.msra.mxu0 %v2682
    %2706 = vmatprep.subr.bf16.mxu0 %v2685
    %2707 = vmatpush1.bf16.msra.mxu0 %v2684
    %2708 = vmatprep.subr.bf16.mxu0 %v2687
    %2709 = vmatpush1.bf16.msra.mxu0 %v2686
    %2710 = vmatprep.subr.bf16.mxu0 0
    %2711 = vmatpush1.bf16.msra.mxu0 0
    %2712 = vmatprep.subr.bf16.mxu0 0
    %2713 = vmatpush1.bf16.msra.mxu0 0
    %2714 = vmatprep.subr.bf16.mxu0 0
    %2715 = vmatpush1.bf16.msra.mxu0 0
    %2716 = vmatprep.subr.bf16.mxu0 0
    %2717 = vmatpush1.bf16.msra.mxu0 0
    %2718 = vmatprep.subr.bf16.mxu0 0
    %2719 = vmatpush1.bf16.msra.mxu0 0
    %2720 = vmatprep.subr.bf16.mxu0 0
    %2721 = vmatpush1.bf16.msra.mxu0 0
    %2722 = vmatprep.subr.bf16.mxu0 0
    %2723 = vmatpush1.bf16.msra.mxu0 0
    %2724 = vmatprep.subr.bf16.mxu0 0
    %2725 = vmatpush1.bf16.msra.mxu0 0
    %2726 = vmatprep.subr.bf16.mxu0 0
    %2727 = vmatpush1.bf16.msra.mxu0 0
    %2728 = vmatprep.subr.bf16.mxu0 0
    %2729 = vmatpush1.bf16.msra.mxu0 0
    %2730 = vmatprep.subr.bf16.mxu0 0
    %2731 = vmatpush1.bf16.msra.mxu0 0
    %2732 = vmatprep.subr.bf16.mxu0 0
    %2733 = vmatpush1.bf16.msra.mxu0 0
    %2734 = vmatprep.mubr.bf16.mxu0 0
    %2735 = vmatmul.mubr.bf16.gmra.mrb[0].mxu0 %v2697
    %v2736 = vpop.f32.mrb[0].mxu0
    %v2737 = vadd.f32 %v2649, %v2736
    %v2738 = vpop.f32.mrb[0].mxu0
    %v2739 = vadd.f32 %v2653, %v2738
    %v2740 = vpop.f32.mrb[0].mxu0
    %v2741 = vadd.f32 %v2649, %v2740
    %v2742 = vpop.f32.mrb[0].mxu0
    %v2743 = vadd.f32 %v2653, %v2742
    %2744 = vmatprep.mubr.bf16.mxu0 0
    %2745 = vmatmul.mubr.bf16.gmra.mrb[0].mxu0 %v2700
    %v2746 = vpop.f32.mrb[0].mxu0
    %v2747 = vadd.f32 %v2649, %v2746
    %v2748 = vpop.f32.mrb[0].mxu0
    %v2749 = vadd.f32 %v2653, %v2748
    %v2750 = vpop.f32.mrb[0].mxu0
    %v2751 = vadd.f32 %v2649, %v2750
    %v2752 = vpop.f32.mrb[0].mxu0
    %v2753 = vadd.f32 %v2653, %v2752
    %2754 = vdwg.mxu0
    %v2755 = vmul.f32 %v2737, %v2737
    %v2756 = vmul.f32 %v2739, %v2739
    %v2757 = vmul.f32 %v2741, %v2741
    %v2758 = vmul.f32 %v2743, %v2743
    %v2759 = vmul.f32 %v2747, %v2747
    %v2760 = vmul.f32 %v2749, %v2749
    %v2761 = vmul.f32 %v2751, %v2751
    %v2762 = vmul.f32 %v2753, %v2753
    %v2763 = vmul.f32 %v2737, %v2755
    %v2764 = vmul.f32 %v2739, %v2756
    %v2765 = vmul.f32 %v2741, %v2757
    %v2766 = vmul.f32 %v2743, %v2758
    %v2767 = vmul.f32 %v2747, %v2759
    %v2768 = vmul.f32 %v2749, %v2760
    %v2769 = vmul.f32 %v2751, %v2761
    %v2770 = vmul.f32 %v2753, %v2762
    %v2771 = vmul.f32 %v2763, 0.044715
    %v2772 = vmul.f32 %v2764, 0.044715
    %v2773 = vmul.f32 %v2765, 0.044715
    %v2774 = vmul.f32 %v2766, 0.044715
    %v2775 = vmul.f32 %v2767, 0.044715
    %v2776 = vmul.f32 %v2768, 0.044715
    %v2777 = vmul.f32 %v2769, 0.044715
    %v2778 = vmul.f32 %v2770, 0.044715
    %v2779 = vadd.f32 %v2737, %v2771
    %v2780 = vadd.f32 %v2739, %v2772
    %v2781 = vadd.f32 %v2741, %v2773
    %v2782 = vadd.f32 %v2743, %v2774
    %v2783 = vadd.f32 %v2747, %v2775
    %v2784 = vadd.f32 %v2749, %v2776
    %v2785 = vadd.f32 %v2751, %v2777
    %v2786 = vadd.f32 %v2753, %v2778
    %v2787 = vmul.f32 %v2779, 0.7978846
    %v2788 = vmul.f32 %v2780, 0.7978846
    %v2789 = vmul.f32 %v2781, 0.7978846
    %v2790 = vmul.f32 %v2782, 0.7978846
    %v2791 = vmul.f32 %v2783, 0.7978846
    %v2792 = vmul.f32 %v2784, 0.7978846
    %v2793 = vmul.f32 %v2785, 0.7978846
    %v2794 = vmul.f32 %v2786, 0.7978846
    %v2795 = vtanh.pop %v2787
    %v2796 = vtanh.pop %v2788
    %v2797 = vtanh.pop %v2789
    %v2798 = vtanh.pop %v2790
    %v2799 = vtanh.pop %v2791
    %v2800 = vtanh.pop %v2792
    %v2801 = vtanh.pop %v2793
    %v2802 = vtanh.pop %v2794
    %v2803 = vadd.f32 %v2795, 1.0
    %v2804 = vadd.f32 %v2796, 1.0
    %v2805 = vadd.f32 %v2797, 1.0
    %v2806 = vadd.f32 %v2798, 1.0
    %v2807 = vadd.f32 %v2799, 1.0
    %v2808 = vadd.f32 %v2800, 1.0
    %v2809 = vadd.f32 %v2801, 1.0
    %v2810 = vadd.f32 %v2802, 1.0
    %v2811 = vmul.f32 %v2803, 0.5
    %v2812 = vmul.f32 %v2804, 0.5
    %v2813 = vmul.f32 %v2805, 0.5
    %v2814 = vmul.f32 %v2806, 0.5
    %v2815 = vmul.f32 %v2807, 0.5
    %v2816 = vmul.f32 %v2808, 0.5
    %v2817 = vmul.f32 %v2809, 0.5
    %v2818 = vmul.f32 %v2810, 0.5
    %v2819 = vmul.f32 %v2737, %v2811
    %v2820 = vmul.f32 %v2739, %v2812
    %v2821 = vmul.f32 %v2741, %v2813
    %v2822 = vmul.f32 %v2743, %v2814
    %v2823 = vmul.f32 %v2747, %v2815
    %v2824 = vmul.f32 %v2749, %v2816
    %v2825 = vmul.f32 %v2751, %v2817
    %v2826 = vmul.f32 %v2753, %v2818
    %v2827 = vpack.c.bf16 %v2821, %v2819
    %v2828 = vpack.c.bf16 %v2822, %v2820
    %v2829 = vpack.c.bf16 %v2825, %v2823
    %v2830 = vpack.c.bf16 %v2826, %v2824
    %v2831 = vld [vmem:[%s41] sm:$0xf]
    %v2832 = vld [vmem:[%s41 + $0x4] sm:$0xf]
    %v2833 = vld [vmem:[%s41 + $0x8] sm:$0xf]
    %v2834 = vld [vmem:[%s41 + $0xc] sm:$0xf]
    %v2835 = vld [vmem:[%s41 + $0x10] sm:$0xf]
    %v2836 = vld [vmem:[%s41 + $0x14] sm:$0xf]
    %v2837 = vld [vmem:[%s41 + $0x18] sm:$0xf]
    %v2838 = vld [vmem:[%s41 + $0x1c] sm:$0xf]
    %v2839 = vld [vmem:[%s41 + $0x20] sm:$0xf]
    %v2840 = vld [vmem:[%s41 + $0x24] sm:$0xf]
    %v2841 = vld [vmem:[%s41 + $0x28] sm:$0xf]
    %v2842 = vld [vmem:[%s41 + $0x2c] sm:$0xf]
    %v2843 = vld [vmem:[%s41 + $0x30] sm:$0xf]
    %v2844 = vld [vmem:[%s41 + $0x34] sm:$0xf]
    %v2845 = vld [vmem:[%s41 + $0x38] sm:$0xf]
    %v2846 = vld [vmem:[%s41 + $0x3c] sm:$0xf]
    %v2847 = vld [vmem:[%s41 + $0x40] sm:$0xf]
    %v2848 = vld [vmem:[%s41 + $0x44] sm:$0xf]
    %v2849 = vld [vmem:[%s41 + $0x48] sm:$0xf]
    %v2850 = vld [vmem:[%s41 + $0x4c] sm:$0xf]
    %v2851 = vld [vmem:[%s41 + $0x50] sm:$0xf]
    %v2852 = vld [vmem:[%s41 + $0x54] sm:$0xf]
    %v2853 = vld [vmem:[%s41 + $0x58] sm:$0xf]
    %v2854 = vld [vmem:[%s41 + $0x5c] sm:$0xf]
    %v2855 = vld [vmem:[%s41 + $0x60] sm:$0xf]
    %v2856 = vld [vmem:[%s41 + $0x64] sm:$0xf]
    %v2857 = vld [vmem:[%s41 + $0x68] sm:$0xf]
    %v2858 = vld [vmem:[%s41 + $0x6c] sm:$0xf]
    %v2859 = vld [vmem:[%s41 + $0x70] sm:$0xf]
    %v2860 = vld [vmem:[%s41 + $0x74] sm:$0xf]
    %v2861 = vld [vmem:[%s41 + $0x78] sm:$0xf]
    %v2862 = vld [vmem:[%s41 + $0x7c] sm:$0xf]
    %v2863 = vld [vmem:[%s43] sm:$0x1]
    %v2865 = vlaneseq
    %v2866 = vshrl.u32 %v2865, 7
    %v2867 = vsub.s32 0, %v2866
    %v2868 = vrot.slane %v2863, %v2867
    %v2902 = vunpack.c.l.b16 %v2831
    %v2903 = vunpack.c.l.b16 %v2832
    %v2904 = vunpack.c.l.b16 %v2833
    %v2905 = vunpack.c.l.b16 %v2834
    %v2906 = vunpack.c.l.b16 %v2835
    %v2907 = vunpack.c.l.b16 %v2836
    %v2908 = vunpack.c.l.b16 %v2837
    %v2909 = vunpack.c.l.b16 %v2838
    %v2910 = vunpack.c.l.b16 %v2839
    %v2911 = vunpack.c.l.b16 %v2840
    %v2912 = vunpack.c.l.b16 %v2841
    %v2913 = vunpack.c.l.b16 %v2842
    %v2914 = vunpack.c.l.b16 %v2843
    %v2915 = vunpack.c.l.b16 %v2844
    %v2916 = vunpack.c.l.b16 %v2845
    %v2917 = vunpack.c.l.b16 %v2846
    %v2918 = vunpack.c.l.b16 %v2847
    %v2919 = vunpack.c.l.b16 %v2848
    %v2920 = vunpack.c.l.b16 %v2849
    %v2921 = vunpack.c.l.b16 %v2850
    %v2922 = vunpack.c.l.b16 %v2851
    %v2923 = vunpack.c.l.b16 %v2852
    %v2924 = vunpack.c.l.b16 %v2853
    %v2925 = vunpack.c.l.b16 %v2854
    %v2926 = vunpack.c.l.b16 %v2855
    %v2927 = vunpack.c.l.b16 %v2856
    %v2928 = vunpack.c.l.b16 %v2857
    %v2929 = vunpack.c.l.b16 %v2858
    %v2930 = vunpack.c.l.b16 %v2859
    %v2931 = vunpack.c.l.b16 %v2860
    %v2932 = vunpack.c.l.b16 %v2861
    %v2933 = vunpack.c.l.b16 %v2862
    %v2934 = vpack.c.b16 %v2903, %v2902
    %v2935 = vpack.c.b16 %v2905, %v2904
    %v2936 = vpack.c.b16 %v2907, %v2906
    %v2937 = vpack.c.b16 %v2909, %v2908
    %v2938 = vpack.c.b16 %v2911, %v2910
    %v2939 = vpack.c.b16 %v2913, %v2912
    %v2940 = vpack.c.b16 %v2915, %v2914
    %v2941 = vpack.c.b16 %v2917, %v2916
    %v2942 = vpack.c.b16 %v2919, %v2918
    %v2943 = vpack.c.b16 %v2921, %v2920
    %v2944 = vpack.c.b16 %v2923, %v2922
    %v2945 = vpack.c.b16 %v2925, %v2924
    %v2946 = vpack.c.b16 %v2927, %v2926
    %v2947 = vpack.c.b16 %v2929, %v2928
    %v2948 = vpack.c.b16 %v2931, %v2930
    %v2949 = vpack.c.b16 %v2933, %v2932
    %2966 = vmatprep.subr.bf16.mxu0 0
    %2967 = vmatpush1.bf16.msra.mxu0 %v2934
    %2968 = vmatprep.subr.bf16.mxu0 0
    %2969 = vmatpush1.bf16.msra.mxu0 %v2935
    %2970 = vmatprep.subr.bf16.mxu0 0
    %2971 = vmatpush1.bf16.msra.mxu0 %v2936
    %2972 = vmatprep.subr.bf16.mxu0 0
    %2973 = vmatpush1.bf16.msra.mxu0 %v2937
    %2974 = vmatprep.subr.bf16.mxu0 0
    %2975 = vmatpush1.bf16.msra.mxu0 %v2938
    %2976 = vmatprep.subr.bf16.mxu0 0
    %2977 = vmatpush1.bf16.msra.mxu0 %v2939
    %2978 = vmatprep.subr.bf16.mxu0 0
    %2979 = vmatpush1.bf16.msra.mxu0 %v2940
    %2980 = vmatprep.subr.bf16.mxu0 0
    %2981 = vmatpush1.bf16.msra.mxu0 %v2941
    %2982 = vmatprep.subr.bf16.mxu0 0
    %2983 = vmatpush1.bf16.msra.mxu0 %v2942
    %2984 = vmatprep.subr.bf16.mxu0 0
    %2985 = vmatpush1.bf16.msra.mxu0 %v2943
    %2986 = vmatprep.subr.bf16.mxu0 0
    %2987 = vmatpush1.bf16.msra.mxu0 %v2944
    %2988 = vmatprep.subr.bf16.mxu0 0
    %2989 = vmatpush1.bf16.msra.mxu0 %v2945
    %2990 = vmatprep.subr.bf16.mxu0 0
    %2991 = vmatpush1.bf16.msra.mxu0 %v2946
    %2992 = vmatprep.subr.bf16.mxu0 0
    %2993 = vmatpush1.bf16.msra.mxu0 %v2947
    %2994 = vmatprep.subr.bf16.mxu0 0
    %2995 = vmatpush1.bf16.msra.mxu0 %v2948
    %2996 = vmatprep.subr.bf16.mxu0 0
    %2997 = vmatpush1.bf16.msra.mxu0 %v2949
    %2998 = vmatprep.mubr.bf16.mxu0 %v2828
    %2999 = vmatmul.mubr.bf16.gmra.mrb[0].mxu0 %v2827
    %v3000 = vpop.f32.mrb[0].mxu0
    %v3001 = vadd.f32 %v2868, %v3000
    %v3002 = vpop.f32.mrb[0].mxu0
    %v3003 = vpop.f32.mrb[0].mxu0
    %v3004 = vadd.f32 %v2868, %v3003
    %v3005 = vpop.f32.mrb[0].mxu0
    %3006 = vmatprep.mubr.bf16.mxu0 %v2830
    %3007 = vmatmul.mubr.bf16.gmra.mrb[0].mxu0 %v2829
    %v3008 = vpop.f32.mrb[0].mxu0
    %v3009 = vadd.f32 %v2868, %v3008
    %v3010 = vpop.f32.mrb[0].mxu0
    %v3011 = vpop.f32.mrb[0].mxu0
    %v3012 = vadd.f32 %v2868, %v3011
    %v3013 = vpop.f32.mrb[0].mxu0
    %3014 = vdwg.mxu0
    %v3015 = vlaneseq
    %v3016 = vshrl.u32 %v3015, 7
    %v3017 = vsub.s32 0, %v3016
    %v3018 = vrot.slane %v479, %v3017
    %3023 = vrot.lane.b32.xlu0 %v3001, 64
    %v3024 = vpop.permute.xlu0 %3023
    %3025 = vrot.lane.b32.xlu0 %v3004, 64
    %v3026 = vpop.permute.xlu0 %3025
    %3027 = vrot.lane.b32.xlu0 %v3009, 64
    %v3028 = vpop.permute.xlu0 %3027
    %3029 = vrot.lane.b32.xlu0 %v3012, 64
    %v3030 = vpop.permute.xlu0 %3029
    %v3035 = vmul.f32 %v3018, %v3024
    %v3036 = vmul.f32 %v3018, %v3026
    %v3037 = vmul.f32 %v3018, %v3028
    %v3038 = vmul.f32 %v3018, %v3030
    %3043 = vrot.lane.b32.xlu0 %v3035, 64
    %v3044 = vpop.permute.xlu0 %3043
    %3045 = vrot.lane.b32.xlu0 %v3036, 64
    %v3046 = vpop.permute.xlu0 %3045
    %3047 = vrot.lane.b32.xlu0 %v3037, 64
    %v3048 = vpop.permute.xlu0 %3047
    %3049 = vrot.lane.b32.xlu0 %v3038, 64
    %v3050 = vpop.permute.xlu0 %3049
    %v3055 = vadd.f32 %v2561, %v3044
    %v3056 = vadd.f32 %v2562, %v3046
    %v3057 = vadd.f32 %v2563, %v3048
    %v3058 = vadd.f32 %v2564, %v3050
    %v3059 = vpack.c.bf16 %v2453, %v2453
    %v3060 = vpack.c.bf16 %v2456, %v2456
    %v3061 = vld [vmem:[%s33] sm:$0xf]
    %v3062 = vld [vmem:[%s33 + $0x4] sm:$0xf]
    %v3063 = vld [vmem:[%s33 + $0x8] sm:$0xf]
    %v3064 = vld [vmem:[%s33 + $0xc] sm:$0xf]
    %v3065 = vld [vmem:[%s33 + $0x10] sm:$0xf]
    %v3066 = vld [vmem:[%s33 + $0x14] sm:$0xf]
    %v3067 = vld [vmem:[%s33 + $0x18] sm:$0xf]
    %v3068 = vld [vmem:[%s33 + $0x1c] sm:$0xf]
    %v3069 = vld [vmem:[%s35] sm:$0x1]
    %v3071 = vlaneseq
    %v3072 = vshrl.u32 %v3071, 7
    %v3073 = vsub.s32 0, %v3072
    %v3074 = vrot.slane %v3069, %v3073
    %v3078 = vunpack.c.l.b16 %v3059
    %v3079 = vunpack.c.l.b16 %v3060
    %v3080 = vrot.slane %v3079, 7
    %vm3081 = vcmask 1041409
    %v3082 = vsel %vm3081, %v3080, %v3078
    %v3083 = vpack.c.b16 %v3082, %v3082
    %v3092 = vunpack.c.l.b16 %v3061
    %v3093 = vunpack.c.l.b16 %v3062
    %v3094 = vunpack.c.l.b16 %v3063
    %v3095 = vunpack.c.l.b16 %v3064
    %v3096 = vunpack.c.l.b16 %v3065
    %v3097 = vunpack.c.l.b16 %v3066
    %v3098 = vunpack.c.l.b16 %v3067
    %v3099 = vunpack.c.l.b16 %v3068
    %v3100 = vpack.c.b16 %v3093, %v3092
    %v3101 = vpack.c.b16 %v3095, %v3094
    %v3102 = vpack.c.b16 %v3097, %v3096
    %v3103 = vpack.c.b16 %v3099, %v3098
    %v3109 = vsel %vm399, %v3083, 0
    %3111 = vmatprep.subr.bf16.mxu0 0
    %3112 = vmatpush1.bf16.msra.mxu0 %v3100
    %3113 = vmatprep.subr.bf16.mxu0 0
    %3114 = vmatpush1.bf16.msra.mxu0 %v3101
    %3115 = vmatprep.subr.bf16.mxu0 0
    %3116 = vmatpush1.bf16.msra.mxu0 %v3102
    %3117 = vmatprep.subr.bf16.mxu0 0
    %3118 = vmatpush1.bf16.msra.mxu0 %v3103
    %3119 = vmatprep.subr.bf16.mxu0 0
    %3120 = vmatpush1.bf16.msra.mxu0 0
    %3121 = vmatprep.subr.bf16.mxu0 0
    %3122 = vmatpush1.bf16.msra.mxu0 0
    %3123 = vmatprep.subr.bf16.mxu0 0
    %3124 = vmatpush1.bf16.msra.mxu0 0
    %3125 = vmatprep.subr.bf16.mxu0 0
    %3126 = vmatpush1.bf16.msra.mxu0 0
    %3127 = vmatprep.subr.bf16.mxu0 0
    %3128 = vmatpush1.bf16.msra.mxu0 0
    %3129 = vmatprep.subr.bf16.mxu0 0
    %3130 = vmatpush1.bf16.msra.mxu0 0
    %3131 = vmatprep.subr.bf16.mxu0 0
    %3132 = vmatpush1.bf16.msra.mxu0 0
    %3133 = vmatprep.subr.bf16.mxu0 0
    %3134 = vmatpush1.bf16.msra.mxu0 0
    %3135 = vmatprep.subr.bf16.mxu0 0
    %3136 = vmatpush1.bf16.msra.mxu0 0
    %3137 = vmatprep.subr.bf16.mxu0 0
    %3138 = vmatpush1.bf16.msra.mxu0 0
    %3139 = vmatprep.subr.bf16.mxu0 0
    %3140 = vmatpush1.bf16.msra.mxu0 0
    %3141 = vmatprep.subr.bf16.mxu0 0
    %3142 = vmatpush1.bf16.msra.mxu0 0
    %3143 = vmatprep.mubr.bf16.mxu0 0
    %3144 = vmatmul.mubr.bf16.gmra.mrb[0].mxu0 %v3109
    %v3145 = vpop.f32.mrb[0].mxu0
    %v3146 = vadd.f32 %v3074, %v3145
    %v3147 = vpop.f32.mrb[0].mxu0
    %v3148 = vpop.f32.mrb[0].mxu0
    %v3149 = vpop.f32.mrb[0].mxu0
    %3150 = vdwg.mxu0
    %v3151 = vlaneseq
    %v3152 = vshrl.u32 %v3151, 7
    %v3153 = vsub.s32 0, %v3152
    %v3154 = vrot.slane %v618, %v3153
    %v3155 = vmul.f32 %v3154, %v3146
    %v3156 = vadd.f32 %v292, %v3155
    %v3157 = vsel %vm738, %v3156, 0.0
    %3158 = vadd.xlane.f32.xlu0 %v3157
    %v3159 = vpop.xlane.xlu0 %3158
    %v3160 = vmul.f32 %v3159, %v674
    %v3161 = vsub.f32 %v3156, %v3160
    %v3162 = vmul.f32 %v3161, %v3161
    %v3163 = vsel %vm738, %v3162, 0.0
    %3164 = vadd.xlane.f32.xlu0 %v3163
    %v3165 = vpop.xlane.xlu0 %3164
    %v3166 = vmul.f32 %v3165, %v674
    %v3167 = vadd.f32 %v3166, 1e-06
    %v3168 = vrsqrt.pop %v3167
    %v3169 = vmul.f32 %v3161, %v3168
    %v3170 = vadd.f32 %v657, 1.0
    %v3171 = vlaneseq
    %v3172 = vshrl.u32 %v3171, 7
    %v3173 = vsub.s32 0, %v3172
    %v3174 = vrot.slane %v3170, %v3173
    %v3175 = vmul.f32 %v3169, %v3174
    %3177 = vrot.lane.b32.xlu0 %v3154, 64
    %v3178 = vpop.permute.xlu0 %3177
    %v3180 = vadd.f32 %v3175, %v3178
    %v3181 = vpack.c.bf16 %v3180, %v3180
    %v3182 = vld [vmem:[%s45] sm:$0xff]
    %v3183 = vld [vmem:[%s45 + $0x8] sm:$0xff]
    %v3184 = vld [vmem:[%s45 + $0x10] sm:$0xff]
    %v3185 = vld [vmem:[%s45 + $0x18] sm:$0xff]
    %v3186 = vld [vmem:[%s45 + $0x20] sm:$0xff]
    %v3187 = vld [vmem:[%s45 + $0x28] sm:$0xff]
    %v3188 = vld [vmem:[%s45 + $0x30] sm:$0xff]
    %v3189 = vld [vmem:[%s45 + $0x38] sm:$0xff]
    %v3190 = vld [vmem:[%s47] sm:$0x3]
    %v3192 = vlaneseq
    %v3193 = vshrl.u32 %v3192, 7
    %v3194 = vsub.s32 0, %v3193
    %v3195 = vrot.slane %v3190, %v3194
    %v3196 = vlaneseq
    %v3197 = vshrl.u32 %v3196, 7
    %v3198 = vsub.s32 1, %v3197
    %v3199 = vrot.slane %v3190, %v3198
    %v3210 = vunpack.c.l.b16 %v3182
    %v3211 = vunpack.c.h.b16 %v3182
    %v3212 = vunpack.c.l.b16 %v3183
    %v3213 = vunpack.c.h.b16 %v3183
    %v3214 = vunpack.c.l.b16 %v3184
    %v3215 = vunpack.c.h.b16 %v3184
    %v3216 = vunpack.c.l.b16 %v3185
    %v3217 = vunpack.c.h.b16 %v3185
    %v3218 = vunpack.c.l.b16 %v3186
    %v3219 = vunpack.c.h.b16 %v3186
    %v3220 = vunpack.c.l.b16 %v3187
    %v3221 = vunpack.c.h.b16 %v3187
    %v3222 = vunpack.c.l.b16 %v3188
    %v3223 = vunpack.c.h.b16 %v3188
    %v3224 = vunpack.c.l.b16 %v3189
    %v3225 = vunpack.c.h.b16 %v3189
    %v3226 = vpack.c.b16 %v3212, %v3210
    %v3227 = vpack.c.b16 %v3213, %v3211
    %v3228 = vpack.c.b16 %v3216, %v3214
    %v3229 = vpack.c.b16 %v3217, %v3215
    %v3230 = vpack.c.b16 %v3220, %v3218
    %v3231 = vpack.c.b16 %v3221, %v3219
    %v3232 = vpack.c.b16 %v3224, %v3222
    %v3233 = vpack.c.b16 %v3225, %v3223
    %v3243 = vsel %vm399, %v3181, 0
    %3245 = vmatprep.subr.bf16.mxu0 %v3227
    %3246 = vmatpush1.bf16.msra.mxu0 %v3226
    %3247 = vmatprep.subr.bf16.mxu0 %v3229
    %3248 = vmatpush1.bf16.msra.mxu0 %v3228
    %3249 = vmatprep.subr.bf16.mxu0 %v3231
    %3250 = vmatpush1.bf16.msra.mxu0 %v3230
    %3251 = vmatprep.subr.bf16.mxu0 %v3233
    %3252 = vmatpush1.bf16.msra.mxu0 %v3232
    %3253 = vmatprep.subr.bf16.mxu0 0
    %3254 = vmatpush1.bf16.msra.mxu0 0
    %3255 = vmatprep.subr.bf16.mxu0 0
    %3256 = vmatpush1.bf16.msra.mxu0 0
    %3257 = vmatprep.subr.bf16.mxu0 0
    %3258 = vmatpush1.bf16.msra.mxu0 0
    %3259 = vmatprep.subr.bf16.mxu0 0
    %3260 = vmatpush1.bf16.msra.mxu0 0
    %3261 = vmatprep.subr.bf16.mxu0 0
    %3262 = vmatpush1.bf16.msra.mxu0 0
    %3263 = vmatprep.subr.bf16.mxu0 0
    %3264 = vmatpush1.bf16.msra.mxu0 0
    %3265 = vmatprep.subr.bf16.mxu0 0
    %3266 = vmatpush1.bf16.msra.mxu0 0
    %3267 = vmatprep.subr.bf16.mxu0 0
    %3268 = vmatpush1.bf16.msra.mxu0 0
    %3269 = vmatprep.subr.bf16.mxu0 0
    %3270 = vmatpush1.bf16.msra.mxu0 0
    %3271 = vmatprep.subr.bf16.mxu0 0
    %3272 = vmatpush1.bf16.msra.mxu0 0
    %3273 = vmatprep.subr.bf16.mxu0 0
    %3274 = vmatpush1.bf16.msra.mxu0 0
    %3275 = vmatprep.subr.bf16.mxu0 0
    %3276 = vmatpush1.bf16.msra.mxu0 0
    %3277 = vmatprep.mubr.bf16.mxu0 0
    %3278 = vmatmul.mubr.bf16.gmra.mrb[0].mxu0 %v3243
    %v3279 = vpop.f32.mrb[0].mxu0
    %v3280 = vadd.f32 %v3195, %v3279
    %v3281 = vpop.f32.mrb[0].mxu0
    %v3282 = vadd.f32 %v3199, %v3281
    %v3283 = vpop.f32.mrb[0].mxu0
    %v3284 = vpop.f32.mrb[0].mxu0
    %3285 = vdwg.mxu0
    %v3286 = vmul.f32 %v3280, %v3280
    %v3287 = vmul.f32 %v3282, %v3282
    %v3288 = vmul.f32 %v3280, %v3286
    %v3289 = vmul.f32 %v3282, %v3287
    %v3290 = vmul.f32 %v3288, 0.044715
    %v3291 = vmul.f32 %v3289, 0.044715
    %v3292 = vadd.f32 %v3280, %v3290
    %v3293 = vadd.f32 %v3282, %v3291
    %v3294 = vmul.f32 %v3292, 0.7978846
    %v3295 = vmul.f32 %v3293, 0.7978846
    %v3296 = vtanh.pop %v3294
    %v3297 = vtanh.pop %v3295
    %v3298 = vadd.f32 %v3296, 1.0
    %v3299 = vadd.f32 %v3297, 1.0
    %v3300 = vmul.f32 %v3298, 0.5
    %v3301 = vmul.f32 %v3299, 0.5
    %v3302 = vmul.f32 %v3280, %v3300
    %v3303 = vmul.f32 %v3282, %v3301
    %v3304 = vpack.c.bf16 %v3302, %v3302
    %v3305 = vpack.c.bf16 %v3303, %v3303
    %v3306 = vld [vmem:[%s49] sm:$0xf]
    %v3307 = vld [vmem:[%s49 + $0x4] sm:$0xf]
    %v3308 = vld [vmem:[%s49 + $0x8] sm:$0xf]
    %v3309 = vld [vmem:[%s49 + $0xc] sm:$0xf]
    %v3310 = vld [vmem:[%s49 + $0x10] sm:$0xf]
    %v3311 = vld [vmem:[%s49 + $0x14] sm:$0xf]
    %v3312 = vld [vmem:[%s49 + $0x18] sm:$0xf]
    %v3313 = vld [vmem:[%s49 + $0x1c] sm:$0xf]
    %v3314 = vld [vmem:[%s49 + $0x20] sm:$0xf]
    %v3315 = vld [vmem:[%s49 + $0x24] sm:$0xf]
    %v3316 = vld [vmem:[%s49 + $0x28] sm:$0xf]
    %v3317 = vld [vmem:[%s49 + $0x2c] sm:$0xf]
    %v3318 = vld [vmem:[%s49 + $0x30] sm:$0xf]
    %v3319 = vld [vmem:[%s49 + $0x34] sm:$0xf]
    %v3320 = vld [vmem:[%s49 + $0x38] sm:$0xf]
    %v3321 = vld [vmem:[%s49 + $0x3c] sm:$0xf]
    %v3322 = vld [vmem:[%s49 + $0x40] sm:$0xf]
    %v3323 = vld [vmem:[%s49 + $0x44] sm:$0xf]
    %v3324 = vld [vmem:[%s49 + $0x48] sm:$0xf]
    %v3325 = vld [vmem:[%s49 + $0x4c] sm:$0xf]
    %v3326 = vld [vmem:[%s49 + $0x50] sm:$0xf]
    %v3327 = vld [vmem:[%s49 + $0x54] sm:$0xf]
    %v3328 = vld [vmem:[%s49 + $0x58] sm:$0xf]
    %v3329 = vld [vmem:[%s49 + $0x5c] sm:$0xf]
    %v3330 = vld [vmem:[%s49 + $0x60] sm:$0xf]
    %v3331 = vld [vmem:[%s49 + $0x64] sm:$0xf]
    %v3332 = vld [vmem:[%s49 + $0x68] sm:$0xf]
    %v3333 = vld [vmem:[%s49 + $0x6c] sm:$0xf]
    %v3334 = vld [vmem:[%s49 + $0x70] sm:$0xf]
    %v3335 = vld [vmem:[%s49 + $0x74] sm:$0xf]
    %v3336 = vld [vmem:[%s49 + $0x78] sm:$0xf]
    %v3337 = vld [vmem:[%s49 + $0x7c] sm:$0xf]
    %v3338 = vld [vmem:[%s51] sm:$0x1]
    %v3340 = vlaneseq
    %v3341 = vshrl.u32 %v3340, 7
    %v3342 = vsub.s32 0, %v3341
    %v3343 = vrot.slane %v3338, %v3342
    %v3377 = vunpack.c.l.b16 %v3306
    %v3378 = vunpack.c.l.b16 %v3307
    %v3379 = vunpack.c.l.b16 %v3308
    %v3380 = vunpack.c.l.b16 %v3309
    %v3381 = vunpack.c.l.b16 %v3310
    %v3382 = vunpack.c.l.b16 %v3311
    %v3383 = vunpack.c.l.b16 %v3312
    %v3384 = vunpack.c.l.b16 %v3313
    %v3385 = vunpack.c.l.b16 %v3314
    %v3386 = vunpack.c.l.b16 %v3315
    %v3387 = vunpack.c.l.b16 %v3316
    %v3388 = vunpack.c.l.b16 %v3317
    %v3389 = vunpack.c.l.b16 %v3318
    %v3390 = vunpack.c.l.b16 %v3319
    %v3391 = vunpack.c.l.b16 %v3320
    %v3392 = vunpack.c.l.b16 %v3321
    %v3393 = vunpack.c.l.b16 %v3322
    %v3394 = vunpack.c.l.b16 %v3323
    %v3395 = vunpack.c.l.b16 %v3324
    %v3396 = vunpack.c.l.b16 %v3325
    %v3397 = vunpack.c.l.b16 %v3326
    %v3398 = vunpack.c.l.b16 %v3327
    %v3399 = vunpack.c.l.b16 %v3328
    %v3400 = vunpack.c.l.b16 %v3329
    %v3401 = vunpack.c.l.b16 %v3330
    %v3402 = vunpack.c.l.b16 %v3331
    %v3403 = vunpack.c.l.b16 %v3332
    %v3404 = vunpack.c.l.b16 %v3333
    %v3405 = vunpack.c.l.b16 %v3334
    %v3406 = vunpack.c.l.b16 %v3335
    %v3407 = vunpack.c.l.b16 %v3336
    %v3408 = vunpack.c.l.b16 %v3337
    %v3409 = vpack.c.b16 %v3378, %v3377
    %v3410 = vpack.c.b16 %v3380, %v3379
    %v3411 = vpack.c.b16 %v3382, %v3381
    %v3412 = vpack.c.b16 %v3384, %v3383
    %v3413 = vpack.c.b16 %v3386, %v3385
    %v3414 = vpack.c.b16 %v3388, %v3387
    %v3415 = vpack.c.b16 %v3390, %v3389
    %v3416 = vpack.c.b16 %v3392, %v3391
    %v3417 = vpack.c.b16 %v3394, %v3393
    %v3418 = vpack.c.b16 %v3396, %v3395
    %v3419 = vpack.c.b16 %v3398, %v3397
    %v3420 = vpack.c.b16 %v3400, %v3399
    %v3421 = vpack.c.b16 %v3402, %v3401
    %v3422 = vpack.c.b16 %v3404, %v3403
    %v3423 = vpack.c.b16 %v3406, %v3405
    %v3424 = vpack.c.b16 %v3408, %v3407
    %3441 = vmatprep.subr.bf16.mxu0 0
    %3442 = vmatpush1.bf16.msra.mxu0 %v3409
    %3443 = vmatprep.subr.bf16.mxu0 0
    %3444 = vmatpush1.bf16.msra.mxu0 %v3410
    %3445 = vmatprep.subr.bf16.mxu0 0
    %3446 = vmatpush1.bf16.msra.mxu0 %v3411
    %3447 = vmatprep.subr.bf16.mxu0 0
    %3448 = vmatpush1.bf16.msra.mxu0 %v3412
    %3449 = vmatprep.subr.bf16.mxu0 0
    %3450 = vmatpush1.bf16.msra.mxu0 %v3413
    %3451 = vmatprep.subr.bf16.mxu0 0
    %3452 = vmatpush1.bf16.msra.mxu0 %v3414
    %3453 = vmatprep.subr.bf16.mxu0 0
    %3454 = vmatpush1.bf16.msra.mxu0 %v3415
    %3455 = vmatprep.subr.bf16.mxu0 0
    %3456 = vmatpush1.bf16.msra.mxu0 %v3416
    %3457 = vmatprep.subr.bf16.mxu0 0
    %3458 = vmatpush1.bf16.msra.mxu0 %v3417
    %3459 = vmatprep.subr.bf16.mxu0 0
    %3460 = vmatpush1.bf16.msra.mxu0 %v3418
    %3461 = vmatprep.subr.bf16.mxu0 0
    %3462 = vmatpush1.bf16.msra.mxu0 %v3419
    %3463 = vmatprep.subr.bf16.mxu0 0
    %3464 = vmatpush1.bf16.msra.mxu0 %v3420
    %3465 = vmatprep.subr.bf16.mxu0 0
    %3466 = vmatpush1.bf16.msra.mxu0 %v3421
    %3467 = vmatprep.subr.bf16.mxu0 0
    %3468 = vmatpush1.bf16.msra.mxu0 %v3422
    %3469 = vmatprep.subr.bf16.mxu0 0
    %3470 = vmatpush1.bf16.msra.mxu0 %v3423
    %3471 = vmatprep.subr.bf16.mxu0 0
    %3472 = vmatpush1.bf16.msra.mxu0 %v3424
    %3473 = vmatprep.mubr.bf16.mxu0 %v3305
    %3474 = vmatmul.mubr.bf16.gmra.mrb[0].mxu0 %v3304
    %v3475 = vpop.f32.mrb[0].mxu0
    %v3476 = vadd.f32 %v3343, %v3475
    %v3477 = vpop.f32.mrb[0].mxu0
    %v3478 = vpop.f32.mrb[0].mxu0
    %v3479 = vpop.f32.mrb[0].mxu0
    %3480 = vdwg.mxu0
    %v3481 = vlaneseq
    %v3482 = vshrl.u32 %v3481, 7
    %v3483 = vsub.s32 0, %v3482
    %v3484 = vrot.slane %v657, %v3483
    %3486 = vrot.lane.b32.xlu0 %v3476, 64
    %v3487 = vpop.permute.xlu0 %3486
    %v3489 = vmul.f32 %v3484, %v3487
    %3491 = vrot.lane.b32.xlu0 %v3489, 64
    %v3492 = vpop.permute.xlu0 %3491
    %v3494 = vadd.f32 %v3156, %v3492
    %v3495 = vld [vmem:[%s53] sm:$0xff]
    %v3496 = vld [vmem:[%s53 + $0x8] sm:$0xf]
    %v3497 = vld [vmem:[%s53 + $0xc] sm:$0xff]
    %v3498 = vld [vmem:[%s53 + $0x14] sm:$0xf]
    %v3499 = vld [vmem:[%s53 + $0x18] sm:$0xff]
    %v3500 = vld [vmem:[%s53 + $0x20] sm:$0xf]
    %v3501 = vld [vmem:[%s53 + $0x24] sm:$0xff]
    %v3502 = vld [vmem:[%s53 + $0x2c] sm:$0xf]
    %v3503 = vld [vmem:[%s53 + $0x30] sm:$0xff]
    %v3504 = vld [vmem:[%s53 + $0x38] sm:$0xf]
    %v3505 = vld [vmem:[%s53 + $0x3c] sm:$0xff]
    %v3506 = vld [vmem:[%s53 + $0x44] sm:$0xf]
    %v3507 = vld [vmem:[%s53 + $0x48] sm:$0xff]
    %v3508 = vld [vmem:[%s53 + $0x50] sm:$0xf]
    %v3509 = vld [vmem:[%s53 + $0x54] sm:$0xff]
    %v3510 = vld [vmem:[%s53 + $0x5c] sm:$0xf]
    %v3511 = vld [vmem:[%s55] sm:$0x7]
    %v3528 = vunpack.c.l.b16 %v3495
    %v3529 = vunpack.c.h.b16 %v3495
    %v3530 = vunpack.c.l.b16 %v3496
    %v3531 = vunpack.c.l.b16 %v3497
    %v3532 = vunpack.c.h.b16 %v3497
    %v3533 = vunpack.c.l.b16 %v3498
    %v3534 = vunpack.c.l.b16 %v3499
    %v3535 = vunpack.c.h.b16 %v3499
    %v3536 = vunpack.c.l.b16 %v3500
    %v3537 = vunpack.c.l.b16 %v3501
    %v3538 = vunpack.c.h.b16 %v3501
    %v3539 = vunpack.c.l.b16 %v3502
    %v3540 = vunpack.c.l.b16 %v3503
    %v3541 = vunpack.c.h.b16 %v3503
    %v3542 = vunpack.c.l.b16 %v3504
    %v3543 = vunpack.c.l.b16 %v3505
    %v3544 = vunpack.c.h.b16 %v3505
    %v3545 = vunpack.c.l.b16 %v3506
    %v3546 = vunpack.c.l.b16 %v3507
    %v3547 = vunpack.c.h.b16 %v3507
    %v3548 = vunpack.c.l.b16 %v3508
    %v3549 = vunpack.c.l.b16 %v3509
    %v3550 = vunpack.c.h.b16 %v3509
    %v3551 = vunpack.c.l.b16 %v3510
    %v3552 = vpack.c.b16 %v3531, %v3528
    %v3553 = vpack.c.b16 %v3532, %v3529
    %v3554 = vpack.c.b16 %v3533, %v3530
    %v3555 = vpack.c.b16 %v3537, %v3534
    %v3556 = vpack.c.b16 %v3538, %v3535
    %v3557 = vpack.c.b16 %v3539, %v3536
    %v3558 = vpack.c.b16 %v3543, %v3540
    %v3559 = vpack.c.b16 %v3544, %v3541
    %v3560 = vpack.c.b16 %v3545, %v3542
    %v3561 = vpack.c.b16 %v3549, %v3546
    %v3562 = vpack.c.b16 %v3550, %v3547
    %v3563 = vpack.c.b16 %v3551, %v3548
    %v3577 = vlaneseq
    %v3578 = vshrl.u32 %v3577, 7
    %v3579 = vsub.s32 0, %v3578
    %v3580 = vrot.slane %v3511, %v3579
    %v3581 = vlaneseq
    %v3582 = vshrl.u32 %v3581, 7
    %v3583 = vsub.s32 1, %v3582
    %v3584 = vrot.slane %v3511, %v3583
    %v3585 = vlaneseq
    %v3586 = vshrl.u32 %v3585, 7
    %v3587 = vsub.s32 2, %v3586
    %v3588 = vrot.slane %v3511, %v3587
    %3592 = vmatprep.subr.bf16.mxu0 %v3553
    %3593 = vmatpush1.bf16.msra.mxu0 %v3552
    %3594 = vmatprep.subr.bf16.mxu0 %v3556
    %3595 = vmatpush1.bf16.msra.mxu0 %v3555
    %3596 = vmatprep.subr.bf16.mxu0 %v3559
    %3597 = vmatpush1.bf16.msra.mxu0 %v3558
    %3598 = vmatprep.subr.bf16.mxu0 %v3562
    %3599 = vmatpush1.bf16.msra.mxu0 %v3561
    %3600 = vmatprep.subr.bf16.mxu0 0
    %3601 = vmatpush1.bf16.msra.mxu0 0
    %3602 = vmatprep.subr.bf16.mxu0 0
    %3603 = vmatpush1.bf16.msra.mxu0 0
    %3604 = vmatprep.subr.bf16.mxu0 0
    %3605 = vmatpush1.bf16.msra.mxu0 0
    %3606 = vmatprep.subr.bf16.mxu0 0
    %3607 = vmatpush1.bf16.msra.mxu0 0
    %3608 = vmatprep.subr.bf16.mxu0 0
    %3609 = vmatpush1.bf16.msra.mxu0 0
    %3610 = vmatprep.subr.bf16.mxu0 0
    %3611 = vmatpush1.bf16.msra.mxu0 0
    %3612 = vmatprep.subr.bf16.mxu0 0
    %3613 = vmatpush1.bf16.msra.mxu0 0
    %3614 = vmatprep.subr.bf16.mxu0 0
    %3615 = vmatpush1.bf16.msra.mxu0 0
    %3616 = vmatprep.subr.bf16.mxu0 0
    %3617 = vmatpush1.bf16.msra.mxu0 0
    %3618 = vmatprep.subr.bf16.mxu0 0
    %3619 = vmatpush1.bf16.msra.mxu0 0
    %3620 = vmatprep.subr.bf16.mxu0 0
    %3621 = vmatpush1.bf16.msra.mxu0 0
    %3622 = vmatprep.subr.bf16.mxu0 0
    %3623 = vmatpush1.bf16.msra.mxu0 0
    %3624 = vmatprep.mubr.bf16.mxu0 0
    %3625 = vmatmul.mubr.bf16.gmra.mrb[0].mxu0 %v401
    %v3626 = vpop.f32.mrb[0].mxu0
    %v3627 = vadd.f32 %v3580, %v3626
    %v3628 = vpop.f32.mrb[0].mxu0
    %v3629 = vadd.f32 %v3584, %v3628
    %v3630 = vpop.f32.mrb[0].mxu0
    %v3631 = vpop.f32.mrb[0].mxu0
    %3632 = vdwg.mxu0
    %3633 = vmatprep.subr.bf16.mxu0 0
    %3634 = vmatpush1.bf16.msra.mxu0 %v3554
    %3635 = vmatprep.subr.bf16.mxu0 0
    %3636 = vmatpush1.bf16.msra.mxu0 %v3557
    %3637 = vmatprep.subr.bf16.mxu0 0
    %3638 = vmatpush1.bf16.msra.mxu0 %v3560
    %3639 = vmatprep.subr.bf16.mxu0 0
    %3640 = vmatpush1.bf16.msra.mxu0 %v3563
    %3641 = vmatprep.subr.bf16.mxu0 0
    %3642 = vmatpush1.bf16.msra.mxu0 0
    %3643 = vmatprep.subr.bf16.mxu0 0
    %3644 = vmatpush1.bf16.msra.mxu0 0
    %3645 = vmatprep.subr.bf16.mxu0 0
    %3646 = vmatpush1.bf16.msra.mxu0 0
    %3647 = vmatprep.subr.bf16.mxu0 0
    %3648 = vmatpush1.bf16.msra.mxu0 0
    %3649 = vmatprep.subr.bf16.mxu0 0
    %3650 = vmatpush1.bf16.msra.mxu0 0
    %3651 = vmatprep.subr.bf16.mxu0 0
    %3652 = vmatpush1.bf16.msra.mxu0 0
    %3653 = vmatprep.subr.bf16.mxu0 0
    %3654 = vmatpush1.bf16.msra.mxu0 0
    %3655 = vmatprep.subr.bf16.mxu0 0
    %3656 = vmatpush1.bf16.msra.mxu0 0
    %3657 = vmatprep.subr.bf16.mxu0 0
    %3658 = vmatpush1.bf16.msra.mxu0 0
    %3659 = vmatprep.subr.bf16.mxu0 0
    %3660 = vmatpush1.bf16.msra.mxu0 0
    %3661 = vmatprep.subr.bf16.mxu0 0
    %3662 = vmatpush1.bf16.msra.mxu0 0
    %3663 = vmatprep.subr.bf16.mxu0 0
    %3664 = vmatpush1.bf16.msra.mxu0 0
    %3665 = vmatprep.mubr.bf16.mxu0 0
    %3666 = vmatmul.mubr.bf16.gmra.mrb[0].mxu0 %v401
    %v3667 = vpop.f32.mrb[0].mxu0
    %v3668 = vadd.f32 %v3588, %v3667
    %v3669 = vpop.f32.mrb[0].mxu0
    %v3670 = vpop.f32.mrb[0].mxu0
    %v3671 = vpop.f32.mrb[0].mxu0
    %3672 = vdwg.mxu0
    %v3673 = vld [vmem:[%s57] sm:$0xf]
    %v3674 = vld [vmem:[%s57 + $0x4] sm:$0xf]
    %v3675 = vld [vmem:[%s57 + $0x8] sm:$0xf]
    %v3676 = vld [vmem:[%s57 + $0xc] sm:$0xf]
    %v3677 = vld [vmem:[%s57 + $0x10] sm:$0xf]
    %v3678 = vld [vmem:[%s57 + $0x14] sm:$0xf]
    %v3679 = vld [vmem:[%s57 + $0x18] sm:$0xf]
    %v3680 = vld [vmem:[%s57 + $0x1c] sm:$0xf]
    %v3681 = vld [vmem:[%s59] sm:$0x1]
    %v3690 = vunpack.c.l.b16 %v3673
    %v3691 = vunpack.c.l.b16 %v3674
    %v3692 = vunpack.c.l.b16 %v3675
    %v3693 = vunpack.c.l.b16 %v3676
    %v3694 = vunpack.c.l.b16 %v3677
    %v3695 = vunpack.c.l.b16 %v3678
    %v3696 = vunpack.c.l.b16 %v3679
    %v3697 = vunpack.c.l.b16 %v3680
    %v3698 = vpack.c.b16 %v3691, %v3690
    %v3699 = vpack.c.b16 %v3693, %v3692
    %v3700 = vpack.c.b16 %v3695, %v3694
    %v3701 = vpack.c.b16 %v3697, %v3696
    %3706 = vmatprep.subr.bf16.mxu0 0
    %3707 = vmatpush1.bf16.msra.mxu0 %v3698
    %3708 = vmatprep.subr.bf16.mxu0 0
    %3709 = vmatpush1.bf16.msra.mxu0 %v3699
    %3710 = vmatprep.subr.bf16.mxu0 0
    %3711 = vmatpush1.bf16.msra.mxu0 %v3700
    %3712 = vmatprep.subr.bf16.mxu0 0
    %3713 = vmatpush1.bf16.msra.mxu0 %v3701
    %3714 = vmatprep.subr.bf16.mxu0 0
    %3715 = vmatpush1.bf16.msra.mxu0 0
    %3716 = vmatprep.subr.bf16.mxu0 0
    %3717 = vmatpush1.bf16.msra.mxu0 0
    %3718 = vmatprep.subr.bf16.mxu0 0
    %3719 = vmatpush1.bf16.msra.mxu0 0
    %3720 = vmatprep.subr.bf16.mxu0 0
    %3721 = vmatpush1.bf16.msra.mxu0 0
    %3722 = vmatprep.subr.bf16.mxu0 0
    %3723 = vmatpush1.bf16.msra.mxu0 0
    %3724 = vmatprep.subr.bf16.mxu0 0
    %3725 = vmatpush1.bf16.msra.mxu0 0
    %3726 = vmatprep.subr.bf16.mxu0 0
    %3727 = vmatpush1.bf16.msra.mxu0 0
    %3728 = vmatprep.subr.bf16.mxu0 0
    %3729 = vmatpush1.bf16.msra.mxu0 0
    %3730 = vmatprep.subr.bf16.mxu0 0
    %3731 = vmatpush1.bf16.msra.mxu0 0
    %3732 = vmatprep.subr.bf16.mxu0 0
    %3733 = vmatpush1.bf16.msra.mxu0 0
    %3734 = vmatprep.subr.bf16.mxu0 0
    %3735 = vmatpush1.bf16.msra.mxu0 0
    %3736 = vmatprep.subr.bf16.mxu0 0
    %3737 = vmatpush1.bf16.msra.mxu0 0
    %3738 = vmatprep.mubr.bf16.mxu0 0
    %3739 = vmatmul.mubr.bf16.gmra.mrb[0].mxu0 %v401
    %v3740 = vpop.f32.mrb[0].mxu0
    %v3741 = vadd.f32 %v3681, %v3740
    %v3742 = vpop.f32.mrb[0].mxu0
    %v3743 = vpop.f32.mrb[0].mxu0
    %v3744 = vpop.f32.mrb[0].mxu0
    %3745 = vdwg.mxu0
    %v3746 = vsel %vm399, %v3055, 0.0
    %3747 = vadd.xlane.f32.xlu0 %v3746
    %v3748 = vpop.xlane.xlu0 %3747
    %v3749 = vsel %vm399, %v3056, 0.0
    %3750 = vadd.xlane.f32.xlu0 %v3749
    %v3751 = vpop.xlane.xlu0 %3750
    %v3752 = vsel %vm399, %v3057, 0.0
    %3753 = vadd.xlane.f32.xlu0 %v3752
    %v3754 = vpop.xlane.xlu0 %3753
    %v3755 = vsel %vm399, %v3058, 0.0
    %3756 = vadd.xlane.f32.xlu0 %v3755
    %v3757 = vpop.xlane.xlu0 %3756
    %v3758 = vmul.f32 %v3748, %v674
    %v3759 = vmul.f32 %v3751, %v674
    %v3760 = vmul.f32 %v3754, %v674
    %v3761 = vmul.f32 %v3757, %v674
    %v3762 = vsub.f32 %v3055, %v3758
    %v3763 = vsub.f32 %v3056, %v3759
    %v3764 = vsub.f32 %v3057, %v3760
    %v3765 = vsub.f32 %v3058, %v3761
    %v3766 = vmul.f32 %v3762, %v3762
    %v3767 = vmul.f32 %v3763, %v3763
    %v3768 = vmul.f32 %v3764, %v3764
    %v3769 = vmul.f32 %v3765, %v3765
    %v3770 = vsel %vm399, %v3766, 0.0
    %3771 = vadd.xlane.f32.xlu0 %v3770
    %v3772 = vpop.xlane.xlu0 %3771
    %v3773 = vsel %vm399, %v3767, 0.0
    %3774 = vadd.xlane.f32.xlu0 %v3773
    %v3775 = vpop.xlane.xlu0 %3774
    %v3776 = vsel %vm399, %v3768, 0.0
    %3777 = vadd.xlane.f32.xlu0 %v3776
    %v3778 = vpop.xlane.xlu0 %3777
    %v3779 = vsel %vm399, %v3769, 0.0
    %3780 = vadd.xlane.f32.xlu0 %v3779
    %v3781 = vpop.xlane.xlu0 %3780
    %v3782 = vmul.f32 %v3772, %v674
    %v3783 = vmul.f32 %v3775, %v674
    %v3784 = vmul.f32 %v3778, %v674
    %v3785 = vmul.f32 %v3781, %v674
    %v3786 = vadd.f32 %v3782, 1e-06
    %v3787 = vadd.f32 %v3783, 1e-06
    %v3788 = vadd.f32 %v3784, 1e-06
    %v3789 = vadd.f32 %v3785, 1e-06
    %v3790 = vrsqrt.pop %v3786
    %v3791 = vrsqrt.pop %v3787
    %v3792 = vrsqrt.pop %v3788
    %v3793 = vrsqrt.pop %v3789
    %v3794 = vmul.f32 %v3762, %v3790
    %v3795 = vmul.f32 %v3763, %v3791
    %v3796 = vmul.f32 %v3764, %v3792
    %v3797 = vmul.f32 %v3765, %v3793
    %v3798 = vadd.f32 %v3627, 1.0
    %v3799 = vlaneseq
    %v3800 = vshrl.u32 %v3799, 7
    %v3801 = vsub.s32 0, %v3800
    %v3802 = vrot.slane %v3798, %v3801
    %3804 = vrot.lane.b32.xlu0 %v3802, 64
    %v3805 = vpop.permute.xlu0 %3804
    %v3807 = vmul.f32 %v3794, %v3805
    %v3808 = vmul.f32 %v3795, %v3805
    %v3809 = vmul.f32 %v3796, %v3805
    %v3810 = vmul.f32 %v3797, %v3805
    %v3811 = vlaneseq
    %v3812 = vshrl.u32 %v3811, 7
    %v3813 = vsub.s32 0, %v3812
    %v3814 = vrot.slane %v3627, %v3813
    %v3815 = vadd.f32 %v3807, %v3814
    %v3816 = vadd.f32 %v3808, %v3814
    %v3817 = vadd.f32 %v3809, %v3814
    %v3818 = vadd.f32 %v3810, %v3814
    %v3819 = vpack.c.bf16 %v3816, %v3815
    %v3820 = vpack.c.bf16 %v3818, %v3817
    %v3821 = vsel %vm738, %v3494, 0.0
    %3822 = vadd.xlane.f32.xlu0 %v3821
    %v3823 = vpop.xlane.xlu0 %3822
    %v3824 = vmul.f32 %v3823, %v674
    %v3825 = vsub.f32 %v3494, %v3824
    %v3826 = vmul.f32 %v3825, %v3825
    %v3827 = vsel %vm738, %v3826, 0.0
    %3828 = vadd.xlane.f32.xlu0 %v3827
    %v3829 = vpop.xlane.xlu0 %3828
    %v3830 = vmul.f32 %v3829, %v674
    %v3831 = vadd.f32 %v3830, 1e-06
    %v3832 = vrsqrt.pop %v3831
    %v3833 = vmul.f32 %v3825, %v3832
    %v3834 = vadd.f32 %v3741, 1.0
    %v3835 = vlaneseq
    %v3836 = vshrl.u32 %v3835, 7
    %v3837 = vsub.s32 0, %v3836
    %v3838 = vrot.slane %v3834, %v3837
    %v3839 = vmul.f32 %v3833, %v3838
    %v3840 = vlaneseq
    %v3841 = vshrl.u32 %v3840, 7
    %v3842 = vsub.s32 0, %v3841
    %v3843 = vrot.slane %v3741, %v3842
    %3845 = vrot.lane.b32.xlu0 %v3843, 64
    %v3846 = vpop.permute.xlu0 %3845
    %v3848 = vadd.f32 %v3839, %v3846
    %v3849 = vpack.c.bf16 %v3848, %v3848
    %v3850 = vld [vmem:[%s61] sm:$0xff]
    %v3851 = vld [vmem:[%s61 + $0x8] sm:$0xff]
    %v3852 = vld [vmem:[%s61 + $0x10] sm:$0xff]
    %v3853 = vld [vmem:[%s61 + $0x18] sm:$0xff]
    %v3854 = vld [vmem:[%s61 + $0x20] sm:$0xff]
    %v3855 = vld [vmem:[%s61 + $0x28] sm:$0xff]
    %v3856 = vld [vmem:[%s61 + $0x30] sm:$0xff]
    %v3857 = vld [vmem:[%s61 + $0x38] sm:$0xff]
    %v3858 = vld [vmem:[%s63] sm:$0x3]
    %v3860 = vlaneseq
    %v3861 = vshrl.u32 %v3860, 7
    %v3862 = vsub.s32 0, %v3861
    %v3863 = vrot.slane %v3858, %v3862
    %v3864 = vlaneseq
    %v3865 = vshrl.u32 %v3864, 7
    %v3866 = vsub.s32 1, %v3865
    %v3867 = vrot.slane %v3858, %v3866
    %v3878 = vunpack.c.l.b16 %v3850
    %v3879 = vunpack.c.h.b16 %v3850
    %v3880 = vunpack.c.l.b16 %v3851
    %v3881 = vunpack.c.h.b16 %v3851
    %v3882 = vunpack.c.l.b16 %v3852
    %v3883 = vunpack.c.h.b16 %v3852
    %v3884 = vunpack.c.l.b16 %v3853
    %v3885 = vunpack.c.h.b16 %v3853
    %v3886 = vunpack.c.l.b16 %v3854
    %v3887 = vunpack.c.h.b16 %v3854
    %v3888 = vunpack.c.l.b16 %v3855
    %v3889 = vunpack.c.h.b16 %v3855
    %v3890 = vunpack.c.l.b16 %v3856
    %v3891 = vunpack.c.h.b16 %v3856
    %v3892 = vunpack.c.l.b16 %v3857
    %v3893 = vunpack.c.h.b16 %v3857
    %v3894 = vpack.c.b16 %v3880, %v3878
    %v3895 = vpack.c.b16 %v3881, %v3879
    %v3896 = vpack.c.b16 %v3884, %v3882
    %v3897 = vpack.c.b16 %v3885, %v3883
    %v3898 = vpack.c.b16 %v3888, %v3886
    %v3899 = vpack.c.b16 %v3889, %v3887
    %v3900 = vpack.c.b16 %v3892, %v3890
    %v3901 = vpack.c.b16 %v3893, %v3891
    %v3911 = vsel %vm399, %v3819, 0
    %v3914 = vsel %vm399, %v3820, 0
    %3916 = vmatprep.subr.bf16.mxu0 %v3895
    %3917 = vmatpush1.bf16.msra.mxu0 %v3894
    %3918 = vmatprep.subr.bf16.mxu0 %v3897
    %3919 = vmatpush1.bf16.msra.mxu0 %v3896
    %3920 = vmatprep.subr.bf16.mxu0 %v3899
    %3921 = vmatpush1.bf16.msra.mxu0 %v3898
    %3922 = vmatprep.subr.bf16.mxu0 %v3901
    %3923 = vmatpush1.bf16.msra.mxu0 %v3900
    %3924 = vmatprep.subr.bf16.mxu0 0
    %3925 = vmatpush1.bf16.msra.mxu0 0
    %3926 = vmatprep.subr.bf16.mxu0 0
    %3927 = vmatpush1.bf16.msra.mxu0 0
    %3928 = vmatprep.subr.bf16.mxu0 0
    %3929 = vmatpush1.bf16.msra.mxu0 0
    %3930 = vmatprep.subr.bf16.mxu0 0
    %3931 = vmatpush1.bf16.msra.mxu0 0
    %3932 = vmatprep.subr.bf16.mxu0 0
    %3933 = vmatpush1.bf16.msra.mxu0 0
    %3934 = vmatprep.subr.bf16.mxu0 0
    %3935 = vmatpush1.bf16.msra.mxu0 0
    %3936 = vmatprep.subr.bf16.mxu0 0
    %3937 = vmatpush1.bf16.msra.mxu0 0
    %3938 = vmatprep.subr.bf16.mxu0 0
    %3939 = vmatpush1.bf16.msra.mxu0 0
    %3940 = vmatprep.subr.bf16.mxu0 0
    %3941 = vmatpush1.bf16.msra.mxu0 0
    %3942 = vmatprep.subr.bf16.mxu0 0
    %3943 = vmatpush1.bf16.msra.mxu0 0
    %3944 = vmatprep.subr.bf16.mxu0 0
    %3945 = vmatpush1.bf16.msra.mxu0 0
    %3946 = vmatprep.subr.bf16.mxu0 0
    %3947 = vmatpush1.bf16.msra.mxu0 0
    %3948 = vmatprep.mubr.bf16.mxu0 0
    %3949 = vmatmul.mubr.bf16.gmra.mrb[0].mxu0 %v3911
    %v3950 = vpop.f32.mrb[0].mxu0
    %v3951 = vadd.f32 %v3863, %v3950
    %v3952 = vpop.f32.mrb[0].mxu0
    %v3953 = vadd.f32 %v3867, %v3952
    %v3954 = vpop.f32.mrb[0].mxu0
    %v3955 = vadd.f32 %v3863, %v3954
    %v3956 = vpop.f32.mrb[0].mxu0
    %v3957 = vadd.f32 %v3867, %v3956
    %3958 = vmatprep.mubr.bf16.mxu0 0
    %3959 = vmatmul.mubr.bf16.gmra.mrb[0].mxu0 %v3914
    %v3960 = vpop.f32.mrb[0].mxu0
    %v3961 = vadd.f32 %v3863, %v3960
    %v3962 = vpop.f32.mrb[0].mxu0
    %v3963 = vadd.f32 %v3867, %v3962
    %v3964 = vpop.f32.mrb[0].mxu0
    %v3965 = vadd.f32 %v3863, %v3964
    %v3966 = vpop.f32.mrb[0].mxu0
    %v3967 = vadd.f32 %v3867, %v3966
    %3968 = vdwg.mxu0
    %v3969 = vld [vmem:[%s65] sm:$0xff]
    %v3970 = vld [vmem:[%s65 + $0x8] sm:$0xff]
    %v3971 = vld [vmem:[%s65 + $0x10] sm:$0xff]
    %v3972 = vld [vmem:[%s65 + $0x18] sm:$0xff]
    %v3973 = vld [vmem:[%s65 + $0x20] sm:$0xff]
    %v3974 = vld [vmem:[%s65 + $0x28] sm:$0xff]
    %v3975 = vld [vmem:[%s65 + $0x30] sm:$0xff]
    %v3976 = vld [vmem:[%s65 + $0x38] sm:$0xff]
    %v3977 = vld [vmem:[%s67] sm:$0x3]
    %v3979 = vlaneseq
    %v3980 = vshrl.u32 %v3979, 7
    %v3981 = vsub.s32 0, %v3980
    %v3982 = vrot.slane %v3977, %v3981
    %v3983 = vlaneseq
    %v3984 = vshrl.u32 %v3983, 7
    %v3985 = vsub.s32 1, %v3984
    %v3986 = vrot.slane %v3977, %v3985
    %v3997 = vunpack.c.l.b16 %v3969
    %v3998 = vunpack.c.h.b16 %v3969
    %v3999 = vunpack.c.l.b16 %v3970
    %v4000 = vunpack.c.h.b16 %v3970
    %v4001 = vunpack.c.l.b16 %v3971
    %v4002 = vunpack.c.h.b16 %v3971
    %v4003 = vunpack.c.l.b16 %v3972
    %v4004 = vunpack.c.h.b16 %v3972
    %v4005 = vunpack.c.l.b16 %v3973
    %v4006 = vunpack.c.h.b16 %v3973
    %v4007 = vunpack.c.l.b16 %v3974
    %v4008 = vunpack.c.h.b16 %v3974
    %v4009 = vunpack.c.l.b16 %v3975
    %v4010 = vunpack.c.h.b16 %v3975
    %v4011 = vunpack.c.l.b16 %v3976
    %v4012 = vunpack.c.h.b16 %v3976
    %v4013 = vpack.c.b16 %v3999, %v3997
    %v4014 = vpack.c.b16 %v4000, %v3998
    %v4015 = vpack.c.b16 %v4003, %v4001
    %v4016 = vpack.c.b16 %v4004, %v4002
    %v4017 = vpack.c.b16 %v4007, %v4005
    %v4018 = vpack.c.b16 %v4008, %v4006
    %v4019 = vpack.c.b16 %v4011, %v4009
    %v4020 = vpack.c.b16 %v4012, %v4010
    %v4030 = vsel %vm399, %v3849, 0
    %4032 = vmatprep.subr.bf16.mxu0 %v4014
    %4033 = vmatpush1.bf16.msra.mxu0 %v4013
    %4034 = vmatprep.subr.bf16.mxu0 %v4016
    %4035 = vmatpush1.bf16.msra.mxu0 %v4015
    %4036 = vmatprep.subr.bf16.mxu0 %v4018
    %4037 = vmatpush1.bf16.msra.mxu0 %v4017
    %4038 = vmatprep.subr.bf16.mxu0 %v4020
    %4039 = vmatpush1.bf16.msra.mxu0 %v4019
    %4040 = vmatprep.subr.bf16.mxu0 0
    %4041 = vmatpush1.bf16.msra.mxu0 0
    %4042 = vmatprep.subr.bf16.mxu0 0
    %4043 = vmatpush1.bf16.msra.mxu0 0
    %4044 = vmatprep.subr.bf16.mxu0 0
    %4045 = vmatpush1.bf16.msra.mxu0 0
    %4046 = vmatprep.subr.bf16.mxu0 0
    %4047 = vmatpush1.bf16.msra.mxu0 0
    %4048 = vmatprep.subr.bf16.mxu0 0
    %4049 = vmatpush1.bf16.msra.mxu0 0
    %4050 = vmatprep.subr.bf16.mxu0 0
    %4051 = vmatpush1.bf16.msra.mxu0 0
    %4052 = vmatprep.subr.bf16.mxu0 0
    %4053 = vmatpush1.bf16.msra.mxu0 0
    %4054 = vmatprep.subr.bf16.mxu0 0
    %4055 = vmatpush1.bf16.msra.mxu0 0
    %4056 = vmatprep.subr.bf16.mxu0 0
    %4057 = vmatpush1.bf16.msra.mxu0 0
    %4058 = vmatprep.subr.bf16.mxu0 0
    %4059 = vmatpush1.bf16.msra.mxu0 0
    %4060 = vmatprep.subr.bf16.mxu0 0
    %4061 = vmatpush1.bf16.msra.mxu0 0
    %4062 = vmatprep.subr.bf16.mxu0 0
    %4063 = vmatpush1.bf16.msra.mxu0 0
    %4064 = vmatprep.mubr.bf16.mxu0 0
    %4065 = vmatmul.mubr.bf16.gmra.mrb[0].mxu0 %v4030
    %v4066 = vpop.f32.mrb[0].mxu0
    %v4067 = vadd.f32 %v3982, %v4066
    %v4068 = vpop.f32.mrb[0].mxu0
    %v4069 = vadd.f32 %v3986, %v4068
    %v4070 = vpop.f32.mrb[0].mxu0
    %v4071 = vpop.f32.mrb[0].mxu0
    %4072 = vdwg.mxu0
    %v4075 = vcombine.low %v4067, %v4069
    %v4077 = vunpack.c.l.s4 1966171168
    %v4078 = vunpack.c.0.s8 %v4077
    %v4079 = vlaneseq
    %v4080 = vshrl.u32 %v4079, 7
    %v4081 = vsub.s32 %v4078, %v4080
    %v4082 = vrot.slane %v4075, %v4081
    %v4083 = vcombine.high %v4082, %v4082
    %v4085 = vunpack.c.l.s4 1966171168
    %v4086 = vunpack.c.0.s8 %v4085
    %v4087 = vlaneseq
    %v4088 = vshrl.u32 %v4087, 7
    %v4089 = vsub.s32 %v4086, %v4088
    %v4090 = vrot.slane %v4082, %v4089
    %v4092 = vunpack.c.l.s4 1966171168
    %v4093 = vunpack.c.0.s8 %v4092
    %v4094 = vlaneseq
    %v4095 = vshrl.u32 %v4094, 7
    %v4096 = vsub.s32 %v4093, %v4095
    %v4097 = vrot.slane %v4083, %v4096
    %v4100 = vpack.c.bf16 %v3955, %v3951
    %v4101 = vpack.c.bf16 %v4090, %v4090
    %v4102 = vpack.c.bf16 %v3965, %v3961
    %v4103 = vpack.c.bf16 %v4097, %v4097
    %v4104 = vlaneseq
    %v4105 = vshrl.u32 %v4104, 7
    %v4106 = vsub.s32 1, %v4105
    %v4107 = vrot.slane %v4090, %v4106
    %v4108 = vlaneseq
    %v4109 = vshrl.u32 %v4108, 7
    %v4110 = vsub.s32 1, %v4109
    %v4111 = vrot.slane %v4097, %v4110
    %v4114 = vpack.c.bf16 %v3957, %v3953
    %v4115 = vpack.c.bf16 %v4107, %v4107
    %v4116 = vpack.c.bf16 %v3967, %v3963
    %v4117 = vpack.c.bf16 %v4111, %v4111
    %v4118 = vmul.f32 %v3951, 0.25
    %v4119 = vmul.f32 %v3955, 0.25
    %v4120 = vmul.f32 %v3961, 0.25
    %v4121 = vmul.f32 %v3965, 0.25
    %v4122 = vpack.c.bf16 %v4119, %v4118
    %v4123 = vpack.c.bf16 %v4121, %v4120
    %4126 = vrot.lane.b32.xlu0 %v4100, 64
    %v4127 = vpop.permute.xlu0 %4126
    %4128 = vrot.lane.b32.xlu0 %v4101, 64
    %v4129 = vpop.permute.xlu0 %4128
    %v4131 = vsel %vm1052, %v4122, 0
    %v4134 = vsel %vm1052, %v4127, 0
    %v4137 = vsel %vm1052, %v4129, 0
    %4139 = vmatprep.subr.bf16.mxu0 0
    %4140 = vmatpush1.bf16.xpose.msra.mxu0 %v4134
    %4141 = vmatprep.subr.bf16.mxu0 0
    %4142 = vmatpush1.bf16.xpose.msra.mxu0 %v4137
    %4143 = vmatprep.subr.bf16.mxu0 0
    %4144 = vmatpush1.bf16.xpose.msra.mxu0 0
    %4145 = vmatprep.subr.bf16.mxu0 0
    %4146 = vmatpush1.bf16.xpose.msra.mxu0 0
    %4147 = vmatprep.subr.bf16.mxu0 0
    %4148 = vmatpush1.bf16.xpose.msra.mxu0 0
    %4149 = vmatprep.subr.bf16.mxu0 0
    %4150 = vmatpush1.bf16.xpose.msra.mxu0 0
    %4151 = vmatprep.subr.bf16.mxu0 0
    %4152 = vmatpush1.bf16.xpose.msra.mxu0 0
    %4153 = vmatprep.subr.bf16.mxu0 0
    %4154 = vmatpush1.bf16.xpose.msra.mxu0 0
    %4155 = vmatprep.subr.bf16.mxu0 0
    %4156 = vmatpush1.bf16.xpose.msra.mxu0 0
    %4157 = vmatprep.subr.bf16.mxu0 0
    %4158 = vmatpush1.bf16.xpose.msra.mxu0 0
    %4159 = vmatprep.subr.bf16.mxu0 0
    %4160 = vmatpush1.bf16.xpose.msra.mxu0 0
    %4161 = vmatprep.subr.bf16.mxu0 0
    %4162 = vmatpush1.bf16.xpose.msra.mxu0 0
    %4163 = vmatprep.subr.bf16.mxu0 0
    %4164 = vmatpush1.bf16.xpose.msra.mxu0 0
    %4165 = vmatprep.subr.bf16.mxu0 0
    %4166 = vmatpush1.bf16.xpose.msra.mxu0 0
    %4167 = vmatprep.subr.bf16.mxu0 0
    %4168 = vmatpush1.bf16.xpose.msra.mxu0 0
    %4169 = vmatprep.subr.bf16.mxu0 0
    %4170 = vmatpush1.bf16.xpose.msra.mxu0 0
    %4171 = vmatprep.mubr.bf16.mxu0 0
    %4172 = vmatmul.mubr.bf16.gmra.mrb[0].mxu0 %v4131
    %v4173 = vpop.f32.mrb[0].mxu0
    %v4174 = vadd.f32 0.0, %v4173
    %v4175 = vpop.f32.mrb[0].mxu0
    %v4176 = vpop.f32.mrb[0].mxu0
    %v4177 = vadd.f32 0.0, %v4176
    %v4178 = vpop.f32.mrb[0].mxu0
    %4179 = vdwg.mxu0
    %4182 = vrot.lane.b32.xlu0 %v4102, 64
    %v4183 = vpop.permute.xlu0 %4182
    %4184 = vrot.lane.b32.xlu0 %v4103, 64
    %v4185 = vpop.permute.xlu0 %4184
    %v4187 = vsel %vm1052, %v4123, 0
    %v4190 = vsel %vm1052, %v4183, 0
    %v4193 = vsel %vm1052, %v4185, 0
    %4195 = vmatprep.subr.bf16.mxu0 0
    %4196 = vmatpush1.bf16.xpose.msra.mxu0 %v4190
    %4197 = vmatprep.subr.bf16.mxu0 0
    %4198 = vmatpush1.bf16.xpose.msra.mxu0 %v4193
    %4199 = vmatprep.subr.bf16.mxu0 0
    %4200 = vmatpush1.bf16.xpose.msra.mxu0 0
    %4201 = vmatprep.subr.bf16.mxu0 0
    %4202 = vmatpush1.bf16.xpose.msra.mxu0 0
    %4203 = vmatprep.subr.bf16.mxu0 0
    %4204 = vmatpush1.bf16.xpose.msra.mxu0 0
    %4205 = vmatprep.subr.bf16.mxu0 0
    %4206 = vmatpush1.bf16.xpose.msra.mxu0 0
    %4207 = vmatprep.subr.bf16.mxu0 0
    %4208 = vmatpush1.bf16.xpose.msra.mxu0 0
    %4209 = vmatprep.subr.bf16.mxu0 0
    %4210 = vmatpush1.bf16.xpose.msra.mxu0 0
    %4211 = vmatprep.subr.bf16.mxu0 0
    %4212 = vmatpush1.bf16.xpose.msra.mxu0 0
    %4213 = vmatprep.subr.bf16.mxu0 0
    %4214 = vmatpush1.bf16.xpose.msra.mxu0 0
    %4215 = vmatprep.subr.bf16.mxu0 0
    %4216 = vmatpush1.bf16.xpose.msra.mxu0 0
    %4217 = vmatprep.subr.bf16.mxu0 0
    %4218 = vmatpush1.bf16.xpose.msra.mxu0 0
    %4219 = vmatprep.subr.bf16.mxu0 0
    %4220 = vmatpush1.bf16.xpose.msra.mxu0 0
    %4221 = vmatprep.subr.bf16.mxu0 0
    %4222 = vmatpush1.bf16.xpose.msra.mxu0 0
    %4223 = vmatprep.subr.bf16.mxu0 0
    %4224 = vmatpush1.bf16.xpose.msra.mxu0 0
    %4225 = vmatprep.subr.bf16.mxu0 0
    %4226 = vmatpush1.bf16.xpose.msra.mxu0 0
    %4227 = vmatprep.mubr.bf16.mxu0 0
    %4228 = vmatmul.mubr.bf16.gmra.mrb[0].mxu0 %v4187
    %v4229 = vpop.f32.mrb[0].mxu0
    %v4230 = vadd.f32 0.0, %v4229
    %v4231 = vpop.f32.mrb[0].mxu0
    %v4232 = vpop.f32.mrb[0].mxu0
    %v4233 = vadd.f32 0.0, %v4232
    %v4234 = vpop.f32.mrb[0].mxu0
    %4235 = vdwg.mxu0
    %v4236 = vsel %vm1179, %v4174, -inf
    %4237 = vmax.xlane.f32.xlu0 %v4236
    %v4238 = vpop.xlane.xlu0 %4237
    %v4239 = vsel %vm1179, %v4177, -inf
    %4240 = vmax.xlane.f32.xlu0 %v4239
    %v4241 = vpop.xlane.xlu0 %4240
    %v4242 = vsel %vm1179, %v4230, -inf
    %4243 = vmax.xlane.f32.xlu0 %v4242
    %v4244 = vpop.xlane.xlu0 %4243
    %v4245 = vsel %vm1179, %v4233, -inf
    %4246 = vmax.xlane.f32.xlu0 %v4245
    %v4247 = vpop.xlane.xlu0 %4246
    %v4248 = vsub.f32 %v4174, %v4238
    %v4249 = vsub.f32 %v4177, %v4241
    %v4250 = vsub.f32 %v4230, %v4244
    %v4251 = vsub.f32 %v4233, %v4247
    %v4252 = vmul.f32 %v4248, 1.442695
    %v4253 = vpow.pop %v4252
    %v4254 = vmul.f32 %v4249, 1.442695
    %v4255 = vpow.pop %v4254
    %v4256 = vmul.f32 %v4250, 1.442695
    %v4257 = vpow.pop %v4256
    %v4258 = vmul.f32 %v4251, 1.442695
    %v4259 = vpow.pop %v4258
    %v4260 = vsel %vm1179, %v4253, 0.0
    %4261 = vadd.xlane.f32.xlu0 %v4260
    %v4262 = vpop.xlane.xlu0 %4261
    %v4263 = vsel %vm1179, %v4255, 0.0
    %4264 = vadd.xlane.f32.xlu0 %v4263
    %v4265 = vpop.xlane.xlu0 %4264
    %v4266 = vsel %vm1179, %v4257, 0.0
    %4267 = vadd.xlane.f32.xlu0 %v4266
    %v4268 = vpop.xlane.xlu0 %4267
    %v4269 = vsel %vm1179, %v4259, 0.0
    %4270 = vadd.xlane.f32.xlu0 %v4269
    %v4271 = vpop.xlane.xlu0 %4270
    %v4272 = vrcp.pop %v4262
    %v4273 = vrcp.pop %v4265
    %v4274 = vrcp.pop %v4268
    %v4275 = vrcp.pop %v4271
    %v4276 = vmul.f32 %v4253, %v4272
    %v4277 = vmul.f32 %v4255, %v4273
    %v4278 = vmul.f32 %v4257, %v4274
    %v4279 = vmul.f32 %v4259, %v4275
    %v4280 = vpack.c.bf16 %v4277, %v4276
    %v4281 = vpack.c.bf16 %v4279, %v4278
    %v4283 = vsel %vm1179, %v4280, 0
    %v4286 = vand.u32 %v4115, %v1259
    %4288 = vmatprep.subr.bf16.mxu0 0
    %4289 = vmatpush1.bf16.msra.mxu0 %v4114
    %4290 = vmatprep.subr.bf16.mxu0 0
    %4291 = vmatpush1.bf16.msra.mxu0 %v4286
    %4292 = vmatprep.subr.bf16.mxu0 0
    %4293 = vmatpush1.bf16.msra.mxu0 0
    %4294 = vmatprep.subr.bf16.mxu0 0
    %4295 = vmatpush1.bf16.msra.mxu0 0
    %4296 = vmatprep.subr.bf16.mxu0 0
    %4297 = vmatpush1.bf16.msra.mxu0 0
    %4298 = vmatprep.subr.bf16.mxu0 0
    %4299 = vmatpush1.bf16.msra.mxu0 0
    %4300 = vmatprep.subr.bf16.mxu0 0
    %4301 = vmatpush1.bf16.msra.mxu0 0
    %4302 = vmatprep.subr.bf16.mxu0 0
    %4303 = vmatpush1.bf16.msra.mxu0 0
    %4304 = vmatprep.subr.bf16.mxu0 0
    %4305 = vmatpush1.bf16.msra.mxu0 0
    %4306 = vmatprep.subr.bf16.mxu0 0
    %4307 = vmatpush1.bf16.msra.mxu0 0
    %4308 = vmatprep.subr.bf16.mxu0 0
    %4309 = vmatpush1.bf16.msra.mxu0 0
    %4310 = vmatprep.subr.bf16.mxu0 0
    %4311 = vmatpush1.bf16.msra.mxu0 0
    %4312 = vmatprep.subr.bf16.mxu0 0
    %4313 = vmatpush1.bf16.msra.mxu0 0
    %4314 = vmatprep.subr.bf16.mxu0 0
    %4315 = vmatpush1.bf16.msra.mxu0 0
    %4316 = vmatprep.subr.bf16.mxu0 0
    %4317 = vmatpush1.bf16.msra.mxu0 0
    %4318 = vmatprep.subr.bf16.mxu0 0
    %4319 = vmatpush1.bf16.msra.mxu0 0
    %4320 = vmatprep.mubr.bf16.mxu0 0
    %4321 = vmatmul.mubr.bf16.gmra.mrb[0].mxu0 %v4283
    %v4322 = vpop.f32.mrb[0].mxu0
    %v4323 = vadd.f32 0.0, %v4322
    %v4324 = vpop.f32.mrb[0].mxu0
    %v4325 = vpop.f32.mrb[0].mxu0
    %v4326 = vadd.f32 0.0, %v4325
    %v4327 = vpop.f32.mrb[0].mxu0
    %4328 = vdwg.mxu0
    %v4330 = vsel %vm1179, %v4281, 0
    %v4333 = vand.u32 %v4117, %v1259
    %4335 = vmatprep.subr.bf16.mxu0 0
    %4336 = vmatpush1.bf16.msra.mxu0 %v4116
    %4337 = vmatprep.subr.bf16.mxu0 0
    %4338 = vmatpush1.bf16.msra.mxu0 %v4333
    %4339 = vmatprep.subr.bf16.mxu0 0
    %4340 = vmatpush1.bf16.msra.mxu0 0
    %4341 = vmatprep.subr.bf16.mxu0 0
    %4342 = vmatpush1.bf16.msra.mxu0 0
    %4343 = vmatprep.subr.bf16.mxu0 0
    %4344 = vmatpush1.bf16.msra.mxu0 0
    %4345 = vmatprep.subr.bf16.mxu0 0
    %4346 = vmatpush1.bf16.msra.mxu0 0
    %4347 = vmatprep.subr.bf16.mxu0 0
    %4348 = vmatpush1.bf16.msra.mxu0 0
    %4349 = vmatprep.subr.bf16.mxu0 0
    %4350 = vmatpush1.bf16.msra.mxu0 0
    %4351 = vmatprep.subr.bf16.mxu0 0
    %4352 = vmatpush1.bf16.msra.mxu0 0
    %4353 = vmatprep.subr.bf16.mxu0 0
    %4354 = vmatpush1.bf16.msra.mxu0 0
    %4355 = vmatprep.subr.bf16.mxu0 0
    %4356 = vmatpush1.bf16.msra.mxu0 0
    %4357 = vmatprep.subr.bf16.mxu0 0
    %4358 = vmatpush1.bf16.msra.mxu0 0
    %4359 = vmatprep.subr.bf16.mxu0 0
    %4360 = vmatpush1.bf16.msra.mxu0 0
    %4361 = vmatprep.subr.bf16.mxu0 0
    %4362 = vmatpush1.bf16.msra.mxu0 0
    %4363 = vmatprep.subr.bf16.mxu0 0
    %4364 = vmatpush1.bf16.msra.mxu0 0
    %4365 = vmatprep.subr.bf16.mxu0 0
    %4366 = vmatpush1.bf16.msra.mxu0 0
    %4367 = vmatprep.mubr.bf16.mxu0 0
    %4368 = vmatmul.mubr.bf16.gmra.mrb[0].mxu0 %v4330
    %v4369 = vpop.f32.mrb[0].mxu0
    %v4370 = vadd.f32 0.0, %v4369
    %v4371 = vpop.f32.mrb[0].mxu0
    %v4372 = vpop.f32.mrb[0].mxu0
    %v4373 = vadd.f32 0.0, %v4372
    %v4374 = vpop.f32.mrb[0].mxu0
    %4375 = vdwg.mxu0
    %4377 = vrot.lane.b32.xlu0 %v4122, 112
    %v4378 = vpop.permute.xlu0 %4377
    %4379 = vrot.lane.b32.xlu0 %v4100, 48
    %v4380 = vpop.permute.xlu0 %4379
    %4381 = vrot.lane.b32.xlu0 %v4101, 48
    %v4382 = vpop.permute.xlu0 %4381
    %v4384 = vsel %vm1052, %v4378, 0
    %v4387 = vsel %vm1052, %v4380, 0
    %v4390 = vsel %vm1052, %v4382, 0
    %4392 = vmatprep.subr.bf16.mxu0 0
    %4393 = vmatpush1.bf16.xpose.msra.mxu0 %v4387
    %4394 = vmatprep.subr.bf16.mxu0 0
    %4395 = vmatpush1.bf16.xpose.msra.mxu0 %v4390
    %4396 = vmatprep.subr.bf16.mxu0 0
    %4397 = vmatpush1.bf16.xpose.msra.mxu0 0
    %4398 = vmatprep.subr.bf16.mxu0 0
    %4399 = vmatpush1.bf16.xpose.msra.mxu0 0
    %4400 = vmatprep.subr.bf16.mxu0 0
    %4401 = vmatpush1.bf16.xpose.msra.mxu0 0
    %4402 = vmatprep.subr.bf16.mxu0 0
    %4403 = vmatpush1.bf16.xpose.msra.mxu0 0
    %4404 = vmatprep.subr.bf16.mxu0 0
    %4405 = vmatpush1.bf16.xpose.msra.mxu0 0
    %4406 = vmatprep.subr.bf16.mxu0 0
    %4407 = vmatpush1.bf16.xpose.msra.mxu0 0
    %4408 = vmatprep.subr.bf16.mxu0 0
    %4409 = vmatpush1.bf16.xpose.msra.mxu0 0
    %4410 = vmatprep.subr.bf16.mxu0 0
    %4411 = vmatpush1.bf16.xpose.msra.mxu0 0
    %4412 = vmatprep.subr.bf16.mxu0 0
    %4413 = vmatpush1.bf16.xpose.msra.mxu0 0
    %4414 = vmatprep.subr.bf16.mxu0 0
    %4415 = vmatpush1.bf16.xpose.msra.mxu0 0
    %4416 = vmatprep.subr.bf16.mxu0 0
    %4417 = vmatpush1.bf16.xpose.msra.mxu0 0
    %4418 = vmatprep.subr.bf16.mxu0 0
    %4419 = vmatpush1.bf16.xpose.msra.mxu0 0
    %4420 = vmatprep.subr.bf16.mxu0 0
    %4421 = vmatpush1.bf16.xpose.msra.mxu0 0
    %4422 = vmatprep.subr.bf16.mxu0 0
    %4423 = vmatpush1.bf16.xpose.msra.mxu0 0
    %4424 = vmatprep.mubr.bf16.mxu0 0
    %4425 = vmatmul.mubr.bf16.gmra.mrb[0].mxu0 %v4384
    %v4426 = vpop.f32.mrb[0].mxu0
    %v4427 = vadd.f32 0.0, %v4426
    %v4428 = vpop.f32.mrb[0].mxu0
    %v4429 = vpop.f32.mrb[0].mxu0
    %v4430 = vadd.f32 0.0, %v4429
    %v4431 = vpop.f32.mrb[0].mxu0
    %4432 = vdwg.mxu0
    %4434 = vrot.lane.b32.xlu0 %v4123, 112
    %v4435 = vpop.permute.xlu0 %4434
    %4436 = vrot.lane.b32.xlu0 %v4102, 48
    %v4437 = vpop.permute.xlu0 %4436
    %4438 = vrot.lane.b32.xlu0 %v4103, 48
    %v4439 = vpop.permute.xlu0 %4438
    %v4441 = vsel %vm1052, %v4435, 0
    %v4444 = vsel %vm1052, %v4437, 0
    %v4447 = vsel %vm1052, %v4439, 0
    %4449 = vmatprep.subr.bf16.mxu0 0
    %4450 = vmatpush1.bf16.xpose.msra.mxu0 %v4444
    %4451 = vmatprep.subr.bf16.mxu0 0
    %4452 = vmatpush1.bf16.xpose.msra.mxu0 %v4447
    %4453 = vmatprep.subr.bf16.mxu0 0
    %4454 = vmatpush1.bf16.xpose.msra.mxu0 0
    %4455 = vmatprep.subr.bf16.mxu0 0
    %4456 = vmatpush1.bf16.xpose.msra.mxu0 0
    %4457 = vmatprep.subr.bf16.mxu0 0
    %4458 = vmatpush1.bf16.xpose.msra.mxu0 0
    %4459 = vmatprep.subr.bf16.mxu0 0
    %4460 = vmatpush1.bf16.xpose.msra.mxu0 0
    %4461 = vmatprep.subr.bf16.mxu0 0
    %4462 = vmatpush1.bf16.xpose.msra.mxu0 0
    %4463 = vmatprep.subr.bf16.mxu0 0
    %4464 = vmatpush1.bf16.xpose.msra.mxu0 0
    %4465 = vmatprep.subr.bf16.mxu0 0
    %4466 = vmatpush1.bf16.xpose.msra.mxu0 0
    %4467 = vmatprep.subr.bf16.mxu0 0
    %4468 = vmatpush1.bf16.xpose.msra.mxu0 0
    %4469 = vmatprep.subr.bf16.mxu0 0
    %4470 = vmatpush1.bf16.xpose.msra.mxu0 0
    %4471 = vmatprep.subr.bf16.mxu0 0
    %4472 = vmatpush1.bf16.xpose.msra.mxu0 0
    %4473 = vmatprep.subr.bf16.mxu0 0
    %4474 = vmatpush1.bf16.xpose.msra.mxu0 0
    %4475 = vmatprep.subr.bf16.mxu0 0
    %4476 = vmatpush1.bf16.xpose.msra.mxu0 0
    %4477 = vmatprep.subr.bf16.mxu0 0
    %4478 = vmatpush1.bf16.xpose.msra.mxu0 0
    %4479 = vmatprep.subr.bf16.mxu0 0
    %4480 = vmatpush1.bf16.xpose.msra.mxu0 0
    %4481 = vmatprep.mubr.bf16.mxu0 0
    %4482 = vmatmul.mubr.bf16.gmra.mrb[0].mxu0 %v4441
    %v4483 = vpop.f32.mrb[0].mxu0
    %v4484 = vadd.f32 0.0, %v4483
    %v4485 = vpop.f32.mrb[0].mxu0
    %v4486 = vpop.f32.mrb[0].mxu0
    %v4487 = vadd.f32 0.0, %v4486
    %v4488 = vpop.f32.mrb[0].mxu0
    %4489 = vdwg.mxu0
    %v4490 = vsel %vm1179, %v4427, -inf
    %4491 = vmax.xlane.f32.xlu0 %v4490
    %v4492 = vpop.xlane.xlu0 %4491
    %v4493 = vsel %vm1179, %v4430, -inf
    %4494 = vmax.xlane.f32.xlu0 %v4493
    %v4495 = vpop.xlane.xlu0 %4494
    %v4496 = vsel %vm1179, %v4484, -inf
    %4497 = vmax.xlane.f32.xlu0 %v4496
    %v4498 = vpop.xlane.xlu0 %4497
    %v4499 = vsel %vm1179, %v4487, -inf
    %4500 = vmax.xlane.f32.xlu0 %v4499
    %v4501 = vpop.xlane.xlu0 %4500
    %v4502 = vsub.f32 %v4427, %v4492
    %v4503 = vsub.f32 %v4430, %v4495
    %v4504 = vsub.f32 %v4484, %v4498
    %v4505 = vsub.f32 %v4487, %v4501
    %v4506 = vmul.f32 %v4502, 1.442695
    %v4507 = vpow.pop %v4506
    %v4508 = vmul.f32 %v4503, 1.442695
    %v4509 = vpow.pop %v4508
    %v4510 = vmul.f32 %v4504, 1.442695
    %v4511 = vpow.pop %v4510
    %v4512 = vmul.f32 %v4505, 1.442695
    %v4513 = vpow.pop %v4512
    %v4514 = vsel %vm1179, %v4507, 0.0
    %4515 = vadd.xlane.f32.xlu0 %v4514
    %v4516 = vpop.xlane.xlu0 %4515
    %v4517 = vsel %vm1179, %v4509, 0.0
    %4518 = vadd.xlane.f32.xlu0 %v4517
    %v4519 = vpop.xlane.xlu0 %4518
    %v4520 = vsel %vm1179, %v4511, 0.0
    %4521 = vadd.xlane.f32.xlu0 %v4520
    %v4522 = vpop.xlane.xlu0 %4521
    %v4523 = vsel %vm1179, %v4513, 0.0
    %4524 = vadd.xlane.f32.xlu0 %v4523
    %v4525 = vpop.xlane.xlu0 %4524
    %v4526 = vrcp.pop %v4516
    %v4527 = vrcp.pop %v4519
    %v4528 = vrcp.pop %v4522
    %v4529 = vrcp.pop %v4525
    %v4530 = vmul.f32 %v4507, %v4526
    %v4531 = vmul.f32 %v4509, %v4527
    %v4532 = vmul.f32 %v4511, %v4528
    %v4533 = vmul.f32 %v4513, %v4529
    %v4534 = vpack.c.bf16 %v4531, %v4530
    %v4535 = vpack.c.bf16 %v4533, %v4532
    %4538 = vrot.lane.b32.xlu0 %v4114, 112
    %v4539 = vpop.permute.xlu0 %4538
    %4540 = vrot.lane.b32.xlu0 %v4115, 112
    %v4541 = vpop.permute.xlu0 %4540
    %v4544 = vsel %vm1179, %v4534, 0
    %v4547 = vand.u32 %v4541, %v1259
    %4549 = vmatprep.subr.bf16.mxu0 0
    %4550 = vmatpush1.bf16.msra.mxu0 %v4539
    %4551 = vmatprep.subr.bf16.mxu0 0
    %4552 = vmatpush1.bf16.msra.mxu0 %v4547
    %4553 = vmatprep.subr.bf16.mxu0 0
    %4554 = vmatpush1.bf16.msra.mxu0 0
    %4555 = vmatprep.subr.bf16.mxu0 0
    %4556 = vmatpush1.bf16.msra.mxu0 0
    %4557 = vmatprep.subr.bf16.mxu0 0
    %4558 = vmatpush1.bf16.msra.mxu0 0
    %4559 = vmatprep.subr.bf16.mxu0 0
    %4560 = vmatpush1.bf16.msra.mxu0 0
    %4561 = vmatprep.subr.bf16.mxu0 0
    %4562 = vmatpush1.bf16.msra.mxu0 0
    %4563 = vmatprep.subr.bf16.mxu0 0
    %4564 = vmatpush1.bf16.msra.mxu0 0
    %4565 = vmatprep.subr.bf16.mxu0 0
    %4566 = vmatpush1.bf16.msra.mxu0 0
    %4567 = vmatprep.subr.bf16.mxu0 0
    %4568 = vmatpush1.bf16.msra.mxu0 0
    %4569 = vmatprep.subr.bf16.mxu0 0
    %4570 = vmatpush1.bf16.msra.mxu0 0
    %4571 = vmatprep.subr.bf16.mxu0 0
    %4572 = vmatpush1.bf16.msra.mxu0 0
    %4573 = vmatprep.subr.bf16.mxu0 0
    %4574 = vmatpush1.bf16.msra.mxu0 0
    %4575 = vmatprep.subr.bf16.mxu0 0
    %4576 = vmatpush1.bf16.msra.mxu0 0
    %4577 = vmatprep.subr.bf16.mxu0 0
    %4578 = vmatpush1.bf16.msra.mxu0 0
    %4579 = vmatprep.subr.bf16.mxu0 0
    %4580 = vmatpush1.bf16.msra.mxu0 0
    %4581 = vmatprep.mubr.bf16.mxu0 0
    %4582 = vmatmul.mubr.bf16.gmra.mrb[0].mxu0 %v4544
    %v4583 = vpop.f32.mrb[0].mxu0
    %v4584 = vadd.f32 0.0, %v4583
    %v4585 = vpop.f32.mrb[0].mxu0
    %v4586 = vpop.f32.mrb[0].mxu0
    %v4587 = vadd.f32 0.0, %v4586
    %v4588 = vpop.f32.mrb[0].mxu0
    %4589 = vdwg.mxu0
    %4592 = vrot.lane.b32.xlu0 %v4116, 112
    %v4593 = vpop.permute.xlu0 %4592
    %4594 = vrot.lane.b32.xlu0 %v4117, 112
    %v4595 = vpop.permute.xlu0 %4594
    %v4598 = vsel %vm1179, %v4535, 0
    %v4601 = vand.u32 %v4595, %v1259
    %4603 = vmatprep.subr.bf16.mxu0 0
    %4604 = vmatpush1.bf16.msra.mxu0 %v4593
    %4605 = vmatprep.subr.bf16.mxu0 0
    %4606 = vmatpush1.bf16.msra.mxu0 %v4601
    %4607 = vmatprep.subr.bf16.mxu0 0
    %4608 = vmatpush1.bf16.msra.mxu0 0
    %4609 = vmatprep.subr.bf16.mxu0 0
    %4610 = vmatpush1.bf16.msra.mxu0 0
    %4611 = vmatprep.subr.bf16.mxu0 0
    %4612 = vmatpush1.bf16.msra.mxu0 0
    %4613 = vmatprep.subr.bf16.mxu0 0
    %4614 = vmatpush1.bf16.msra.mxu0 0
    %4615 = vmatprep.subr.bf16.mxu0 0
    %4616 = vmatpush1.bf16.msra.mxu0 0
    %4617 = vmatprep.subr.bf16.mxu0 0
    %4618 = vmatpush1.bf16.msra.mxu0 0
    %4619 = vmatprep.subr.bf16.mxu0 0
    %4620 = vmatpush1.bf16.msra.mxu0 0
    %4621 = vmatprep.subr.bf16.mxu0 0
    %4622 = vmatpush1.bf16.msra.mxu0 0
    %4623 = vmatprep.subr.bf16.mxu0 0
    %4624 = vmatpush1.bf16.msra.mxu0 0
    %4625 = vmatprep.subr.bf16.mxu0 0
    %4626 = vmatpush1.bf16.msra.mxu0 0
    %4627 = vmatprep.subr.bf16.mxu0 0
    %4628 = vmatpush1.bf16.msra.mxu0 0
    %4629 = vmatprep.subr.bf16.mxu0 0
    %4630 = vmatpush1.bf16.msra.mxu0 0
    %4631 = vmatprep.subr.bf16.mxu0 0
    %4632 = vmatpush1.bf16.msra.mxu0 0
    %4633 = vmatprep.subr.bf16.mxu0 0
    %4634 = vmatpush1.bf16.msra.mxu0 0
    %4635 = vmatprep.mubr.bf16.mxu0 0
    %4636 = vmatmul.mubr.bf16.gmra.mrb[0].mxu0 %v4598
    %v4637 = vpop.f32.mrb[0].mxu0
    %v4638 = vadd.f32 0.0, %v4637
    %v4639 = vpop.f32.mrb[0].mxu0
    %v4640 = vpop.f32.mrb[0].mxu0
    %v4641 = vadd.f32 0.0, %v4640
    %v4642 = vpop.f32.mrb[0].mxu0
    %4643 = vdwg.mxu0
    %4644 = vrot.lane.b32.xlu0 %v4122, 96
    %v4645 = vpop.permute.xlu0 %4644
    %4646 = vrot.lane.b32.xlu0 %v4100, 32
    %v4647 = vpop.permute.xlu0 %4646
    %4648 = vrot.lane.b32.xlu0 %v4101, 32
    %v4649 = vpop.permute.xlu0 %4648
    %v4651 = vsel %vm1052, %v4645, 0
    %v4654 = vsel %vm1052, %v4647, 0
    %v4657 = vsel %vm1052, %v4649, 0
    %4659 = vmatprep.subr.bf16.mxu0 0
    %4660 = vmatpush1.bf16.xpose.msra.mxu0 %v4654
    %4661 = vmatprep.subr.bf16.mxu0 0
    %4662 = vmatpush1.bf16.xpose.msra.mxu0 %v4657
    %4663 = vmatprep.subr.bf16.mxu0 0
    %4664 = vmatpush1.bf16.xpose.msra.mxu0 0
    %4665 = vmatprep.subr.bf16.mxu0 0
    %4666 = vmatpush1.bf16.xpose.msra.mxu0 0
    %4667 = vmatprep.subr.bf16.mxu0 0
    %4668 = vmatpush1.bf16.xpose.msra.mxu0 0
    %4669 = vmatprep.subr.bf16.mxu0 0
    %4670 = vmatpush1.bf16.xpose.msra.mxu0 0
    %4671 = vmatprep.subr.bf16.mxu0 0
    %4672 = vmatpush1.bf16.xpose.msra.mxu0 0
    %4673 = vmatprep.subr.bf16.mxu0 0
    %4674 = vmatpush1.bf16.xpose.msra.mxu0 0
    %4675 = vmatprep.subr.bf16.mxu0 0
    %4676 = vmatpush1.bf16.xpose.msra.mxu0 0
    %4677 = vmatprep.subr.bf16.mxu0 0
    %4678 = vmatpush1.bf16.xpose.msra.mxu0 0
    %4679 = vmatprep.subr.bf16.mxu0 0
    %4680 = vmatpush1.bf16.xpose.msra.mxu0 0
    %4681 = vmatprep.subr.bf16.mxu0 0
    %4682 = vmatpush1.bf16.xpose.msra.mxu0 0
    %4683 = vmatprep.subr.bf16.mxu0 0
    %4684 = vmatpush1.bf16.xpose.msra.mxu0 0
    %4685 = vmatprep.subr.bf16.mxu0 0
    %4686 = vmatpush1.bf16.xpose.msra.mxu0 0
    %4687 = vmatprep.subr.bf16.mxu0 0
    %4688 = vmatpush1.bf16.xpose.msra.mxu0 0
    %4689 = vmatprep.subr.bf16.mxu0 0
    %4690 = vmatpush1.bf16.xpose.msra.mxu0 0
    %4691 = vmatprep.mubr.bf16.mxu0 0
    %4692 = vmatmul.mubr.bf16.gmra.mrb[0].mxu0 %v4651
    %v4693 = vpop.f32.mrb[0].mxu0
    %v4694 = vadd.f32 0.0, %v4693
    %v4695 = vpop.f32.mrb[0].mxu0
    %v4696 = vpop.f32.mrb[0].mxu0
    %v4697 = vadd.f32 0.0, %v4696
    %v4698 = vpop.f32.mrb[0].mxu0
    %4699 = vdwg.mxu0
    %4700 = vrot.lane.b32.xlu0 %v4123, 96
    %v4701 = vpop.permute.xlu0 %4700
    %4702 = vrot.lane.b32.xlu0 %v4102, 32
    %v4703 = vpop.permute.xlu0 %4702
    %4704 = vrot.lane.b32.xlu0 %v4103, 32
    %v4705 = vpop.permute.xlu0 %4704
    %v4707 = vsel %vm1052, %v4701, 0
    %v4710 = vsel %vm1052, %v4703, 0
    %v4713 = vsel %vm1052, %v4705, 0
    %4715 = vmatprep.subr.bf16.mxu0 0
    %4716 = vmatpush1.bf16.xpose.msra.mxu0 %v4710
    %4717 = vmatprep.subr.bf16.mxu0 0
    %4718 = vmatpush1.bf16.xpose.msra.mxu0 %v4713
    %4719 = vmatprep.subr.bf16.mxu0 0
    %4720 = vmatpush1.bf16.xpose.msra.mxu0 0
    %4721 = vmatprep.subr.bf16.mxu0 0
    %4722 = vmatpush1.bf16.xpose.msra.mxu0 0
    %4723 = vmatprep.subr.bf16.mxu0 0
    %4724 = vmatpush1.bf16.xpose.msra.mxu0 0
    %4725 = vmatprep.subr.bf16.mxu0 0
    %4726 = vmatpush1.bf16.xpose.msra.mxu0 0
    %4727 = vmatprep.subr.bf16.mxu0 0
    %4728 = vmatpush1.bf16.xpose.msra.mxu0 0
    %4729 = vmatprep.subr.bf16.mxu0 0
    %4730 = vmatpush1.bf16.xpose.msra.mxu0 0
    %4731 = vmatprep.subr.bf16.mxu0 0
    %4732 = vmatpush1.bf16.xpose.msra.mxu0 0
    %4733 = vmatprep.subr.bf16.mxu0 0
    %4734 = vmatpush1.bf16.xpose.msra.mxu0 0
    %4735 = vmatprep.subr.bf16.mxu0 0
    %4736 = vmatpush1.bf16.xpose.msra.mxu0 0
    %4737 = vmatprep.subr.bf16.mxu0 0
    %4738 = vmatpush1.bf16.xpose.msra.mxu0 0
    %4739 = vmatprep.subr.bf16.mxu0 0
    %4740 = vmatpush1.bf16.xpose.msra.mxu0 0
    %4741 = vmatprep.subr.bf16.mxu0 0
    %4742 = vmatpush1.bf16.xpose.msra.mxu0 0
    %4743 = vmatprep.subr.bf16.mxu0 0
    %4744 = vmatpush1.bf16.xpose.msra.mxu0 0
    %4745 = vmatprep.subr.bf16.mxu0 0
    %4746 = vmatpush1.bf16.xpose.msra.mxu0 0
    %4747 = vmatprep.mubr.bf16.mxu0 0
    %4748 = vmatmul.mubr.bf16.gmra.mrb[0].mxu0 %v4707
    %v4749 = vpop.f32.mrb[0].mxu0
    %v4750 = vadd.f32 0.0, %v4749
    %v4751 = vpop.f32.mrb[0].mxu0
    %v4752 = vpop.f32.mrb[0].mxu0
    %v4753 = vadd.f32 0.0, %v4752
    %v4754 = vpop.f32.mrb[0].mxu0
    %4755 = vdwg.mxu0
    %v4756 = vsel %vm1179, %v4694, -inf
    %4757 = vmax.xlane.f32.xlu0 %v4756
    %v4758 = vpop.xlane.xlu0 %4757
    %v4759 = vsel %vm1179, %v4697, -inf
    %4760 = vmax.xlane.f32.xlu0 %v4759
    %v4761 = vpop.xlane.xlu0 %4760
    %v4762 = vsel %vm1179, %v4750, -inf
    %4763 = vmax.xlane.f32.xlu0 %v4762
    %v4764 = vpop.xlane.xlu0 %4763
    %v4765 = vsel %vm1179, %v4753, -inf
    %4766 = vmax.xlane.f32.xlu0 %v4765
    %v4767 = vpop.xlane.xlu0 %4766
    %v4768 = vsub.f32 %v4694, %v4758
    %v4769 = vsub.f32 %v4697, %v4761
    %v4770 = vsub.f32 %v4750, %v4764
    %v4771 = vsub.f32 %v4753, %v4767
    %v4772 = vmul.f32 %v4768, 1.442695
    %v4773 = vpow.pop %v4772
    %v4774 = vmul.f32 %v4769, 1.442695
    %v4775 = vpow.pop %v4774
    %v4776 = vmul.f32 %v4770, 1.442695
    %v4777 = vpow.pop %v4776
    %v4778 = vmul.f32 %v4771, 1.442695
    %v4779 = vpow.pop %v4778
    %v4780 = vsel %vm1179, %v4773, 0.0
    %4781 = vadd.xlane.f32.xlu0 %v4780
    %v4782 = vpop.xlane.xlu0 %4781
    %v4783 = vsel %vm1179, %v4775, 0.0
    %4784 = vadd.xlane.f32.xlu0 %v4783
    %v4785 = vpop.xlane.xlu0 %4784
    %v4786 = vsel %vm1179, %v4777, 0.0
    %4787 = vadd.xlane.f32.xlu0 %v4786
    %v4788 = vpop.xlane.xlu0 %4787
    %v4789 = vsel %vm1179, %v4779, 0.0
    %4790 = vadd.xlane.f32.xlu0 %v4789
    %v4791 = vpop.xlane.xlu0 %4790
    %v4792 = vrcp.pop %v4782
    %v4793 = vrcp.pop %v4785
    %v4794 = vrcp.pop %v4788
    %v4795 = vrcp.pop %v4791
    %v4796 = vmul.f32 %v4773, %v4792
    %v4797 = vmul.f32 %v4775, %v4793
    %v4798 = vmul.f32 %v4777, %v4794
    %v4799 = vmul.f32 %v4779, %v4795
    %v4800 = vpack.c.bf16 %v4797, %v4796
    %v4801 = vpack.c.bf16 %v4799, %v4798
    %4802 = vrot.lane.b32.xlu0 %v4114, 96
    %v4803 = vpop.permute.xlu0 %4802
    %4804 = vrot.lane.b32.xlu0 %v4115, 96
    %v4805 = vpop.permute.xlu0 %4804
    %v4808 = vsel %vm1179, %v4800, 0
    %v4811 = vand.u32 %v4805, %v1259
    %4813 = vmatprep.subr.bf16.mxu0 0
    %4814 = vmatpush1.bf16.msra.mxu0 %v4803
    %4815 = vmatprep.subr.bf16.mxu0 0
    %4816 = vmatpush1.bf16.msra.mxu0 %v4811
    %4817 = vmatprep.subr.bf16.mxu0 0
    %4818 = vmatpush1.bf16.msra.mxu0 0
    %4819 = vmatprep.subr.bf16.mxu0 0
    %4820 = vmatpush1.bf16.msra.mxu0 0
    %4821 = vmatprep.subr.bf16.mxu0 0
    %4822 = vmatpush1.bf16.msra.mxu0 0
    %4823 = vmatprep.subr.bf16.mxu0 0
    %4824 = vmatpush1.bf16.msra.mxu0 0
    %4825 = vmatprep.subr.bf16.mxu0 0
    %4826 = vmatpush1.bf16.msra.mxu0 0
    %4827 = vmatprep.subr.bf16.mxu0 0
    %4828 = vmatpush1.bf16.msra.mxu0 0
    %4829 = vmatprep.subr.bf16.mxu0 0
    %4830 = vmatpush1.bf16.msra.mxu0 0
    %4831 = vmatprep.subr.bf16.mxu0 0
    %4832 = vmatpush1.bf16.msra.mxu0 0
    %4833 = vmatprep.subr.bf16.mxu0 0
    %4834 = vmatpush1.bf16.msra.mxu0 0
    %4835 = vmatprep.subr.bf16.mxu0 0
    %4836 = vmatpush1.bf16.msra.mxu0 0
    %4837 = vmatprep.subr.bf16.mxu0 0
    %4838 = vmatpush1.bf16.msra.mxu0 0
    %4839 = vmatprep.subr.bf16.mxu0 0
    %4840 = vmatpush1.bf16.msra.mxu0 0
    %4841 = vmatprep.subr.bf16.mxu0 0
    %4842 = vmatpush1.bf16.msra.mxu0 0
    %4843 = vmatprep.subr.bf16.mxu0 0
    %4844 = vmatpush1.bf16.msra.mxu0 0
    %4845 = vmatprep.mubr.bf16.mxu0 0
    %4846 = vmatmul.mubr.bf16.gmra.mrb[0].mxu0 %v4808
    %v4847 = vpop.f32.mrb[0].mxu0
    %v4848 = vadd.f32 0.0, %v4847
    %v4849 = vpop.f32.mrb[0].mxu0
    %v4850 = vpop.f32.mrb[0].mxu0
    %v4851 = vadd.f32 0.0, %v4850
    %v4852 = vpop.f32.mrb[0].mxu0
    %4853 = vdwg.mxu0
    %4854 = vrot.lane.b32.xlu0 %v4116, 96
    %v4855 = vpop.permute.xlu0 %4854
    %4856 = vrot.lane.b32.xlu0 %v4117, 96
    %v4857 = vpop.permute.xlu0 %4856
    %v4860 = vsel %vm1179, %v4801, 0
    %v4863 = vand.u32 %v4857, %v1259
    %4865 = vmatprep.subr.bf16.mxu0 0
    %4866 = vmatpush1.bf16.msra.mxu0 %v4855
    %4867 = vmatprep.subr.bf16.mxu0 0
    %4868 = vmatpush1.bf16.msra.mxu0 %v4863
    %4869 = vmatprep.subr.bf16.mxu0 0
    %4870 = vmatpush1.bf16.msra.mxu0 0
    %4871 = vmatprep.subr.bf16.mxu0 0
    %4872 = vmatpush1.bf16.msra.mxu0 0
    %4873 = vmatprep.subr.bf16.mxu0 0
    %4874 = vmatpush1.bf16.msra.mxu0 0
    %4875 = vmatprep.subr.bf16.mxu0 0
    %4876 = vmatpush1.bf16.msra.mxu0 0
    %4877 = vmatprep.subr.bf16.mxu0 0
    %4878 = vmatpush1.bf16.msra.mxu0 0
    %4879 = vmatprep.subr.bf16.mxu0 0
    %4880 = vmatpush1.bf16.msra.mxu0 0
    %4881 = vmatprep.subr.bf16.mxu0 0
    %4882 = vmatpush1.bf16.msra.mxu0 0
    %4883 = vmatprep.subr.bf16.mxu0 0
    %4884 = vmatpush1.bf16.msra.mxu0 0
    %4885 = vmatprep.subr.bf16.mxu0 0
    %4886 = vmatpush1.bf16.msra.mxu0 0
    %4887 = vmatprep.subr.bf16.mxu0 0
    %4888 = vmatpush1.bf16.msra.mxu0 0
    %4889 = vmatprep.subr.bf16.mxu0 0
    %4890 = vmatpush1.bf16.msra.mxu0 0
    %4891 = vmatprep.subr.bf16.mxu0 0
    %4892 = vmatpush1.bf16.msra.mxu0 0
    %4893 = vmatprep.subr.bf16.mxu0 0
    %4894 = vmatpush1.bf16.msra.mxu0 0
    %4895 = vmatprep.subr.bf16.mxu0 0
    %4896 = vmatpush1.bf16.msra.mxu0 0
    %4897 = vmatprep.mubr.bf16.mxu0 0
    %4898 = vmatmul.mubr.bf16.gmra.mrb[0].mxu0 %v4860
    %v4899 = vpop.f32.mrb[0].mxu0
    %v4900 = vadd.f32 0.0, %v4899
    %v4901 = vpop.f32.mrb[0].mxu0
    %v4902 = vpop.f32.mrb[0].mxu0
    %v4903 = vadd.f32 0.0, %v4902
    %v4904 = vpop.f32.mrb[0].mxu0
    %4905 = vdwg.mxu0
    %4906 = vrot.lane.b32.xlu0 %v4122, 80
    %v4907 = vpop.permute.xlu0 %4906
    %4908 = vrot.lane.b32.xlu0 %v4100, 16
    %v4909 = vpop.permute.xlu0 %4908
    %4910 = vrot.lane.b32.xlu0 %v4101, 16
    %v4911 = vpop.permute.xlu0 %4910
    %v4913 = vsel %vm1052, %v4907, 0
    %v4916 = vsel %vm1052, %v4909, 0
    %v4919 = vsel %vm1052, %v4911, 0
    %4921 = vmatprep.subr.bf16.mxu0 0
    %4922 = vmatpush1.bf16.xpose.msra.mxu0 %v4916
    %4923 = vmatprep.subr.bf16.mxu0 0
    %4924 = vmatpush1.bf16.xpose.msra.mxu0 %v4919
    %4925 = vmatprep.subr.bf16.mxu0 0
    %4926 = vmatpush1.bf16.xpose.msra.mxu0 0
    %4927 = vmatprep.subr.bf16.mxu0 0
    %4928 = vmatpush1.bf16.xpose.msra.mxu0 0
    %4929 = vmatprep.subr.bf16.mxu0 0
    %4930 = vmatpush1.bf16.xpose.msra.mxu0 0
    %4931 = vmatprep.subr.bf16.mxu0 0
    %4932 = vmatpush1.bf16.xpose.msra.mxu0 0
    %4933 = vmatprep.subr.bf16.mxu0 0
    %4934 = vmatpush1.bf16.xpose.msra.mxu0 0
    %4935 = vmatprep.subr.bf16.mxu0 0
    %4936 = vmatpush1.bf16.xpose.msra.mxu0 0
    %4937 = vmatprep.subr.bf16.mxu0 0
    %4938 = vmatpush1.bf16.xpose.msra.mxu0 0
    %4939 = vmatprep.subr.bf16.mxu0 0
    %4940 = vmatpush1.bf16.xpose.msra.mxu0 0
    %4941 = vmatprep.subr.bf16.mxu0 0
    %4942 = vmatpush1.bf16.xpose.msra.mxu0 0
    %4943 = vmatprep.subr.bf16.mxu0 0
    %4944 = vmatpush1.bf16.xpose.msra.mxu0 0
    %4945 = vmatprep.subr.bf16.mxu0 0
    %4946 = vmatpush1.bf16.xpose.msra.mxu0 0
    %4947 = vmatprep.subr.bf16.mxu0 0
    %4948 = vmatpush1.bf16.xpose.msra.mxu0 0
    %4949 = vmatprep.subr.bf16.mxu0 0
    %4950 = vmatpush1.bf16.xpose.msra.mxu0 0
    %4951 = vmatprep.subr.bf16.mxu0 0
    %4952 = vmatpush1.bf16.xpose.msra.mxu0 0
    %4953 = vmatprep.mubr.bf16.mxu0 0
    %4954 = vmatmul.mubr.bf16.gmra.mrb[0].mxu0 %v4913
    %v4955 = vpop.f32.mrb[0].mxu0
    %v4956 = vadd.f32 0.0, %v4955
    %v4957 = vpop.f32.mrb[0].mxu0
    %v4958 = vpop.f32.mrb[0].mxu0
    %v4959 = vadd.f32 0.0, %v4958
    %v4960 = vpop.f32.mrb[0].mxu0
    %4961 = vdwg.mxu0
    %4962 = vrot.lane.b32.xlu0 %v4123, 80
    %v4963 = vpop.permute.xlu0 %4962
    %4964 = vrot.lane.b32.xlu0 %v4102, 16
    %v4965 = vpop.permute.xlu0 %4964
    %4966 = vrot.lane.b32.xlu0 %v4103, 16
    %v4967 = vpop.permute.xlu0 %4966
    %v4969 = vsel %vm1052, %v4963, 0
    %v4972 = vsel %vm1052, %v4965, 0
    %v4975 = vsel %vm1052, %v4967, 0
    %4977 = vmatprep.subr.bf16.mxu0 0
    %4978 = vmatpush1.bf16.xpose.msra.mxu0 %v4972
    %4979 = vmatprep.subr.bf16.mxu0 0
    %4980 = vmatpush1.bf16.xpose.msra.mxu0 %v4975
    %4981 = vmatprep.subr.bf16.mxu0 0
    %4982 = vmatpush1.bf16.xpose.msra.mxu0 0
    %4983 = vmatprep.subr.bf16.mxu0 0
    %4984 = vmatpush1.bf16.xpose.msra.mxu0 0
    %4985 = vmatprep.subr.bf16.mxu0 0
    %4986 = vmatpush1.bf16.xpose.msra.mxu0 0
    %4987 = vmatprep.subr.bf16.mxu0 0
    %4988 = vmatpush1.bf16.xpose.msra.mxu0 0
    %4989 = vmatprep.subr.bf16.mxu0 0
    %4990 = vmatpush1.bf16.xpose.msra.mxu0 0
    %4991 = vmatprep.subr.bf16.mxu0 0
    %4992 = vmatpush1.bf16.xpose.msra.mxu0 0
    %4993 = vmatprep.subr.bf16.mxu0 0
    %4994 = vmatpush1.bf16.xpose.msra.mxu0 0
    %4995 = vmatprep.subr.bf16.mxu0 0
    %4996 = vmatpush1.bf16.xpose.msra.mxu0 0
    %4997 = vmatprep.subr.bf16.mxu0 0
    %4998 = vmatpush1.bf16.xpose.msra.mxu0 0
    %4999 = vmatprep.subr.bf16.mxu0 0
    %5000 = vmatpush1.bf16.xpose.msra.mxu0 0
    %5001 = vmatprep.subr.bf16.mxu0 0
    %5002 = vmatpush1.bf16.xpose.msra.mxu0 0
    %5003 = vmatprep.subr.bf16.mxu0 0
    %5004 = vmatpush1.bf16.xpose.msra.mxu0 0
    %5005 = vmatprep.subr.bf16.mxu0 0
    %5006 = vmatpush1.bf16.xpose.msra.mxu0 0
    %5007 = vmatprep.subr.bf16.mxu0 0
    %5008 = vmatpush1.bf16.xpose.msra.mxu0 0
    %5009 = vmatprep.mubr.bf16.mxu0 0
    %5010 = vmatmul.mubr.bf16.gmra.mrb[0].mxu0 %v4969
    %v5011 = vpop.f32.mrb[0].mxu0
    %v5012 = vadd.f32 0.0, %v5011
    %v5013 = vpop.f32.mrb[0].mxu0
    %v5014 = vpop.f32.mrb[0].mxu0
    %v5015 = vadd.f32 0.0, %v5014
    %v5016 = vpop.f32.mrb[0].mxu0
    %5017 = vdwg.mxu0
    %v5018 = vsel %vm1179, %v4956, -inf
    %5019 = vmax.xlane.f32.xlu0 %v5018
    %v5020 = vpop.xlane.xlu0 %5019
    %v5021 = vsel %vm1179, %v4959, -inf
    %5022 = vmax.xlane.f32.xlu0 %v5021
    %v5023 = vpop.xlane.xlu0 %5022
    %v5024 = vsel %vm1179, %v5012, -inf
    %5025 = vmax.xlane.f32.xlu0 %v5024
    %v5026 = vpop.xlane.xlu0 %5025
    %v5027 = vsel %vm1179, %v5015, -inf
    %5028 = vmax.xlane.f32.xlu0 %v5027
    %v5029 = vpop.xlane.xlu0 %5028
    %v5030 = vsub.f32 %v4956, %v5020
    %v5031 = vsub.f32 %v4959, %v5023
    %v5032 = vsub.f32 %v5012, %v5026
    %v5033 = vsub.f32 %v5015, %v5029
    %v5034 = vmul.f32 %v5030, 1.442695
    %v5035 = vpow.pop %v5034
    %v5036 = vmul.f32 %v5031, 1.442695
    %v5037 = vpow.pop %v5036
    %v5038 = vmul.f32 %v5032, 1.442695
    %v5039 = vpow.pop %v5038
    %v5040 = vmul.f32 %v5033, 1.442695
    %v5041 = vpow.pop %v5040
    %v5042 = vsel %vm1179, %v5035, 0.0
    %5043 = vadd.xlane.f32.xlu0 %v5042
    %v5044 = vpop.xlane.xlu0 %5043
    %v5045 = vsel %vm1179, %v5037, 0.0
    %5046 = vadd.xlane.f32.xlu0 %v5045
    %v5047 = vpop.xlane.xlu0 %5046
    %v5048 = vsel %vm1179, %v5039, 0.0
    %5049 = vadd.xlane.f32.xlu0 %v5048
    %v5050 = vpop.xlane.xlu0 %5049
    %v5051 = vsel %vm1179, %v5041, 0.0
    %5052 = vadd.xlane.f32.xlu0 %v5051
    %v5053 = vpop.xlane.xlu0 %5052
    %v5054 = vrcp.pop %v5044
    %v5055 = vrcp.pop %v5047
    %v5056 = vrcp.pop %v5050
    %v5057 = vrcp.pop %v5053
    %v5058 = vmul.f32 %v5035, %v5054
    %v5059 = vmul.f32 %v5037, %v5055
    %v5060 = vmul.f32 %v5039, %v5056
    %v5061 = vmul.f32 %v5041, %v5057
    %v5062 = vpack.c.bf16 %v5059, %v5058
    %v5063 = vpack.c.bf16 %v5061, %v5060
    %5064 = vrot.lane.b32.xlu0 %v4114, 80
    %v5065 = vpop.permute.xlu0 %5064
    %5066 = vrot.lane.b32.xlu0 %v4115, 80
    %v5067 = vpop.permute.xlu0 %5066
    %v5070 = vsel %vm1179, %v5062, 0
    %v5073 = vand.u32 %v5067, %v1259
    %5075 = vmatprep.subr.bf16.mxu0 0
    %5076 = vmatpush1.bf16.msra.mxu0 %v5065
    %5077 = vmatprep.subr.bf16.mxu0 0
    %5078 = vmatpush1.bf16.msra.mxu0 %v5073
    %5079 = vmatprep.subr.bf16.mxu0 0
    %5080 = vmatpush1.bf16.msra.mxu0 0
    %5081 = vmatprep.subr.bf16.mxu0 0
    %5082 = vmatpush1.bf16.msra.mxu0 0
    %5083 = vmatprep.subr.bf16.mxu0 0
    %5084 = vmatpush1.bf16.msra.mxu0 0
    %5085 = vmatprep.subr.bf16.mxu0 0
    %5086 = vmatpush1.bf16.msra.mxu0 0
    %5087 = vmatprep.subr.bf16.mxu0 0
    %5088 = vmatpush1.bf16.msra.mxu0 0
    %5089 = vmatprep.subr.bf16.mxu0 0
    %5090 = vmatpush1.bf16.msra.mxu0 0
    %5091 = vmatprep.subr.bf16.mxu0 0
    %5092 = vmatpush1.bf16.msra.mxu0 0
    %5093 = vmatprep.subr.bf16.mxu0 0
    %5094 = vmatpush1.bf16.msra.mxu0 0
    %5095 = vmatprep.subr.bf16.mxu0 0
    %5096 = vmatpush1.bf16.msra.mxu0 0
    %5097 = vmatprep.subr.bf16.mxu0 0
    %5098 = vmatpush1.bf16.msra.mxu0 0
    %5099 = vmatprep.subr.bf16.mxu0 0
    %5100 = vmatpush1.bf16.msra.mxu0 0
    %5101 = vmatprep.subr.bf16.mxu0 0
    %5102 = vmatpush1.bf16.msra.mxu0 0
    %5103 = vmatprep.subr.bf16.mxu0 0
    %5104 = vmatpush1.bf16.msra.mxu0 0
    %5105 = vmatprep.subr.bf16.mxu0 0
    %5106 = vmatpush1.bf16.msra.mxu0 0
    %5107 = vmatprep.mubr.bf16.mxu0 0
    %5108 = vmatmul.mubr.bf16.gmra.mrb[0].mxu0 %v5070
    %v5109 = vpop.f32.mrb[0].mxu0
    %v5110 = vadd.f32 0.0, %v5109
    %v5111 = vpop.f32.mrb[0].mxu0
    %v5112 = vpop.f32.mrb[0].mxu0
    %v5113 = vadd.f32 0.0, %v5112
    %v5114 = vpop.f32.mrb[0].mxu0
    %5115 = vdwg.mxu0
    %5116 = vrot.lane.b32.xlu0 %v4116, 80
    %v5117 = vpop.permute.xlu0 %5116
    %5118 = vrot.lane.b32.xlu0 %v4117, 80
    %v5119 = vpop.permute.xlu0 %5118
    %v5122 = vsel %vm1179, %v5063, 0
    %v5125 = vand.u32 %v5119, %v1259
    %5127 = vmatprep.subr.bf16.mxu0 0
    %5128 = vmatpush1.bf16.msra.mxu0 %v5117
    %5129 = vmatprep.subr.bf16.mxu0 0
    %5130 = vmatpush1.bf16.msra.mxu0 %v5125
    %5131 = vmatprep.subr.bf16.mxu0 0
    %5132 = vmatpush1.bf16.msra.mxu0 0
    %5133 = vmatprep.subr.bf16.mxu0 0
    %5134 = vmatpush1.bf16.msra.mxu0 0
    %5135 = vmatprep.subr.bf16.mxu0 0
    %5136 = vmatpush1.bf16.msra.mxu0 0
    %5137 = vmatprep.subr.bf16.mxu0 0
    %5138 = vmatpush1.bf16.msra.mxu0 0
    %5139 = vmatprep.subr.bf16.mxu0 0
    %5140 = vmatpush1.bf16.msra.mxu0 0
    %5141 = vmatprep.subr.bf16.mxu0 0
    %5142 = vmatpush1.bf16.msra.mxu0 0
    %5143 = vmatprep.subr.bf16.mxu0 0
    %5144 = vmatpush1.bf16.msra.mxu0 0
    %5145 = vmatprep.subr.bf16.mxu0 0
    %5146 = vmatpush1.bf16.msra.mxu0 0
    %5147 = vmatprep.subr.bf16.mxu0 0
    %5148 = vmatpush1.bf16.msra.mxu0 0
    %5149 = vmatprep.subr.bf16.mxu0 0
    %5150 = vmatpush1.bf16.msra.mxu0 0
    %5151 = vmatprep.subr.bf16.mxu0 0
    %5152 = vmatpush1.bf16.msra.mxu0 0
    %5153 = vmatprep.subr.bf16.mxu0 0
    %5154 = vmatpush1.bf16.msra.mxu0 0
    %5155 = vmatprep.subr.bf16.mxu0 0
    %5156 = vmatpush1.bf16.msra.mxu0 0
    %5157 = vmatprep.subr.bf16.mxu0 0
    %5158 = vmatpush1.bf16.msra.mxu0 0
    %5159 = vmatprep.mubr.bf16.mxu0 0
    %5160 = vmatmul.mubr.bf16.gmra.mrb[0].mxu0 %v5122
    %v5161 = vpop.f32.mrb[0].mxu0
    %v5162 = vadd.f32 0.0, %v5161
    %v5163 = vpop.f32.mrb[0].mxu0
    %v5164 = vpop.f32.mrb[0].mxu0
    %v5165 = vadd.f32 0.0, %v5164
    %v5166 = vpop.f32.mrb[0].mxu0
    %5167 = vdwg.mxu0
    %5172 = vrot.lane.b32.xlu0 %v4584, 16
    %v5173 = vpop.permute.xlu0 %5172
    %5174 = vrot.lane.b32.xlu0 %v4587, 16
    %v5175 = vpop.permute.xlu0 %5174
    %5176 = vrot.lane.b32.xlu0 %v4638, 16
    %v5177 = vpop.permute.xlu0 %5176
    %5178 = vrot.lane.b32.xlu0 %v4641, 16
    %v5179 = vpop.permute.xlu0 %5178
    %5188 = vrot.lane.b32.xlu0 %v4848, 32
    %v5189 = vpop.permute.xlu0 %5188
    %5190 = vrot.lane.b32.xlu0 %v4851, 32
    %v5191 = vpop.permute.xlu0 %5190
    %5192 = vrot.lane.b32.xlu0 %v4900, 32
    %v5193 = vpop.permute.xlu0 %5192
    %5194 = vrot.lane.b32.xlu0 %v4903, 32
    %v5195 = vpop.permute.xlu0 %5194
    %5204 = vrot.lane.b32.xlu0 %v5110, 48
    %v5205 = vpop.permute.xlu0 %5204
    %5206 = vrot.lane.b32.xlu0 %v5113, 48
    %v5207 = vpop.permute.xlu0 %5206
    %5208 = vrot.lane.b32.xlu0 %v5162, 48
    %v5209 = vpop.permute.xlu0 %5208
    %5210 = vrot.lane.b32.xlu0 %v5165, 48
    %v5211 = vpop.permute.xlu0 %5210
    %v5216 = vsel %vm1052, %v4323, %v5173
    %v5217 = vsel %vm1052, %v4326, %v5175
    %v5218 = vsel %vm1052, %v4370, %v5177
    %v5219 = vsel %vm1052, %v4373, %v5179
    %v5220 = vsel %vm228, %v5216, %v5189
    %v5221 = vsel %vm228, %v5217, %v5191
    %v5222 = vsel %vm228, %v5218, %v5193
    %v5223 = vsel %vm228, %v5219, %v5195
    %v5224 = vsel %vm2450, %v5220, %v5205
    %v5225 = vsel %vm2450, %v5221, %v5207
    %v5226 = vsel %vm2450, %v5222, %v5209
    %v5227 = vsel %vm2450, %v5223, %v5211
    %v5228 = vpack.c.bf16 %v5225, %v5224
    %v5229 = vpack.c.bf16 %v5227, %v5226
    %v5230 = vld [vmem:[%s69] sm:$0xf]
    %v5231 = vld [vmem:[%s69 + $0x4] sm:$0xf]
    %v5232 = vld [vmem:[%s69 + $0x8] sm:$0xf]
    %v5233 = vld [vmem:[%s69 + $0xc] sm:$0xf]
    %v5234 = vld [vmem:[%s69 + $0x10] sm:$0xf]
    %v5235 = vld [vmem:[%s69 + $0x14] sm:$0xf]
    %v5236 = vld [vmem:[%s69 + $0x18] sm:$0xf]
    %v5237 = vld [vmem:[%s69 + $0x1c] sm:$0xf]
    %v5238 = vld [vmem:[#allocation2] sm:$0x1]
    %v5240 = vlaneseq
    %v5241 = vshrl.u32 %v5240, 7
    %v5242 = vsub.s32 0, %v5241
    %v5243 = vrot.slane %v5238, %v5242
    %v5253 = vunpack.c.l.b16 %v5230
    %v5254 = vunpack.c.l.b16 %v5231
    %v5255 = vunpack.c.l.b16 %v5232
    %v5256 = vunpack.c.l.b16 %v5233
    %v5257 = vunpack.c.l.b16 %v5234
    %v5258 = vunpack.c.l.b16 %v5235
    %v5259 = vunpack.c.l.b16 %v5236
    %v5260 = vunpack.c.l.b16 %v5237
    %v5261 = vpack.c.b16 %v5254, %v5253
    %v5262 = vpack.c.b16 %v5256, %v5255
    %v5263 = vpack.c.b16 %v5258, %v5257
    %v5264 = vpack.c.b16 %v5260, %v5259
    %v5270 = vsel %vm399, %v5228, 0
    %v5273 = vsel %vm399, %v5229, 0
    %5275 = vmatprep.subr.bf16.mxu0 0
    %5276 = vmatpush1.bf16.msra.mxu0 %v5261
    %5277 = vmatprep.subr.bf16.mxu0 0
    %5278 = vmatpush1.bf16.msra.mxu0 %v5262
    %5279 = vmatprep.subr.bf16.mxu0 0
    %5280 = vmatpush1.bf16.msra.mxu0 %v5263
    %5281 = vmatprep.subr.bf16.mxu0 0
    %5282 = vmatpush1.bf16.msra.mxu0 %v5264
    %5283 = vmatprep.subr.bf16.mxu0 0
    %5284 = vmatpush1.bf16.msra.mxu0 0
    %5285 = vmatprep.subr.bf16.mxu0 0
    %5286 = vmatpush1.bf16.msra.mxu0 0
    %5287 = vmatprep.subr.bf16.mxu0 0
    %5288 = vmatpush1.bf16.msra.mxu0 0
    %5289 = vmatprep.subr.bf16.mxu0 0
    %5290 = vmatpush1.bf16.msra.mxu0 0
    %5291 = vmatprep.subr.bf16.mxu0 0
    %5292 = vmatpush1.bf16.msra.mxu0 0
    %5293 = vmatprep.subr.bf16.mxu0 0
    %5294 = vmatpush1.bf16.msra.mxu0 0
    %5295 = vmatprep.subr.bf16.mxu0 0
    %5296 = vmatpush1.bf16.msra.mxu0 0
    %5297 = vmatprep.subr.bf16.mxu0 0
    %5298 = vmatpush1.bf16.msra.mxu0 0
    %5299 = vmatprep.subr.bf16.mxu0 0
    %5300 = vmatpush1.bf16.msra.mxu0 0
    %5301 = vmatprep.subr.bf16.mxu0 0
    %5302 = vmatpush1.bf16.msra.mxu0 0
    %5303 = vmatprep.subr.bf16.mxu0 0
    %5304 = vmatpush1.bf16.msra.mxu0 0
    %5305 = vmatprep.subr.bf16.mxu0 0
    %5306 = vmatpush1.bf16.msra.mxu0 0
    %5307 = vmatprep.mubr.bf16.mxu0 0
    %5308 = vmatmul.mubr.bf16.gmra.mrb[0].mxu0 %v5270
    %v5309 = vpop.f32.mrb[0].mxu0
    %v5310 = vadd.f32 %v5243, %v5309
    %v5311 = vpop.f32.mrb[0].mxu0
    %v5312 = vpop.f32.mrb[0].mxu0
    %v5313 = vadd.f32 %v5243, %v5312
    %v5314 = vpop.f32.mrb[0].mxu0
    %5315 = vmatprep.mubr.bf16.mxu0 0
    %5316 = vmatmul.mubr.bf16.gmra.mrb[0].mxu0 %v5273
    %v5317 = vpop.f32.mrb[0].mxu0
    %v5318 = vadd.f32 %v5243, %v5317
    %v5319 = vpop.f32.mrb[0].mxu0
    %v5320 = vpop.f32.mrb[0].mxu0
    %v5321 = vadd.f32 %v5243, %v5320
    %v5322 = vpop.f32.mrb[0].mxu0
    %5323 = vdwg.mxu0
    %v5324 = vlaneseq
    %v5325 = vshrl.u32 %v5324, 7
    %v5326 = vsub.s32 0, %v5325
    %v5327 = vrot.slane %v3629, %v5326
    %v5328 = vmul.f32 %v5327, %v5310
    %v5329 = vmul.f32 %v5327, %v5313
    %v5330 = vmul.f32 %v5327, %v5318
    %v5331 = vmul.f32 %v5327, %v5321
    %v5332 = vadd.f32 %v3055, %v5328
    %v5333 = vadd.f32 %v3056, %v5329
    %v5334 = vadd.f32 %v3057, %v5330
    %v5335 = vadd.f32 %v3058, %v5331
    %v5336 = vsel %vm399, %v5332, 0.0
    %5337 = vadd.xlane.f32.xlu0 %v5336
    %v5338 = vpop.xlane.xlu0 %5337
    %v5339 = vsel %vm399, %v5333, 0.0
    %5340 = vadd.xlane.f32.xlu0 %v5339
    %v5341 = vpop.xlane.xlu0 %5340
    %v5342 = vsel %vm399, %v5334, 0.0
    %5343 = vadd.xlane.f32.xlu0 %v5342
    %v5344 = vpop.xlane.xlu0 %5343
    %v5345 = vsel %vm399, %v5335, 0.0
    %5346 = vadd.xlane.f32.xlu0 %v5345
    %v5347 = vpop.xlane.xlu0 %5346
    %v5348 = vmul.f32 %v5338, %v674
    %v5349 = vmul.f32 %v5341, %v674
    %v5350 = vmul.f32 %v5344, %v674
    %v5351 = vmul.f32 %v5347, %v674
    %v5352 = vsub.f32 %v5332, %v5348
    %v5353 = vsub.f32 %v5333, %v5349
    %v5354 = vsub.f32 %v5334, %v5350
    %v5355 = vsub.f32 %v5335, %v5351
    %v5356 = vmul.f32 %v5352, %v5352
    %v5357 = vmul.f32 %v5353, %v5353
    %v5358 = vmul.f32 %v5354, %v5354
    %v5359 = vmul.f32 %v5355, %v5355
    %v5360 = vsel %vm399, %v5356, 0.0
    %5361 = vadd.xlane.f32.xlu0 %v5360
    %v5362 = vpop.xlane.xlu0 %5361
    %v5363 = vsel %vm399, %v5357, 0.0
    %5364 = vadd.xlane.f32.xlu0 %v5363
    %v5365 = vpop.xlane.xlu0 %5364
    %v5366 = vsel %vm399, %v5358, 0.0
    %5367 = vadd.xlane.f32.xlu0 %v5366
    %v5368 = vpop.xlane.xlu0 %5367
    %v5369 = vsel %vm399, %v5359, 0.0
    %5370 = vadd.xlane.f32.xlu0 %v5369
    %v5371 = vpop.xlane.xlu0 %5370
    %v5372 = vmul.f32 %v5362, %v674
    %v5373 = vmul.f32 %v5365, %v674
    %v5374 = vmul.f32 %v5368, %v674
    %v5375 = vmul.f32 %v5371, %v674
    %v5376 = vadd.f32 %v5372, 1e-06
    %v5377 = vadd.f32 %v5373, 1e-06
    %v5378 = vadd.f32 %v5374, 1e-06
    %v5379 = vadd.f32 %v5375, 1e-06
    %v5380 = vrsqrt.pop %v5376
    %v5381 = vrsqrt.pop %v5377
    %v5382 = vrsqrt.pop %v5378
    %v5383 = vrsqrt.pop %v5379
    %v5384 = vmul.f32 %v5352, %v5380
    %v5385 = vmul.f32 %v5353, %v5381
    %v5386 = vmul.f32 %v5354, %v5382
    %v5387 = vmul.f32 %v5355, %v5383
    %v5388 = vadd.f32 %v3668, 1.0
    %v5389 = vlaneseq
    %v5390 = vshrl.u32 %v5389, 7
    %v5391 = vsub.s32 0, %v5390
    %v5392 = vrot.slane %v5388, %v5391
    %v5393 = vmul.f32 %v5384, %v5392
    %v5394 = vmul.f32 %v5385, %v5392
    %v5395 = vmul.f32 %v5386, %v5392
    %v5396 = vmul.f32 %v5387, %v5392
    %5398 = vrot.lane.b32.xlu0 %v5327, 64
    %v5399 = vpop.permute.xlu0 %5398
    %v5401 = vadd.f32 %v5393, %v5399
    %v5402 = vadd.f32 %v5394, %v5399
    %v5403 = vadd.f32 %v5395, %v5399
    %v5404 = vadd.f32 %v5396, %v5399
    %v5405 = vpack.c.bf16 %v5402, %v5401
    %v5406 = vpack.c.bf16 %v5404, %v5403
    %v5407 = vld [vmem:[%s73] sm:$0xff]
    %v5408 = vld [vmem:[%s73 + $0x8] sm:$0xff]
    %v5409 = vld [vmem:[%s73 + $0x10] sm:$0xff]
    %v5410 = vld [vmem:[%s73 + $0x18] sm:$0xff]
    %v5411 = vld [vmem:[%s73 + $0x20] sm:$0xff]
    %v5412 = vld [vmem:[%s73 + $0x28] sm:$0xff]
    %v5413 = vld [vmem:[%s73 + $0x30] sm:$0xff]
    %v5414 = vld [vmem:[%s73 + $0x38] sm:$0xff]
    %v5415 = vld [vmem:[%s75] sm:$0x3]
    %v5417 = vlaneseq
    %v5418 = vshrl.u32 %v5417, 7
    %v5419 = vsub.s32 0, %v5418
    %v5420 = vrot.slane %v5415, %v5419
    %v5421 = vlaneseq
    %v5422 = vshrl.u32 %v5421, 7
    %v5423 = vsub.s32 1, %v5422
    %v5424 = vrot.slane %v5415, %v5423
    %v5435 = vunpack.c.l.b16 %v5407
    %v5436 = vunpack.c.h.b16 %v5407
    %v5437 = vunpack.c.l.b16 %v5408
    %v5438 = vunpack.c.h.b16 %v5408
    %v5439 = vunpack.c.l.b16 %v5409
    %v5440 = vunpack.c.h.b16 %v5409
    %v5441 = vunpack.c.l.b16 %v5410
    %v5442 = vunpack.c.h.b16 %v5410
    %v5443 = vunpack.c.l.b16 %v5411
    %v5444 = vunpack.c.h.b16 %v5411
    %v5445 = vunpack.c.l.b16 %v5412
    %v5446 = vunpack.c.h.b16 %v5412
    %v5447 = vunpack.c.l.b16 %v5413
    %v5448 = vunpack.c.h.b16 %v5413
    %v5449 = vunpack.c.l.b16 %v5414
    %v5450 = vunpack.c.h.b16 %v5414
    %v5451 = vpack.c.b16 %v5437, %v5435
    %v5452 = vpack.c.b16 %v5438, %v5436
    %v5453 = vpack.c.b16 %v5441, %v5439
    %v5454 = vpack.c.b16 %v5442, %v5440
    %v5455 = vpack.c.b16 %v5445, %v5443
    %v5456 = vpack.c.b16 %v5446, %v5444
    %v5457 = vpack.c.b16 %v5449, %v5447
    %v5458 = vpack.c.b16 %v5450, %v5448
    %v5468 = vsel %vm399, %v5405, 0
    %v5471 = vsel %vm399, %v5406, 0
    %5473 = vmatprep.subr.bf16.mxu0 %v5452
    %5474 = vmatpush1.bf16.msra.mxu0 %v5451
    %5475 = vmatprep.subr.bf16.mxu0 %v5454
    %5476 = vmatpush1.bf16.msra.mxu0 %v5453
    %5477 = vmatprep.subr.bf16.mxu0 %v5456
    %5478 = vmatpush1.bf16.msra.mxu0 %v5455
    %5479 = vmatprep.subr.bf16.mxu0 %v5458
    %5480 = vmatpush1.bf16.msra.mxu0 %v5457
    %5481 = vmatprep.subr.bf16.mxu0 0
    %5482 = vmatpush1.bf16.msra.mxu0 0
    %5483 = vmatprep.subr.bf16.mxu0 0
    %5484 = vmatpush1.bf16.msra.mxu0 0
    %5485 = vmatprep.subr.bf16.mxu0 0
    %5486 = vmatpush1.bf16.msra.mxu0 0
    %5487 = vmatprep.subr.bf16.mxu0 0
    %5488 = vmatpush1.bf16.msra.mxu0 0
    %5489 = vmatprep.subr.bf16.mxu0 0
    %5490 = vmatpush1.bf16.msra.mxu0 0
    %5491 = vmatprep.subr.bf16.mxu0 0
    %5492 = vmatpush1.bf16.msra.mxu0 0
    %5493 = vmatprep.subr.bf16.mxu0 0
    %5494 = vmatpush1.bf16.msra.mxu0 0
    %5495 = vmatprep.subr.bf16.mxu0 0
    %5496 = vmatpush1.bf16.msra.mxu0 0
    %5497 = vmatprep.subr.bf16.mxu0 0
    %5498 = vmatpush1.bf16.msra.mxu0 0
    %5499 = vmatprep.subr.bf16.mxu0 0
    %5500 = vmatpush1.bf16.msra.mxu0 0
    %5501 = vmatprep.subr.bf16.mxu0 0
    %5502 = vmatpush1.bf16.msra.mxu0 0
    %5503 = vmatprep.subr.bf16.mxu0 0
    %5504 = vmatpush1.bf16.msra.mxu0 0
    %5505 = vmatprep.mubr.bf16.mxu0 0
    %5506 = vmatmul.mubr.bf16.gmra.mrb[0].mxu0 %v5468
    %v5507 = vpop.f32.mrb[0].mxu0
    %v5508 = vadd.f32 %v5420, %v5507
    %v5509 = vpop.f32.mrb[0].mxu0
    %v5510 = vadd.f32 %v5424, %v5509
    %v5511 = vpop.f32.mrb[0].mxu0
    %v5512 = vadd.f32 %v5420, %v5511
    %v5513 = vpop.f32.mrb[0].mxu0
    %v5514 = vadd.f32 %v5424, %v5513
    %5515 = vmatprep.mubr.bf16.mxu0 0
    %5516 = vmatmul.mubr.bf16.gmra.mrb[0].mxu0 %v5471
    %v5517 = vpop.f32.mrb[0].mxu0
    %v5518 = vadd.f32 %v5420, %v5517
    %v5519 = vpop.f32.mrb[0].mxu0
    %v5520 = vadd.f32 %v5424, %v5519
    %v5521 = vpop.f32.mrb[0].mxu0
    %v5522 = vadd.f32 %v5420, %v5521
    %v5523 = vpop.f32.mrb[0].mxu0
    %v5524 = vadd.f32 %v5424, %v5523
    %5525 = vdwg.mxu0
    %v5526 = vmul.f32 %v5508, %v5508
    %v5527 = vmul.f32 %v5510, %v5510
    %v5528 = vmul.f32 %v5512, %v5512
    %v5529 = vmul.f32 %v5514, %v5514
    %v5530 = vmul.f32 %v5518, %v5518
    %v5531 = vmul.f32 %v5520, %v5520
    %v5532 = vmul.f32 %v5522, %v5522
    %v5533 = vmul.f32 %v5524, %v5524
    %v5534 = vmul.f32 %v5508, %v5526
    %v5535 = vmul.f32 %v5510, %v5527
    %v5536 = vmul.f32 %v5512, %v5528
    %v5537 = vmul.f32 %v5514, %v5529
    %v5538 = vmul.f32 %v5518, %v5530
    %v5539 = vmul.f32 %v5520, %v5531
    %v5540 = vmul.f32 %v5522, %v5532
    %v5541 = vmul.f32 %v5524, %v5533
    %v5542 = vmul.f32 %v5534, 0.044715
    %v5543 = vmul.f32 %v5535, 0.044715
    %v5544 = vmul.f32 %v5536, 0.044715
    %v5545 = vmul.f32 %v5537, 0.044715
    %v5546 = vmul.f32 %v5538, 0.044715
    %v5547 = vmul.f32 %v5539, 0.044715
    %v5548 = vmul.f32 %v5540, 0.044715
    %v5549 = vmul.f32 %v5541, 0.044715
    %v5550 = vadd.f32 %v5508, %v5542
    %v5551 = vadd.f32 %v5510, %v5543
    %v5552 = vadd.f32 %v5512, %v5544
    %v5553 = vadd.f32 %v5514, %v5545
    %v5554 = vadd.f32 %v5518, %v5546
    %v5555 = vadd.f32 %v5520, %v5547
    %v5556 = vadd.f32 %v5522, %v5548
    %v5557 = vadd.f32 %v5524, %v5549
    %v5558 = vmul.f32 %v5550, 0.7978846
    %v5559 = vmul.f32 %v5551, 0.7978846
    %v5560 = vmul.f32 %v5552, 0.7978846
    %v5561 = vmul.f32 %v5553, 0.7978846
    %v5562 = vmul.f32 %v5554, 0.7978846
    %v5563 = vmul.f32 %v5555, 0.7978846
    %v5564 = vmul.f32 %v5556, 0.7978846
    %v5565 = vmul.f32 %v5557, 0.7978846
    %v5566 = vtanh.pop %v5558
    %v5567 = vtanh.pop %v5559
    %v5568 = vtanh.pop %v5560
    %v5569 = vtanh.pop %v5561
    %v5570 = vtanh.pop %v5562
    %v5571 = vtanh.pop %v5563
    %v5572 = vtanh.pop %v5564
    %v5573 = vtanh.pop %v5565
    %v5574 = vadd.f32 %v5566, 1.0
    %v5575 = vadd.f32 %v5567, 1.0
    %v5576 = vadd.f32 %v5568, 1.0
    %v5577 = vadd.f32 %v5569, 1.0
    %v5578 = vadd.f32 %v5570, 1.0
    %v5579 = vadd.f32 %v5571, 1.0
    %v5580 = vadd.f32 %v5572, 1.0
    %v5581 = vadd.f32 %v5573, 1.0
    %v5582 = vmul.f32 %v5574, 0.5
    %v5583 = vmul.f32 %v5575, 0.5
    %v5584 = vmul.f32 %v5576, 0.5
    %v5585 = vmul.f32 %v5577, 0.5
    %v5586 = vmul.f32 %v5578, 0.5
    %v5587 = vmul.f32 %v5579, 0.5
    %v5588 = vmul.f32 %v5580, 0.5
    %v5589 = vmul.f32 %v5581, 0.5
    %v5590 = vmul.f32 %v5508, %v5582
    %v5591 = vmul.f32 %v5510, %v5583
    %v5592 = vmul.f32 %v5512, %v5584
    %v5593 = vmul.f32 %v5514, %v5585
    %v5594 = vmul.f32 %v5518, %v5586
    %v5595 = vmul.f32 %v5520, %v5587
    %v5596 = vmul.f32 %v5522, %v5588
    %v5597 = vmul.f32 %v5524, %v5589
    %v5598 = vpack.c.bf16 %v5592, %v5590
    %v5599 = vpack.c.bf16 %v5593, %v5591
    %v5600 = vpack.c.bf16 %v5596, %v5594
    %v5601 = vpack.c.bf16 %v5597, %v5595
    %v5602 = vld [vmem:[%s77] sm:$0xf]
    %v5603 = vld [vmem:[%s77 + $0x4] sm:$0xf]
    %v5604 = vld [vmem:[%s77 + $0x8] sm:$0xf]
    %v5605 = vld [vmem:[%s77 + $0xc] sm:$0xf]
    %v5606 = vld [vmem:[%s77 + $0x10] sm:$0xf]
    %v5607 = vld [vmem:[%s77 + $0x14] sm:$0xf]
    %v5608 = vld [vmem:[%s77 + $0x18] sm:$0xf]
    %v5609 = vld [vmem:[%s77 + $0x1c] sm:$0xf]
    %v5610 = vld [vmem:[%s77 + $0x20] sm:$0xf]
    %v5611 = vld [vmem:[%s77 + $0x24] sm:$0xf]
    %v5612 = vld [vmem:[%s77 + $0x28] sm:$0xf]
    %v5613 = vld [vmem:[%s77 + $0x2c] sm:$0xf]
    %v5614 = vld [vmem:[%s77 + $0x30] sm:$0xf]
    %v5615 = vld [vmem:[%s77 + $0x34] sm:$0xf]
    %v5616 = vld [vmem:[%s77 + $0x38] sm:$0xf]
    %v5617 = vld [vmem:[%s77 + $0x3c] sm:$0xf]
    %v5618 = vld [vmem:[%s77 + $0x40] sm:$0xf]
    %v5619 = vld [vmem:[%s77 + $0x44] sm:$0xf]
    %v5620 = vld [vmem:[%s77 + $0x48] sm:$0xf]
    %v5621 = vld [vmem:[%s77 + $0x4c] sm:$0xf]
    %v5622 = vld [vmem:[%s77 + $0x50] sm:$0xf]
    %v5623 = vld [vmem:[%s77 + $0x54] sm:$0xf]
    %v5624 = vld [vmem:[%s77 + $0x58] sm:$0xf]
    %v5625 = vld [vmem:[%s77 + $0x5c] sm:$0xf]
    %v5626 = vld [vmem:[%s77 + $0x60] sm:$0xf]
    %v5627 = vld [vmem:[%s77 + $0x64] sm:$0xf]
    %v5628 = vld [vmem:[%s77 + $0x68] sm:$0xf]
    %v5629 = vld [vmem:[%s77 + $0x6c] sm:$0xf]
    %v5630 = vld [vmem:[%s77 + $0x70] sm:$0xf]
    %v5631 = vld [vmem:[%s77 + $0x74] sm:$0xf]
    %v5632 = vld [vmem:[%s77 + $0x78] sm:$0xf]
    %v5633 = vld [vmem:[%s77 + $0x7c] sm:$0xf]
    %v5634 = vld [vmem:[#allocation4] sm:$0x1]
    %v5636 = vlaneseq
    %v5637 = vshrl.u32 %v5636, 7
    %v5638 = vsub.s32 0, %v5637
    %v5639 = vrot.slane %v5634, %v5638
    %v5673 = vunpack.c.l.b16 %v5602
    %v5674 = vunpack.c.l.b16 %v5603
    %v5675 = vunpack.c.l.b16 %v5604
    %v5676 = vunpack.c.l.b16 %v5605
    %v5677 = vunpack.c.l.b16 %v5606
    %v5678 = vunpack.c.l.b16 %v5607
    %v5679 = vunpack.c.l.b16 %v5608
    %v5680 = vunpack.c.l.b16 %v5609
    %v5681 = vunpack.c.l.b16 %v5610
    %v5682 = vunpack.c.l.b16 %v5611
    %v5683 = vunpack.c.l.b16 %v5612
    %v5684 = vunpack.c.l.b16 %v5613
    %v5685 = vunpack.c.l.b16 %v5614
    %v5686 = vunpack.c.l.b16 %v5615
    %v5687 = vunpack.c.l.b16 %v5616
    %v5688 = vunpack.c.l.b16 %v5617
    %v5689 = vunpack.c.l.b16 %v5618
    %v5690 = vunpack.c.l.b16 %v5619
    %v5691 = vunpack.c.l.b16 %v5620
    %v5692 = vunpack.c.l.b16 %v5621
    %v5693 = vunpack.c.l.b16 %v5622
    %v5694 = vunpack.c.l.b16 %v5623
    %v5695 = vunpack.c.l.b16 %v5624
    %v5696 = vunpack.c.l.b16 %v5625
    %v5697 = vunpack.c.l.b16 %v5626
    %v5698 = vunpack.c.l.b16 %v5627
    %v5699 = vunpack.c.l.b16 %v5628
    %v5700 = vunpack.c.l.b16 %v5629
    %v5701 = vunpack.c.l.b16 %v5630
    %v5702 = vunpack.c.l.b16 %v5631
    %v5703 = vunpack.c.l.b16 %v5632
    %v5704 = vunpack.c.l.b16 %v5633
    %v5705 = vpack.c.b16 %v5674, %v5673
    %v5706 = vpack.c.b16 %v5676, %v5675
    %v5707 = vpack.c.b16 %v5678, %v5677
    %v5708 = vpack.c.b16 %v5680, %v5679
    %v5709 = vpack.c.b16 %v5682, %v5681
    %v5710 = vpack.c.b16 %v5684, %v5683
    %v5711 = vpack.c.b16 %v5686, %v5685
    %v5712 = vpack.c.b16 %v5688, %v5687
    %v5713 = vpack.c.b16 %v5690, %v5689
    %v5714 = vpack.c.b16 %v5692, %v5691
    %v5715 = vpack.c.b16 %v5694, %v5693
    %v5716 = vpack.c.b16 %v5696, %v5695
    %v5717 = vpack.c.b16 %v5698, %v5697
    %v5718 = vpack.c.b16 %v5700, %v5699
    %v5719 = vpack.c.b16 %v5702, %v5701
    %v5720 = vpack.c.b16 %v5704, %v5703
    %5737 = vmatprep.subr.bf16.mxu0 0
    %5738 = vmatpush1.bf16.msra.mxu0 %v5705
    %5739 = vmatprep.subr.bf16.mxu0 0
    %5740 = vmatpush1.bf16.msra.mxu0 %v5706
    %5741 = vmatprep.subr.bf16.mxu0 0
    %5742 = vmatpush1.bf16.msra.mxu0 %v5707
    %5743 = vmatprep.subr.bf16.mxu0 0
    %5744 = vmatpush1.bf16.msra.mxu0 %v5708
    %5745 = vmatprep.subr.bf16.mxu0 0
    %5746 = vmatpush1.bf16.msra.mxu0 %v5709
    %5747 = vmatprep.subr.bf16.mxu0 0
    %5748 = vmatpush1.bf16.msra.mxu0 %v5710
    %5749 = vmatprep.subr.bf16.mxu0 0
    %5750 = vmatpush1.bf16.msra.mxu0 %v5711
    %5751 = vmatprep.subr.bf16.mxu0 0
    %5752 = vmatpush1.bf16.msra.mxu0 %v5712
    %5753 = vmatprep.subr.bf16.mxu0 0
    %5754 = vmatpush1.bf16.msra.mxu0 %v5713
    %5755 = vmatprep.subr.bf16.mxu0 0
    %5756 = vmatpush1.bf16.msra.mxu0 %v5714
    %5757 = vmatprep.subr.bf16.mxu0 0
    %5758 = vmatpush1.bf16.msra.mxu0 %v5715
    %5759 = vmatprep.subr.bf16.mxu0 0
    %5760 = vmatpush1.bf16.msra.mxu0 %v5716
    %5761 = vmatprep.subr.bf16.mxu0 0
    %5762 = vmatpush1.bf16.msra.mxu0 %v5717
    %5763 = vmatprep.subr.bf16.mxu0 0
    %5764 = vmatpush1.bf16.msra.mxu0 %v5718
    %5765 = vmatprep.subr.bf16.mxu0 0
    %5766 = vmatpush1.bf16.msra.mxu0 %v5719
    %5767 = vmatprep.subr.bf16.mxu0 0
    %5768 = vmatpush1.bf16.msra.mxu0 %v5720
    %5769 = vmatprep.mubr.bf16.mxu0 %v5599
    %5770 = vmatmul.mubr.bf16.gmra.mrb[0].mxu0 %v5598
    %v5771 = vpop.f32.mrb[0].mxu0
    %v5772 = vadd.f32 %v5639, %v5771
    %v5773 = vpop.f32.mrb[0].mxu0
    %v5774 = vpop.f32.mrb[0].mxu0
    %v5775 = vadd.f32 %v5639, %v5774
    %v5776 = vpop.f32.mrb[0].mxu0
    %5777 = vmatprep.mubr.bf16.mxu0 %v5601
    %5778 = vmatmul.mubr.bf16.gmra.mrb[0].mxu0 %v5600
    %v5779 = vpop.f32.mrb[0].mxu0
    %v5780 = vadd.f32 %v5639, %v5779
    %v5781 = vpop.f32.mrb[0].mxu0
    %v5782 = vpop.f32.mrb[0].mxu0
    %v5783 = vadd.f32 %v5639, %v5782
    %v5784 = vpop.f32.mrb[0].mxu0
    %5785 = vdwg.mxu0
    %v5786 = vlaneseq
    %v5787 = vshrl.u32 %v5786, 7
    %v5788 = vsub.s32 0, %v5787
    %v5789 = vrot.slane %v3668, %v5788
    %5794 = vrot.lane.b32.xlu0 %v5772, 64
    %v5795 = vpop.permute.xlu0 %5794
    %5796 = vrot.lane.b32.xlu0 %v5775, 64
    %v5797 = vpop.permute.xlu0 %5796
    %5798 = vrot.lane.b32.xlu0 %v5780, 64
    %v5799 = vpop.permute.xlu0 %5798
    %5800 = vrot.lane.b32.xlu0 %v5783, 64
    %v5801 = vpop.permute.xlu0 %5800
    %v5806 = vmul.f32 %v5789, %v5795
    %v5807 = vmul.f32 %v5789, %v5797
    %v5808 = vmul.f32 %v5789, %v5799
    %v5809 = vmul.f32 %v5789, %v5801
    %5814 = vrot.lane.b32.xlu0 %v5806, 64
    %v5815 = vpop.permute.xlu0 %5814
    %5816 = vrot.lane.b32.xlu0 %v5807, 64
    %v5817 = vpop.permute.xlu0 %5816
    %5818 = vrot.lane.b32.xlu0 %v5808, 64
    %v5819 = vpop.permute.xlu0 %5818
    %5820 = vrot.lane.b32.xlu0 %v5809, 64
    %v5821 = vpop.permute.xlu0 %5820
    %v5826 = vadd.f32 %v5332, %v5815
    %v5827 = vadd.f32 %v5333, %v5817
    %v5828 = vadd.f32 %v5334, %v5819
    %v5829 = vadd.f32 %v5335, %v5821
    %5834 = vrot.lane.b32.xlu0 %v5328, 64
    %v5835 = vpop.permute.xlu0 %5834
    %5836 = vrot.lane.b32.xlu0 %v5329, 64
    %v5837 = vpop.permute.xlu0 %5836
    %5838 = vrot.lane.b32.xlu0 %v5330, 64
    %v5839 = vpop.permute.xlu0 %5838
    %5840 = vrot.lane.b32.xlu0 %v5331, 64
    %v5841 = vpop.permute.xlu0 %5840
    %5850 = vrot.lane.b32.xlu0 %v5826, 64
    %v5851 = vpop.permute.xlu0 %5850
    %5852 = vrot.lane.b32.xlu0 %v5827, 64
    %v5853 = vpop.permute.xlu0 %5852
    %5854 = vrot.lane.b32.xlu0 %v5828, 64
    %v5855 = vpop.permute.xlu0 %5854
    %5856 = vrot.lane.b32.xlu0 %v5829, 64
    %v5857 = vpop.permute.xlu0 %5856
    %v5862 = vsel %vm399, %v2557, %v3035
    %v5863 = vsel %vm399, %v2558, %v3036
    %v5864 = vsel %vm399, %v2559, %v3037
    %v5865 = vsel %vm399, %v2560, %v3038
    %v5866 = vsel %vm399, %v3055, %v5835
    %v5867 = vsel %vm399, %v3056, %v5837
    %v5868 = vsel %vm399, %v3057, %v5839
    %v5869 = vsel %vm399, %v3058, %v5841
    %v5870 = vsel %vm399, %v5815, %v5851
    %v5871 = vsel %vm399, %v5817, %v5853
    %v5872 = vsel %vm399, %v5819, %v5855
    %v5873 = vsel %vm399, %v5821, %v5857
    %v5874 = vpack.c.bf16 %v5863, %v5862
    %v5875 = vpack.c.bf16 %v5867, %v5866
    %v5876 = vpack.c.bf16 %v5871, %v5870
    %v5877 = vpack.c.bf16 %v5865, %v5864
    %v5878 = vpack.c.bf16 %v5869, %v5868
    %v5879 = vpack.c.bf16 %v5873, %v5872
    %v5886 = vunpack.c.l.b16 %v5874
    %v5887 = vunpack.c.l.b16 %v5875
    %v5888 = vunpack.c.l.b16 %v5876
    %v5889 = vunpack.c.h.b16 %v5874
    %v5890 = vunpack.c.h.b16 %v5875
    %v5891 = vunpack.c.h.b16 %v5876
    %v5892 = vunpack.c.l.b16 %v5877
    %v5893 = vunpack.c.l.b16 %v5878
    %v5894 = vunpack.c.l.b16 %v5879
    %v5895 = vunpack.c.h.b16 %v5877
    %v5896 = vunpack.c.h.b16 %v5878
    %v5897 = vunpack.c.h.b16 %v5879
    %v5898 = vpack.c.b16 %v5887, %v5886
    %v5899 = vpack.c.b16 %v5888, %v5888
    %v5900 = vpack.c.b16 %v5890, %v5889
    %v5901 = vpack.c.b16 %v5891, %v5891
    %v5902 = vpack.c.b16 %v5893, %v5892
    %v5903 = vpack.c.b16 %v5894, %v5894
    %v5904 = vpack.c.b16 %v5896, %v5895
    %v5905 = vpack.c.b16 %v5897, %v5897
    %5914 = vst [vmem:[%s81] sm:$0xff] %v5898
    %5915 = vst [vmem:[%s81 + $0x8] sm:$0xf] %v5899
    %5916 = vst [vmem:[%s81 + $0xc] sm:$0xff] %v5900
    %5917 = vst [vmem:[%s81 + $0x14] sm:$0xf] %v5901
    %5918 = vst [vmem:[%s81 + $0x18] sm:$0xff] %v5902
    %5919 = vst [vmem:[%s81 + $0x20] sm:$0xf] %v5903
    %5920 = vst [vmem:[%s81 + $0x24] sm:$0xff] %v5904
    %5921 = vst [vmem:[%s81 + $0x2c] sm:$0xf] %v5905
    // Predicated region
    $region170: #{stable_diffusion3_forward.5} parent=1 // pred_check
      _
    $region171: #{stable_diffusion3_forward.5} parent=1 // pred_check_branch
      %5923 = sbr.rel (0) target = $region173
    $region172: #{stable_diffusion3_forward.5} parent=1 // pred_region
      _
    $region173: #{stable_diffusion3_forward.5} parent=1 // pred_fallthru
      _
    // Predicated region
    $region174: #{stable_diffusion3_forward.5} parent=1 // pred_check
      _
    $region175: #{stable_diffusion3_forward.5} parent=1 // pred_check_branch
      %5925 = sbr.rel (0) target = $region177
    $region176: #{stable_diffusion3_forward.5} parent=1 // pred_region
      _
    $region177: #{stable_diffusion3_forward.5} parent=1 // pred_fallthru
      _
    %5926 = vsyncpa [#allocation3], 1
    %5927 = vsyncpa [#allocation5], 1

</llo_original>
